<compile_context>
chip_gen: v7x
topology: tpu7x:2x2x1
jax: 0.10.0
libtpu: 0.0.40
codegen_flags: <defaults>
</compile_context>

<pallas_src>
import math
import functools

import jax
import jax.numpy as jnp
from jax import lax
from jax.experimental import pallas as pl
from jax.experimental.pallas import tpu as pltpu


# f32-accurate matmuls on every backend (TPU MXU multi-pass, CPU native f32).
# This is what keeps the kernel and the plain-JAX reference numerically
# comparable regardless of where each one executes.
_HI = jax.lax.Precision.HIGHEST
_DOT = dict(preferred_element_type=jnp.float32, precision=_HI)


def _num_tensorcores_per_chip() -> int:
    """1 program on single-TC chips (v5e/v6e), 2 on v7x (2 TCs/chip)."""
    try:
        kind = jax.devices()[0].device_kind.lower()
        if "v7" in kind:
            return 2
    except Exception:
        pass
    return 1


def make_attention_kernel(heads: int, head_dim: int, batch_per_block: int,
                          seq_len: int):
    scale = 1.0 / math.sqrt(head_dim)
    # scores[s, t] = sum_d Qh[s, d] * Kh[t, d]  (contract dim 1 of both):
    # MXU matmul with transposed-RHS feed; no explicit K transpose is built.
    score_dnums = (((1,), (1,)), ((), ()))

    def kernel(x_ref, wq_ref, wk_ref, wv_ref, wo_ref, o_ref, ctx_ref):
        x = x_ref[...]                     # (rows, D), rows = batch_per_block*S
        Wq = wq_ref[...]                   # (D, D)
        Wk = wk_ref[...]
        Wv = wv_ref[...]
        Wo = wo_ref[...]

        # One projection matmul per weight for all rows of this program
        # (batch folded into sublanes).  The attention scale is folded into Q
        # once: a single VPU pass over (rows, D) instead of H passes over
        # (S, S) score tiles.
        Q = jnp.dot(x, Wq, **_DOT) * scale
        K = jnp.dot(x, Wk, **_DOT)
        V = jnp.dot(x, Wv, **_DOT)

        # Static, fully unrolled (batch, head) loop — only static slices, no
        # in-kernel reshape/transpose/concat.  Fine at 4 iterations; at real
        # sizes switch to lax.fori_loop(..., unroll=True) over heads (or a
        # grid axis) so live ranges stay bounded.
        for b in range(batch_per_block):
            r0 = b * seq_len
            for h in range(heads):
                c0 = h * head_dim
                Qh = Q[r0:r0 + seq_len, c0:c0 + head_dim]      # (S, hd)
                Kh = K[r0:r0 + seq_len, c0:c0 + head_dim]      # (S, hd)
                Vh = V[r0:r0 + seq_len, c0:c0 + head_dim]      # (S, hd)

                scores = lax.dot_general(
                    Qh, Kh, dimension_numbers=score_dnums, **_DOT)  # (S, S)

                # Numerically stable softmax, all in f32, exact divide
                # (approx EUP reciprocal only cost accuracy at this size).
                scores = scores - jnp.max(scores, axis=-1, keepdims=True)
                e = jnp.exp(scores)
                attn = e / jnp.sum(e, axis=-1, keepdims=True)

                # Per-head context goes into its 8-lane slab of the (rows, D)
                # scratch; the "concat" is just these static-offset writes.
                ctx_ref[r0:r0 + seq_len, c0:c0 + head_dim] = jnp.dot(
                    attn, Vh, **_DOT)

        # ONE fc_out matmul for every row of this program (instead of H tiny
        # K=8 matmuls + adds per batch), and ONE full-block store of o_ref
        # (lane-dense as far as D allows; with D >= 128 it becomes an
        # unmasked vst automatically).
        o_ref[...] = jnp.dot(ctx_ref[...], Wo, **_DOT)

    return kernel


def simple_transformer_forward(x, W_q, W_k, W_v, fc_out, heads: int,
                               batch_blocks: int | None = None):
    B, S, D = x.shape
    assert D % heads == 0
    head_dim = D // heads

    if batch_blocks is None:
        # grid=(1,) on v5e/v6e (single TensorCore: an extra program is a pure
        # serial grid step and halves the projection matmul M); grid=(2,) only
        # on v7x where the "parallel" axis can shard across the two TCs.
        # TODO(synk): on v7x, verify via the Mosaic dump that the parallel
        # axis actually shards across TensorCores; otherwise use
        # pltpu.CORE_PARALLEL / pl.core_map.
        batch_blocks = min(B, _num_tensorcores_per_chip())
    assert B % batch_blocks == 0
    batch_per_block = B // batch_blocks
    rows = batch_per_block * S

    # Fold batch into the row (sublane) dimension for the projections.
    x2 = x.reshape(B * S, D)

    kernel = make_attention_kernel(heads, head_dim, batch_per_block, S)

    # Weights are tiny at D=32; constant-index full blocks are fine.  At large
    # D: bf16 inputs, pipeline_mode=pl.Buffered(1) (or load-once scratch), and
    # a K-tiled "arbitrary" axis sized against v7x's 64 MiB VMEM.
    weight_spec = pl.BlockSpec((D, D), lambda i: (0, 0))

    out2 = pl.pallas_call(
        kernel,
        out_shape=jax.ShapeDtypeStruct((B * S, D), jnp.float32),
        grid=(batch_blocks,),
        in_specs=[
            pl.BlockSpec((rows, D), lambda i: (i, 0)),
            weight_spec, weight_spec, weight_spec, weight_spec,
        ],
        out_specs=pl.BlockSpec((rows, D), lambda i: (i, 0)),
        scratch_shapes=[pltpu.VMEM((rows, D), jnp.float32)],
        compiler_params=pltpu.CompilerParams(
            dimension_semantics=("parallel",)),
    )(x2, W_q, W_k, W_v, fc_out)

    return out2.reshape(B, S, D)


def reference_forward(x, W_q, W_k, W_v, fc_out, heads: int):
    """Pure-JAX reference mirroring the PyTorch forward exactly (f32-accurate)."""
    B, S, D = x.shape
    hd = D // heads
    Q = jnp.dot(x, W_q, precision=_HI)
    K = jnp.dot(x, W_k, precision=_HI)
    V = jnp.dot(x, W_v, precision=_HI)
    Qh = Q.reshape(B, S, heads, hd).transpose(0, 2, 1, 3)      # (B, H, S, hd)
    Kh = K.reshape(B, S, heads, hd).transpose(0, 2, 3, 1)      # (B, H, hd, S)
    Vh = V.reshape(B, S, heads, hd).transpose(0, 2, 1, 3)      # (B, H, S, hd)
    scores = jnp.einsum("bhsd,bhdt->bhst", Qh, Kh,
                        precision=_HI) / math.sqrt(hd)
    attn = jax.nn.softmax(scores, axis=-1)
    head_out = jnp.einsum("bhst,bhtd->bhsd", attn, Vh, precision=_HI)
    head_out = head_out.transpose(0, 2, 1, 3).reshape(B, S, D)
    return jnp.dot(head_out, fc_out, precision=_HI)


if __name__ == "__main__":
    # Small shapes consistent with the module: batch=2, seq=8, d_model=32, heads=4.
    B, S, D, H = 2, 8, 32, 4

    key = jax.random.PRNGKey(0)
    kx, kq, kk, kv, ko = jax.random.split(key, 5)

    x = jax.random.normal(kx, (B, S, D), dtype=jnp.float32)
    # Gaussian weights scaled by 1/sqrt(D): keeps attention logits O(1) so the
    # kernel-vs-reference comparison is well conditioned on every backend.
    # The kernel itself is scale-agnostic (same math as the PyTorch module).
    w_scale = 1.0 / math.sqrt(D)
    W_q = jax.random.normal(kq, (D, D), dtype=jnp.float32) * w_scale
    W_k = jax.random.normal(kk, (D, D), dtype=jnp.float32) * w_scale
    W_v = jax.random.normal(kv, (D, D), dtype=jnp.float32) * w_scale
    fc_out = jax.random.normal(ko, (D, D), dtype=jnp.float32) * w_scale

    fwd = jax.jit(functools.partial(simple_transformer_forward, heads=H))
    out = jax.block_until_ready(fwd(x, W_q, W_k, W_v, fc_out))

    ref = reference_forward(x, W_q, W_k, W_v, fc_out, heads=H)
    assert out.shape == (B, S, D)
    max_err = float(jnp.max(jnp.abs(out - ref)))
    assert jnp.allclose(out, ref, atol=2e-3, rtol=2e-3), (
        f"mismatch vs reference (max abs err {max_err:.3e})")

    print("KERNEL_OK")
</pallas_src>

<mosaic_0001>
module attributes {stable_mosaic.version = 11 : i64} {
  func.func @kernel(%arg0: i32, %arg1: memref<16x32xf32, #tpu.memory_space<vmem>>, %arg2: memref<32x32xf32, #tpu.memory_space<vmem>>, %arg3: memref<32x32xf32, #tpu.memory_space<vmem>>, %arg4: memref<32x32xf32, #tpu.memory_space<vmem>>, %arg5: memref<32x32xf32, #tpu.memory_space<vmem>>, %arg6: memref<16x32xf32, #tpu.memory_space<vmem>>, %arg7: memref<16x32xf32, #tpu.memory_space<vmem>>) attributes {dimension_semantics = [#tpu.dimension_semantics<parallel>], iteration_bounds = array<i64: 1>, scalar_prefetch = 0 : i64, scratch_operands = 1 : i64, tpu.core_type = #tpu.core_type<tc>, window_params = [{transform_indices = @transform_0, window_bounds = array<i64: 16, 32>}, {pipeline_mode = #tpu.pipeline_mode<synchronous>, transform_indices = @transform_1, window_bounds = array<i64: 32, 32>}, {pipeline_mode = #tpu.pipeline_mode<synchronous>, transform_indices = @transform_2, window_bounds = array<i64: 32, 32>}, {pipeline_mode = #tpu.pipeline_mode<synchronous>, transform_indices = @transform_3, window_bounds = array<i64: 32, 32>}, {pipeline_mode = #tpu.pipeline_mode<synchronous>, transform_indices = @transform_4, window_bounds = array<i64: 32, 32>}, {transform_indices = @transform_5, window_bounds = array<i64: 16, 32>}]} {
    %c0 = arith.constant 0 : index
    %c0_0 = arith.constant 0 : index
    %0 = vector.load %arg1[%c0, %c0_0] : memref<16x32xf32, #tpu.memory_space<vmem>>, vector<16x32xf32>
    %c0_1 = arith.constant 0 : index
    %c0_2 = arith.constant 0 : index
    %1 = vector.load %arg2[%c0_1, %c0_2] : memref<32x32xf32, #tpu.memory_space<vmem>>, vector<32x32xf32>
    %c0_3 = arith.constant 0 : index
    %c0_4 = arith.constant 0 : index
    %2 = vector.load %arg3[%c0_3, %c0_4] : memref<32x32xf32, #tpu.memory_space<vmem>>, vector<32x32xf32>
    %c0_5 = arith.constant 0 : index
    %c0_6 = arith.constant 0 : index
    %3 = vector.load %arg4[%c0_5, %c0_6] : memref<32x32xf32, #tpu.memory_space<vmem>>, vector<32x32xf32>
    %c0_7 = arith.constant 0 : index
    %c0_8 = arith.constant 0 : index
    %4 = vector.load %arg5[%c0_7, %c0_8] : memref<32x32xf32, #tpu.memory_space<vmem>>, vector<32x32xf32>
    %cst = arith.constant dense<0.000000e+00> : vector<16x32xf32>
    %5 = tpu.matmul %0, %1, %cst {dimension_numbers = #tpu.dot_dimension_numbers<[1], [0], [0], [1], [0, 0, 1, 1], [], []>, precision = #tpu.contract_precision<fp32>} : vector<16x32xf32>, vector<32x32xf32>, vector<16x32xf32> -> vector<16x32xf32>
    %cst_9 = arith.constant 0.353553385 : f32
    %6 = vector.broadcast %cst_9 : f32 to vector<16x32xf32>
    %7 = arith.mulf %5, %6 : vector<16x32xf32>
    %cst_10 = arith.constant dense<0.000000e+00> : vector<16x32xf32>
    %8 = tpu.matmul %0, %2, %cst_10 {dimension_numbers = #tpu.dot_dimension_numbers<[1], [0], [0], [1], [0, 0, 1, 1], [], []>, precision = #tpu.contract_precision<fp32>} : vector<16x32xf32>, vector<32x32xf32>, vector<16x32xf32> -> vector<16x32xf32>
    %cst_11 = arith.constant dense<0.000000e+00> : vector<16x32xf32>
    %9 = tpu.matmul %0, %3, %cst_11 {dimension_numbers = #tpu.dot_dimension_numbers<[1], [0], [0], [1], [0, 0, 1, 1], [], []>, precision = #tpu.contract_precision<fp32>} : vector<16x32xf32>, vector<32x32xf32>, vector<16x32xf32> -> vector<16x32xf32>
    %10 = vector.extract_strided_slice %7 {offsets = [0, 0], sizes = [8, 8], strides = [1, 1]} : vector<16x32xf32> to vector<8x8xf32>
    %11 = vector.extract_strided_slice %8 {offsets = [0, 0], sizes = [8, 8], strides = [1, 1]} : vector<16x32xf32> to vector<8x8xf32>
    %12 = vector.extract_strided_slice %9 {offsets = [0, 0], sizes = [8, 8], strides = [1, 1]} : vector<16x32xf32> to vector<8x8xf32>
    %cst_12 = arith.constant dense<0.000000e+00> : vector<8x8xf32>
    %13 = tpu.matmul %10, %11, %cst_12 {dimension_numbers = #tpu.dot_dimension_numbers<[1], [1], [0], [0], [0, 0, 1, 0], [], []>, precision = #tpu.contract_precision<fp32>} : vector<8x8xf32>, vector<8x8xf32>, vector<8x8xf32> -> vector<8x8xf32>
    %cst_13 = arith.constant dense<0xFF800000> : vector<8xf32>
    %14 = vector.multi_reduction <maximumf>, %13, %cst_13 [1] : vector<8x8xf32> to vector<8xf32>
    %15 = vector.shape_cast %14 : vector<8xf32> to vector<8x1xf32>
    %16 = vector.broadcast %15 : vector<8x1xf32> to vector<8x8xf32>
    %17 = arith.subf %13, %16 : vector<8x8xf32>
    %18 = math.exp %17 : vector<8x8xf32>
    %cst_14 = arith.constant dense<0.000000e+00> : vector<8xf32>
    %19 = vector.multi_reduction <add>, %18, %cst_14 [1] : vector<8x8xf32> to vector<8xf32>
    %20 = vector.shape_cast %19 : vector<8xf32> to vector<8x1xf32>
    %21 = vector.broadcast %20 : vector<8x1xf32> to vector<8x8xf32>
    %22 = arith.divf %18, %21 : vector<8x8xf32>
    %cst_15 = arith.constant dense<0.000000e+00> : vector<8x8xf32>
    %23 = tpu.matmul %22, %12, %cst_15 {dimension_numbers = #tpu.dot_dimension_numbers<[1], [0], [0], [1], [0, 0, 1, 1], [], []>, precision = #tpu.contract_precision<fp32>} : vector<8x8xf32>, vector<8x8xf32>, vector<8x8xf32> -> vector<8x8xf32>
    %c0_16 = arith.constant 0 : index
    %c0_17 = arith.constant 0 : index
    %24 = vector.load %arg7[%c0_16, %c0_17] : memref<16x32xf32, #tpu.memory_space<vmem>>, vector<8x8xf32>
    tpu.vector_store %arg7[%c0_16, %c0_17], %23 {strides = array<i32>} : memref<16x32xf32, #tpu.memory_space<vmem>>, vector<8x8xf32>,
    %25 = vector.extract_strided_slice %7 {offsets = [0, 8], sizes = [8, 8], strides = [1, 1]} : vector<16x32xf32> to vector<8x8xf32>
    %26 = vector.extract_strided_slice %8 {offsets = [0, 8], sizes = [8, 8], strides = [1, 1]} : vector<16x32xf32> to vector<8x8xf32>
    %27 = vector.extract_strided_slice %9 {offsets = [0, 8], sizes = [8, 8], strides = [1, 1]} : vector<16x32xf32> to vector<8x8xf32>
    %cst_18 = arith.constant dense<0.000000e+00> : vector<8x8xf32>
    %28 = tpu.matmul %25, %26, %cst_18 {dimension_numbers = #tpu.dot_dimension_numbers<[1], [1], [0], [0], [0, 0, 1, 0], [], []>, precision = #tpu.contract_precision<fp32>} : vector<8x8xf32>, vector<8x8xf32>, vector<8x8xf32> -> vector<8x8xf32>
    %cst_19 = arith.constant dense<0xFF800000> : vector<8xf32>
    %29 = vector.multi_reduction <maximumf>, %28, %cst_19 [1] : vector<8x8xf32> to vector<8xf32>
    %30 = vector.shape_cast %29 : vector<8xf32> to vector<8x1xf32>
    %31 = vector.broadcast %30 : vector<8x1xf32> to vector<8x8xf32>
    %32 = arith.subf %28, %31 : vector<8x8xf32>
    %33 = math.exp %32 : vector<8x8xf32>
    %cst_20 = arith.constant dense<0.000000e+00> : vector<8xf32>
    %34 = vector.multi_reduction <add>, %33, %cst_20 [1] : vector<8x8xf32> to vector<8xf32>
    %35 = vector.shape_cast %34 : vector<8xf32> to vector<8x1xf32>
    %36 = vector.broadcast %35 : vector<8x1xf32> to vector<8x8xf32>
    %37 = arith.divf %33, %36 : vector<8x8xf32>
    %cst_21 = arith.constant dense<0.000000e+00> : vector<8x8xf32>
    %38 = tpu.matmul %37, %27, %cst_21 {dimension_numbers = #tpu.dot_dimension_numbers<[1], [0], [0], [1], [0, 0, 1, 1], [], []>, precision = #tpu.contract_precision<fp32>} : vector<8x8xf32>, vector<8x8xf32>, vector<8x8xf32> -> vector<8x8xf32>
    %c0_22 = arith.constant 0 : index
    %c8 = arith.constant 8 : index
    %39 = vector.load %arg7[%c0_22, %c8] : memref<16x32xf32, #tpu.memory_space<vmem>>, vector<8x8xf32>
    tpu.vector_store %arg7[%c0_22, %c8], %38 {strides = array<i32>} : memref<16x32xf32, #tpu.memory_space<vmem>>, vector<8x8xf32>,
    %40 = vector.extract_strided_slice %7 {offsets = [0, 16], sizes = [8, 8], strides = [1, 1]} : vector<16x32xf32> to vector<8x8xf32>
    %41 = vector.extract_strided_slice %8 {offsets = [0, 16], sizes = [8, 8], strides = [1, 1]} : vector<16x32xf32> to vector<8x8xf32>
    %42 = vector.extract_strided_slice %9 {offsets = [0, 16], sizes = [8, 8], strides = [1, 1]} : vector<16x32xf32> to vector<8x8xf32>
    %cst_23 = arith.constant dense<0.000000e+00> : vector<8x8xf32>
    %43 = tpu.matmul %40, %41, %cst_23 {dimension_numbers = #tpu.dot_dimension_numbers<[1], [1], [0], [0], [0, 0, 1, 0], [], []>, precision = #tpu.contract_precision<fp32>} : vector<8x8xf32>, vector<8x8xf32>, vector<8x8xf32> -> vector<8x8xf32>
    %cst_24 = arith.constant dense<0xFF800000> : vector<8xf32>
    %44 = vector.multi_reduction <maximumf>, %43, %cst_24 [1] : vector<8x8xf32> to vector<8xf32>
    %45 = vector.shape_cast %44 : vector<8xf32> to vector<8x1xf32>
    %46 = vector.broadcast %45 : vector<8x1xf32> to vector<8x8xf32>
    %47 = arith.subf %43, %46 : vector<8x8xf32>
    %48 = math.exp %47 : vector<8x8xf32>
    %cst_25 = arith.constant dense<0.000000e+00> : vector<8xf32>
    %49 = vector.multi_reduction <add>, %48, %cst_25 [1] : vector<8x8xf32> to vector<8xf32>
    %50 = vector.shape_cast %49 : vector<8xf32> to vector<8x1xf32>
    %51 = vector.broadcast %50 : vector<8x1xf32> to vector<8x8xf32>
    %52 = arith.divf %48, %51 : vector<8x8xf32>
    %cst_26 = arith.constant dense<0.000000e+00> : vector<8x8xf32>
    %53 = tpu.matmul %52, %42, %cst_26 {dimension_numbers = #tpu.dot_dimension_numbers<[1], [0], [0], [1], [0, 0, 1, 1], [], []>, precision = #tpu.contract_precision<fp32>} : vector<8x8xf32>, vector<8x8xf32>, vector<8x8xf32> -> vector<8x8xf32>
    %c0_27 = arith.constant 0 : index
    %c16 = arith.constant 16 : index
    %54 = vector.load %arg7[%c0_27, %c16] : memref<16x32xf32, #tpu.memory_space<vmem>>, vector<8x8xf32>
    tpu.vector_store %arg7[%c0_27, %c16], %53 {strides = array<i32>} : memref<16x32xf32, #tpu.memory_space<vmem>>, vector<8x8xf32>,
    %55 = vector.extract_strided_slice %7 {offsets = [0, 24], sizes = [8, 8], strides = [1, 1]} : vector<16x32xf32> to vector<8x8xf32>
    %56 = vector.extract_strided_slice %8 {offsets = [0, 24], sizes = [8, 8], strides = [1, 1]} : vector<16x32xf32> to vector<8x8xf32>
    %57 = vector.extract_strided_slice %9 {offsets = [0, 24], sizes = [8, 8], strides = [1, 1]} : vector<16x32xf32> to vector<8x8xf32>
    %cst_28 = arith.constant dense<0.000000e+00> : vector<8x8xf32>
    %58 = tpu.matmul %55, %56, %cst_28 {dimension_numbers = #tpu.dot_dimension_numbers<[1], [1], [0], [0], [0, 0, 1, 0], [], []>, precision = #tpu.contract_precision<fp32>} : vector<8x8xf32>, vector<8x8xf32>, vector<8x8xf32> -> vector<8x8xf32>
    %cst_29 = arith.constant dense<0xFF800000> : vector<8xf32>
    %59 = vector.multi_reduction <maximumf>, %58, %cst_29 [1] : vector<8x8xf32> to vector<8xf32>
    %60 = vector.shape_cast %59 : vector<8xf32> to vector<8x1xf32>
    %61 = vector.broadcast %60 : vector<8x1xf32> to vector<8x8xf32>
    %62 = arith.subf %58, %61 : vector<8x8xf32>
    %63 = math.exp %62 : vector<8x8xf32>
    %cst_30 = arith.constant dense<0.000000e+00> : vector<8xf32>
    %64 = vector.multi_reduction <add>, %63, %cst_30 [1] : vector<8x8xf32> to vector<8xf32>
    %65 = vector.shape_cast %64 : vector<8xf32> to vector<8x1xf32>
    %66 = vector.broadcast %65 : vector<8x1xf32> to vector<8x8xf32>
    %67 = arith.divf %63, %66 : vector<8x8xf32>
    %cst_31 = arith.constant dense<0.000000e+00> : vector<8x8xf32>
    %68 = tpu.matmul %67, %57, %cst_31 {dimension_numbers = #tpu.dot_dimension_numbers<[1], [0], [0], [1], [0, 0, 1, 1], [], []>, precision = #tpu.contract_precision<fp32>} : vector<8x8xf32>, vector<8x8xf32>, vector<8x8xf32> -> vector<8x8xf32>
    %c0_32 = arith.constant 0 : index
    %c24 = arith.constant 24 : index
    %69 = vector.load %arg7[%c0_32, %c24] : memref<16x32xf32, #tpu.memory_space<vmem>>, vector<8x8xf32>
    tpu.vector_store %arg7[%c0_32, %c24], %68 {strides = array<i32>} : memref<16x32xf32, #tpu.memory_space<vmem>>, vector<8x8xf32>,
    %70 = vector.extract_strided_slice %7 {offsets = [8, 0], sizes = [8, 8], strides = [1, 1]} : vector<16x32xf32> to vector<8x8xf32>
    %71 = vector.extract_strided_slice %8 {offsets = [8, 0], sizes = [8, 8], strides = [1, 1]} : vector<16x32xf32> to vector<8x8xf32>
    %72 = vector.extract_strided_slice %9 {offsets = [8, 0], sizes = [8, 8], strides = [1, 1]} : vector<16x32xf32> to vector<8x8xf32>
    %cst_33 = arith.constant dense<0.000000e+00> : vector<8x8xf32>
    %73 = tpu.matmul %70, %71, %cst_33 {dimension_numbers = #tpu.dot_dimension_numbers<[1], [1], [0], [0], [0, 0, 1, 0], [], []>, precision = #tpu.contract_precision<fp32>} : vector<8x8xf32>, vector<8x8xf32>, vector<8x8xf32> -> vector<8x8xf32>
    %cst_34 = arith.constant dense<0xFF800000> : vector<8xf32>
    %74 = vector.multi_reduction <maximumf>, %73, %cst_34 [1] : vector<8x8xf32> to vector<8xf32>
    %75 = vector.shape_cast %74 : vector<8xf32> to vector<8x1xf32>
    %76 = vector.broadcast %75 : vector<8x1xf32> to vector<8x8xf32>
    %77 = arith.subf %73, %76 : vector<8x8xf32>
    %78 = math.exp %77 : vector<8x8xf32>
    %cst_35 = arith.constant dense<0.000000e+00> : vector<8xf32>
    %79 = vector.multi_reduction <add>, %78, %cst_35 [1] : vector<8x8xf32> to vector<8xf32>
    %80 = vector.shape_cast %79 : vector<8xf32> to vector<8x1xf32>
    %81 = vector.broadcast %80 : vector<8x1xf32> to vector<8x8xf32>
    %82 = arith.divf %78, %81 : vector<8x8xf32>
    %cst_36 = arith.constant dense<0.000000e+00> : vector<8x8xf32>
    %83 = tpu.matmul %82, %72, %cst_36 {dimension_numbers = #tpu.dot_dimension_numbers<[1], [0], [0], [1], [0, 0, 1, 1], [], []>, precision = #tpu.contract_precision<fp32>} : vector<8x8xf32>, vector<8x8xf32>, vector<8x8xf32> -> vector<8x8xf32>
    %c8_37 = arith.constant 8 : index
    %c0_38 = arith.constant 0 : index
    %84 = vector.load %arg7[%c8_37, %c0_38] : memref<16x32xf32, #tpu.memory_space<vmem>>, vector<8x8xf32>
    tpu.vector_store %arg7[%c8_37, %c0_38], %83 {strides = array<i32>} : memref<16x32xf32, #tpu.memory_space<vmem>>, vector<8x8xf32>,
    %85 = vector.extract_strided_slice %7 {offsets = [8, 8], sizes = [8, 8], strides = [1, 1]} : vector<16x32xf32> to vector<8x8xf32>
    %86 = vector.extract_strided_slice %8 {offsets = [8, 8], sizes = [8, 8], strides = [1, 1]} : vector<16x32xf32> to vector<8x8xf32>
    %87 = vector.extract_strided_slice %9 {offsets = [8, 8], sizes = [8, 8], strides = [1, 1]} : vector<16x32xf32> to vector<8x8xf32>
    %cst_39 = arith.constant dense<0.000000e+00> : vector<8x8xf32>
    %88 = tpu.matmul %85, %86, %cst_39 {dimension_numbers = #tpu.dot_dimension_numbers<[1], [1], [0], [0], [0, 0, 1, 0], [], []>, precision = #tpu.contract_precision<fp32>} : vector<8x8xf32>, vector<8x8xf32>, vector<8x8xf32> -> vector<8x8xf32>
    %cst_40 = arith.constant dense<0xFF800000> : vector<8xf32>
    %89 = vector.multi_reduction <maximumf>, %88, %cst_40 [1] : vector<8x8xf32> to vector<8xf32>
    %90 = vector.shape_cast %89 : vector<8xf32> to vector<8x1xf32>
    %91 = vector.broadcast %90 : vector<8x1xf32> to vector<8x8xf32>
    %92 = arith.subf %88, %91 : vector<8x8xf32>
    %93 = math.exp %92 : vector<8x8xf32>
    %cst_41 = arith.constant dense<0.000000e+00> : vector<8xf32>
    %94 = vector.multi_reduction <add>, %93, %cst_41 [1] : vector<8x8xf32> to vector<8xf32>
    %95 = vector.shape_cast %94 : vector<8xf32> to vector<8x1xf32>
    %96 = vector.broadcast %95 : vector<8x1xf32> to vector<8x8xf32>
    %97 = arith.divf %93, %96 : vector<8x8xf32>
    %cst_42 = arith.constant dense<0.000000e+00> : vector<8x8xf32>
    %98 = tpu.matmul %97, %87, %cst_42 {dimension_numbers = #tpu.dot_dimension_numbers<[1], [0], [0], [1], [0, 0, 1, 1], [], []>, precision = #tpu.contract_precision<fp32>} : vector<8x8xf32>, vector<8x8xf32>, vector<8x8xf32> -> vector<8x8xf32>
    %c8_43 = arith.constant 8 : index
    %c8_44 = arith.constant 8 : index
    %99 = vector.load %arg7[%c8_43, %c8_44] : memref<16x32xf32, #tpu.memory_space<vmem>>, vector<8x8xf32>
    tpu.vector_store %arg7[%c8_43, %c8_44], %98 {strides = array<i32>} : memref<16x32xf32, #tpu.memory_space<vmem>>, vector<8x8xf32>,
    %100 = vector.extract_strided_slice %7 {offsets = [8, 16], sizes = [8, 8], strides = [1, 1]} : vector<16x32xf32> to vector<8x8xf32>
    %101 = vector.extract_strided_slice %8 {offsets = [8, 16], sizes = [8, 8], strides = [1, 1]} : vector<16x32xf32> to vector<8x8xf32>
    %102 = vector.extract_strided_slice %9 {offsets = [8, 16], sizes = [8, 8], strides = [1, 1]} : vector<16x32xf32> to vector<8x8xf32>
    %cst_45 = arith.constant dense<0.000000e+00> : vector<8x8xf32>
    %103 = tpu.matmul %100, %101, %cst_45 {dimension_numbers = #tpu.dot_dimension_numbers<[1], [1], [0], [0], [0, 0, 1, 0], [], []>, precision = #tpu.contract_precision<fp32>} : vector<8x8xf32>, vector<8x8xf32>, vector<8x8xf32> -> vector<8x8xf32>
    %cst_46 = arith.constant dense<0xFF800000> : vector<8xf32>
    %104 = vector.multi_reduction <maximumf>, %103, %cst_46 [1] : vector<8x8xf32> to vector<8xf32>
    %105 = vector.shape_cast %104 : vector<8xf32> to vector<8x1xf32>
    %106 = vector.broadcast %105 : vector<8x1xf32> to vector<8x8xf32>
    %107 = arith.subf %103, %106 : vector<8x8xf32>
    %108 = math.exp %107 : vector<8x8xf32>
    %cst_47 = arith.constant dense<0.000000e+00> : vector<8xf32>
    %109 = vector.multi_reduction <add>, %108, %cst_47 [1] : vector<8x8xf32> to vector<8xf32>
    %110 = vector.shape_cast %109 : vector<8xf32> to vector<8x1xf32>
    %111 = vector.broadcast %110 : vector<8x1xf32> to vector<8x8xf32>
    %112 = arith.divf %108, %111 : vector<8x8xf32>
    %cst_48 = arith.constant dense<0.000000e+00> : vector<8x8xf32>
    %113 = tpu.matmul %112, %102, %cst_48 {dimension_numbers = #tpu.dot_dimension_numbers<[1], [0], [0], [1], [0, 0, 1, 1], [], []>, precision = #tpu.contract_precision<fp32>} : vector<8x8xf32>, vector<8x8xf32>, vector<8x8xf32> -> vector<8x8xf32>
    %c8_49 = arith.constant 8 : index
    %c16_50 = arith.constant 16 : index
    %114 = vector.load %arg7[%c8_49, %c16_50] : memref<16x32xf32, #tpu.memory_space<vmem>>, vector<8x8xf32>
    tpu.vector_store %arg7[%c8_49, %c16_50], %113 {strides = array<i32>} : memref<16x32xf32, #tpu.memory_space<vmem>>, vector<8x8xf32>,
    %115 = vector.extract_strided_slice %7 {offsets = [8, 24], sizes = [8, 8], strides = [1, 1]} : vector<16x32xf32> to vector<8x8xf32>
    %116 = vector.extract_strided_slice %8 {offsets = [8, 24], sizes = [8, 8], strides = [1, 1]} : vector<16x32xf32> to vector<8x8xf32>
    %117 = vector.extract_strided_slice %9 {offsets = [8, 24], sizes = [8, 8], strides = [1, 1]} : vector<16x32xf32> to vector<8x8xf32>
    %cst_51 = arith.constant dense<0.000000e+00> : vector<8x8xf32>
    %118 = tpu.matmul %115, %116, %cst_51 {dimension_numbers = #tpu.dot_dimension_numbers<[1], [1], [0], [0], [0, 0, 1, 0], [], []>, precision = #tpu.contract_precision<fp32>} : vector<8x8xf32>, vector<8x8xf32>, vector<8x8xf32> -> vector<8x8xf32>
    %cst_52 = arith.constant dense<0xFF800000> : vector<8xf32>
    %119 = vector.multi_reduction <maximumf>, %118, %cst_52 [1] : vector<8x8xf32> to vector<8xf32>
    %120 = vector.shape_cast %119 : vector<8xf32> to vector<8x1xf32>
    %121 = vector.broadcast %120 : vector<8x1xf32> to vector<8x8xf32>
    %122 = arith.subf %118, %121 : vector<8x8xf32>
    %123 = math.exp %122 : vector<8x8xf32>
    %cst_53 = arith.constant dense<0.000000e+00> : vector<8xf32>
    %124 = vector.multi_reduction <add>, %123, %cst_53 [1] : vector<8x8xf32> to vector<8xf32>
    %125 = vector.shape_cast %124 : vector<8xf32> to vector<8x1xf32>
    %126 = vector.broadcast %125 : vector<8x1xf32> to vector<8x8xf32>
    %127 = arith.divf %123, %126 : vector<8x8xf32>
    %cst_54 = arith.constant dense<0.000000e+00> : vector<8x8xf32>
    %128 = tpu.matmul %127, %117, %cst_54 {dimension_numbers = #tpu.dot_dimension_numbers<[1], [0], [0], [1], [0, 0, 1, 1], [], []>, precision = #tpu.contract_precision<fp32>} : vector<8x8xf32>, vector<8x8xf32>, vector<8x8xf32> -> vector<8x8xf32>
    %c8_55 = arith.constant 8 : index
    %c24_56 = arith.constant 24 : index
    %129 = vector.load %arg7[%c8_55, %c24_56] : memref<16x32xf32, #tpu.memory_space<vmem>>, vector<8x8xf32>
    tpu.vector_store %arg7[%c8_55, %c24_56], %128 {strides = array<i32>} : memref<16x32xf32, #tpu.memory_space<vmem>>, vector<8x8xf32>,
    %c0_57 = arith.constant 0 : index
    %c0_58 = arith.constant 0 : index
    %130 = vector.load %arg7[%c0_57, %c0_58] : memref<16x32xf32, #tpu.memory_space<vmem>>, vector<16x32xf32>
    %cst_59 = arith.constant dense<0.000000e+00> : vector<16x32xf32>
    %131 = tpu.matmul %130, %4, %cst_59 {dimension_numbers = #tpu.dot_dimension_numbers<[1], [0], [0], [1], [0, 0, 1, 1], [], []>, precision = #tpu.contract_precision<fp32>} : vector<16x32xf32>, vector<32x32xf32>, vector<16x32xf32> -> vector<16x32xf32>
    %c0_60 = arith.constant 0 : index
    %c0_61 = arith.constant 0 : index
    %132 = vector.load %arg6[%c0_60, %c0_61] : memref<16x32xf32, #tpu.memory_space<vmem>>, vector<16x32xf32>
    tpu.vector_store %arg6[%c0_60, %c0_61], %131 {strides = array<i32>} : memref<16x32xf32, #tpu.memory_space<vmem>>, vector<16x32xf32>,
    return
  }
  func.func @transform_0(%arg0: i32) -> (i32, i32) {
    %c0_i32 = arith.constant 0 : i32
    %c0_i32_0 = arith.constant 0 : i32
    return %arg0, %c0_i32 : i32, i32
  }
  func.func @transform_1(%arg0: i32) -> (i32, i32) {
    %c0_i32 = arith.constant 0 : i32
    %c0_i32_0 = arith.constant 0 : i32
    %c0_i32_1 = arith.constant 0 : i32
    return %c0_i32, %c0_i32_0 : i32, i32
  }
  func.func @transform_2(%arg0: i32) -> (i32, i32) {
    %c0_i32 = arith.constant 0 : i32
    %c0_i32_0 = arith.constant 0 : i32
    %c0_i32_1 = arith.constant 0 : i32
    return %c0_i32, %c0_i32_0 : i32, i32
  }
  func.func @transform_3(%arg0: i32) -> (i32, i32) {
    %c0_i32 = arith.constant 0 : i32
    %c0_i32_0 = arith.constant 0 : i32
    %c0_i32_1 = arith.constant 0 : i32
    return %c0_i32, %c0_i32_0 : i32, i32
  }
  func.func @transform_4(%arg0: i32) -> (i32, i32) {
    %c0_i32 = arith.constant 0 : i32
    %c0_i32_0 = arith.constant 0 : i32
    %c0_i32_1 = arith.constant 0 : i32
    return %c0_i32, %c0_i32_0 : i32, i32
  }
  func.func @transform_5(%arg0: i32) -> (i32, i32) {
    %c0_i32 = arith.constant 0 : i32
    %c0_i32_0 = arith.constant 0 : i32
    return %arg0, %c0_i32 : i32, i32
  }
}

</mosaic_0001>

<llo_original>
// kernel: simple_transformer_forward.1
$region0: #{simple_transformer_forward.1}
  #allocation0 [shape = 'u32[]', space=smem, size = 0x4, offset = 0x4, fixed_abs, tag = 'smem constant byte address 0x4 - core index']
  #allocation1 [shape = 'u32[144,128]{1,0:T(1,128)}', space=vmem, size = 0x12000, scoped, tag = 'internal scratch']
  #allocation2 [shape = 'f32[16,32]{1,0:T(8,128)}', space=vmem, size = 0x2000, scoped, tag = 'scratch operand']
  %s0 = inlined_call_operand.hbm [shape: f32[16,32], index: 0, kind: input, shape index: {}]
  %s1 = inlined_call_operand.hbm [shape: f32[32,32], index: 1, kind: input, shape index: {}]
  %s2 = inlined_call_operand.hbm [shape: f32[32,32], index: 2, kind: input, shape index: {}]
  %s3 = inlined_call_operand.hbm [shape: f32[32,32], index: 3, kind: input, shape index: {}]
  %s4 = inlined_call_operand.hbm [shape: f32[32,32], index: 4, kind: input, shape index: {}]
  %s5 = inlined_call_operand.hbm [shape: f32[16,32], index: 5, kind: output, shape index: {}]
  %s6 = sld [smem:[#allocation0]]
  $region50: #{simple_transformer_forward.1} parent=0
    _
  %s8 = ssub.s32 1, %s6
  %s9 = scalar_select 0, %s8, %s6
  $region1: #{simple_transformer_forward.1} parent=0
    #allocation3 [shape = 'u8[8192]{0}', space=vmem, size = 0x2000, scoped, tag = 'input window, operand 0, single buffered']
    #allocation4 [shape = 's32[1]{0}', space=sflag, size = 0x4, scoped, tag = 'scoped memory for simple_transformer_forward.1']
    #allocation5 [shape = 's32[1]{0}', space=sflag, size = 0x4, scoped, tag = 'scoped memory for simple_transformer_forward.1']
    #allocation6 [shape = 'u8[16384]{0}', space=vmem, size = 0x4000, scoped, tag = 'input window, operand 1, single buffered']
    #allocation7 [shape = 's32[1]{0}', space=sflag, size = 0x4, scoped, tag = 'scoped memory for simple_transformer_forward.1']
    #allocation8 [shape = 'u8[16384]{0}', space=vmem, size = 0x4000, scoped, tag = 'input window, operand 2, single buffered']
    #allocation9 [shape = 'u8[16384]{0}', space=vmem, size = 0x4000, scoped, tag = 'input window, operand 3, single buffered']
    #allocation10 [shape = 's32[1]{0}', space=sflag, size = 0x4, scoped, tag = 'scoped memory for simple_transformer_forward.1']
    #allocation11 [shape = 'u8[16384]{0}', space=vmem, size = 0x4000, scoped, tag = 'input window, operand 4, single buffered']
    #allocation12 [shape = 'u8[8192]{0}', space=vmem, size = 0x2000, scoped, tag = 'output window, operand 0, single buffered']
    %10 = vsyncpa [#allocation4], 0
    %11 = vsyncpa [#allocation7], 0
    %12 = vsyncpa [#allocation10], 0
    %13 = vsyncpa [#allocation5], 0
    // Predicated region
    $region2: #{simple_transformer_forward.1} parent=1 // pred_check
      _
    $region3: #{simple_transformer_forward.1} parent=1 // pred_check_branch
      %15 = sbr.rel (0) target = $region5
    $region4: #{simple_transformer_forward.1} parent=1 // pred_region
      %s17 = ssub.s32 256, 256
      %18 = vsyncadd [#allocation4], %s17
      %s19 = sshll.u32 [#allocation3], 4
      %s20 = int_to_ptr.vmem [resolvable:$true] %s19
      %25 = dma.hbm_to_vmem [thread:$0]  %s0, 256, %s20, [#allocation4], 128, 128, 8
    $region5: #{simple_transformer_forward.1} parent=1 // pred_fallthru
      _
    // Predicated region
    $region6: #{simple_transformer_forward.1} parent=1 // pred_check
      _
    $region7: #{simple_transformer_forward.1} parent=1 // pred_check_branch
      %27 = sbr.rel (0) target = $region9
    $region8: #{simple_transformer_forward.1} parent=1 // pred_region
      %s29 = ssub.s32 512, 512
      %30 = vsyncadd [#allocation7], %s29
      %s31 = sshll.u32 [#allocation6], 4
      %s32 = int_to_ptr.vmem [resolvable:$true] %s31
      %37 = dma.hbm_to_vmem [thread:$0]  %s1, 512, %s32, [#allocation7], 128, 128, 8
    $region9: #{simple_transformer_forward.1} parent=1 // pred_fallthru
      _
    // Predicated region
    $region10: #{simple_transformer_forward.1} parent=1 // pred_check
      _
    $region11: #{simple_transformer_forward.1} parent=1 // pred_check_branch
      %39 = sbr.rel (0) target = $region13
    $region12: #{simple_transformer_forward.1} parent=1 // pred_region
      %s41 = ssub.s32 512, 512
      %42 = vsyncadd [#allocation7], %s41
      %s43 = sshll.u32 [#allocation8], 4
      %s44 = int_to_ptr.vmem [resolvable:$true] %s43
      %49 = dma.hbm_to_vmem [thread:$0]  %s2, 512, %s44, [#allocation7], 128, 128, 8
    $region13: #{simple_transformer_forward.1} parent=1 // pred_fallthru
      _
    // Predicated region
    $region14: #{simple_transformer_forward.1} parent=1 // pred_check
      _
    $region15: #{simple_transformer_forward.1} parent=1 // pred_check_branch
      %51 = sbr.rel (0) target = $region17
    $region16: #{simple_transformer_forward.1} parent=1 // pred_region
      %s53 = ssub.s32 512, 512
      %54 = vsyncadd [#allocation10], %s53
      %s55 = sshll.u32 [#allocation9], 4
      %s56 = int_to_ptr.vmem [resolvable:$true] %s55
      %61 = dma.hbm_to_vmem [thread:$0]  %s3, 512, %s56, [#allocation10], 128, 128, 8
    $region17: #{simple_transformer_forward.1} parent=1 // pred_fallthru
      _
    // Predicated region
    $region18: #{simple_transformer_forward.1} parent=1 // pred_check
      _
    $region19: #{simple_transformer_forward.1} parent=1 // pred_check_branch
      %63 = sbr.rel (0) target = $region21
    $region20: #{simple_transformer_forward.1} parent=1 // pred_region
      %s65 = ssub.s32 512, 512
      %66 = vsyncadd [#allocation10], %s65
      %s67 = sshll.u32 [#allocation11], 4
      %s68 = int_to_ptr.vmem [resolvable:$true] %s67
      %73 = dma.hbm_to_vmem [thread:$0]  %s4, 512, %s68, [#allocation10], 128, 128, 8
    $region21: #{simple_transformer_forward.1} parent=1 // pred_fallthru
      _
    // Predicated region
    $region22: #{simple_transformer_forward.1} parent=1 // pred_check
      _
    $region23: #{simple_transformer_forward.1} parent=1 // pred_check_branch
      %75 = sbr.rel (0) target = $region25
    $region24: #{simple_transformer_forward.1} parent=1 // pred_region
      %76 = dma.done [#allocation4], 256
    $region25: #{simple_transformer_forward.1} parent=1 // pred_fallthru
      _
    // Predicated region
    $region26: #{simple_transformer_forward.1} parent=1 // pred_check
      _
    $region27: #{simple_transformer_forward.1} parent=1 // pred_check_branch
      %78 = sbr.rel (0) target = $region29
    $region28: #{simple_transformer_forward.1} parent=1 // pred_region
      %79 = dma.done [#allocation7], 512
    $region29: #{simple_transformer_forward.1} parent=1 // pred_fallthru
      _
    // Predicated region
    $region30: #{simple_transformer_forward.1} parent=1 // pred_check
      _
    $region31: #{simple_transformer_forward.1} parent=1 // pred_check_branch
      %81 = sbr.rel (0) target = $region33
    $region32: #{simple_transformer_forward.1} parent=1 // pred_region
      %82 = dma.done [#allocation7], 512
    $region33: #{simple_transformer_forward.1} parent=1 // pred_fallthru
      _
    // Predicated region
    $region34: #{simple_transformer_forward.1} parent=1 // pred_check
      _
    $region35: #{simple_transformer_forward.1} parent=1 // pred_check_branch
      %84 = sbr.rel (0) target = $region37
    $region36: #{simple_transformer_forward.1} parent=1 // pred_region
      %85 = dma.done [#allocation10], 512
    $region37: #{simple_transformer_forward.1} parent=1 // pred_fallthru
      _
    // Predicated region
    $region38: #{simple_transformer_forward.1} parent=1 // pred_check
      _
    $region39: #{simple_transformer_forward.1} parent=1 // pred_check_branch
      %87 = sbr.rel (0) target = $region41
    $region40: #{simple_transformer_forward.1} parent=1 // pred_region
      %88 = dma.done [#allocation10], 512
    $region41: #{simple_transformer_forward.1} parent=1 // pred_fallthru
      _
    %v89 = vld [vmem:[#allocation3] sm:$0xff]
    %v90 = vld [vmem:[#allocation3 + $0x8] sm:$0xff]
    %v91 = vld [vmem:[#allocation6] sm:$0xff]
    %v92 = vld [vmem:[#allocation6 + $0x8] sm:$0xff]
    %v93 = vld [vmem:[#allocation6 + $0x10] sm:$0xff]
    %v94 = vld [vmem:[#allocation6 + $0x18] sm:$0xff]
    %v95 = vld [vmem:[#allocation8] sm:$0xff]
    %v96 = vld [vmem:[#allocation8 + $0x8] sm:$0xff]
    %v97 = vld [vmem:[#allocation8 + $0x10] sm:$0xff]
    %v98 = vld [vmem:[#allocation8 + $0x18] sm:$0xff]
    %v99 = vld [vmem:[#allocation9] sm:$0xff]
    %v100 = vld [vmem:[#allocation9 + $0x8] sm:$0xff]
    %v101 = vld [vmem:[#allocation9 + $0x10] sm:$0xff]
    %v102 = vld [vmem:[#allocation9 + $0x18] sm:$0xff]
    %v103 = vld [vmem:[#allocation11] sm:$0xff]
    %v104 = vld [vmem:[#allocation11 + $0x8] sm:$0xff]
    %v105 = vld [vmem:[#allocation11 + $0x10] sm:$0xff]
    %v106 = vld [vmem:[#allocation11 + $0x18] sm:$0xff]
    %vm107 = vcmask 261120
    %v109 = vsel %vm107, %v89, 0
    %v112 = vsel %vm107, %v90, 0
    %114 = vmatprep.subr.mxu0 0.0
    %v115 = vand.u32 %v91, 4294901760
    %116 = vmatpush1.msra.mxu0 %v115
    %117 = vmatprep.subr.mxu0 0.0
    %v118 = vand.u32 %v92, 4294901760
    %119 = vmatpush1.msra.mxu0 %v118
    %120 = vmatprep.subr.mxu0 0.0
    %v121 = vand.u32 %v93, 4294901760
    %122 = vmatpush1.msra.mxu0 %v121
    %123 = vmatprep.subr.mxu0 0.0
    %v124 = vand.u32 %v94, 4294901760
    %125 = vmatpush1.msra.mxu0 %v124
    %126 = vmatprep.subr.mxu0 0.0
    %127 = vmatpush1.msra.mxu0 0.0
    %128 = vmatprep.subr.mxu0 0.0
    %129 = vmatpush1.msra.mxu0 0.0
    %130 = vmatprep.subr.mxu0 0.0
    %131 = vmatpush1.msra.mxu0 0.0
    %132 = vmatprep.subr.mxu0 0.0
    %133 = vmatpush1.msra.mxu0 0.0
    %134 = vmatprep.subr.mxu0 0.0
    %135 = vmatpush1.msra.mxu0 0.0
    %136 = vmatprep.subr.mxu0 0.0
    %137 = vmatpush1.msra.mxu0 0.0
    %138 = vmatprep.subr.mxu0 0.0
    %139 = vmatpush1.msra.mxu0 0.0
    %140 = vmatprep.subr.mxu0 0.0
    %141 = vmatpush1.msra.mxu0 0.0
    %142 = vmatprep.subr.mxu0 0.0
    %143 = vmatpush1.msra.mxu0 0.0
    %144 = vmatprep.subr.mxu0 0.0
    %145 = vmatpush1.msra.mxu0 0.0
    %146 = vmatprep.subr.mxu0 0.0
    %147 = vmatpush1.msra.mxu0 0.0
    %148 = vmatprep.subr.mxu0 0.0
    %149 = vmatpush1.msra.mxu0 0.0
    %150 = vmatprep.subr.mxu0 0.0
    %151 = vmatpush1.msra.mxu0 0.0
    %152 = vmatprep.subr.mxu0 0.0
    %153 = vmatpush1.msra.mxu0 0.0
    %154 = vmatprep.subr.mxu0 0.0
    %155 = vmatpush1.msra.mxu0 0.0
    %156 = vmatprep.subr.mxu0 0.0
    %157 = vmatpush1.msra.mxu0 0.0
    %158 = vmatprep.subr.mxu0 0.0
    %159 = vmatpush1.msra.mxu0 0.0
    %160 = vmatprep.subr.mxu0 0.0
    %161 = vmatpush1.msra.mxu0 0.0
    %162 = vmatprep.subr.mxu0 0.0
    %163 = vmatpush1.msra.mxu0 0.0
    %164 = vmatprep.subr.mxu0 0.0
    %165 = vmatpush1.msra.mxu0 0.0
    %166 = vmatprep.subr.mxu0 0.0
    %167 = vmatpush1.msra.mxu0 0.0
    %168 = vmatprep.subr.mxu0 0.0
    %169 = vmatpush1.msra.mxu0 0.0
    %170 = vmatprep.subr.mxu0 0.0
    %171 = vmatpush1.msra.mxu0 0.0
    %172 = vmatprep.subr.mxu0 0.0
    %173 = vmatpush1.msra.mxu0 0.0
    %174 = vmatprep.subr.mxu0 0.0
    %175 = vmatpush1.msra.mxu0 0.0
    %176 = vmatprep.subr.mxu0 0.0
    %177 = vmatpush1.msra.mxu0 0.0
    %178 = vmatprep.subr.mxu0 0.0
    %179 = vmatpush1.msra.mxu0 0.0
    %180 = vmatprep.subr.mxu0 0.0
    %181 = vmatpush1.msra.mxu0 0.0
    %182 = vmatprep.mubr.f32.mxu0 0.0
    %v183 = vand.u32 %v109, 4294901760
    %v184 = vsub.f32 %v109, %v183
    %v185 = vand.u32 %v184, 4294901760
    %v186 = vsub.f32 %v184, %v185
    %v187 = vand.u32 %v186, 4294901760
    %188 = vmatmul.mubr.f32.gmra.mrb[0].mxu0 %v187
    %v189 = vpop.f32.mrb[0].mxu0
    %v190 = vadd.f32 0.0, %v189
    %v191 = vpop.f32.mrb[0].mxu0
    %192 = vmatprep.mubr.f32.mxu0 0.0
    %v193 = vand.u32 %v112, 4294901760
    %v194 = vsub.f32 %v112, %v193
    %v195 = vand.u32 %v194, 4294901760
    %v196 = vsub.f32 %v194, %v195
    %v197 = vand.u32 %v196, 4294901760
    %198 = vmatmul.mubr.f32.gmra.mrb[0].mxu0 %v197
    %v199 = vpop.f32.mrb[0].mxu0
    %v200 = vadd.f32 0.0, %v199
    %v201 = vpop.f32.mrb[0].mxu0
    %202 = vdwg.mxu0
    %203 = vmatprep.subr.mxu0 0.0
    %v204 = vand.u32 %v91, 4294901760
    %v205 = vsub.f32 %v91, %v204
    %v206 = vand.u32 %v205, 4294901760
    %v207 = vsub.f32 %v205, %v206
    %v208 = vand.u32 %v207, 4294901760
    %209 = vmatpush1.msra.mxu0 %v208
    %210 = vmatprep.subr.mxu0 0.0
    %v211 = vand.u32 %v92, 4294901760
    %v212 = vsub.f32 %v92, %v211
    %v213 = vand.u32 %v212, 4294901760
    %v214 = vsub.f32 %v212, %v213
    %v215 = vand.u32 %v214, 4294901760
    %216 = vmatpush1.msra.mxu0 %v215
    %217 = vmatprep.subr.mxu0 0.0
    %v218 = vand.u32 %v93, 4294901760
    %v219 = vsub.f32 %v93, %v218
    %v220 = vand.u32 %v219, 4294901760
    %v221 = vsub.f32 %v219, %v220
    %v222 = vand.u32 %v221, 4294901760
    %223 = vmatpush1.msra.mxu0 %v222
    %224 = vmatprep.subr.mxu0 0.0
    %v225 = vand.u32 %v94, 4294901760
    %v226 = vsub.f32 %v94, %v225
    %v227 = vand.u32 %v226, 4294901760
    %v228 = vsub.f32 %v226, %v227
    %v229 = vand.u32 %v228, 4294901760
    %230 = vmatpush1.msra.mxu0 %v229
    %231 = vmatprep.subr.mxu0 0.0
    %232 = vmatpush1.msra.mxu0 0.0
    %233 = vmatprep.subr.mxu0 0.0
    %234 = vmatpush1.msra.mxu0 0.0
    %235 = vmatprep.subr.mxu0 0.0
    %236 = vmatpush1.msra.mxu0 0.0
    %237 = vmatprep.subr.mxu0 0.0
    %238 = vmatpush1.msra.mxu0 0.0
    %239 = vmatprep.subr.mxu0 0.0
    %240 = vmatpush1.msra.mxu0 0.0
    %241 = vmatprep.subr.mxu0 0.0
    %242 = vmatpush1.msra.mxu0 0.0
    %243 = vmatprep.subr.mxu0 0.0
    %244 = vmatpush1.msra.mxu0 0.0
    %245 = vmatprep.subr.mxu0 0.0
    %246 = vmatpush1.msra.mxu0 0.0
    %247 = vmatprep.subr.mxu0 0.0
    %248 = vmatpush1.msra.mxu0 0.0
    %249 = vmatprep.subr.mxu0 0.0
    %250 = vmatpush1.msra.mxu0 0.0
    %251 = vmatprep.subr.mxu0 0.0
    %252 = vmatpush1.msra.mxu0 0.0
    %253 = vmatprep.subr.mxu0 0.0
    %254 = vmatpush1.msra.mxu0 0.0
    %255 = vmatprep.subr.mxu0 0.0
    %256 = vmatpush1.msra.mxu0 0.0
    %257 = vmatprep.subr.mxu0 0.0
    %258 = vmatpush1.msra.mxu0 0.0
    %259 = vmatprep.subr.mxu0 0.0
    %260 = vmatpush1.msra.mxu0 0.0
    %261 = vmatprep.subr.mxu0 0.0
    %262 = vmatpush1.msra.mxu0 0.0
    %263 = vmatprep.subr.mxu0 0.0
    %264 = vmatpush1.msra.mxu0 0.0
    %265 = vmatprep.subr.mxu0 0.0
    %266 = vmatpush1.msra.mxu0 0.0
    %267 = vmatprep.subr.mxu0 0.0
    %268 = vmatpush1.msra.mxu0 0.0
    %269 = vmatprep.subr.mxu0 0.0
    %270 = vmatpush1.msra.mxu0 0.0
    %271 = vmatprep.subr.mxu0 0.0
    %272 = vmatpush1.msra.mxu0 0.0
    %273 = vmatprep.subr.mxu0 0.0
    %274 = vmatpush1.msra.mxu0 0.0
    %275 = vmatprep.subr.mxu0 0.0
    %276 = vmatpush1.msra.mxu0 0.0
    %277 = vmatprep.subr.mxu0 0.0
    %278 = vmatpush1.msra.mxu0 0.0
    %279 = vmatprep.subr.mxu0 0.0
    %280 = vmatpush1.msra.mxu0 0.0
    %281 = vmatprep.subr.mxu0 0.0
    %282 = vmatpush1.msra.mxu0 0.0
    %283 = vmatprep.subr.mxu0 0.0
    %284 = vmatpush1.msra.mxu0 0.0
    %285 = vmatprep.subr.mxu0 0.0
    %286 = vmatpush1.msra.mxu0 0.0
    %287 = vmatprep.mubr.f32.mxu0 0.0
    %v288 = vand.u32 %v109, 4294901760
    %289 = vmatmul.mubr.f32.gmra.mrb[0].mxu0 %v288
    %v290 = vpop.f32.mrb[0].mxu0
    %v291 = vadd.f32 %v190, %v290
    %v292 = vpop.f32.mrb[0].mxu0
    %293 = vmatprep.mubr.f32.mxu0 0.0
    %v294 = vand.u32 %v112, 4294901760
    %295 = vmatmul.mubr.f32.gmra.mrb[0].mxu0 %v294
    %v296 = vpop.f32.mrb[0].mxu0
    %v297 = vadd.f32 %v200, %v296
    %v298 = vpop.f32.mrb[0].mxu0
    %299 = vdwg.mxu0
    %300 = vmatprep.subr.mxu0 0.0
    %v301 = vand.u32 %v91, 4294901760
    %v302 = vsub.f32 %v91, %v301
    %303 = vmatpush1.msra.mxu0 %v302
    %304 = vmatprep.subr.mxu0 0.0
    %v305 = vand.u32 %v92, 4294901760
    %v306 = vsub.f32 %v92, %v305
    %307 = vmatpush1.msra.mxu0 %v306
    %308 = vmatprep.subr.mxu0 0.0
    %v309 = vand.u32 %v93, 4294901760
    %v310 = vsub.f32 %v93, %v309
    %311 = vmatpush1.msra.mxu0 %v310
    %312 = vmatprep.subr.mxu0 0.0
    %v313 = vand.u32 %v94, 4294901760
    %v314 = vsub.f32 %v94, %v313
    %315 = vmatpush1.msra.mxu0 %v314
    %316 = vmatprep.subr.mxu0 0.0
    %317 = vmatpush1.msra.mxu0 0.0
    %318 = vmatprep.subr.mxu0 0.0
    %319 = vmatpush1.msra.mxu0 0.0
    %320 = vmatprep.subr.mxu0 0.0
    %321 = vmatpush1.msra.mxu0 0.0
    %322 = vmatprep.subr.mxu0 0.0
    %323 = vmatpush1.msra.mxu0 0.0
    %324 = vmatprep.subr.mxu0 0.0
    %325 = vmatpush1.msra.mxu0 0.0
    %326 = vmatprep.subr.mxu0 0.0
    %327 = vmatpush1.msra.mxu0 0.0
    %328 = vmatprep.subr.mxu0 0.0
    %329 = vmatpush1.msra.mxu0 0.0
    %330 = vmatprep.subr.mxu0 0.0
    %331 = vmatpush1.msra.mxu0 0.0
    %332 = vmatprep.subr.mxu0 0.0
    %333 = vmatpush1.msra.mxu0 0.0
    %334 = vmatprep.subr.mxu0 0.0
    %335 = vmatpush1.msra.mxu0 0.0
    %336 = vmatprep.subr.mxu0 0.0
    %337 = vmatpush1.msra.mxu0 0.0
    %338 = vmatprep.subr.mxu0 0.0
    %339 = vmatpush1.msra.mxu0 0.0
    %340 = vmatprep.subr.mxu0 0.0
    %341 = vmatpush1.msra.mxu0 0.0
    %342 = vmatprep.subr.mxu0 0.0
    %343 = vmatpush1.msra.mxu0 0.0
    %344 = vmatprep.subr.mxu0 0.0
    %345 = vmatpush1.msra.mxu0 0.0
    %346 = vmatprep.subr.mxu0 0.0
    %347 = vmatpush1.msra.mxu0 0.0
    %348 = vmatprep.subr.mxu0 0.0
    %349 = vmatpush1.msra.mxu0 0.0
    %350 = vmatprep.subr.mxu0 0.0
    %351 = vmatpush1.msra.mxu0 0.0
    %352 = vmatprep.subr.mxu0 0.0
    %353 = vmatpush1.msra.mxu0 0.0
    %354 = vmatprep.subr.mxu0 0.0
    %355 = vmatpush1.msra.mxu0 0.0
    %356 = vmatprep.subr.mxu0 0.0
    %357 = vmatpush1.msra.mxu0 0.0
    %358 = vmatprep.subr.mxu0 0.0
    %359 = vmatpush1.msra.mxu0 0.0
    %360 = vmatprep.subr.mxu0 0.0
    %361 = vmatpush1.msra.mxu0 0.0
    %362 = vmatprep.subr.mxu0 0.0
    %363 = vmatpush1.msra.mxu0 0.0
    %364 = vmatprep.subr.mxu0 0.0
    %365 = vmatpush1.msra.mxu0 0.0
    %366 = vmatprep.subr.mxu0 0.0
    %367 = vmatpush1.msra.mxu0 0.0
    %368 = vmatprep.subr.mxu0 0.0
    %369 = vmatpush1.msra.mxu0 0.0
    %370 = vmatprep.subr.mxu0 0.0
    %371 = vmatpush1.msra.mxu0 0.0
    %372 = vmatprep.mubr.f32.mxu0 0.0
    %v373 = vand.u32 %v109, 4294901760
    %v374 = vsub.f32 %v109, %v373
    %375 = vmatmul.mubr.f32.gmra.mrb[0].mxu0 %v374
    %v376 = vpop.f32.mrb[0].mxu0
    %v377 = vadd.f32 %v291, %v376
    %v378 = vpop.f32.mrb[0].mxu0
    %379 = vmatprep.mubr.f32.mxu0 0.0
    %v380 = vand.u32 %v112, 4294901760
    %v381 = vsub.f32 %v112, %v380
    %382 = vmatmul.mubr.f32.gmra.mrb[0].mxu0 %v381
    %v383 = vpop.f32.mrb[0].mxu0
    %v384 = vadd.f32 %v297, %v383
    %v385 = vpop.f32.mrb[0].mxu0
    %386 = vdwg.mxu0
    %387 = vmatprep.subr.mxu0 0.0
    %v388 = vand.u32 %v91, 4294901760
    %389 = vmatpush1.msra.mxu0 %v388
    %390 = vmatprep.subr.mxu0 0.0
    %v391 = vand.u32 %v92, 4294901760
    %392 = vmatpush1.msra.mxu0 %v391
    %393 = vmatprep.subr.mxu0 0.0
    %v394 = vand.u32 %v93, 4294901760
    %395 = vmatpush1.msra.mxu0 %v394
    %396 = vmatprep.subr.mxu0 0.0
    %v397 = vand.u32 %v94, 4294901760
    %398 = vmatpush1.msra.mxu0 %v397
    %399 = vmatprep.subr.mxu0 0.0
    %400 = vmatpush1.msra.mxu0 0.0
    %401 = vmatprep.subr.mxu0 0.0
    %402 = vmatpush1.msra.mxu0 0.0
    %403 = vmatprep.subr.mxu0 0.0
    %404 = vmatpush1.msra.mxu0 0.0
    %405 = vmatprep.subr.mxu0 0.0
    %406 = vmatpush1.msra.mxu0 0.0
    %407 = vmatprep.subr.mxu0 0.0
    %408 = vmatpush1.msra.mxu0 0.0
    %409 = vmatprep.subr.mxu0 0.0
    %410 = vmatpush1.msra.mxu0 0.0
    %411 = vmatprep.subr.mxu0 0.0
    %412 = vmatpush1.msra.mxu0 0.0
    %413 = vmatprep.subr.mxu0 0.0
    %414 = vmatpush1.msra.mxu0 0.0
    %415 = vmatprep.subr.mxu0 0.0
    %416 = vmatpush1.msra.mxu0 0.0
    %417 = vmatprep.subr.mxu0 0.0
    %418 = vmatpush1.msra.mxu0 0.0
    %419 = vmatprep.subr.mxu0 0.0
    %420 = vmatpush1.msra.mxu0 0.0
    %421 = vmatprep.subr.mxu0 0.0
    %422 = vmatpush1.msra.mxu0 0.0
    %423 = vmatprep.subr.mxu0 0.0
    %424 = vmatpush1.msra.mxu0 0.0
    %425 = vmatprep.subr.mxu0 0.0
    %426 = vmatpush1.msra.mxu0 0.0
    %427 = vmatprep.subr.mxu0 0.0
    %428 = vmatpush1.msra.mxu0 0.0
    %429 = vmatprep.subr.mxu0 0.0
    %430 = vmatpush1.msra.mxu0 0.0
    %431 = vmatprep.subr.mxu0 0.0
    %432 = vmatpush1.msra.mxu0 0.0
    %433 = vmatprep.subr.mxu0 0.0
    %434 = vmatpush1.msra.mxu0 0.0
    %435 = vmatprep.subr.mxu0 0.0
    %436 = vmatpush1.msra.mxu0 0.0
    %437 = vmatprep.subr.mxu0 0.0
    %438 = vmatpush1.msra.mxu0 0.0
    %439 = vmatprep.subr.mxu0 0.0
    %440 = vmatpush1.msra.mxu0 0.0
    %441 = vmatprep.subr.mxu0 0.0
    %442 = vmatpush1.msra.mxu0 0.0
    %443 = vmatprep.subr.mxu0 0.0
    %444 = vmatpush1.msra.mxu0 0.0
    %445 = vmatprep.subr.mxu0 0.0
    %446 = vmatpush1.msra.mxu0 0.0
    %447 = vmatprep.subr.mxu0 0.0
    %448 = vmatpush1.msra.mxu0 0.0
    %449 = vmatprep.subr.mxu0 0.0
    %450 = vmatpush1.msra.mxu0 0.0
    %451 = vmatprep.subr.mxu0 0.0
    %452 = vmatpush1.msra.mxu0 0.0
    %453 = vmatprep.subr.mxu0 0.0
    %454 = vmatpush1.msra.mxu0 0.0
    %455 = vmatprep.mubr.f32.mxu0 0.0
    %v456 = vand.u32 %v109, 4294901760
    %v457 = vsub.f32 %v109, %v456
    %v458 = vand.u32 %v457, 4294901760
    %459 = vmatmul.mubr.f32.gmra.mrb[0].mxu0 %v458
    %v460 = vpop.f32.mrb[0].mxu0
    %v461 = vadd.f32 %v377, %v460
    %v462 = vpop.f32.mrb[0].mxu0
    %463 = vmatprep.mubr.f32.mxu0 0.0
    %v464 = vand.u32 %v112, 4294901760
    %v465 = vsub.f32 %v112, %v464
    %v466 = vand.u32 %v465, 4294901760
    %467 = vmatmul.mubr.f32.gmra.mrb[0].mxu0 %v466
    %v468 = vpop.f32.mrb[0].mxu0
    %v469 = vadd.f32 %v384, %v468
    %v470 = vpop.f32.mrb[0].mxu0
    %471 = vdwg.mxu0
    %472 = vmatprep.subr.mxu0 0.0
    %v473 = vand.u32 %v91, 4294901760
    %v474 = vsub.f32 %v91, %v473
    %v475 = vand.u32 %v474, 4294901760
    %476 = vmatpush1.msra.mxu0 %v475
    %477 = vmatprep.subr.mxu0 0.0
    %v478 = vand.u32 %v92, 4294901760
    %v479 = vsub.f32 %v92, %v478
    %v480 = vand.u32 %v479, 4294901760
    %481 = vmatpush1.msra.mxu0 %v480
    %482 = vmatprep.subr.mxu0 0.0
    %v483 = vand.u32 %v93, 4294901760
    %v484 = vsub.f32 %v93, %v483
    %v485 = vand.u32 %v484, 4294901760
    %486 = vmatpush1.msra.mxu0 %v485
    %487 = vmatprep.subr.mxu0 0.0
    %v488 = vand.u32 %v94, 4294901760
    %v489 = vsub.f32 %v94, %v488
    %v490 = vand.u32 %v489, 4294901760
    %491 = vmatpush1.msra.mxu0 %v490
    %492 = vmatprep.subr.mxu0 0.0
    %493 = vmatpush1.msra.mxu0 0.0
    %494 = vmatprep.subr.mxu0 0.0
    %495 = vmatpush1.msra.mxu0 0.0
    %496 = vmatprep.subr.mxu0 0.0
    %497 = vmatpush1.msra.mxu0 0.0
    %498 = vmatprep.subr.mxu0 0.0
    %499 = vmatpush1.msra.mxu0 0.0
    %500 = vmatprep.subr.mxu0 0.0
    %501 = vmatpush1.msra.mxu0 0.0
    %502 = vmatprep.subr.mxu0 0.0
    %503 = vmatpush1.msra.mxu0 0.0
    %504 = vmatprep.subr.mxu0 0.0
    %505 = vmatpush1.msra.mxu0 0.0
    %506 = vmatprep.subr.mxu0 0.0
    %507 = vmatpush1.msra.mxu0 0.0
    %508 = vmatprep.subr.mxu0 0.0
    %509 = vmatpush1.msra.mxu0 0.0
    %510 = vmatprep.subr.mxu0 0.0
    %511 = vmatpush1.msra.mxu0 0.0
    %512 = vmatprep.subr.mxu0 0.0
    %513 = vmatpush1.msra.mxu0 0.0
    %514 = vmatprep.subr.mxu0 0.0
    %515 = vmatpush1.msra.mxu0 0.0
    %516 = vmatprep.subr.mxu0 0.0
    %517 = vmatpush1.msra.mxu0 0.0
    %518 = vmatprep.subr.mxu0 0.0
    %519 = vmatpush1.msra.mxu0 0.0
    %520 = vmatprep.subr.mxu0 0.0
    %521 = vmatpush1.msra.mxu0 0.0
    %522 = vmatprep.subr.mxu0 0.0
    %523 = vmatpush1.msra.mxu0 0.0
    %524 = vmatprep.subr.mxu0 0.0
    %525 = vmatpush1.msra.mxu0 0.0
    %526 = vmatprep.subr.mxu0 0.0
    %527 = vmatpush1.msra.mxu0 0.0
    %528 = vmatprep.subr.mxu0 0.0
    %529 = vmatpush1.msra.mxu0 0.0
    %530 = vmatprep.subr.mxu0 0.0
    %531 = vmatpush1.msra.mxu0 0.0
    %532 = vmatprep.subr.mxu0 0.0
    %533 = vmatpush1.msra.mxu0 0.0
    %534 = vmatprep.subr.mxu0 0.0
    %535 = vmatpush1.msra.mxu0 0.0
    %536 = vmatprep.subr.mxu0 0.0
    %537 = vmatpush1.msra.mxu0 0.0
    %538 = vmatprep.subr.mxu0 0.0
    %539 = vmatpush1.msra.mxu0 0.0
    %540 = vmatprep.subr.mxu0 0.0
    %541 = vmatpush1.msra.mxu0 0.0
    %542 = vmatprep.subr.mxu0 0.0
    %543 = vmatpush1.msra.mxu0 0.0
    %544 = vmatprep.subr.mxu0 0.0
    %545 = vmatpush1.msra.mxu0 0.0
    %546 = vmatprep.subr.mxu0 0.0
    %547 = vmatpush1.msra.mxu0 0.0
    %548 = vmatprep.mubr.f32.mxu0 0.0
    %v549 = vand.u32 %v109, 4294901760
    %550 = vmatmul.mubr.f32.gmra.mrb[0].mxu0 %v549
    %v551 = vpop.f32.mrb[0].mxu0
    %v552 = vadd.f32 %v461, %v551
    %v553 = vpop.f32.mrb[0].mxu0
    %554 = vmatprep.mubr.f32.mxu0 0.0
    %v555 = vand.u32 %v112, 4294901760
    %556 = vmatmul.mubr.f32.gmra.mrb[0].mxu0 %v555
    %v557 = vpop.f32.mrb[0].mxu0
    %v558 = vadd.f32 %v469, %v557
    %v559 = vpop.f32.mrb[0].mxu0
    %560 = vdwg.mxu0
    %561 = vmatprep.subr.mxu0 0.0
    %v562 = vand.u32 %v91, 4294901760
    %563 = vmatpush1.msra.mxu0 %v562
    %564 = vmatprep.subr.mxu0 0.0
    %v565 = vand.u32 %v92, 4294901760
    %566 = vmatpush1.msra.mxu0 %v565
    %567 = vmatprep.subr.mxu0 0.0
    %v568 = vand.u32 %v93, 4294901760
    %569 = vmatpush1.msra.mxu0 %v568
    %570 = vmatprep.subr.mxu0 0.0
    %v571 = vand.u32 %v94, 4294901760
    %572 = vmatpush1.msra.mxu0 %v571
    %573 = vmatprep.subr.mxu0 0.0
    %574 = vmatpush1.msra.mxu0 0.0
    %575 = vmatprep.subr.mxu0 0.0
    %576 = vmatpush1.msra.mxu0 0.0
    %577 = vmatprep.subr.mxu0 0.0
    %578 = vmatpush1.msra.mxu0 0.0
    %579 = vmatprep.subr.mxu0 0.0
    %580 = vmatpush1.msra.mxu0 0.0
    %581 = vmatprep.subr.mxu0 0.0
    %582 = vmatpush1.msra.mxu0 0.0
    %583 = vmatprep.subr.mxu0 0.0
    %584 = vmatpush1.msra.mxu0 0.0
    %585 = vmatprep.subr.mxu0 0.0
    %586 = vmatpush1.msra.mxu0 0.0
    %587 = vmatprep.subr.mxu0 0.0
    %588 = vmatpush1.msra.mxu0 0.0
    %589 = vmatprep.subr.mxu0 0.0
    %590 = vmatpush1.msra.mxu0 0.0
    %591 = vmatprep.subr.mxu0 0.0
    %592 = vmatpush1.msra.mxu0 0.0
    %593 = vmatprep.subr.mxu0 0.0
    %594 = vmatpush1.msra.mxu0 0.0
    %595 = vmatprep.subr.mxu0 0.0
    %596 = vmatpush1.msra.mxu0 0.0
    %597 = vmatprep.subr.mxu0 0.0
    %598 = vmatpush1.msra.mxu0 0.0
    %599 = vmatprep.subr.mxu0 0.0
    %600 = vmatpush1.msra.mxu0 0.0
    %601 = vmatprep.subr.mxu0 0.0
    %602 = vmatpush1.msra.mxu0 0.0
    %603 = vmatprep.subr.mxu0 0.0
    %604 = vmatpush1.msra.mxu0 0.0
    %605 = vmatprep.subr.mxu0 0.0
    %606 = vmatpush1.msra.mxu0 0.0
    %607 = vmatprep.subr.mxu0 0.0
    %608 = vmatpush1.msra.mxu0 0.0
    %609 = vmatprep.subr.mxu0 0.0
    %610 = vmatpush1.msra.mxu0 0.0
    %611 = vmatprep.subr.mxu0 0.0
    %612 = vmatpush1.msra.mxu0 0.0
    %613 = vmatprep.subr.mxu0 0.0
    %614 = vmatpush1.msra.mxu0 0.0
    %615 = vmatprep.subr.mxu0 0.0
    %616 = vmatpush1.msra.mxu0 0.0
    %617 = vmatprep.subr.mxu0 0.0
    %618 = vmatpush1.msra.mxu0 0.0
    %619 = vmatprep.subr.mxu0 0.0
    %620 = vmatpush1.msra.mxu0 0.0
    %621 = vmatprep.subr.mxu0 0.0
    %622 = vmatpush1.msra.mxu0 0.0
    %623 = vmatprep.subr.mxu0 0.0
    %624 = vmatpush1.msra.mxu0 0.0
    %625 = vmatprep.subr.mxu0 0.0
    %626 = vmatpush1.msra.mxu0 0.0
    %627 = vmatprep.subr.mxu0 0.0
    %628 = vmatpush1.msra.mxu0 0.0
    %629 = vmatprep.mubr.f32.mxu0 0.0
    %v630 = vand.u32 %v109, 4294901760
    %631 = vmatmul.mubr.f32.gmra.mrb[0].mxu0 %v630
    %v632 = vpop.f32.mrb[0].mxu0
    %v633 = vadd.f32 %v552, %v632
    %v634 = vpop.f32.mrb[0].mxu0
    %635 = vmatprep.mubr.f32.mxu0 0.0
    %v636 = vand.u32 %v112, 4294901760
    %637 = vmatmul.mubr.f32.gmra.mrb[0].mxu0 %v636
    %v638 = vpop.f32.mrb[0].mxu0
    %v639 = vadd.f32 %v558, %v638
    %v640 = vpop.f32.mrb[0].mxu0
    %641 = vdwg.mxu0
    %v642 = vmul.f32 %v633, 0.35355338
    %v643 = vmul.f32 %v639, 0.35355338
    %644 = vmatprep.subr.mxu0 0.0
    %v645 = vand.u32 %v95, 4294901760
    %646 = vmatpush1.msra.mxu0 %v645
    %647 = vmatprep.subr.mxu0 0.0
    %v648 = vand.u32 %v96, 4294901760
    %649 = vmatpush1.msra.mxu0 %v648
    %650 = vmatprep.subr.mxu0 0.0
    %v651 = vand.u32 %v97, 4294901760
    %652 = vmatpush1.msra.mxu0 %v651
    %653 = vmatprep.subr.mxu0 0.0
    %v654 = vand.u32 %v98, 4294901760
    %655 = vmatpush1.msra.mxu0 %v654
    %656 = vmatprep.subr.mxu0 0.0
    %657 = vmatpush1.msra.mxu0 0.0
    %658 = vmatprep.subr.mxu0 0.0
    %659 = vmatpush1.msra.mxu0 0.0
    %660 = vmatprep.subr.mxu0 0.0
    %661 = vmatpush1.msra.mxu0 0.0
    %662 = vmatprep.subr.mxu0 0.0
    %663 = vmatpush1.msra.mxu0 0.0
    %664 = vmatprep.subr.mxu0 0.0
    %665 = vmatpush1.msra.mxu0 0.0
    %666 = vmatprep.subr.mxu0 0.0
    %667 = vmatpush1.msra.mxu0 0.0
    %668 = vmatprep.subr.mxu0 0.0
    %669 = vmatpush1.msra.mxu0 0.0
    %670 = vmatprep.subr.mxu0 0.0
    %671 = vmatpush1.msra.mxu0 0.0
    %672 = vmatprep.subr.mxu0 0.0
    %673 = vmatpush1.msra.mxu0 0.0
    %674 = vmatprep.subr.mxu0 0.0
    %675 = vmatpush1.msra.mxu0 0.0
    %676 = vmatprep.subr.mxu0 0.0
    %677 = vmatpush1.msra.mxu0 0.0
    %678 = vmatprep.subr.mxu0 0.0
    %679 = vmatpush1.msra.mxu0 0.0
    %680 = vmatprep.subr.mxu0 0.0
    %681 = vmatpush1.msra.mxu0 0.0
    %682 = vmatprep.subr.mxu0 0.0
    %683 = vmatpush1.msra.mxu0 0.0
    %684 = vmatprep.subr.mxu0 0.0
    %685 = vmatpush1.msra.mxu0 0.0
    %686 = vmatprep.subr.mxu0 0.0
    %687 = vmatpush1.msra.mxu0 0.0
    %688 = vmatprep.subr.mxu0 0.0
    %689 = vmatpush1.msra.mxu0 0.0
    %690 = vmatprep.subr.mxu0 0.0
    %691 = vmatpush1.msra.mxu0 0.0
    %692 = vmatprep.subr.mxu0 0.0
    %693 = vmatpush1.msra.mxu0 0.0
    %694 = vmatprep.subr.mxu0 0.0
    %695 = vmatpush1.msra.mxu0 0.0
    %696 = vmatprep.subr.mxu0 0.0
    %697 = vmatpush1.msra.mxu0 0.0
    %698 = vmatprep.subr.mxu0 0.0
    %699 = vmatpush1.msra.mxu0 0.0
    %700 = vmatprep.subr.mxu0 0.0
    %701 = vmatpush1.msra.mxu0 0.0
    %702 = vmatprep.subr.mxu0 0.0
    %703 = vmatpush1.msra.mxu0 0.0
    %704 = vmatprep.subr.mxu0 0.0
    %705 = vmatpush1.msra.mxu0 0.0
    %706 = vmatprep.subr.mxu0 0.0
    %707 = vmatpush1.msra.mxu0 0.0
    %708 = vmatprep.subr.mxu0 0.0
    %709 = vmatpush1.msra.mxu0 0.0
    %710 = vmatprep.subr.mxu0 0.0
    %711 = vmatpush1.msra.mxu0 0.0
    %712 = vmatprep.mubr.f32.mxu0 0.0
    %v713 = vand.u32 %v109, 4294901760
    %v714 = vsub.f32 %v109, %v713
    %v715 = vand.u32 %v714, 4294901760
    %v716 = vsub.f32 %v714, %v715
    %v717 = vand.u32 %v716, 4294901760
    %718 = vmatmul.mubr.f32.gmra.mrb[0].mxu0 %v717
    %v719 = vpop.f32.mrb[0].mxu0
    %v720 = vadd.f32 0.0, %v719
    %v721 = vpop.f32.mrb[0].mxu0
    %722 = vmatprep.mubr.f32.mxu0 0.0
    %v723 = vand.u32 %v112, 4294901760
    %v724 = vsub.f32 %v112, %v723
    %v725 = vand.u32 %v724, 4294901760
    %v726 = vsub.f32 %v724, %v725
    %v727 = vand.u32 %v726, 4294901760
    %728 = vmatmul.mubr.f32.gmra.mrb[0].mxu0 %v727
    %v729 = vpop.f32.mrb[0].mxu0
    %v730 = vadd.f32 0.0, %v729
    %v731 = vpop.f32.mrb[0].mxu0
    %732 = vdwg.mxu0
    %733 = vmatprep.subr.mxu0 0.0
    %v734 = vand.u32 %v95, 4294901760
    %v735 = vsub.f32 %v95, %v734
    %v736 = vand.u32 %v735, 4294901760
    %v737 = vsub.f32 %v735, %v736
    %v738 = vand.u32 %v737, 4294901760
    %739 = vmatpush1.msra.mxu0 %v738
    %740 = vmatprep.subr.mxu0 0.0
    %v741 = vand.u32 %v96, 4294901760
    %v742 = vsub.f32 %v96, %v741
    %v743 = vand.u32 %v742, 4294901760
    %v744 = vsub.f32 %v742, %v743
    %v745 = vand.u32 %v744, 4294901760
    %746 = vmatpush1.msra.mxu0 %v745
    %747 = vmatprep.subr.mxu0 0.0
    %v748 = vand.u32 %v97, 4294901760
    %v749 = vsub.f32 %v97, %v748
    %v750 = vand.u32 %v749, 4294901760
    %v751 = vsub.f32 %v749, %v750
    %v752 = vand.u32 %v751, 4294901760
    %753 = vmatpush1.msra.mxu0 %v752
    %754 = vmatprep.subr.mxu0 0.0
    %v755 = vand.u32 %v98, 4294901760
    %v756 = vsub.f32 %v98, %v755
    %v757 = vand.u32 %v756, 4294901760
    %v758 = vsub.f32 %v756, %v757
    %v759 = vand.u32 %v758, 4294901760
    %760 = vmatpush1.msra.mxu0 %v759
    %761 = vmatprep.subr.mxu0 0.0
    %762 = vmatpush1.msra.mxu0 0.0
    %763 = vmatprep.subr.mxu0 0.0
    %764 = vmatpush1.msra.mxu0 0.0
    %765 = vmatprep.subr.mxu0 0.0
    %766 = vmatpush1.msra.mxu0 0.0
    %767 = vmatprep.subr.mxu0 0.0
    %768 = vmatpush1.msra.mxu0 0.0
    %769 = vmatprep.subr.mxu0 0.0
    %770 = vmatpush1.msra.mxu0 0.0
    %771 = vmatprep.subr.mxu0 0.0
    %772 = vmatpush1.msra.mxu0 0.0
    %773 = vmatprep.subr.mxu0 0.0
    %774 = vmatpush1.msra.mxu0 0.0
    %775 = vmatprep.subr.mxu0 0.0
    %776 = vmatpush1.msra.mxu0 0.0
    %777 = vmatprep.subr.mxu0 0.0
    %778 = vmatpush1.msra.mxu0 0.0
    %779 = vmatprep.subr.mxu0 0.0
    %780 = vmatpush1.msra.mxu0 0.0
    %781 = vmatprep.subr.mxu0 0.0
    %782 = vmatpush1.msra.mxu0 0.0
    %783 = vmatprep.subr.mxu0 0.0
    %784 = vmatpush1.msra.mxu0 0.0
    %785 = vmatprep.subr.mxu0 0.0
    %786 = vmatpush1.msra.mxu0 0.0
    %787 = vmatprep.subr.mxu0 0.0
    %788 = vmatpush1.msra.mxu0 0.0
    %789 = vmatprep.subr.mxu0 0.0
    %790 = vmatpush1.msra.mxu0 0.0
    %791 = vmatprep.subr.mxu0 0.0
    %792 = vmatpush1.msra.mxu0 0.0
    %793 = vmatprep.subr.mxu0 0.0
    %794 = vmatpush1.msra.mxu0 0.0
    %795 = vmatprep.subr.mxu0 0.0
    %796 = vmatpush1.msra.mxu0 0.0
    %797 = vmatprep.subr.mxu0 0.0
    %798 = vmatpush1.msra.mxu0 0.0
    %799 = vmatprep.subr.mxu0 0.0
    %800 = vmatpush1.msra.mxu0 0.0
    %801 = vmatprep.subr.mxu0 0.0
    %802 = vmatpush1.msra.mxu0 0.0
    %803 = vmatprep.subr.mxu0 0.0
    %804 = vmatpush1.msra.mxu0 0.0
    %805 = vmatprep.subr.mxu0 0.0
    %806 = vmatpush1.msra.mxu0 0.0
    %807 = vmatprep.subr.mxu0 0.0
    %808 = vmatpush1.msra.mxu0 0.0
    %809 = vmatprep.subr.mxu0 0.0
    %810 = vmatpush1.msra.mxu0 0.0
    %811 = vmatprep.subr.mxu0 0.0
    %812 = vmatpush1.msra.mxu0 0.0
    %813 = vmatprep.subr.mxu0 0.0
    %814 = vmatpush1.msra.mxu0 0.0
    %815 = vmatprep.subr.mxu0 0.0
    %816 = vmatpush1.msra.mxu0 0.0
    %817 = vmatprep.mubr.f32.mxu0 0.0
    %v818 = vand.u32 %v109, 4294901760
    %819 = vmatmul.mubr.f32.gmra.mrb[0].mxu0 %v818
    %v820 = vpop.f32.mrb[0].mxu0
    %v821 = vadd.f32 %v720, %v820
    %v822 = vpop.f32.mrb[0].mxu0
    %823 = vmatprep.mubr.f32.mxu0 0.0
    %v824 = vand.u32 %v112, 4294901760
    %825 = vmatmul.mubr.f32.gmra.mrb[0].mxu0 %v824
    %v826 = vpop.f32.mrb[0].mxu0
    %v827 = vadd.f32 %v730, %v826
    %v828 = vpop.f32.mrb[0].mxu0
    %829 = vdwg.mxu0
    %830 = vmatprep.subr.mxu0 0.0
    %v831 = vand.u32 %v95, 4294901760
    %v832 = vsub.f32 %v95, %v831
    %833 = vmatpush1.msra.mxu0 %v832
    %834 = vmatprep.subr.mxu0 0.0
    %v835 = vand.u32 %v96, 4294901760
    %v836 = vsub.f32 %v96, %v835
    %837 = vmatpush1.msra.mxu0 %v836
    %838 = vmatprep.subr.mxu0 0.0
    %v839 = vand.u32 %v97, 4294901760
    %v840 = vsub.f32 %v97, %v839
    %841 = vmatpush1.msra.mxu0 %v840
    %842 = vmatprep.subr.mxu0 0.0
    %v843 = vand.u32 %v98, 4294901760
    %v844 = vsub.f32 %v98, %v843
    %845 = vmatpush1.msra.mxu0 %v844
    %846 = vmatprep.subr.mxu0 0.0
    %847 = vmatpush1.msra.mxu0 0.0
    %848 = vmatprep.subr.mxu0 0.0
    %849 = vmatpush1.msra.mxu0 0.0
    %850 = vmatprep.subr.mxu0 0.0
    %851 = vmatpush1.msra.mxu0 0.0
    %852 = vmatprep.subr.mxu0 0.0
    %853 = vmatpush1.msra.mxu0 0.0
    %854 = vmatprep.subr.mxu0 0.0
    %855 = vmatpush1.msra.mxu0 0.0
    %856 = vmatprep.subr.mxu0 0.0
    %857 = vmatpush1.msra.mxu0 0.0
    %858 = vmatprep.subr.mxu0 0.0
    %859 = vmatpush1.msra.mxu0 0.0
    %860 = vmatprep.subr.mxu0 0.0
    %861 = vmatpush1.msra.mxu0 0.0
    %862 = vmatprep.subr.mxu0 0.0
    %863 = vmatpush1.msra.mxu0 0.0
    %864 = vmatprep.subr.mxu0 0.0
    %865 = vmatpush1.msra.mxu0 0.0
    %866 = vmatprep.subr.mxu0 0.0
    %867 = vmatpush1.msra.mxu0 0.0
    %868 = vmatprep.subr.mxu0 0.0
    %869 = vmatpush1.msra.mxu0 0.0
    %870 = vmatprep.subr.mxu0 0.0
    %871 = vmatpush1.msra.mxu0 0.0
    %872 = vmatprep.subr.mxu0 0.0
    %873 = vmatpush1.msra.mxu0 0.0
    %874 = vmatprep.subr.mxu0 0.0
    %875 = vmatpush1.msra.mxu0 0.0
    %876 = vmatprep.subr.mxu0 0.0
    %877 = vmatpush1.msra.mxu0 0.0
    %878 = vmatprep.subr.mxu0 0.0
    %879 = vmatpush1.msra.mxu0 0.0
    %880 = vmatprep.subr.mxu0 0.0
    %881 = vmatpush1.msra.mxu0 0.0
    %882 = vmatprep.subr.mxu0 0.0
    %883 = vmatpush1.msra.mxu0 0.0
    %884 = vmatprep.subr.mxu0 0.0
    %885 = vmatpush1.msra.mxu0 0.0
    %886 = vmatprep.subr.mxu0 0.0
    %887 = vmatpush1.msra.mxu0 0.0
    %888 = vmatprep.subr.mxu0 0.0
    %889 = vmatpush1.msra.mxu0 0.0
    %890 = vmatprep.subr.mxu0 0.0
    %891 = vmatpush1.msra.mxu0 0.0
    %892 = vmatprep.subr.mxu0 0.0
    %893 = vmatpush1.msra.mxu0 0.0
    %894 = vmatprep.subr.mxu0 0.0
    %895 = vmatpush1.msra.mxu0 0.0
    %896 = vmatprep.subr.mxu0 0.0
    %897 = vmatpush1.msra.mxu0 0.0
    %898 = vmatprep.subr.mxu0 0.0
    %899 = vmatpush1.msra.mxu0 0.0
    %900 = vmatprep.subr.mxu0 0.0
    %901 = vmatpush1.msra.mxu0 0.0
    %902 = vmatprep.mubr.f32.mxu0 0.0
    %v903 = vand.u32 %v109, 4294901760
    %v904 = vsub.f32 %v109, %v903
    %905 = vmatmul.mubr.f32.gmra.mrb[0].mxu0 %v904
    %v906 = vpop.f32.mrb[0].mxu0
    %v907 = vadd.f32 %v821, %v906
    %v908 = vpop.f32.mrb[0].mxu0
    %909 = vmatprep.mubr.f32.mxu0 0.0
    %v910 = vand.u32 %v112, 4294901760
    %v911 = vsub.f32 %v112, %v910
    %912 = vmatmul.mubr.f32.gmra.mrb[0].mxu0 %v911
    %v913 = vpop.f32.mrb[0].mxu0
    %v914 = vadd.f32 %v827, %v913
    %v915 = vpop.f32.mrb[0].mxu0
    %916 = vdwg.mxu0
    %917 = vmatprep.subr.mxu0 0.0
    %v918 = vand.u32 %v95, 4294901760
    %919 = vmatpush1.msra.mxu0 %v918
    %920 = vmatprep.subr.mxu0 0.0
    %v921 = vand.u32 %v96, 4294901760
    %922 = vmatpush1.msra.mxu0 %v921
    %923 = vmatprep.subr.mxu0 0.0
    %v924 = vand.u32 %v97, 4294901760
    %925 = vmatpush1.msra.mxu0 %v924
    %926 = vmatprep.subr.mxu0 0.0
    %v927 = vand.u32 %v98, 4294901760
    %928 = vmatpush1.msra.mxu0 %v927
    %929 = vmatprep.subr.mxu0 0.0
    %930 = vmatpush1.msra.mxu0 0.0
    %931 = vmatprep.subr.mxu0 0.0
    %932 = vmatpush1.msra.mxu0 0.0
    %933 = vmatprep.subr.mxu0 0.0
    %934 = vmatpush1.msra.mxu0 0.0
    %935 = vmatprep.subr.mxu0 0.0
    %936 = vmatpush1.msra.mxu0 0.0
    %937 = vmatprep.subr.mxu0 0.0
    %938 = vmatpush1.msra.mxu0 0.0
    %939 = vmatprep.subr.mxu0 0.0
    %940 = vmatpush1.msra.mxu0 0.0
    %941 = vmatprep.subr.mxu0 0.0
    %942 = vmatpush1.msra.mxu0 0.0
    %943 = vmatprep.subr.mxu0 0.0
    %944 = vmatpush1.msra.mxu0 0.0
    %945 = vmatprep.subr.mxu0 0.0
    %946 = vmatpush1.msra.mxu0 0.0
    %947 = vmatprep.subr.mxu0 0.0
    %948 = vmatpush1.msra.mxu0 0.0
    %949 = vmatprep.subr.mxu0 0.0
    %950 = vmatpush1.msra.mxu0 0.0
    %951 = vmatprep.subr.mxu0 0.0
    %952 = vmatpush1.msra.mxu0 0.0
    %953 = vmatprep.subr.mxu0 0.0
    %954 = vmatpush1.msra.mxu0 0.0
    %955 = vmatprep.subr.mxu0 0.0
    %956 = vmatpush1.msra.mxu0 0.0
    %957 = vmatprep.subr.mxu0 0.0
    %958 = vmatpush1.msra.mxu0 0.0
    %959 = vmatprep.subr.mxu0 0.0
    %960 = vmatpush1.msra.mxu0 0.0
    %961 = vmatprep.subr.mxu0 0.0
    %962 = vmatpush1.msra.mxu0 0.0
    %963 = vmatprep.subr.mxu0 0.0
    %964 = vmatpush1.msra.mxu0 0.0
    %965 = vmatprep.subr.mxu0 0.0
    %966 = vmatpush1.msra.mxu0 0.0
    %967 = vmatprep.subr.mxu0 0.0
    %968 = vmatpush1.msra.mxu0 0.0
    %969 = vmatprep.subr.mxu0 0.0
    %970 = vmatpush1.msra.mxu0 0.0
    %971 = vmatprep.subr.mxu0 0.0
    %972 = vmatpush1.msra.mxu0 0.0
    %973 = vmatprep.subr.mxu0 0.0
    %974 = vmatpush1.msra.mxu0 0.0
    %975 = vmatprep.subr.mxu0 0.0
    %976 = vmatpush1.msra.mxu0 0.0
    %977 = vmatprep.subr.mxu0 0.0
    %978 = vmatpush1.msra.mxu0 0.0
    %979 = vmatprep.subr.mxu0 0.0
    %980 = vmatpush1.msra.mxu0 0.0
    %981 = vmatprep.subr.mxu0 0.0
    %982 = vmatpush1.msra.mxu0 0.0
    %983 = vmatprep.subr.mxu0 0.0
    %984 = vmatpush1.msra.mxu0 0.0
    %985 = vmatprep.mubr.f32.mxu0 0.0
    %v986 = vand.u32 %v109, 4294901760
    %v987 = vsub.f32 %v109, %v986
    %v988 = vand.u32 %v987, 4294901760
    %989 = vmatmul.mubr.f32.gmra.mrb[0].mxu0 %v988
    %v990 = vpop.f32.mrb[0].mxu0
    %v991 = vadd.f32 %v907, %v990
    %v992 = vpop.f32.mrb[0].mxu0
    %993 = vmatprep.mubr.f32.mxu0 0.0
    %v994 = vand.u32 %v112, 4294901760
    %v995 = vsub.f32 %v112, %v994
    %v996 = vand.u32 %v995, 4294901760
    %997 = vmatmul.mubr.f32.gmra.mrb[0].mxu0 %v996
    %v998 = vpop.f32.mrb[0].mxu0
    %v999 = vadd.f32 %v914, %v998
    %v1000 = vpop.f32.mrb[0].mxu0
    %1001 = vdwg.mxu0
    %1002 = vmatprep.subr.mxu0 0.0
    %v1003 = vand.u32 %v95, 4294901760
    %v1004 = vsub.f32 %v95, %v1003
    %v1005 = vand.u32 %v1004, 4294901760
    %1006 = vmatpush1.msra.mxu0 %v1005
    %1007 = vmatprep.subr.mxu0 0.0
    %v1008 = vand.u32 %v96, 4294901760
    %v1009 = vsub.f32 %v96, %v1008
    %v1010 = vand.u32 %v1009, 4294901760
    %1011 = vmatpush1.msra.mxu0 %v1010
    %1012 = vmatprep.subr.mxu0 0.0
    %v1013 = vand.u32 %v97, 4294901760
    %v1014 = vsub.f32 %v97, %v1013
    %v1015 = vand.u32 %v1014, 4294901760
    %1016 = vmatpush1.msra.mxu0 %v1015
    %1017 = vmatprep.subr.mxu0 0.0
    %v1018 = vand.u32 %v98, 4294901760
    %v1019 = vsub.f32 %v98, %v1018
    %v1020 = vand.u32 %v1019, 4294901760
    %1021 = vmatpush1.msra.mxu0 %v1020
    %1022 = vmatprep.subr.mxu0 0.0
    %1023 = vmatpush1.msra.mxu0 0.0
    %1024 = vmatprep.subr.mxu0 0.0
    %1025 = vmatpush1.msra.mxu0 0.0
    %1026 = vmatprep.subr.mxu0 0.0
    %1027 = vmatpush1.msra.mxu0 0.0
    %1028 = vmatprep.subr.mxu0 0.0
    %1029 = vmatpush1.msra.mxu0 0.0
    %1030 = vmatprep.subr.mxu0 0.0
    %1031 = vmatpush1.msra.mxu0 0.0
    %1032 = vmatprep.subr.mxu0 0.0
    %1033 = vmatpush1.msra.mxu0 0.0
    %1034 = vmatprep.subr.mxu0 0.0
    %1035 = vmatpush1.msra.mxu0 0.0
    %1036 = vmatprep.subr.mxu0 0.0
    %1037 = vmatpush1.msra.mxu0 0.0
    %1038 = vmatprep.subr.mxu0 0.0
    %1039 = vmatpush1.msra.mxu0 0.0
    %1040 = vmatprep.subr.mxu0 0.0
    %1041 = vmatpush1.msra.mxu0 0.0
    %1042 = vmatprep.subr.mxu0 0.0
    %1043 = vmatpush1.msra.mxu0 0.0
    %1044 = vmatprep.subr.mxu0 0.0
    %1045 = vmatpush1.msra.mxu0 0.0
    %1046 = vmatprep.subr.mxu0 0.0
    %1047 = vmatpush1.msra.mxu0 0.0
    %1048 = vmatprep.subr.mxu0 0.0
    %1049 = vmatpush1.msra.mxu0 0.0
    %1050 = vmatprep.subr.mxu0 0.0
    %1051 = vmatpush1.msra.mxu0 0.0
    %1052 = vmatprep.subr.mxu0 0.0
    %1053 = vmatpush1.msra.mxu0 0.0
    %1054 = vmatprep.subr.mxu0 0.0
    %1055 = vmatpush1.msra.mxu0 0.0
    %1056 = vmatprep.subr.mxu0 0.0
    %1057 = vmatpush1.msra.mxu0 0.0
    %1058 = vmatprep.subr.mxu0 0.0
    %1059 = vmatpush1.msra.mxu0 0.0
    %1060 = vmatprep.subr.mxu0 0.0
    %1061 = vmatpush1.msra.mxu0 0.0
    %1062 = vmatprep.subr.mxu0 0.0
    %1063 = vmatpush1.msra.mxu0 0.0
    %1064 = vmatprep.subr.mxu0 0.0
    %1065 = vmatpush1.msra.mxu0 0.0
    %1066 = vmatprep.subr.mxu0 0.0
    %1067 = vmatpush1.msra.mxu0 0.0
    %1068 = vmatprep.subr.mxu0 0.0
    %1069 = vmatpush1.msra.mxu0 0.0
    %1070 = vmatprep.subr.mxu0 0.0
    %1071 = vmatpush1.msra.mxu0 0.0
    %1072 = vmatprep.subr.mxu0 0.0
    %1073 = vmatpush1.msra.mxu0 0.0
    %1074 = vmatprep.subr.mxu0 0.0
    %1075 = vmatpush1.msra.mxu0 0.0
    %1076 = vmatprep.subr.mxu0 0.0
    %1077 = vmatpush1.msra.mxu0 0.0
    %1078 = vmatprep.mubr.f32.mxu0 0.0
    %v1079 = vand.u32 %v109, 4294901760
    %1080 = vmatmul.mubr.f32.gmra.mrb[0].mxu0 %v1079
    %v1081 = vpop.f32.mrb[0].mxu0
    %v1082 = vadd.f32 %v991, %v1081
    %v1083 = vpop.f32.mrb[0].mxu0
    %1084 = vmatprep.mubr.f32.mxu0 0.0
    %v1085 = vand.u32 %v112, 4294901760
    %1086 = vmatmul.mubr.f32.gmra.mrb[0].mxu0 %v1085
    %v1087 = vpop.f32.mrb[0].mxu0
    %v1088 = vadd.f32 %v999, %v1087
    %v1089 = vpop.f32.mrb[0].mxu0
    %1090 = vdwg.mxu0
    %1091 = vmatprep.subr.mxu0 0.0
    %v1092 = vand.u32 %v95, 4294901760
    %1093 = vmatpush1.msra.mxu0 %v1092
    %1094 = vmatprep.subr.mxu0 0.0
    %v1095 = vand.u32 %v96, 4294901760
    %1096 = vmatpush1.msra.mxu0 %v1095
    %1097 = vmatprep.subr.mxu0 0.0
    %v1098 = vand.u32 %v97, 4294901760
    %1099 = vmatpush1.msra.mxu0 %v1098
    %1100 = vmatprep.subr.mxu0 0.0
    %v1101 = vand.u32 %v98, 4294901760
    %1102 = vmatpush1.msra.mxu0 %v1101
    %1103 = vmatprep.subr.mxu0 0.0
    %1104 = vmatpush1.msra.mxu0 0.0
    %1105 = vmatprep.subr.mxu0 0.0
    %1106 = vmatpush1.msra.mxu0 0.0
    %1107 = vmatprep.subr.mxu0 0.0
    %1108 = vmatpush1.msra.mxu0 0.0
    %1109 = vmatprep.subr.mxu0 0.0
    %1110 = vmatpush1.msra.mxu0 0.0
    %1111 = vmatprep.subr.mxu0 0.0
    %1112 = vmatpush1.msra.mxu0 0.0
    %1113 = vmatprep.subr.mxu0 0.0
    %1114 = vmatpush1.msra.mxu0 0.0
    %1115 = vmatprep.subr.mxu0 0.0
    %1116 = vmatpush1.msra.mxu0 0.0
    %1117 = vmatprep.subr.mxu0 0.0
    %1118 = vmatpush1.msra.mxu0 0.0
    %1119 = vmatprep.subr.mxu0 0.0
    %1120 = vmatpush1.msra.mxu0 0.0
    %1121 = vmatprep.subr.mxu0 0.0
    %1122 = vmatpush1.msra.mxu0 0.0
    %1123 = vmatprep.subr.mxu0 0.0
    %1124 = vmatpush1.msra.mxu0 0.0
    %1125 = vmatprep.subr.mxu0 0.0
    %1126 = vmatpush1.msra.mxu0 0.0
    %1127 = vmatprep.subr.mxu0 0.0
    %1128 = vmatpush1.msra.mxu0 0.0
    %1129 = vmatprep.subr.mxu0 0.0
    %1130 = vmatpush1.msra.mxu0 0.0
    %1131 = vmatprep.subr.mxu0 0.0
    %1132 = vmatpush1.msra.mxu0 0.0
    %1133 = vmatprep.subr.mxu0 0.0
    %1134 = vmatpush1.msra.mxu0 0.0
    %1135 = vmatprep.subr.mxu0 0.0
    %1136 = vmatpush1.msra.mxu0 0.0
    %1137 = vmatprep.subr.mxu0 0.0
    %1138 = vmatpush1.msra.mxu0 0.0
    %1139 = vmatprep.subr.mxu0 0.0
    %1140 = vmatpush1.msra.mxu0 0.0
    %1141 = vmatprep.subr.mxu0 0.0
    %1142 = vmatpush1.msra.mxu0 0.0
    %1143 = vmatprep.subr.mxu0 0.0
    %1144 = vmatpush1.msra.mxu0 0.0
    %1145 = vmatprep.subr.mxu0 0.0
    %1146 = vmatpush1.msra.mxu0 0.0
    %1147 = vmatprep.subr.mxu0 0.0
    %1148 = vmatpush1.msra.mxu0 0.0
    %1149 = vmatprep.subr.mxu0 0.0
    %1150 = vmatpush1.msra.mxu0 0.0
    %1151 = vmatprep.subr.mxu0 0.0
    %1152 = vmatpush1.msra.mxu0 0.0
    %1153 = vmatprep.subr.mxu0 0.0
    %1154 = vmatpush1.msra.mxu0 0.0
    %1155 = vmatprep.subr.mxu0 0.0
    %1156 = vmatpush1.msra.mxu0 0.0
    %1157 = vmatprep.subr.mxu0 0.0
    %1158 = vmatpush1.msra.mxu0 0.0
    %1159 = vmatprep.mubr.f32.mxu0 0.0
    %v1160 = vand.u32 %v109, 4294901760
    %1161 = vmatmul.mubr.f32.gmra.mrb[0].mxu0 %v1160
    %v1162 = vpop.f32.mrb[0].mxu0
    %v1163 = vadd.f32 %v1082, %v1162
    %v1164 = vpop.f32.mrb[0].mxu0
    %1165 = vmatprep.mubr.f32.mxu0 0.0
    %v1166 = vand.u32 %v112, 4294901760
    %1167 = vmatmul.mubr.f32.gmra.mrb[0].mxu0 %v1166
    %v1168 = vpop.f32.mrb[0].mxu0
    %v1169 = vadd.f32 %v1088, %v1168
    %v1170 = vpop.f32.mrb[0].mxu0
    %1171 = vdwg.mxu0
    %1172 = vmatprep.subr.mxu0 0.0
    %v1173 = vand.u32 %v99, 4294901760
    %1174 = vmatpush1.msra.mxu0 %v1173
    %1175 = vmatprep.subr.mxu0 0.0
    %v1176 = vand.u32 %v100, 4294901760
    %1177 = vmatpush1.msra.mxu0 %v1176
    %1178 = vmatprep.subr.mxu0 0.0
    %v1179 = vand.u32 %v101, 4294901760
    %1180 = vmatpush1.msra.mxu0 %v1179
    %1181 = vmatprep.subr.mxu0 0.0
    %v1182 = vand.u32 %v102, 4294901760
    %1183 = vmatpush1.msra.mxu0 %v1182
    %1184 = vmatprep.subr.mxu0 0.0
    %1185 = vmatpush1.msra.mxu0 0.0
    %1186 = vmatprep.subr.mxu0 0.0
    %1187 = vmatpush1.msra.mxu0 0.0
    %1188 = vmatprep.subr.mxu0 0.0
    %1189 = vmatpush1.msra.mxu0 0.0
    %1190 = vmatprep.subr.mxu0 0.0
    %1191 = vmatpush1.msra.mxu0 0.0
    %1192 = vmatprep.subr.mxu0 0.0
    %1193 = vmatpush1.msra.mxu0 0.0
    %1194 = vmatprep.subr.mxu0 0.0
    %1195 = vmatpush1.msra.mxu0 0.0
    %1196 = vmatprep.subr.mxu0 0.0
    %1197 = vmatpush1.msra.mxu0 0.0
    %1198 = vmatprep.subr.mxu0 0.0
    %1199 = vmatpush1.msra.mxu0 0.0
    %1200 = vmatprep.subr.mxu0 0.0
    %1201 = vmatpush1.msra.mxu0 0.0
    %1202 = vmatprep.subr.mxu0 0.0
    %1203 = vmatpush1.msra.mxu0 0.0
    %1204 = vmatprep.subr.mxu0 0.0
    %1205 = vmatpush1.msra.mxu0 0.0
    %1206 = vmatprep.subr.mxu0 0.0
    %1207 = vmatpush1.msra.mxu0 0.0
    %1208 = vmatprep.subr.mxu0 0.0
    %1209 = vmatpush1.msra.mxu0 0.0
    %1210 = vmatprep.subr.mxu0 0.0
    %1211 = vmatpush1.msra.mxu0 0.0
    %1212 = vmatprep.subr.mxu0 0.0
    %1213 = vmatpush1.msra.mxu0 0.0
    %1214 = vmatprep.subr.mxu0 0.0
    %1215 = vmatpush1.msra.mxu0 0.0
    %1216 = vmatprep.subr.mxu0 0.0
    %1217 = vmatpush1.msra.mxu0 0.0
    %1218 = vmatprep.subr.mxu0 0.0
    %1219 = vmatpush1.msra.mxu0 0.0
    %1220 = vmatprep.subr.mxu0 0.0
    %1221 = vmatpush1.msra.mxu0 0.0
    %1222 = vmatprep.subr.mxu0 0.0
    %1223 = vmatpush1.msra.mxu0 0.0
    %1224 = vmatprep.subr.mxu0 0.0
    %1225 = vmatpush1.msra.mxu0 0.0
    %1226 = vmatprep.subr.mxu0 0.0
    %1227 = vmatpush1.msra.mxu0 0.0
    %1228 = vmatprep.subr.mxu0 0.0
    %1229 = vmatpush1.msra.mxu0 0.0
    %1230 = vmatprep.subr.mxu0 0.0
    %1231 = vmatpush1.msra.mxu0 0.0
    %1232 = vmatprep.subr.mxu0 0.0
    %1233 = vmatpush1.msra.mxu0 0.0
    %1234 = vmatprep.subr.mxu0 0.0
    %1235 = vmatpush1.msra.mxu0 0.0
    %1236 = vmatprep.subr.mxu0 0.0
    %1237 = vmatpush1.msra.mxu0 0.0
    %1238 = vmatprep.subr.mxu0 0.0
    %1239 = vmatpush1.msra.mxu0 0.0
    %1240 = vmatprep.mubr.f32.mxu0 0.0
    %v1241 = vand.u32 %v109, 4294901760
    %v1242 = vsub.f32 %v109, %v1241
    %v1243 = vand.u32 %v1242, 4294901760
    %v1244 = vsub.f32 %v1242, %v1243
    %v1245 = vand.u32 %v1244, 4294901760
    %1246 = vmatmul.mubr.f32.gmra.mrb[0].mxu0 %v1245
    %v1247 = vpop.f32.mrb[0].mxu0
    %v1248 = vadd.f32 0.0, %v1247
    %v1249 = vpop.f32.mrb[0].mxu0
    %1250 = vmatprep.mubr.f32.mxu0 0.0
    %v1251 = vand.u32 %v112, 4294901760
    %v1252 = vsub.f32 %v112, %v1251
    %v1253 = vand.u32 %v1252, 4294901760
    %v1254 = vsub.f32 %v1252, %v1253
    %v1255 = vand.u32 %v1254, 4294901760
    %1256 = vmatmul.mubr.f32.gmra.mrb[0].mxu0 %v1255
    %v1257 = vpop.f32.mrb[0].mxu0
    %v1258 = vadd.f32 0.0, %v1257
    %v1259 = vpop.f32.mrb[0].mxu0
    %1260 = vdwg.mxu0
    %1261 = vmatprep.subr.mxu0 0.0
    %v1262 = vand.u32 %v99, 4294901760
    %v1263 = vsub.f32 %v99, %v1262
    %v1264 = vand.u32 %v1263, 4294901760
    %v1265 = vsub.f32 %v1263, %v1264
    %v1266 = vand.u32 %v1265, 4294901760
    %1267 = vmatpush1.msra.mxu0 %v1266
    %1268 = vmatprep.subr.mxu0 0.0
    %v1269 = vand.u32 %v100, 4294901760
    %v1270 = vsub.f32 %v100, %v1269
    %v1271 = vand.u32 %v1270, 4294901760
    %v1272 = vsub.f32 %v1270, %v1271
    %v1273 = vand.u32 %v1272, 4294901760
    %1274 = vmatpush1.msra.mxu0 %v1273
    %1275 = vmatprep.subr.mxu0 0.0
    %v1276 = vand.u32 %v101, 4294901760
    %v1277 = vsub.f32 %v101, %v1276
    %v1278 = vand.u32 %v1277, 4294901760
    %v1279 = vsub.f32 %v1277, %v1278
    %v1280 = vand.u32 %v1279, 4294901760
    %1281 = vmatpush1.msra.mxu0 %v1280
    %1282 = vmatprep.subr.mxu0 0.0
    %v1283 = vand.u32 %v102, 4294901760
    %v1284 = vsub.f32 %v102, %v1283
    %v1285 = vand.u32 %v1284, 4294901760
    %v1286 = vsub.f32 %v1284, %v1285
    %v1287 = vand.u32 %v1286, 4294901760
    %1288 = vmatpush1.msra.mxu0 %v1287
    %1289 = vmatprep.subr.mxu0 0.0
    %1290 = vmatpush1.msra.mxu0 0.0
    %1291 = vmatprep.subr.mxu0 0.0
    %1292 = vmatpush1.msra.mxu0 0.0
    %1293 = vmatprep.subr.mxu0 0.0
    %1294 = vmatpush1.msra.mxu0 0.0
    %1295 = vmatprep.subr.mxu0 0.0
    %1296 = vmatpush1.msra.mxu0 0.0
    %1297 = vmatprep.subr.mxu0 0.0
    %1298 = vmatpush1.msra.mxu0 0.0
    %1299 = vmatprep.subr.mxu0 0.0
    %1300 = vmatpush1.msra.mxu0 0.0
    %1301 = vmatprep.subr.mxu0 0.0
    %1302 = vmatpush1.msra.mxu0 0.0
    %1303 = vmatprep.subr.mxu0 0.0
    %1304 = vmatpush1.msra.mxu0 0.0
    %1305 = vmatprep.subr.mxu0 0.0
    %1306 = vmatpush1.msra.mxu0 0.0
    %1307 = vmatprep.subr.mxu0 0.0
    %1308 = vmatpush1.msra.mxu0 0.0
    %1309 = vmatprep.subr.mxu0 0.0
    %1310 = vmatpush1.msra.mxu0 0.0
    %1311 = vmatprep.subr.mxu0 0.0
    %1312 = vmatpush1.msra.mxu0 0.0
    %1313 = vmatprep.subr.mxu0 0.0
    %1314 = vmatpush1.msra.mxu0 0.0
    %1315 = vmatprep.subr.mxu0 0.0
    %1316 = vmatpush1.msra.mxu0 0.0
    %1317 = vmatprep.subr.mxu0 0.0
    %1318 = vmatpush1.msra.mxu0 0.0
    %1319 = vmatprep.subr.mxu0 0.0
    %1320 = vmatpush1.msra.mxu0 0.0
    %1321 = vmatprep.subr.mxu0 0.0
    %1322 = vmatpush1.msra.mxu0 0.0
    %1323 = vmatprep.subr.mxu0 0.0
    %1324 = vmatpush1.msra.mxu0 0.0
    %1325 = vmatprep.subr.mxu0 0.0
    %1326 = vmatpush1.msra.mxu0 0.0
    %1327 = vmatprep.subr.mxu0 0.0
    %1328 = vmatpush1.msra.mxu0 0.0
    %1329 = vmatprep.subr.mxu0 0.0
    %1330 = vmatpush1.msra.mxu0 0.0
    %1331 = vmatprep.subr.mxu0 0.0
    %1332 = vmatpush1.msra.mxu0 0.0
    %1333 = vmatprep.subr.mxu0 0.0
    %1334 = vmatpush1.msra.mxu0 0.0
    %1335 = vmatprep.subr.mxu0 0.0
    %1336 = vmatpush1.msra.mxu0 0.0
    %1337 = vmatprep.subr.mxu0 0.0
    %1338 = vmatpush1.msra.mxu0 0.0
    %1339 = vmatprep.subr.mxu0 0.0
    %1340 = vmatpush1.msra.mxu0 0.0
    %1341 = vmatprep.subr.mxu0 0.0
    %1342 = vmatpush1.msra.mxu0 0.0
    %1343 = vmatprep.subr.mxu0 0.0
    %1344 = vmatpush1.msra.mxu0 0.0
    %1345 = vmatprep.mubr.f32.mxu0 0.0
    %v1346 = vand.u32 %v109, 4294901760
    %1347 = vmatmul.mubr.f32.gmra.mrb[0].mxu0 %v1346
    %v1348 = vpop.f32.mrb[0].mxu0
    %v1349 = vadd.f32 %v1248, %v1348
    %v1350 = vpop.f32.mrb[0].mxu0
    %1351 = vmatprep.mubr.f32.mxu0 0.0
    %v1352 = vand.u32 %v112, 4294901760
    %1353 = vmatmul.mubr.f32.gmra.mrb[0].mxu0 %v1352
    %v1354 = vpop.f32.mrb[0].mxu0
    %v1355 = vadd.f32 %v1258, %v1354
    %v1356 = vpop.f32.mrb[0].mxu0
    %1357 = vdwg.mxu0
    %1358 = vmatprep.subr.mxu0 0.0
    %v1359 = vand.u32 %v99, 4294901760
    %v1360 = vsub.f32 %v99, %v1359
    %1361 = vmatpush1.msra.mxu0 %v1360
    %1362 = vmatprep.subr.mxu0 0.0
    %v1363 = vand.u32 %v100, 4294901760
    %v1364 = vsub.f32 %v100, %v1363
    %1365 = vmatpush1.msra.mxu0 %v1364
    %1366 = vmatprep.subr.mxu0 0.0
    %v1367 = vand.u32 %v101, 4294901760
    %v1368 = vsub.f32 %v101, %v1367
    %1369 = vmatpush1.msra.mxu0 %v1368
    %1370 = vmatprep.subr.mxu0 0.0
    %v1371 = vand.u32 %v102, 4294901760
    %v1372 = vsub.f32 %v102, %v1371
    %1373 = vmatpush1.msra.mxu0 %v1372
    %1374 = vmatprep.subr.mxu0 0.0
    %1375 = vmatpush1.msra.mxu0 0.0
    %1376 = vmatprep.subr.mxu0 0.0
    %1377 = vmatpush1.msra.mxu0 0.0
    %1378 = vmatprep.subr.mxu0 0.0
    %1379 = vmatpush1.msra.mxu0 0.0
    %1380 = vmatprep.subr.mxu0 0.0
    %1381 = vmatpush1.msra.mxu0 0.0
    %1382 = vmatprep.subr.mxu0 0.0
    %1383 = vmatpush1.msra.mxu0 0.0
    %1384 = vmatprep.subr.mxu0 0.0
    %1385 = vmatpush1.msra.mxu0 0.0
    %1386 = vmatprep.subr.mxu0 0.0
    %1387 = vmatpush1.msra.mxu0 0.0
    %1388 = vmatprep.subr.mxu0 0.0
    %1389 = vmatpush1.msra.mxu0 0.0
    %1390 = vmatprep.subr.mxu0 0.0
    %1391 = vmatpush1.msra.mxu0 0.0
    %1392 = vmatprep.subr.mxu0 0.0
    %1393 = vmatpush1.msra.mxu0 0.0
    %1394 = vmatprep.subr.mxu0 0.0
    %1395 = vmatpush1.msra.mxu0 0.0
    %1396 = vmatprep.subr.mxu0 0.0
    %1397 = vmatpush1.msra.mxu0 0.0
    %1398 = vmatprep.subr.mxu0 0.0
    %1399 = vmatpush1.msra.mxu0 0.0
    %1400 = vmatprep.subr.mxu0 0.0
    %1401 = vmatpush1.msra.mxu0 0.0
    %1402 = vmatprep.subr.mxu0 0.0
    %1403 = vmatpush1.msra.mxu0 0.0
    %1404 = vmatprep.subr.mxu0 0.0
    %1405 = vmatpush1.msra.mxu0 0.0
    %1406 = vmatprep.subr.mxu0 0.0
    %1407 = vmatpush1.msra.mxu0 0.0
    %1408 = vmatprep.subr.mxu0 0.0
    %1409 = vmatpush1.msra.mxu0 0.0
    %1410 = vmatprep.subr.mxu0 0.0
    %1411 = vmatpush1.msra.mxu0 0.0
    %1412 = vmatprep.subr.mxu0 0.0
    %1413 = vmatpush1.msra.mxu0 0.0
    %1414 = vmatprep.subr.mxu0 0.0
    %1415 = vmatpush1.msra.mxu0 0.0
    %1416 = vmatprep.subr.mxu0 0.0
    %1417 = vmatpush1.msra.mxu0 0.0
    %1418 = vmatprep.subr.mxu0 0.0
    %1419 = vmatpush1.msra.mxu0 0.0
    %1420 = vmatprep.subr.mxu0 0.0
    %1421 = vmatpush1.msra.mxu0 0.0
    %1422 = vmatprep.subr.mxu0 0.0
    %1423 = vmatpush1.msra.mxu0 0.0
    %1424 = vmatprep.subr.mxu0 0.0
    %1425 = vmatpush1.msra.mxu0 0.0
    %1426 = vmatprep.subr.mxu0 0.0
    %1427 = vmatpush1.msra.mxu0 0.0
    %1428 = vmatprep.subr.mxu0 0.0
    %1429 = vmatpush1.msra.mxu0 0.0
    %1430 = vmatprep.mubr.f32.mxu0 0.0
    %v1431 = vand.u32 %v109, 4294901760
    %v1432 = vsub.f32 %v109, %v1431
    %1433 = vmatmul.mubr.f32.gmra.mrb[0].mxu0 %v1432
    %v1434 = vpop.f32.mrb[0].mxu0
    %v1435 = vadd.f32 %v1349, %v1434
    %v1436 = vpop.f32.mrb[0].mxu0
    %1437 = vmatprep.mubr.f32.mxu0 0.0
    %v1438 = vand.u32 %v112, 4294901760
    %v1439 = vsub.f32 %v112, %v1438
    %1440 = vmatmul.mubr.f32.gmra.mrb[0].mxu0 %v1439
    %v1441 = vpop.f32.mrb[0].mxu0
    %v1442 = vadd.f32 %v1355, %v1441
    %v1443 = vpop.f32.mrb[0].mxu0
    %1444 = vdwg.mxu0
    %1445 = vmatprep.subr.mxu0 0.0
    %v1446 = vand.u32 %v99, 4294901760
    %1447 = vmatpush1.msra.mxu0 %v1446
    %1448 = vmatprep.subr.mxu0 0.0
    %v1449 = vand.u32 %v100, 4294901760
    %1450 = vmatpush1.msra.mxu0 %v1449
    %1451 = vmatprep.subr.mxu0 0.0
    %v1452 = vand.u32 %v101, 4294901760
    %1453 = vmatpush1.msra.mxu0 %v1452
    %1454 = vmatprep.subr.mxu0 0.0
    %v1455 = vand.u32 %v102, 4294901760
    %1456 = vmatpush1.msra.mxu0 %v1455
    %1457 = vmatprep.subr.mxu0 0.0
    %1458 = vmatpush1.msra.mxu0 0.0
    %1459 = vmatprep.subr.mxu0 0.0
    %1460 = vmatpush1.msra.mxu0 0.0
    %1461 = vmatprep.subr.mxu0 0.0
    %1462 = vmatpush1.msra.mxu0 0.0
    %1463 = vmatprep.subr.mxu0 0.0
    %1464 = vmatpush1.msra.mxu0 0.0
    %1465 = vmatprep.subr.mxu0 0.0
    %1466 = vmatpush1.msra.mxu0 0.0
    %1467 = vmatprep.subr.mxu0 0.0
    %1468 = vmatpush1.msra.mxu0 0.0
    %1469 = vmatprep.subr.mxu0 0.0
    %1470 = vmatpush1.msra.mxu0 0.0
    %1471 = vmatprep.subr.mxu0 0.0
    %1472 = vmatpush1.msra.mxu0 0.0
    %1473 = vmatprep.subr.mxu0 0.0
    %1474 = vmatpush1.msra.mxu0 0.0
    %1475 = vmatprep.subr.mxu0 0.0
    %1476 = vmatpush1.msra.mxu0 0.0
    %1477 = vmatprep.subr.mxu0 0.0
    %1478 = vmatpush1.msra.mxu0 0.0
    %1479 = vmatprep.subr.mxu0 0.0
    %1480 = vmatpush1.msra.mxu0 0.0
    %1481 = vmatprep.subr.mxu0 0.0
    %1482 = vmatpush1.msra.mxu0 0.0
    %1483 = vmatprep.subr.mxu0 0.0
    %1484 = vmatpush1.msra.mxu0 0.0
    %1485 = vmatprep.subr.mxu0 0.0
    %1486 = vmatpush1.msra.mxu0 0.0
    %1487 = vmatprep.subr.mxu0 0.0
    %1488 = vmatpush1.msra.mxu0 0.0
    %1489 = vmatprep.subr.mxu0 0.0
    %1490 = vmatpush1.msra.mxu0 0.0
    %1491 = vmatprep.subr.mxu0 0.0
    %1492 = vmatpush1.msra.mxu0 0.0
    %1493 = vmatprep.subr.mxu0 0.0
    %1494 = vmatpush1.msra.mxu0 0.0
    %1495 = vmatprep.subr.mxu0 0.0
    %1496 = vmatpush1.msra.mxu0 0.0
    %1497 = vmatprep.subr.mxu0 0.0
    %1498 = vmatpush1.msra.mxu0 0.0
    %1499 = vmatprep.subr.mxu0 0.0
    %1500 = vmatpush1.msra.mxu0 0.0
    %1501 = vmatprep.subr.mxu0 0.0
    %1502 = vmatpush1.msra.mxu0 0.0
    %1503 = vmatprep.subr.mxu0 0.0
    %1504 = vmatpush1.msra.mxu0 0.0
    %1505 = vmatprep.subr.mxu0 0.0
    %1506 = vmatpush1.msra.mxu0 0.0
    %1507 = vmatprep.subr.mxu0 0.0
    %1508 = vmatpush1.msra.mxu0 0.0
    %1509 = vmatprep.subr.mxu0 0.0
    %1510 = vmatpush1.msra.mxu0 0.0
    %1511 = vmatprep.subr.mxu0 0.0
    %1512 = vmatpush1.msra.mxu0 0.0
    %1513 = vmatprep.mubr.f32.mxu0 0.0
    %v1514 = vand.u32 %v109, 4294901760
    %v1515 = vsub.f32 %v109, %v1514
    %v1516 = vand.u32 %v1515, 4294901760
    %1517 = vmatmul.mubr.f32.gmra.mrb[0].mxu0 %v1516
    %v1518 = vpop.f32.mrb[0].mxu0
    %v1519 = vadd.f32 %v1435, %v1518
    %v1520 = vpop.f32.mrb[0].mxu0
    %1521 = vmatprep.mubr.f32.mxu0 0.0
    %v1522 = vand.u32 %v112, 4294901760
    %v1523 = vsub.f32 %v112, %v1522
    %v1524 = vand.u32 %v1523, 4294901760
    %1525 = vmatmul.mubr.f32.gmra.mrb[0].mxu0 %v1524
    %v1526 = vpop.f32.mrb[0].mxu0
    %v1527 = vadd.f32 %v1442, %v1526
    %v1528 = vpop.f32.mrb[0].mxu0
    %1529 = vdwg.mxu0
    %1530 = vmatprep.subr.mxu0 0.0
    %v1531 = vand.u32 %v99, 4294901760
    %v1532 = vsub.f32 %v99, %v1531
    %v1533 = vand.u32 %v1532, 4294901760
    %1534 = vmatpush1.msra.mxu0 %v1533
    %1535 = vmatprep.subr.mxu0 0.0
    %v1536 = vand.u32 %v100, 4294901760
    %v1537 = vsub.f32 %v100, %v1536
    %v1538 = vand.u32 %v1537, 4294901760
    %1539 = vmatpush1.msra.mxu0 %v1538
    %1540 = vmatprep.subr.mxu0 0.0
    %v1541 = vand.u32 %v101, 4294901760
    %v1542 = vsub.f32 %v101, %v1541
    %v1543 = vand.u32 %v1542, 4294901760
    %1544 = vmatpush1.msra.mxu0 %v1543
    %1545 = vmatprep.subr.mxu0 0.0
    %v1546 = vand.u32 %v102, 4294901760
    %v1547 = vsub.f32 %v102, %v1546
    %v1548 = vand.u32 %v1547, 4294901760
    %1549 = vmatpush1.msra.mxu0 %v1548
    %1550 = vmatprep.subr.mxu0 0.0
    %1551 = vmatpush1.msra.mxu0 0.0
    %1552 = vmatprep.subr.mxu0 0.0
    %1553 = vmatpush1.msra.mxu0 0.0
    %1554 = vmatprep.subr.mxu0 0.0
    %1555 = vmatpush1.msra.mxu0 0.0
    %1556 = vmatprep.subr.mxu0 0.0
    %1557 = vmatpush1.msra.mxu0 0.0
    %1558 = vmatprep.subr.mxu0 0.0
    %1559 = vmatpush1.msra.mxu0 0.0
    %1560 = vmatprep.subr.mxu0 0.0
    %1561 = vmatpush1.msra.mxu0 0.0
    %1562 = vmatprep.subr.mxu0 0.0
    %1563 = vmatpush1.msra.mxu0 0.0
    %1564 = vmatprep.subr.mxu0 0.0
    %1565 = vmatpush1.msra.mxu0 0.0
    %1566 = vmatprep.subr.mxu0 0.0
    %1567 = vmatpush1.msra.mxu0 0.0
    %1568 = vmatprep.subr.mxu0 0.0
    %1569 = vmatpush1.msra.mxu0 0.0
    %1570 = vmatprep.subr.mxu0 0.0
    %1571 = vmatpush1.msra.mxu0 0.0
    %1572 = vmatprep.subr.mxu0 0.0
    %1573 = vmatpush1.msra.mxu0 0.0
    %1574 = vmatprep.subr.mxu0 0.0
    %1575 = vmatpush1.msra.mxu0 0.0
    %1576 = vmatprep.subr.mxu0 0.0
    %1577 = vmatpush1.msra.mxu0 0.0
    %1578 = vmatprep.subr.mxu0 0.0
    %1579 = vmatpush1.msra.mxu0 0.0
    %1580 = vmatprep.subr.mxu0 0.0
    %1581 = vmatpush1.msra.mxu0 0.0
    %1582 = vmatprep.subr.mxu0 0.0
    %1583 = vmatpush1.msra.mxu0 0.0
    %1584 = vmatprep.subr.mxu0 0.0
    %1585 = vmatpush1.msra.mxu0 0.0
    %1586 = vmatprep.subr.mxu0 0.0
    %1587 = vmatpush1.msra.mxu0 0.0
    %1588 = vmatprep.subr.mxu0 0.0
    %1589 = vmatpush1.msra.mxu0 0.0
    %1590 = vmatprep.subr.mxu0 0.0
    %1591 = vmatpush1.msra.mxu0 0.0
    %1592 = vmatprep.subr.mxu0 0.0
    %1593 = vmatpush1.msra.mxu0 0.0
    %1594 = vmatprep.subr.mxu0 0.0
    %1595 = vmatpush1.msra.mxu0 0.0
    %1596 = vmatprep.subr.mxu0 0.0
    %1597 = vmatpush1.msra.mxu0 0.0
    %1598 = vmatprep.subr.mxu0 0.0
    %1599 = vmatpush1.msra.mxu0 0.0
    %1600 = vmatprep.subr.mxu0 0.0
    %1601 = vmatpush1.msra.mxu0 0.0
    %1602 = vmatprep.subr.mxu0 0.0
    %1603 = vmatpush1.msra.mxu0 0.0
    %1604 = vmatprep.subr.mxu0 0.0
    %1605 = vmatpush1.msra.mxu0 0.0
    %1606 = vmatprep.mubr.f32.mxu0 0.0
    %v1607 = vand.u32 %v109, 4294901760
    %1608 = vmatmul.mubr.f32.gmra.mrb[0].mxu0 %v1607
    %v1609 = vpop.f32.mrb[0].mxu0
    %v1610 = vadd.f32 %v1519, %v1609
    %v1611 = vpop.f32.mrb[0].mxu0
    %1612 = vmatprep.mubr.f32.mxu0 0.0
    %v1613 = vand.u32 %v112, 4294901760
    %1614 = vmatmul.mubr.f32.gmra.mrb[0].mxu0 %v1613
    %v1615 = vpop.f32.mrb[0].mxu0
    %v1616 = vadd.f32 %v1527, %v1615
    %v1617 = vpop.f32.mrb[0].mxu0
    %1618 = vdwg.mxu0
    %1619 = vmatprep.subr.mxu0 0.0
    %v1620 = vand.u32 %v99, 4294901760
    %1621 = vmatpush1.msra.mxu0 %v1620
    %1622 = vmatprep.subr.mxu0 0.0
    %v1623 = vand.u32 %v100, 4294901760
    %1624 = vmatpush1.msra.mxu0 %v1623
    %1625 = vmatprep.subr.mxu0 0.0
    %v1626 = vand.u32 %v101, 4294901760
    %1627 = vmatpush1.msra.mxu0 %v1626
    %1628 = vmatprep.subr.mxu0 0.0
    %v1629 = vand.u32 %v102, 4294901760
    %1630 = vmatpush1.msra.mxu0 %v1629
    %1631 = vmatprep.subr.mxu0 0.0
    %1632 = vmatpush1.msra.mxu0 0.0
    %1633 = vmatprep.subr.mxu0 0.0
    %1634 = vmatpush1.msra.mxu0 0.0
    %1635 = vmatprep.subr.mxu0 0.0
    %1636 = vmatpush1.msra.mxu0 0.0
    %1637 = vmatprep.subr.mxu0 0.0
    %1638 = vmatpush1.msra.mxu0 0.0
    %1639 = vmatprep.subr.mxu0 0.0
    %1640 = vmatpush1.msra.mxu0 0.0
    %1641 = vmatprep.subr.mxu0 0.0
    %1642 = vmatpush1.msra.mxu0 0.0
    %1643 = vmatprep.subr.mxu0 0.0
    %1644 = vmatpush1.msra.mxu0 0.0
    %1645 = vmatprep.subr.mxu0 0.0
    %1646 = vmatpush1.msra.mxu0 0.0
    %1647 = vmatprep.subr.mxu0 0.0
    %1648 = vmatpush1.msra.mxu0 0.0
    %1649 = vmatprep.subr.mxu0 0.0
    %1650 = vmatpush1.msra.mxu0 0.0
    %1651 = vmatprep.subr.mxu0 0.0
    %1652 = vmatpush1.msra.mxu0 0.0
    %1653 = vmatprep.subr.mxu0 0.0
    %1654 = vmatpush1.msra.mxu0 0.0
    %1655 = vmatprep.subr.mxu0 0.0
    %1656 = vmatpush1.msra.mxu0 0.0
    %1657 = vmatprep.subr.mxu0 0.0
    %1658 = vmatpush1.msra.mxu0 0.0
    %1659 = vmatprep.subr.mxu0 0.0
    %1660 = vmatpush1.msra.mxu0 0.0
    %1661 = vmatprep.subr.mxu0 0.0
    %1662 = vmatpush1.msra.mxu0 0.0
    %1663 = vmatprep.subr.mxu0 0.0
    %1664 = vmatpush1.msra.mxu0 0.0
    %1665 = vmatprep.subr.mxu0 0.0
    %1666 = vmatpush1.msra.mxu0 0.0
    %1667 = vmatprep.subr.mxu0 0.0
    %1668 = vmatpush1.msra.mxu0 0.0
    %1669 = vmatprep.subr.mxu0 0.0
    %1670 = vmatpush1.msra.mxu0 0.0
    %1671 = vmatprep.subr.mxu0 0.0
    %1672 = vmatpush1.msra.mxu0 0.0
    %1673 = vmatprep.subr.mxu0 0.0
    %1674 = vmatpush1.msra.mxu0 0.0
    %1675 = vmatprep.subr.mxu0 0.0
    %1676 = vmatpush1.msra.mxu0 0.0
    %1677 = vmatprep.subr.mxu0 0.0
    %1678 = vmatpush1.msra.mxu0 0.0
    %1679 = vmatprep.subr.mxu0 0.0
    %1680 = vmatpush1.msra.mxu0 0.0
    %1681 = vmatprep.subr.mxu0 0.0
    %1682 = vmatpush1.msra.mxu0 0.0
    %1683 = vmatprep.subr.mxu0 0.0
    %1684 = vmatpush1.msra.mxu0 0.0
    %1685 = vmatprep.subr.mxu0 0.0
    %1686 = vmatpush1.msra.mxu0 0.0
    %1687 = vmatprep.mubr.f32.mxu0 0.0
    %v1688 = vand.u32 %v109, 4294901760
    %1689 = vmatmul.mubr.f32.gmra.mrb[0].mxu0 %v1688
    %v1690 = vpop.f32.mrb[0].mxu0
    %v1691 = vadd.f32 %v1610, %v1690
    %v1692 = vpop.f32.mrb[0].mxu0
    %1693 = vmatprep.mubr.f32.mxu0 0.0
    %v1694 = vand.u32 %v112, 4294901760
    %1695 = vmatmul.mubr.f32.gmra.mrb[0].mxu0 %v1694
    %v1696 = vpop.f32.mrb[0].mxu0
    %v1697 = vadd.f32 %v1616, %v1696
    %v1698 = vpop.f32.mrb[0].mxu0
    %1699 = vdwg.mxu0
    %vm1700 = vcmask 64512
    %v1702 = vsel %vm1700, %v642, 0
    %v1705 = vsel %vm1700, %v1163, 0
    %1707 = vmatprep.subr.mxu0 0.0
    %v1708 = vand.u32 %v1705, 4294901760
    %1709 = vmatpush1.xpose.msra.mxu0 %v1708
    %1710 = vmatprep.subr.mxu0 0.0
    %1711 = vmatpush1.xpose.msra.mxu0 0.0
    %1712 = vmatprep.subr.mxu0 0.0
    %1713 = vmatpush1.xpose.msra.mxu0 0.0
    %1714 = vmatprep.subr.mxu0 0.0
    %1715 = vmatpush1.xpose.msra.mxu0 0.0
    %1716 = vmatprep.subr.mxu0 0.0
    %1717 = vmatpush1.xpose.msra.mxu0 0.0
    %1718 = vmatprep.subr.mxu0 0.0
    %1719 = vmatpush1.xpose.msra.mxu0 0.0
    %1720 = vmatprep.subr.mxu0 0.0
    %1721 = vmatpush1.xpose.msra.mxu0 0.0
    %1722 = vmatprep.subr.mxu0 0.0
    %1723 = vmatpush1.xpose.msra.mxu0 0.0
    %1724 = vmatprep.subr.mxu0 0.0
    %1725 = vmatpush1.xpose.msra.mxu0 0.0
    %1726 = vmatprep.subr.mxu0 0.0
    %1727 = vmatpush1.xpose.msra.mxu0 0.0
    %1728 = vmatprep.subr.mxu0 0.0
    %1729 = vmatpush1.xpose.msra.mxu0 0.0
    %1730 = vmatprep.subr.mxu0 0.0
    %1731 = vmatpush1.xpose.msra.mxu0 0.0
    %1732 = vmatprep.subr.mxu0 0.0
    %1733 = vmatpush1.xpose.msra.mxu0 0.0
    %1734 = vmatprep.subr.mxu0 0.0
    %1735 = vmatpush1.xpose.msra.mxu0 0.0
    %1736 = vmatprep.subr.mxu0 0.0
    %1737 = vmatpush1.xpose.msra.mxu0 0.0
    %1738 = vmatprep.subr.mxu0 0.0
    %1739 = vmatpush1.xpose.msra.mxu0 0.0
    %1740 = vmatprep.subr.mxu0 0.0
    %1741 = vmatpush1.xpose.msra.mxu0 0.0
    %1742 = vmatprep.subr.mxu0 0.0
    %1743 = vmatpush1.xpose.msra.mxu0 0.0
    %1744 = vmatprep.subr.mxu0 0.0
    %1745 = vmatpush1.xpose.msra.mxu0 0.0
    %1746 = vmatprep.subr.mxu0 0.0
    %1747 = vmatpush1.xpose.msra.mxu0 0.0
    %1748 = vmatprep.subr.mxu0 0.0
    %1749 = vmatpush1.xpose.msra.mxu0 0.0
    %1750 = vmatprep.subr.mxu0 0.0
    %1751 = vmatpush1.xpose.msra.mxu0 0.0
    %1752 = vmatprep.subr.mxu0 0.0
    %1753 = vmatpush1.xpose.msra.mxu0 0.0
    %1754 = vmatprep.subr.mxu0 0.0
    %1755 = vmatpush1.xpose.msra.mxu0 0.0
    %1756 = vmatprep.subr.mxu0 0.0
    %1757 = vmatpush1.xpose.msra.mxu0 0.0
    %1758 = vmatprep.subr.mxu0 0.0
    %1759 = vmatpush1.xpose.msra.mxu0 0.0
    %1760 = vmatprep.subr.mxu0 0.0
    %1761 = vmatpush1.xpose.msra.mxu0 0.0
    %1762 = vmatprep.subr.mxu0 0.0
    %1763 = vmatpush1.xpose.msra.mxu0 0.0
    %1764 = vmatprep.subr.mxu0 0.0
    %1765 = vmatpush1.xpose.msra.mxu0 0.0
    %1766 = vmatprep.subr.mxu0 0.0
    %1767 = vmatpush1.xpose.msra.mxu0 0.0
    %1768 = vmatprep.subr.mxu0 0.0
    %1769 = vmatpush1.xpose.msra.mxu0 0.0
    %1770 = vmatprep.subr.mxu0 0.0
    %1771 = vmatpush1.xpose.msra.mxu0 0.0
    %1772 = vmatprep.mubr.f32.mxu0 0.0
    %v1773 = vand.u32 %v1702, 4294901760
    %v1774 = vsub.f32 %v1702, %v1773
    %v1775 = vand.u32 %v1774, 4294901760
    %v1776 = vsub.f32 %v1774, %v1775
    %v1777 = vand.u32 %v1776, 4294901760
    %1778 = vmatmul.mubr.f32.gmra.mrb[0].mxu0 %v1777
    %v1779 = vpop.f32.mrb[0].mxu0
    %v1780 = vadd.f32 0.0, %v1779
    %v1781 = vpop.f32.mrb[0].mxu0
    %1782 = vdwg.mxu0
    %1783 = vmatprep.subr.mxu0 0.0
    %v1784 = vand.u32 %v1705, 4294901760
    %v1785 = vsub.f32 %v1705, %v1784
    %v1786 = vand.u32 %v1785, 4294901760
    %v1787 = vsub.f32 %v1785, %v1786
    %v1788 = vand.u32 %v1787, 4294901760
    %1789 = vmatpush1.xpose.msra.mxu0 %v1788
    %1790 = vmatprep.subr.mxu0 0.0
    %1791 = vmatpush1.xpose.msra.mxu0 0.0
    %1792 = vmatprep.subr.mxu0 0.0
    %1793 = vmatpush1.xpose.msra.mxu0 0.0
    %1794 = vmatprep.subr.mxu0 0.0
    %1795 = vmatpush1.xpose.msra.mxu0 0.0
    %1796 = vmatprep.subr.mxu0 0.0
    %1797 = vmatpush1.xpose.msra.mxu0 0.0
    %1798 = vmatprep.subr.mxu0 0.0
    %1799 = vmatpush1.xpose.msra.mxu0 0.0
    %1800 = vmatprep.subr.mxu0 0.0
    %1801 = vmatpush1.xpose.msra.mxu0 0.0
    %1802 = vmatprep.subr.mxu0 0.0
    %1803 = vmatpush1.xpose.msra.mxu0 0.0
    %1804 = vmatprep.subr.mxu0 0.0
    %1805 = vmatpush1.xpose.msra.mxu0 0.0
    %1806 = vmatprep.subr.mxu0 0.0
    %1807 = vmatpush1.xpose.msra.mxu0 0.0
    %1808 = vmatprep.subr.mxu0 0.0
    %1809 = vmatpush1.xpose.msra.mxu0 0.0
    %1810 = vmatprep.subr.mxu0 0.0
    %1811 = vmatpush1.xpose.msra.mxu0 0.0
    %1812 = vmatprep.subr.mxu0 0.0
    %1813 = vmatpush1.xpose.msra.mxu0 0.0
    %1814 = vmatprep.subr.mxu0 0.0
    %1815 = vmatpush1.xpose.msra.mxu0 0.0
    %1816 = vmatprep.subr.mxu0 0.0
    %1817 = vmatpush1.xpose.msra.mxu0 0.0
    %1818 = vmatprep.subr.mxu0 0.0
    %1819 = vmatpush1.xpose.msra.mxu0 0.0
    %1820 = vmatprep.subr.mxu0 0.0
    %1821 = vmatpush1.xpose.msra.mxu0 0.0
    %1822 = vmatprep.subr.mxu0 0.0
    %1823 = vmatpush1.xpose.msra.mxu0 0.0
    %1824 = vmatprep.subr.mxu0 0.0
    %1825 = vmatpush1.xpose.msra.mxu0 0.0
    %1826 = vmatprep.subr.mxu0 0.0
    %1827 = vmatpush1.xpose.msra.mxu0 0.0
    %1828 = vmatprep.subr.mxu0 0.0
    %1829 = vmatpush1.xpose.msra.mxu0 0.0
    %1830 = vmatprep.subr.mxu0 0.0
    %1831 = vmatpush1.xpose.msra.mxu0 0.0
    %1832 = vmatprep.subr.mxu0 0.0
    %1833 = vmatpush1.xpose.msra.mxu0 0.0
    %1834 = vmatprep.subr.mxu0 0.0
    %1835 = vmatpush1.xpose.msra.mxu0 0.0
    %1836 = vmatprep.subr.mxu0 0.0
    %1837 = vmatpush1.xpose.msra.mxu0 0.0
    %1838 = vmatprep.subr.mxu0 0.0
    %1839 = vmatpush1.xpose.msra.mxu0 0.0
    %1840 = vmatprep.subr.mxu0 0.0
    %1841 = vmatpush1.xpose.msra.mxu0 0.0
    %1842 = vmatprep.subr.mxu0 0.0
    %1843 = vmatpush1.xpose.msra.mxu0 0.0
    %1844 = vmatprep.subr.mxu0 0.0
    %1845 = vmatpush1.xpose.msra.mxu0 0.0
    %1846 = vmatprep.subr.mxu0 0.0
    %1847 = vmatpush1.xpose.msra.mxu0 0.0
    %1848 = vmatprep.subr.mxu0 0.0
    %1849 = vmatpush1.xpose.msra.mxu0 0.0
    %1850 = vmatprep.subr.mxu0 0.0
    %1851 = vmatpush1.xpose.msra.mxu0 0.0
    %1852 = vmatprep.mubr.f32.mxu0 0.0
    %v1853 = vand.u32 %v1702, 4294901760
    %1854 = vmatmul.mubr.f32.gmra.mrb[0].mxu0 %v1853
    %v1855 = vpop.f32.mrb[0].mxu0
    %v1856 = vadd.f32 %v1780, %v1855
    %v1857 = vpop.f32.mrb[0].mxu0
    %1858 = vdwg.mxu0
    %1859 = vmatprep.subr.mxu0 0.0
    %v1860 = vand.u32 %v1705, 4294901760
    %v1861 = vsub.f32 %v1705, %v1860
    %1862 = vmatpush1.xpose.msra.mxu0 %v1861
    %1863 = vmatprep.subr.mxu0 0.0
    %1864 = vmatpush1.xpose.msra.mxu0 0.0
    %1865 = vmatprep.subr.mxu0 0.0
    %1866 = vmatpush1.xpose.msra.mxu0 0.0
    %1867 = vmatprep.subr.mxu0 0.0
    %1868 = vmatpush1.xpose.msra.mxu0 0.0
    %1869 = vmatprep.subr.mxu0 0.0
    %1870 = vmatpush1.xpose.msra.mxu0 0.0
    %1871 = vmatprep.subr.mxu0 0.0
    %1872 = vmatpush1.xpose.msra.mxu0 0.0
    %1873 = vmatprep.subr.mxu0 0.0
    %1874 = vmatpush1.xpose.msra.mxu0 0.0
    %1875 = vmatprep.subr.mxu0 0.0
    %1876 = vmatpush1.xpose.msra.mxu0 0.0
    %1877 = vmatprep.subr.mxu0 0.0
    %1878 = vmatpush1.xpose.msra.mxu0 0.0
    %1879 = vmatprep.subr.mxu0 0.0
    %1880 = vmatpush1.xpose.msra.mxu0 0.0
    %1881 = vmatprep.subr.mxu0 0.0
    %1882 = vmatpush1.xpose.msra.mxu0 0.0
    %1883 = vmatprep.subr.mxu0 0.0
    %1884 = vmatpush1.xpose.msra.mxu0 0.0
    %1885 = vmatprep.subr.mxu0 0.0
    %1886 = vmatpush1.xpose.msra.mxu0 0.0
    %1887 = vmatprep.subr.mxu0 0.0
    %1888 = vmatpush1.xpose.msra.mxu0 0.0
    %1889 = vmatprep.subr.mxu0 0.0
    %1890 = vmatpush1.xpose.msra.mxu0 0.0
    %1891 = vmatprep.subr.mxu0 0.0
    %1892 = vmatpush1.xpose.msra.mxu0 0.0
    %1893 = vmatprep.subr.mxu0 0.0
    %1894 = vmatpush1.xpose.msra.mxu0 0.0
    %1895 = vmatprep.subr.mxu0 0.0
    %1896 = vmatpush1.xpose.msra.mxu0 0.0
    %1897 = vmatprep.subr.mxu0 0.0
    %1898 = vmatpush1.xpose.msra.mxu0 0.0
    %1899 = vmatprep.subr.mxu0 0.0
    %1900 = vmatpush1.xpose.msra.mxu0 0.0
    %1901 = vmatprep.subr.mxu0 0.0
    %1902 = vmatpush1.xpose.msra.mxu0 0.0
    %1903 = vmatprep.subr.mxu0 0.0
    %1904 = vmatpush1.xpose.msra.mxu0 0.0
    %1905 = vmatprep.subr.mxu0 0.0
    %1906 = vmatpush1.xpose.msra.mxu0 0.0
    %1907 = vmatprep.subr.mxu0 0.0
    %1908 = vmatpush1.xpose.msra.mxu0 0.0
    %1909 = vmatprep.subr.mxu0 0.0
    %1910 = vmatpush1.xpose.msra.mxu0 0.0
    %1911 = vmatprep.subr.mxu0 0.0
    %1912 = vmatpush1.xpose.msra.mxu0 0.0
    %1913 = vmatprep.subr.mxu0 0.0
    %1914 = vmatpush1.xpose.msra.mxu0 0.0
    %1915 = vmatprep.subr.mxu0 0.0
    %1916 = vmatpush1.xpose.msra.mxu0 0.0
    %1917 = vmatprep.subr.mxu0 0.0
    %1918 = vmatpush1.xpose.msra.mxu0 0.0
    %1919 = vmatprep.subr.mxu0 0.0
    %1920 = vmatpush1.xpose.msra.mxu0 0.0
    %1921 = vmatprep.subr.mxu0 0.0
    %1922 = vmatpush1.xpose.msra.mxu0 0.0
    %1923 = vmatprep.subr.mxu0 0.0
    %1924 = vmatpush1.xpose.msra.mxu0 0.0
    %1925 = vmatprep.mubr.f32.mxu0 0.0
    %v1926 = vand.u32 %v1702, 4294901760
    %v1927 = vsub.f32 %v1702, %v1926
    %1928 = vmatmul.mubr.f32.gmra.mrb[0].mxu0 %v1927
    %v1929 = vpop.f32.mrb[0].mxu0
    %v1930 = vadd.f32 %v1856, %v1929
    %v1931 = vpop.f32.mrb[0].mxu0
    %1932 = vdwg.mxu0
    %1933 = vmatprep.subr.mxu0 0.0
    %v1934 = vand.u32 %v1705, 4294901760
    %1935 = vmatpush1.xpose.msra.mxu0 %v1934
    %1936 = vmatprep.subr.mxu0 0.0
    %1937 = vmatpush1.xpose.msra.mxu0 0.0
    %1938 = vmatprep.subr.mxu0 0.0
    %1939 = vmatpush1.xpose.msra.mxu0 0.0
    %1940 = vmatprep.subr.mxu0 0.0
    %1941 = vmatpush1.xpose.msra.mxu0 0.0
    %1942 = vmatprep.subr.mxu0 0.0
    %1943 = vmatpush1.xpose.msra.mxu0 0.0
    %1944 = vmatprep.subr.mxu0 0.0
    %1945 = vmatpush1.xpose.msra.mxu0 0.0
    %1946 = vmatprep.subr.mxu0 0.0
    %1947 = vmatpush1.xpose.msra.mxu0 0.0
    %1948 = vmatprep.subr.mxu0 0.0
    %1949 = vmatpush1.xpose.msra.mxu0 0.0
    %1950 = vmatprep.subr.mxu0 0.0
    %1951 = vmatpush1.xpose.msra.mxu0 0.0
    %1952 = vmatprep.subr.mxu0 0.0
    %1953 = vmatpush1.xpose.msra.mxu0 0.0
    %1954 = vmatprep.subr.mxu0 0.0
    %1955 = vmatpush1.xpose.msra.mxu0 0.0
    %1956 = vmatprep.subr.mxu0 0.0
    %1957 = vmatpush1.xpose.msra.mxu0 0.0
    %1958 = vmatprep.subr.mxu0 0.0
    %1959 = vmatpush1.xpose.msra.mxu0 0.0
    %1960 = vmatprep.subr.mxu0 0.0
    %1961 = vmatpush1.xpose.msra.mxu0 0.0
    %1962 = vmatprep.subr.mxu0 0.0
    %1963 = vmatpush1.xpose.msra.mxu0 0.0
    %1964 = vmatprep.subr.mxu0 0.0
    %1965 = vmatpush1.xpose.msra.mxu0 0.0
    %1966 = vmatprep.subr.mxu0 0.0
    %1967 = vmatpush1.xpose.msra.mxu0 0.0
    %1968 = vmatprep.subr.mxu0 0.0
    %1969 = vmatpush1.xpose.msra.mxu0 0.0
    %1970 = vmatprep.subr.mxu0 0.0
    %1971 = vmatpush1.xpose.msra.mxu0 0.0
    %1972 = vmatprep.subr.mxu0 0.0
    %1973 = vmatpush1.xpose.msra.mxu0 0.0
    %1974 = vmatprep.subr.mxu0 0.0
    %1975 = vmatpush1.xpose.msra.mxu0 0.0
    %1976 = vmatprep.subr.mxu0 0.0
    %1977 = vmatpush1.xpose.msra.mxu0 0.0
    %1978 = vmatprep.subr.mxu0 0.0
    %1979 = vmatpush1.xpose.msra.mxu0 0.0
    %1980 = vmatprep.subr.mxu0 0.0
    %1981 = vmatpush1.xpose.msra.mxu0 0.0
    %1982 = vmatprep.subr.mxu0 0.0
    %1983 = vmatpush1.xpose.msra.mxu0 0.0
    %1984 = vmatprep.subr.mxu0 0.0
    %1985 = vmatpush1.xpose.msra.mxu0 0.0
    %1986 = vmatprep.subr.mxu0 0.0
    %1987 = vmatpush1.xpose.msra.mxu0 0.0
    %1988 = vmatprep.subr.mxu0 0.0
    %1989 = vmatpush1.xpose.msra.mxu0 0.0
    %1990 = vmatprep.subr.mxu0 0.0
    %1991 = vmatpush1.xpose.msra.mxu0 0.0
    %1992 = vmatprep.subr.mxu0 0.0
    %1993 = vmatpush1.xpose.msra.mxu0 0.0
    %1994 = vmatprep.subr.mxu0 0.0
    %1995 = vmatpush1.xpose.msra.mxu0 0.0
    %1996 = vmatprep.subr.mxu0 0.0
    %1997 = vmatpush1.xpose.msra.mxu0 0.0
    %1998 = vmatprep.mubr.f32.mxu0 0.0
    %v1999 = vand.u32 %v1702, 4294901760
    %v2000 = vsub.f32 %v1702, %v1999
    %v2001 = vand.u32 %v2000, 4294901760
    %2002 = vmatmul.mubr.f32.gmra.mrb[0].mxu0 %v2001
    %v2003 = vpop.f32.mrb[0].mxu0
    %v2004 = vadd.f32 %v1930, %v2003
    %v2005 = vpop.f32.mrb[0].mxu0
    %2006 = vdwg.mxu0
    %2007 = vmatprep.subr.mxu0 0.0
    %v2008 = vand.u32 %v1705, 4294901760
    %v2009 = vsub.f32 %v1705, %v2008
    %v2010 = vand.u32 %v2009, 4294901760
    %2011 = vmatpush1.xpose.msra.mxu0 %v2010
    %2012 = vmatprep.subr.mxu0 0.0
    %2013 = vmatpush1.xpose.msra.mxu0 0.0
    %2014 = vmatprep.subr.mxu0 0.0
    %2015 = vmatpush1.xpose.msra.mxu0 0.0
    %2016 = vmatprep.subr.mxu0 0.0
    %2017 = vmatpush1.xpose.msra.mxu0 0.0
    %2018 = vmatprep.subr.mxu0 0.0
    %2019 = vmatpush1.xpose.msra.mxu0 0.0
    %2020 = vmatprep.subr.mxu0 0.0
    %2021 = vmatpush1.xpose.msra.mxu0 0.0
    %2022 = vmatprep.subr.mxu0 0.0
    %2023 = vmatpush1.xpose.msra.mxu0 0.0
    %2024 = vmatprep.subr.mxu0 0.0
    %2025 = vmatpush1.xpose.msra.mxu0 0.0
    %2026 = vmatprep.subr.mxu0 0.0
    %2027 = vmatpush1.xpose.msra.mxu0 0.0
    %2028 = vmatprep.subr.mxu0 0.0
    %2029 = vmatpush1.xpose.msra.mxu0 0.0
    %2030 = vmatprep.subr.mxu0 0.0
    %2031 = vmatpush1.xpose.msra.mxu0 0.0
    %2032 = vmatprep.subr.mxu0 0.0
    %2033 = vmatpush1.xpose.msra.mxu0 0.0
    %2034 = vmatprep.subr.mxu0 0.0
    %2035 = vmatpush1.xpose.msra.mxu0 0.0
    %2036 = vmatprep.subr.mxu0 0.0
    %2037 = vmatpush1.xpose.msra.mxu0 0.0
    %2038 = vmatprep.subr.mxu0 0.0
    %2039 = vmatpush1.xpose.msra.mxu0 0.0
    %2040 = vmatprep.subr.mxu0 0.0
    %2041 = vmatpush1.xpose.msra.mxu0 0.0
    %2042 = vmatprep.subr.mxu0 0.0
    %2043 = vmatpush1.xpose.msra.mxu0 0.0
    %2044 = vmatprep.subr.mxu0 0.0
    %2045 = vmatpush1.xpose.msra.mxu0 0.0
    %2046 = vmatprep.subr.mxu0 0.0
    %2047 = vmatpush1.xpose.msra.mxu0 0.0
    %2048 = vmatprep.subr.mxu0 0.0
    %2049 = vmatpush1.xpose.msra.mxu0 0.0
    %2050 = vmatprep.subr.mxu0 0.0
    %2051 = vmatpush1.xpose.msra.mxu0 0.0
    %2052 = vmatprep.subr.mxu0 0.0
    %2053 = vmatpush1.xpose.msra.mxu0 0.0
    %2054 = vmatprep.subr.mxu0 0.0
    %2055 = vmatpush1.xpose.msra.mxu0 0.0
    %2056 = vmatprep.subr.mxu0 0.0
    %2057 = vmatpush1.xpose.msra.mxu0 0.0
    %2058 = vmatprep.subr.mxu0 0.0
    %2059 = vmatpush1.xpose.msra.mxu0 0.0
    %2060 = vmatprep.subr.mxu0 0.0
    %2061 = vmatpush1.xpose.msra.mxu0 0.0
    %2062 = vmatprep.subr.mxu0 0.0
    %2063 = vmatpush1.xpose.msra.mxu0 0.0
    %2064 = vmatprep.subr.mxu0 0.0
    %2065 = vmatpush1.xpose.msra.mxu0 0.0
    %2066 = vmatprep.subr.mxu0 0.0
    %2067 = vmatpush1.xpose.msra.mxu0 0.0
    %2068 = vmatprep.subr.mxu0 0.0
    %2069 = vmatpush1.xpose.msra.mxu0 0.0
    %2070 = vmatprep.subr.mxu0 0.0
    %2071 = vmatpush1.xpose.msra.mxu0 0.0
    %2072 = vmatprep.subr.mxu0 0.0
    %2073 = vmatpush1.xpose.msra.mxu0 0.0
    %2074 = vmatprep.mubr.f32.mxu0 0.0
    %v2075 = vand.u32 %v1702, 4294901760
    %2076 = vmatmul.mubr.f32.gmra.mrb[0].mxu0 %v2075
    %v2077 = vpop.f32.mrb[0].mxu0
    %v2078 = vadd.f32 %v2004, %v2077
    %v2079 = vpop.f32.mrb[0].mxu0
    %2080 = vdwg.mxu0
    %2081 = vmatprep.subr.mxu0 0.0
    %v2082 = vand.u32 %v1705, 4294901760
    %2083 = vmatpush1.xpose.msra.mxu0 %v2082
    %2084 = vmatprep.subr.mxu0 0.0
    %2085 = vmatpush1.xpose.msra.mxu0 0.0
    %2086 = vmatprep.subr.mxu0 0.0
    %2087 = vmatpush1.xpose.msra.mxu0 0.0
    %2088 = vmatprep.subr.mxu0 0.0
    %2089 = vmatpush1.xpose.msra.mxu0 0.0
    %2090 = vmatprep.subr.mxu0 0.0
    %2091 = vmatpush1.xpose.msra.mxu0 0.0
    %2092 = vmatprep.subr.mxu0 0.0
    %2093 = vmatpush1.xpose.msra.mxu0 0.0
    %2094 = vmatprep.subr.mxu0 0.0
    %2095 = vmatpush1.xpose.msra.mxu0 0.0
    %2096 = vmatprep.subr.mxu0 0.0
    %2097 = vmatpush1.xpose.msra.mxu0 0.0
    %2098 = vmatprep.subr.mxu0 0.0
    %2099 = vmatpush1.xpose.msra.mxu0 0.0
    %2100 = vmatprep.subr.mxu0 0.0
    %2101 = vmatpush1.xpose.msra.mxu0 0.0
    %2102 = vmatprep.subr.mxu0 0.0
    %2103 = vmatpush1.xpose.msra.mxu0 0.0
    %2104 = vmatprep.subr.mxu0 0.0
    %2105 = vmatpush1.xpose.msra.mxu0 0.0
    %2106 = vmatprep.subr.mxu0 0.0
    %2107 = vmatpush1.xpose.msra.mxu0 0.0
    %2108 = vmatprep.subr.mxu0 0.0
    %2109 = vmatpush1.xpose.msra.mxu0 0.0
    %2110 = vmatprep.subr.mxu0 0.0
    %2111 = vmatpush1.xpose.msra.mxu0 0.0
    %2112 = vmatprep.subr.mxu0 0.0
    %2113 = vmatpush1.xpose.msra.mxu0 0.0
    %2114 = vmatprep.subr.mxu0 0.0
    %2115 = vmatpush1.xpose.msra.mxu0 0.0
    %2116 = vmatprep.subr.mxu0 0.0
    %2117 = vmatpush1.xpose.msra.mxu0 0.0
    %2118 = vmatprep.subr.mxu0 0.0
    %2119 = vmatpush1.xpose.msra.mxu0 0.0
    %2120 = vmatprep.subr.mxu0 0.0
    %2121 = vmatpush1.xpose.msra.mxu0 0.0
    %2122 = vmatprep.subr.mxu0 0.0
    %2123 = vmatpush1.xpose.msra.mxu0 0.0
    %2124 = vmatprep.subr.mxu0 0.0
    %2125 = vmatpush1.xpose.msra.mxu0 0.0
    %2126 = vmatprep.subr.mxu0 0.0
    %2127 = vmatpush1.xpose.msra.mxu0 0.0
    %2128 = vmatprep.subr.mxu0 0.0
    %2129 = vmatpush1.xpose.msra.mxu0 0.0
    %2130 = vmatprep.subr.mxu0 0.0
    %2131 = vmatpush1.xpose.msra.mxu0 0.0
    %2132 = vmatprep.subr.mxu0 0.0
    %2133 = vmatpush1.xpose.msra.mxu0 0.0
    %2134 = vmatprep.subr.mxu0 0.0
    %2135 = vmatpush1.xpose.msra.mxu0 0.0
    %2136 = vmatprep.subr.mxu0 0.0
    %2137 = vmatpush1.xpose.msra.mxu0 0.0
    %2138 = vmatprep.subr.mxu0 0.0
    %2139 = vmatpush1.xpose.msra.mxu0 0.0
    %2140 = vmatprep.subr.mxu0 0.0
    %2141 = vmatpush1.xpose.msra.mxu0 0.0
    %2142 = vmatprep.subr.mxu0 0.0
    %2143 = vmatpush1.xpose.msra.mxu0 0.0
    %2144 = vmatprep.subr.mxu0 0.0
    %2145 = vmatpush1.xpose.msra.mxu0 0.0
    %2146 = vmatprep.mubr.f32.mxu0 0.0
    %v2147 = vand.u32 %v1702, 4294901760
    %2148 = vmatmul.mubr.f32.gmra.mrb[0].mxu0 %v2147
    %v2149 = vpop.f32.mrb[0].mxu0
    %v2150 = vadd.f32 %v2078, %v2149
    %v2151 = vpop.f32.mrb[0].mxu0
    %2152 = vdwg.mxu0
    %v2153 = vsel %vm1700, %v2150, -inf
    %2154 = vmax.xlane.f32.xlu0 %v2153
    %v2155 = vpop.xlane.xlu0 %2154
    %v2156 = vsub.f32 %v2150, %v2155
    %v2157 = vmul.f32 %v2156, 1.442695
    %v2158 = vpow.pop %v2157
    %v2159 = vsel %vm1700, %v2158, 0.0
    %2160 = vadd.xlane.f32.xlu0 %v2159
    %v2161 = vpop.xlane.xlu0 %2160
    %v2162 = vrcp.pop %v2161
    %v2163 = vmul.f32 %v2158, %v2162
    %v2165 = vsel %vm1700, %v2163, 0
    %2167 = vmatprep.subr.mxu0 0.0
    %v2168 = vand.u32 %v1691, 4294901760
    %2169 = vmatpush1.msra.mxu0 %v2168
    %2170 = vmatprep.subr.mxu0 0.0
    %2171 = vmatpush1.msra.mxu0 0.0
    %2172 = vmatprep.subr.mxu0 0.0
    %2173 = vmatpush1.msra.mxu0 0.0
    %2174 = vmatprep.subr.mxu0 0.0
    %2175 = vmatpush1.msra.mxu0 0.0
    %2176 = vmatprep.subr.mxu0 0.0
    %2177 = vmatpush1.msra.mxu0 0.0
    %2178 = vmatprep.subr.mxu0 0.0
    %2179 = vmatpush1.msra.mxu0 0.0
    %2180 = vmatprep.subr.mxu0 0.0
    %2181 = vmatpush1.msra.mxu0 0.0
    %2182 = vmatprep.subr.mxu0 0.0
    %2183 = vmatpush1.msra.mxu0 0.0
    %2184 = vmatprep.subr.mxu0 0.0
    %2185 = vmatpush1.msra.mxu0 0.0
    %2186 = vmatprep.subr.mxu0 0.0
    %2187 = vmatpush1.msra.mxu0 0.0
    %2188 = vmatprep.subr.mxu0 0.0
    %2189 = vmatpush1.msra.mxu0 0.0
    %2190 = vmatprep.subr.mxu0 0.0
    %2191 = vmatpush1.msra.mxu0 0.0
    %2192 = vmatprep.subr.mxu0 0.0
    %2193 = vmatpush1.msra.mxu0 0.0
    %2194 = vmatprep.subr.mxu0 0.0
    %2195 = vmatpush1.msra.mxu0 0.0
    %2196 = vmatprep.subr.mxu0 0.0
    %2197 = vmatpush1.msra.mxu0 0.0
    %2198 = vmatprep.subr.mxu0 0.0
    %2199 = vmatpush1.msra.mxu0 0.0
    %2200 = vmatprep.subr.mxu0 0.0
    %2201 = vmatpush1.msra.mxu0 0.0
    %2202 = vmatprep.subr.mxu0 0.0
    %2203 = vmatpush1.msra.mxu0 0.0
    %2204 = vmatprep.subr.mxu0 0.0
    %2205 = vmatpush1.msra.mxu0 0.0
    %2206 = vmatprep.subr.mxu0 0.0
    %2207 = vmatpush1.msra.mxu0 0.0
    %2208 = vmatprep.subr.mxu0 0.0
    %2209 = vmatpush1.msra.mxu0 0.0
    %2210 = vmatprep.subr.mxu0 0.0
    %2211 = vmatpush1.msra.mxu0 0.0
    %2212 = vmatprep.subr.mxu0 0.0
    %2213 = vmatpush1.msra.mxu0 0.0
    %2214 = vmatprep.subr.mxu0 0.0
    %2215 = vmatpush1.msra.mxu0 0.0
    %2216 = vmatprep.subr.mxu0 0.0
    %2217 = vmatpush1.msra.mxu0 0.0
    %2218 = vmatprep.subr.mxu0 0.0
    %2219 = vmatpush1.msra.mxu0 0.0
    %2220 = vmatprep.subr.mxu0 0.0
    %2221 = vmatpush1.msra.mxu0 0.0
    %2222 = vmatprep.subr.mxu0 0.0
    %2223 = vmatpush1.msra.mxu0 0.0
    %2224 = vmatprep.subr.mxu0 0.0
    %2225 = vmatpush1.msra.mxu0 0.0
    %2226 = vmatprep.subr.mxu0 0.0
    %2227 = vmatpush1.msra.mxu0 0.0
    %2228 = vmatprep.subr.mxu0 0.0
    %2229 = vmatpush1.msra.mxu0 0.0
    %2230 = vmatprep.subr.mxu0 0.0
    %2231 = vmatpush1.msra.mxu0 0.0
    %2232 = vmatprep.mubr.f32.mxu0 0.0
    %v2233 = vand.u32 %v2165, 4294901760
    %v2234 = vsub.f32 %v2165, %v2233
    %v2235 = vand.u32 %v2234, 4294901760
    %v2236 = vsub.f32 %v2234, %v2235
    %v2237 = vand.u32 %v2236, 4294901760
    %2238 = vmatmul.mubr.f32.gmra.mrb[0].mxu0 %v2237
    %v2239 = vpop.f32.mrb[0].mxu0
    %v2240 = vadd.f32 0.0, %v2239
    %v2241 = vpop.f32.mrb[0].mxu0
    %2242 = vdwg.mxu0
    %2243 = vmatprep.subr.mxu0 0.0
    %v2244 = vand.u32 %v1691, 4294901760
    %v2245 = vsub.f32 %v1691, %v2244
    %v2246 = vand.u32 %v2245, 4294901760
    %v2247 = vsub.f32 %v2245, %v2246
    %v2248 = vand.u32 %v2247, 4294901760
    %2249 = vmatpush1.msra.mxu0 %v2248
    %2250 = vmatprep.subr.mxu0 0.0
    %2251 = vmatpush1.msra.mxu0 0.0
    %2252 = vmatprep.subr.mxu0 0.0
    %2253 = vmatpush1.msra.mxu0 0.0
    %2254 = vmatprep.subr.mxu0 0.0
    %2255 = vmatpush1.msra.mxu0 0.0
    %2256 = vmatprep.subr.mxu0 0.0
    %2257 = vmatpush1.msra.mxu0 0.0
    %2258 = vmatprep.subr.mxu0 0.0
    %2259 = vmatpush1.msra.mxu0 0.0
    %2260 = vmatprep.subr.mxu0 0.0
    %2261 = vmatpush1.msra.mxu0 0.0
    %2262 = vmatprep.subr.mxu0 0.0
    %2263 = vmatpush1.msra.mxu0 0.0
    %2264 = vmatprep.subr.mxu0 0.0
    %2265 = vmatpush1.msra.mxu0 0.0
    %2266 = vmatprep.subr.mxu0 0.0
    %2267 = vmatpush1.msra.mxu0 0.0
    %2268 = vmatprep.subr.mxu0 0.0
    %2269 = vmatpush1.msra.mxu0 0.0
    %2270 = vmatprep.subr.mxu0 0.0
    %2271 = vmatpush1.msra.mxu0 0.0
    %2272 = vmatprep.subr.mxu0 0.0
    %2273 = vmatpush1.msra.mxu0 0.0
    %2274 = vmatprep.subr.mxu0 0.0
    %2275 = vmatpush1.msra.mxu0 0.0
    %2276 = vmatprep.subr.mxu0 0.0
    %2277 = vmatpush1.msra.mxu0 0.0
    %2278 = vmatprep.subr.mxu0 0.0
    %2279 = vmatpush1.msra.mxu0 0.0
    %2280 = vmatprep.subr.mxu0 0.0
    %2281 = vmatpush1.msra.mxu0 0.0
    %2282 = vmatprep.subr.mxu0 0.0
    %2283 = vmatpush1.msra.mxu0 0.0
    %2284 = vmatprep.subr.mxu0 0.0
    %2285 = vmatpush1.msra.mxu0 0.0
    %2286 = vmatprep.subr.mxu0 0.0
    %2287 = vmatpush1.msra.mxu0 0.0
    %2288 = vmatprep.subr.mxu0 0.0
    %2289 = vmatpush1.msra.mxu0 0.0
    %2290 = vmatprep.subr.mxu0 0.0
    %2291 = vmatpush1.msra.mxu0 0.0
    %2292 = vmatprep.subr.mxu0 0.0
    %2293 = vmatpush1.msra.mxu0 0.0
    %2294 = vmatprep.subr.mxu0 0.0
    %2295 = vmatpush1.msra.mxu0 0.0
    %2296 = vmatprep.subr.mxu0 0.0
    %2297 = vmatpush1.msra.mxu0 0.0
    %2298 = vmatprep.subr.mxu0 0.0
    %2299 = vmatpush1.msra.mxu0 0.0
    %2300 = vmatprep.subr.mxu0 0.0
    %2301 = vmatpush1.msra.mxu0 0.0
    %2302 = vmatprep.subr.mxu0 0.0
    %2303 = vmatpush1.msra.mxu0 0.0
    %2304 = vmatprep.subr.mxu0 0.0
    %2305 = vmatpush1.msra.mxu0 0.0
    %2306 = vmatprep.subr.mxu0 0.0
    %2307 = vmatpush1.msra.mxu0 0.0
    %2308 = vmatprep.subr.mxu0 0.0
    %2309 = vmatpush1.msra.mxu0 0.0
    %2310 = vmatprep.subr.mxu0 0.0
    %2311 = vmatpush1.msra.mxu0 0.0
    %2312 = vmatprep.mubr.f32.mxu0 0.0
    %v2313 = vand.u32 %v2165, 4294901760
    %2314 = vmatmul.mubr.f32.gmra.mrb[0].mxu0 %v2313
    %v2315 = vpop.f32.mrb[0].mxu0
    %v2316 = vadd.f32 %v2240, %v2315
    %v2317 = vpop.f32.mrb[0].mxu0
    %2318 = vdwg.mxu0
    %2319 = vmatprep.subr.mxu0 0.0
    %v2320 = vand.u32 %v1691, 4294901760
    %v2321 = vsub.f32 %v1691, %v2320
    %2322 = vmatpush1.msra.mxu0 %v2321
    %2323 = vmatprep.subr.mxu0 0.0
    %2324 = vmatpush1.msra.mxu0 0.0
    %2325 = vmatprep.subr.mxu0 0.0
    %2326 = vmatpush1.msra.mxu0 0.0
    %2327 = vmatprep.subr.mxu0 0.0
    %2328 = vmatpush1.msra.mxu0 0.0
    %2329 = vmatprep.subr.mxu0 0.0
    %2330 = vmatpush1.msra.mxu0 0.0
    %2331 = vmatprep.subr.mxu0 0.0
    %2332 = vmatpush1.msra.mxu0 0.0
    %2333 = vmatprep.subr.mxu0 0.0
    %2334 = vmatpush1.msra.mxu0 0.0
    %2335 = vmatprep.subr.mxu0 0.0
    %2336 = vmatpush1.msra.mxu0 0.0
    %2337 = vmatprep.subr.mxu0 0.0
    %2338 = vmatpush1.msra.mxu0 0.0
    %2339 = vmatprep.subr.mxu0 0.0
    %2340 = vmatpush1.msra.mxu0 0.0
    %2341 = vmatprep.subr.mxu0 0.0
    %2342 = vmatpush1.msra.mxu0 0.0
    %2343 = vmatprep.subr.mxu0 0.0
    %2344 = vmatpush1.msra.mxu0 0.0
    %2345 = vmatprep.subr.mxu0 0.0
    %2346 = vmatpush1.msra.mxu0 0.0
    %2347 = vmatprep.subr.mxu0 0.0
    %2348 = vmatpush1.msra.mxu0 0.0
    %2349 = vmatprep.subr.mxu0 0.0
    %2350 = vmatpush1.msra.mxu0 0.0
    %2351 = vmatprep.subr.mxu0 0.0
    %2352 = vmatpush1.msra.mxu0 0.0
    %2353 = vmatprep.subr.mxu0 0.0
    %2354 = vmatpush1.msra.mxu0 0.0
    %2355 = vmatprep.subr.mxu0 0.0
    %2356 = vmatpush1.msra.mxu0 0.0
    %2357 = vmatprep.subr.mxu0 0.0
    %2358 = vmatpush1.msra.mxu0 0.0
    %2359 = vmatprep.subr.mxu0 0.0
    %2360 = vmatpush1.msra.mxu0 0.0
    %2361 = vmatprep.subr.mxu0 0.0
    %2362 = vmatpush1.msra.mxu0 0.0
    %2363 = vmatprep.subr.mxu0 0.0
    %2364 = vmatpush1.msra.mxu0 0.0
    %2365 = vmatprep.subr.mxu0 0.0
    %2366 = vmatpush1.msra.mxu0 0.0
    %2367 = vmatprep.subr.mxu0 0.0
    %2368 = vmatpush1.msra.mxu0 0.0
    %2369 = vmatprep.subr.mxu0 0.0
    %2370 = vmatpush1.msra.mxu0 0.0
    %2371 = vmatprep.subr.mxu0 0.0
    %2372 = vmatpush1.msra.mxu0 0.0
    %2373 = vmatprep.subr.mxu0 0.0
    %2374 = vmatpush1.msra.mxu0 0.0
    %2375 = vmatprep.subr.mxu0 0.0
    %2376 = vmatpush1.msra.mxu0 0.0
    %2377 = vmatprep.subr.mxu0 0.0
    %2378 = vmatpush1.msra.mxu0 0.0
    %2379 = vmatprep.subr.mxu0 0.0
    %2380 = vmatpush1.msra.mxu0 0.0
    %2381 = vmatprep.subr.mxu0 0.0
    %2382 = vmatpush1.msra.mxu0 0.0
    %2383 = vmatprep.subr.mxu0 0.0
    %2384 = vmatpush1.msra.mxu0 0.0
    %2385 = vmatprep.mubr.f32.mxu0 0.0
    %v2386 = vand.u32 %v2165, 4294901760
    %v2387 = vsub.f32 %v2165, %v2386
    %2388 = vmatmul.mubr.f32.gmra.mrb[0].mxu0 %v2387
    %v2389 = vpop.f32.mrb[0].mxu0
    %v2390 = vadd.f32 %v2316, %v2389
    %v2391 = vpop.f32.mrb[0].mxu0
    %2392 = vdwg.mxu0
    %2393 = vmatprep.subr.mxu0 0.0
    %v2394 = vand.u32 %v1691, 4294901760
    %2395 = vmatpush1.msra.mxu0 %v2394
    %2396 = vmatprep.subr.mxu0 0.0
    %2397 = vmatpush1.msra.mxu0 0.0
    %2398 = vmatprep.subr.mxu0 0.0
    %2399 = vmatpush1.msra.mxu0 0.0
    %2400 = vmatprep.subr.mxu0 0.0
    %2401 = vmatpush1.msra.mxu0 0.0
    %2402 = vmatprep.subr.mxu0 0.0
    %2403 = vmatpush1.msra.mxu0 0.0
    %2404 = vmatprep.subr.mxu0 0.0
    %2405 = vmatpush1.msra.mxu0 0.0
    %2406 = vmatprep.subr.mxu0 0.0
    %2407 = vmatpush1.msra.mxu0 0.0
    %2408 = vmatprep.subr.mxu0 0.0
    %2409 = vmatpush1.msra.mxu0 0.0
    %2410 = vmatprep.subr.mxu0 0.0
    %2411 = vmatpush1.msra.mxu0 0.0
    %2412 = vmatprep.subr.mxu0 0.0
    %2413 = vmatpush1.msra.mxu0 0.0
    %2414 = vmatprep.subr.mxu0 0.0
    %2415 = vmatpush1.msra.mxu0 0.0
    %2416 = vmatprep.subr.mxu0 0.0
    %2417 = vmatpush1.msra.mxu0 0.0
    %2418 = vmatprep.subr.mxu0 0.0
    %2419 = vmatpush1.msra.mxu0 0.0
    %2420 = vmatprep.subr.mxu0 0.0
    %2421 = vmatpush1.msra.mxu0 0.0
    %2422 = vmatprep.subr.mxu0 0.0
    %2423 = vmatpush1.msra.mxu0 0.0
    %2424 = vmatprep.subr.mxu0 0.0
    %2425 = vmatpush1.msra.mxu0 0.0
    %2426 = vmatprep.subr.mxu0 0.0
    %2427 = vmatpush1.msra.mxu0 0.0
    %2428 = vmatprep.subr.mxu0 0.0
    %2429 = vmatpush1.msra.mxu0 0.0
    %2430 = vmatprep.subr.mxu0 0.0
    %2431 = vmatpush1.msra.mxu0 0.0
    %2432 = vmatprep.subr.mxu0 0.0
    %2433 = vmatpush1.msra.mxu0 0.0
    %2434 = vmatprep.subr.mxu0 0.0
    %2435 = vmatpush1.msra.mxu0 0.0
    %2436 = vmatprep.subr.mxu0 0.0
    %2437 = vmatpush1.msra.mxu0 0.0
    %2438 = vmatprep.subr.mxu0 0.0
    %2439 = vmatpush1.msra.mxu0 0.0
    %2440 = vmatprep.subr.mxu0 0.0
    %2441 = vmatpush1.msra.mxu0 0.0
    %2442 = vmatprep.subr.mxu0 0.0
    %2443 = vmatpush1.msra.mxu0 0.0
    %2444 = vmatprep.subr.mxu0 0.0
    %2445 = vmatpush1.msra.mxu0 0.0
    %2446 = vmatprep.subr.mxu0 0.0
    %2447 = vmatpush1.msra.mxu0 0.0
    %2448 = vmatprep.subr.mxu0 0.0
    %2449 = vmatpush1.msra.mxu0 0.0
    %2450 = vmatprep.subr.mxu0 0.0
    %2451 = vmatpush1.msra.mxu0 0.0
    %2452 = vmatprep.subr.mxu0 0.0
    %2453 = vmatpush1.msra.mxu0 0.0
    %2454 = vmatprep.subr.mxu0 0.0
    %2455 = vmatpush1.msra.mxu0 0.0
    %2456 = vmatprep.subr.mxu0 0.0
    %2457 = vmatpush1.msra.mxu0 0.0
    %2458 = vmatprep.mubr.f32.mxu0 0.0
    %v2459 = vand.u32 %v2165, 4294901760
    %v2460 = vsub.f32 %v2165, %v2459
    %v2461 = vand.u32 %v2460, 4294901760
    %2462 = vmatmul.mubr.f32.gmra.mrb[0].mxu0 %v2461
    %v2463 = vpop.f32.mrb[0].mxu0
    %v2464 = vadd.f32 %v2390, %v2463
    %v2465 = vpop.f32.mrb[0].mxu0
    %2466 = vdwg.mxu0
    %2467 = vmatprep.subr.mxu0 0.0
    %v2468 = vand.u32 %v1691, 4294901760
    %v2469 = vsub.f32 %v1691, %v2468
    %v2470 = vand.u32 %v2469, 4294901760
    %2471 = vmatpush1.msra.mxu0 %v2470
    %2472 = vmatprep.subr.mxu0 0.0
    %2473 = vmatpush1.msra.mxu0 0.0
    %2474 = vmatprep.subr.mxu0 0.0
    %2475 = vmatpush1.msra.mxu0 0.0
    %2476 = vmatprep.subr.mxu0 0.0
    %2477 = vmatpush1.msra.mxu0 0.0
    %2478 = vmatprep.subr.mxu0 0.0
    %2479 = vmatpush1.msra.mxu0 0.0
    %2480 = vmatprep.subr.mxu0 0.0
    %2481 = vmatpush1.msra.mxu0 0.0
    %2482 = vmatprep.subr.mxu0 0.0
    %2483 = vmatpush1.msra.mxu0 0.0
    %2484 = vmatprep.subr.mxu0 0.0
    %2485 = vmatpush1.msra.mxu0 0.0
    %2486 = vmatprep.subr.mxu0 0.0
    %2487 = vmatpush1.msra.mxu0 0.0
    %2488 = vmatprep.subr.mxu0 0.0
    %2489 = vmatpush1.msra.mxu0 0.0
    %2490 = vmatprep.subr.mxu0 0.0
    %2491 = vmatpush1.msra.mxu0 0.0
    %2492 = vmatprep.subr.mxu0 0.0
    %2493 = vmatpush1.msra.mxu0 0.0
    %2494 = vmatprep.subr.mxu0 0.0
    %2495 = vmatpush1.msra.mxu0 0.0
    %2496 = vmatprep.subr.mxu0 0.0
    %2497 = vmatpush1.msra.mxu0 0.0
    %2498 = vmatprep.subr.mxu0 0.0
    %2499 = vmatpush1.msra.mxu0 0.0
    %2500 = vmatprep.subr.mxu0 0.0
    %2501 = vmatpush1.msra.mxu0 0.0
    %2502 = vmatprep.subr.mxu0 0.0
    %2503 = vmatpush1.msra.mxu0 0.0
    %2504 = vmatprep.subr.mxu0 0.0
    %2505 = vmatpush1.msra.mxu0 0.0
    %2506 = vmatprep.subr.mxu0 0.0
    %2507 = vmatpush1.msra.mxu0 0.0
    %2508 = vmatprep.subr.mxu0 0.0
    %2509 = vmatpush1.msra.mxu0 0.0
    %2510 = vmatprep.subr.mxu0 0.0
    %2511 = vmatpush1.msra.mxu0 0.0
    %2512 = vmatprep.subr.mxu0 0.0
    %2513 = vmatpush1.msra.mxu0 0.0
    %2514 = vmatprep.subr.mxu0 0.0
    %2515 = vmatpush1.msra.mxu0 0.0
    %2516 = vmatprep.subr.mxu0 0.0
    %2517 = vmatpush1.msra.mxu0 0.0
    %2518 = vmatprep.subr.mxu0 0.0
    %2519 = vmatpush1.msra.mxu0 0.0
    %2520 = vmatprep.subr.mxu0 0.0
    %2521 = vmatpush1.msra.mxu0 0.0
    %2522 = vmatprep.subr.mxu0 0.0
    %2523 = vmatpush1.msra.mxu0 0.0
    %2524 = vmatprep.subr.mxu0 0.0
    %2525 = vmatpush1.msra.mxu0 0.0
    %2526 = vmatprep.subr.mxu0 0.0
    %2527 = vmatpush1.msra.mxu0 0.0
    %2528 = vmatprep.subr.mxu0 0.0
    %2529 = vmatpush1.msra.mxu0 0.0
    %2530 = vmatprep.subr.mxu0 0.0
    %2531 = vmatpush1.msra.mxu0 0.0
    %2532 = vmatprep.subr.mxu0 0.0
    %2533 = vmatpush1.msra.mxu0 0.0
    %2534 = vmatprep.mubr.f32.mxu0 0.0
    %v2535 = vand.u32 %v2165, 4294901760
    %2536 = vmatmul.mubr.f32.gmra.mrb[0].mxu0 %v2535
    %v2537 = vpop.f32.mrb[0].mxu0
    %v2538 = vadd.f32 %v2464, %v2537
    %v2539 = vpop.f32.mrb[0].mxu0
    %2540 = vdwg.mxu0
    %2541 = vmatprep.subr.mxu0 0.0
    %v2542 = vand.u32 %v1691, 4294901760
    %2543 = vmatpush1.msra.mxu0 %v2542
    %2544 = vmatprep.subr.mxu0 0.0
    %2545 = vmatpush1.msra.mxu0 0.0
    %2546 = vmatprep.subr.mxu0 0.0
    %2547 = vmatpush1.msra.mxu0 0.0
    %2548 = vmatprep.subr.mxu0 0.0
    %2549 = vmatpush1.msra.mxu0 0.0
    %2550 = vmatprep.subr.mxu0 0.0
    %2551 = vmatpush1.msra.mxu0 0.0
    %2552 = vmatprep.subr.mxu0 0.0
    %2553 = vmatpush1.msra.mxu0 0.0
    %2554 = vmatprep.subr.mxu0 0.0
    %2555 = vmatpush1.msra.mxu0 0.0
    %2556 = vmatprep.subr.mxu0 0.0
    %2557 = vmatpush1.msra.mxu0 0.0
    %2558 = vmatprep.subr.mxu0 0.0
    %2559 = vmatpush1.msra.mxu0 0.0
    %2560 = vmatprep.subr.mxu0 0.0
    %2561 = vmatpush1.msra.mxu0 0.0
    %2562 = vmatprep.subr.mxu0 0.0
    %2563 = vmatpush1.msra.mxu0 0.0
    %2564 = vmatprep.subr.mxu0 0.0
    %2565 = vmatpush1.msra.mxu0 0.0
    %2566 = vmatprep.subr.mxu0 0.0
    %2567 = vmatpush1.msra.mxu0 0.0
    %2568 = vmatprep.subr.mxu0 0.0
    %2569 = vmatpush1.msra.mxu0 0.0
    %2570 = vmatprep.subr.mxu0 0.0
    %2571 = vmatpush1.msra.mxu0 0.0
    %2572 = vmatprep.subr.mxu0 0.0
    %2573 = vmatpush1.msra.mxu0 0.0
    %2574 = vmatprep.subr.mxu0 0.0
    %2575 = vmatpush1.msra.mxu0 0.0
    %2576 = vmatprep.subr.mxu0 0.0
    %2577 = vmatpush1.msra.mxu0 0.0
    %2578 = vmatprep.subr.mxu0 0.0
    %2579 = vmatpush1.msra.mxu0 0.0
    %2580 = vmatprep.subr.mxu0 0.0
    %2581 = vmatpush1.msra.mxu0 0.0
    %2582 = vmatprep.subr.mxu0 0.0
    %2583 = vmatpush1.msra.mxu0 0.0
    %2584 = vmatprep.subr.mxu0 0.0
    %2585 = vmatpush1.msra.mxu0 0.0
    %2586 = vmatprep.subr.mxu0 0.0
    %2587 = vmatpush1.msra.mxu0 0.0
    %2588 = vmatprep.subr.mxu0 0.0
    %2589 = vmatpush1.msra.mxu0 0.0
    %2590 = vmatprep.subr.mxu0 0.0
    %2591 = vmatpush1.msra.mxu0 0.0
    %2592 = vmatprep.subr.mxu0 0.0
    %2593 = vmatpush1.msra.mxu0 0.0
    %2594 = vmatprep.subr.mxu0 0.0
    %2595 = vmatpush1.msra.mxu0 0.0
    %2596 = vmatprep.subr.mxu0 0.0
    %2597 = vmatpush1.msra.mxu0 0.0
    %2598 = vmatprep.subr.mxu0 0.0
    %2599 = vmatpush1.msra.mxu0 0.0
    %2600 = vmatprep.subr.mxu0 0.0
    %2601 = vmatpush1.msra.mxu0 0.0
    %2602 = vmatprep.subr.mxu0 0.0
    %2603 = vmatpush1.msra.mxu0 0.0
    %2604 = vmatprep.subr.mxu0 0.0
    %2605 = vmatpush1.msra.mxu0 0.0
    %2606 = vmatprep.mubr.f32.mxu0 0.0
    %v2607 = vand.u32 %v2165, 4294901760
    %2608 = vmatmul.mubr.f32.gmra.mrb[0].mxu0 %v2607
    %v2609 = vpop.f32.mrb[0].mxu0
    %v2610 = vadd.f32 %v2538, %v2609
    %v2611 = vpop.f32.mrb[0].mxu0
    %2612 = vdwg.mxu0
    %2613 = vst.msk [vmem:[#allocation2] sm:$0xff] %vm1700, %v2610
    %2614 = vrot.lane.b32.xlu0 %v642, 120
    %v2615 = vpop.permute.xlu0 %2614
    %2616 = vrot.lane.b32.xlu0 %v1163, 120
    %v2617 = vpop.permute.xlu0 %2616
    %v2618 = vsel %vm1700, %v2615, 0
    %v2620 = vsel %vm1700, %v2617, 0
    %2622 = vmatprep.subr.mxu0 0.0
    %v2623 = vand.u32 %v2620, 4294901760
    %2624 = vmatpush1.xpose.msra.mxu0 %v2623
    %2625 = vmatprep.subr.mxu0 0.0
    %2626 = vmatpush1.xpose.msra.mxu0 0.0
    %2627 = vmatprep.subr.mxu0 0.0
    %2628 = vmatpush1.xpose.msra.mxu0 0.0
    %2629 = vmatprep.subr.mxu0 0.0
    %2630 = vmatpush1.xpose.msra.mxu0 0.0
    %2631 = vmatprep.subr.mxu0 0.0
    %2632 = vmatpush1.xpose.msra.mxu0 0.0
    %2633 = vmatprep.subr.mxu0 0.0
    %2634 = vmatpush1.xpose.msra.mxu0 0.0
    %2635 = vmatprep.subr.mxu0 0.0
    %2636 = vmatpush1.xpose.msra.mxu0 0.0
    %2637 = vmatprep.subr.mxu0 0.0
    %2638 = vmatpush1.xpose.msra.mxu0 0.0
    %2639 = vmatprep.subr.mxu0 0.0
    %2640 = vmatpush1.xpose.msra.mxu0 0.0
    %2641 = vmatprep.subr.mxu0 0.0
    %2642 = vmatpush1.xpose.msra.mxu0 0.0
    %2643 = vmatprep.subr.mxu0 0.0
    %2644 = vmatpush1.xpose.msra.mxu0 0.0
    %2645 = vmatprep.subr.mxu0 0.0
    %2646 = vmatpush1.xpose.msra.mxu0 0.0
    %2647 = vmatprep.subr.mxu0 0.0
    %2648 = vmatpush1.xpose.msra.mxu0 0.0
    %2649 = vmatprep.subr.mxu0 0.0
    %2650 = vmatpush1.xpose.msra.mxu0 0.0
    %2651 = vmatprep.subr.mxu0 0.0
    %2652 = vmatpush1.xpose.msra.mxu0 0.0
    %2653 = vmatprep.subr.mxu0 0.0
    %2654 = vmatpush1.xpose.msra.mxu0 0.0
    %2655 = vmatprep.subr.mxu0 0.0
    %2656 = vmatpush1.xpose.msra.mxu0 0.0
    %2657 = vmatprep.subr.mxu0 0.0
    %2658 = vmatpush1.xpose.msra.mxu0 0.0
    %2659 = vmatprep.subr.mxu0 0.0
    %2660 = vmatpush1.xpose.msra.mxu0 0.0
    %2661 = vmatprep.subr.mxu0 0.0
    %2662 = vmatpush1.xpose.msra.mxu0 0.0
    %2663 = vmatprep.subr.mxu0 0.0
    %2664 = vmatpush1.xpose.msra.mxu0 0.0
    %2665 = vmatprep.subr.mxu0 0.0
    %2666 = vmatpush1.xpose.msra.mxu0 0.0
    %2667 = vmatprep.subr.mxu0 0.0
    %2668 = vmatpush1.xpose.msra.mxu0 0.0
    %2669 = vmatprep.subr.mxu0 0.0
    %2670 = vmatpush1.xpose.msra.mxu0 0.0
    %2671 = vmatprep.subr.mxu0 0.0
    %2672 = vmatpush1.xpose.msra.mxu0 0.0
    %2673 = vmatprep.subr.mxu0 0.0
    %2674 = vmatpush1.xpose.msra.mxu0 0.0
    %2675 = vmatprep.subr.mxu0 0.0
    %2676 = vmatpush1.xpose.msra.mxu0 0.0
    %2677 = vmatprep.subr.mxu0 0.0
    %2678 = vmatpush1.xpose.msra.mxu0 0.0
    %2679 = vmatprep.subr.mxu0 0.0
    %2680 = vmatpush1.xpose.msra.mxu0 0.0
    %2681 = vmatprep.subr.mxu0 0.0
    %2682 = vmatpush1.xpose.msra.mxu0 0.0
    %2683 = vmatprep.subr.mxu0 0.0
    %2684 = vmatpush1.xpose.msra.mxu0 0.0
    %2685 = vmatprep.subr.mxu0 0.0
    %2686 = vmatpush1.xpose.msra.mxu0 0.0
    %2687 = vmatprep.mubr.f32.mxu0 0.0
    %v2688 = vand.u32 %v2618, 4294901760
    %v2689 = vsub.f32 %v2618, %v2688
    %v2690 = vand.u32 %v2689, 4294901760
    %v2691 = vsub.f32 %v2689, %v2690
    %v2692 = vand.u32 %v2691, 4294901760
    %2693 = vmatmul.mubr.f32.gmra.mrb[0].mxu0 %v2692
    %v2694 = vpop.f32.mrb[0].mxu0
    %v2695 = vadd.f32 0.0, %v2694
    %v2696 = vpop.f32.mrb[0].mxu0
    %2697 = vdwg.mxu0
    %2698 = vmatprep.subr.mxu0 0.0
    %v2699 = vand.u32 %v2620, 4294901760
    %v2700 = vsub.f32 %v2620, %v2699
    %v2701 = vand.u32 %v2700, 4294901760
    %v2702 = vsub.f32 %v2700, %v2701
    %v2703 = vand.u32 %v2702, 4294901760
    %2704 = vmatpush1.xpose.msra.mxu0 %v2703
    %2705 = vmatprep.subr.mxu0 0.0
    %2706 = vmatpush1.xpose.msra.mxu0 0.0
    %2707 = vmatprep.subr.mxu0 0.0
    %2708 = vmatpush1.xpose.msra.mxu0 0.0
    %2709 = vmatprep.subr.mxu0 0.0
    %2710 = vmatpush1.xpose.msra.mxu0 0.0
    %2711 = vmatprep.subr.mxu0 0.0
    %2712 = vmatpush1.xpose.msra.mxu0 0.0
    %2713 = vmatprep.subr.mxu0 0.0
    %2714 = vmatpush1.xpose.msra.mxu0 0.0
    %2715 = vmatprep.subr.mxu0 0.0
    %2716 = vmatpush1.xpose.msra.mxu0 0.0
    %2717 = vmatprep.subr.mxu0 0.0
    %2718 = vmatpush1.xpose.msra.mxu0 0.0
    %2719 = vmatprep.subr.mxu0 0.0
    %2720 = vmatpush1.xpose.msra.mxu0 0.0
    %2721 = vmatprep.subr.mxu0 0.0
    %2722 = vmatpush1.xpose.msra.mxu0 0.0
    %2723 = vmatprep.subr.mxu0 0.0
    %2724 = vmatpush1.xpose.msra.mxu0 0.0
    %2725 = vmatprep.subr.mxu0 0.0
    %2726 = vmatpush1.xpose.msra.mxu0 0.0
    %2727 = vmatprep.subr.mxu0 0.0
    %2728 = vmatpush1.xpose.msra.mxu0 0.0
    %2729 = vmatprep.subr.mxu0 0.0
    %2730 = vmatpush1.xpose.msra.mxu0 0.0
    %2731 = vmatprep.subr.mxu0 0.0
    %2732 = vmatpush1.xpose.msra.mxu0 0.0
    %2733 = vmatprep.subr.mxu0 0.0
    %2734 = vmatpush1.xpose.msra.mxu0 0.0
    %2735 = vmatprep.subr.mxu0 0.0
    %2736 = vmatpush1.xpose.msra.mxu0 0.0
    %2737 = vmatprep.subr.mxu0 0.0
    %2738 = vmatpush1.xpose.msra.mxu0 0.0
    %2739 = vmatprep.subr.mxu0 0.0
    %2740 = vmatpush1.xpose.msra.mxu0 0.0
    %2741 = vmatprep.subr.mxu0 0.0
    %2742 = vmatpush1.xpose.msra.mxu0 0.0
    %2743 = vmatprep.subr.mxu0 0.0
    %2744 = vmatpush1.xpose.msra.mxu0 0.0
    %2745 = vmatprep.subr.mxu0 0.0
    %2746 = vmatpush1.xpose.msra.mxu0 0.0
    %2747 = vmatprep.subr.mxu0 0.0
    %2748 = vmatpush1.xpose.msra.mxu0 0.0
    %2749 = vmatprep.subr.mxu0 0.0
    %2750 = vmatpush1.xpose.msra.mxu0 0.0
    %2751 = vmatprep.subr.mxu0 0.0
    %2752 = vmatpush1.xpose.msra.mxu0 0.0
    %2753 = vmatprep.subr.mxu0 0.0
    %2754 = vmatpush1.xpose.msra.mxu0 0.0
    %2755 = vmatprep.subr.mxu0 0.0
    %2756 = vmatpush1.xpose.msra.mxu0 0.0
    %2757 = vmatprep.subr.mxu0 0.0
    %2758 = vmatpush1.xpose.msra.mxu0 0.0
    %2759 = vmatprep.subr.mxu0 0.0
    %2760 = vmatpush1.xpose.msra.mxu0 0.0
    %2761 = vmatprep.subr.mxu0 0.0
    %2762 = vmatpush1.xpose.msra.mxu0 0.0
    %2763 = vmatprep.subr.mxu0 0.0
    %2764 = vmatpush1.xpose.msra.mxu0 0.0
    %2765 = vmatprep.subr.mxu0 0.0
    %2766 = vmatpush1.xpose.msra.mxu0 0.0
    %2767 = vmatprep.mubr.f32.mxu0 0.0
    %v2768 = vand.u32 %v2618, 4294901760
    %2769 = vmatmul.mubr.f32.gmra.mrb[0].mxu0 %v2768
    %v2770 = vpop.f32.mrb[0].mxu0
    %v2771 = vadd.f32 %v2695, %v2770
    %v2772 = vpop.f32.mrb[0].mxu0
    %2773 = vdwg.mxu0
    %2774 = vmatprep.subr.mxu0 0.0
    %v2775 = vand.u32 %v2620, 4294901760
    %v2776 = vsub.f32 %v2620, %v2775
    %2777 = vmatpush1.xpose.msra.mxu0 %v2776
    %2778 = vmatprep.subr.mxu0 0.0
    %2779 = vmatpush1.xpose.msra.mxu0 0.0
    %2780 = vmatprep.subr.mxu0 0.0
    %2781 = vmatpush1.xpose.msra.mxu0 0.0
    %2782 = vmatprep.subr.mxu0 0.0
    %2783 = vmatpush1.xpose.msra.mxu0 0.0
    %2784 = vmatprep.subr.mxu0 0.0
    %2785 = vmatpush1.xpose.msra.mxu0 0.0
    %2786 = vmatprep.subr.mxu0 0.0
    %2787 = vmatpush1.xpose.msra.mxu0 0.0
    %2788 = vmatprep.subr.mxu0 0.0
    %2789 = vmatpush1.xpose.msra.mxu0 0.0
    %2790 = vmatprep.subr.mxu0 0.0
    %2791 = vmatpush1.xpose.msra.mxu0 0.0
    %2792 = vmatprep.subr.mxu0 0.0
    %2793 = vmatpush1.xpose.msra.mxu0 0.0
    %2794 = vmatprep.subr.mxu0 0.0
    %2795 = vmatpush1.xpose.msra.mxu0 0.0
    %2796 = vmatprep.subr.mxu0 0.0
    %2797 = vmatpush1.xpose.msra.mxu0 0.0
    %2798 = vmatprep.subr.mxu0 0.0
    %2799 = vmatpush1.xpose.msra.mxu0 0.0
    %2800 = vmatprep.subr.mxu0 0.0
    %2801 = vmatpush1.xpose.msra.mxu0 0.0
    %2802 = vmatprep.subr.mxu0 0.0
    %2803 = vmatpush1.xpose.msra.mxu0 0.0
    %2804 = vmatprep.subr.mxu0 0.0
    %2805 = vmatpush1.xpose.msra.mxu0 0.0
    %2806 = vmatprep.subr.mxu0 0.0
    %2807 = vmatpush1.xpose.msra.mxu0 0.0
    %2808 = vmatprep.subr.mxu0 0.0
    %2809 = vmatpush1.xpose.msra.mxu0 0.0
    %2810 = vmatprep.subr.mxu0 0.0
    %2811 = vmatpush1.xpose.msra.mxu0 0.0
    %2812 = vmatprep.subr.mxu0 0.0
    %2813 = vmatpush1.xpose.msra.mxu0 0.0
    %2814 = vmatprep.subr.mxu0 0.0
    %2815 = vmatpush1.xpose.msra.mxu0 0.0
    %2816 = vmatprep.subr.mxu0 0.0
    %2817 = vmatpush1.xpose.msra.mxu0 0.0
    %2818 = vmatprep.subr.mxu0 0.0
    %2819 = vmatpush1.xpose.msra.mxu0 0.0
    %2820 = vmatprep.subr.mxu0 0.0
    %2821 = vmatpush1.xpose.msra.mxu0 0.0
    %2822 = vmatprep.subr.mxu0 0.0
    %2823 = vmatpush1.xpose.msra.mxu0 0.0
    %2824 = vmatprep.subr.mxu0 0.0
    %2825 = vmatpush1.xpose.msra.mxu0 0.0
    %2826 = vmatprep.subr.mxu0 0.0
    %2827 = vmatpush1.xpose.msra.mxu0 0.0
    %2828 = vmatprep.subr.mxu0 0.0
    %2829 = vmatpush1.xpose.msra.mxu0 0.0
    %2830 = vmatprep.subr.mxu0 0.0
    %2831 = vmatpush1.xpose.msra.mxu0 0.0
    %2832 = vmatprep.subr.mxu0 0.0
    %2833 = vmatpush1.xpose.msra.mxu0 0.0
    %2834 = vmatprep.subr.mxu0 0.0
    %2835 = vmatpush1.xpose.msra.mxu0 0.0
    %2836 = vmatprep.subr.mxu0 0.0
    %2837 = vmatpush1.xpose.msra.mxu0 0.0
    %2838 = vmatprep.subr.mxu0 0.0
    %2839 = vmatpush1.xpose.msra.mxu0 0.0
    %2840 = vmatprep.mubr.f32.mxu0 0.0
    %v2841 = vand.u32 %v2618, 4294901760
    %v2842 = vsub.f32 %v2618, %v2841
    %2843 = vmatmul.mubr.f32.gmra.mrb[0].mxu0 %v2842
    %v2844 = vpop.f32.mrb[0].mxu0
    %v2845 = vadd.f32 %v2771, %v2844
    %v2846 = vpop.f32.mrb[0].mxu0
    %2847 = vdwg.mxu0
    %2848 = vmatprep.subr.mxu0 0.0
    %v2849 = vand.u32 %v2620, 4294901760
    %2850 = vmatpush1.xpose.msra.mxu0 %v2849
    %2851 = vmatprep.subr.mxu0 0.0
    %2852 = vmatpush1.xpose.msra.mxu0 0.0
    %2853 = vmatprep.subr.mxu0 0.0
    %2854 = vmatpush1.xpose.msra.mxu0 0.0
    %2855 = vmatprep.subr.mxu0 0.0
    %2856 = vmatpush1.xpose.msra.mxu0 0.0
    %2857 = vmatprep.subr.mxu0 0.0
    %2858 = vmatpush1.xpose.msra.mxu0 0.0
    %2859 = vmatprep.subr.mxu0 0.0
    %2860 = vmatpush1.xpose.msra.mxu0 0.0
    %2861 = vmatprep.subr.mxu0 0.0
    %2862 = vmatpush1.xpose.msra.mxu0 0.0
    %2863 = vmatprep.subr.mxu0 0.0
    %2864 = vmatpush1.xpose.msra.mxu0 0.0
    %2865 = vmatprep.subr.mxu0 0.0
    %2866 = vmatpush1.xpose.msra.mxu0 0.0
    %2867 = vmatprep.subr.mxu0 0.0
    %2868 = vmatpush1.xpose.msra.mxu0 0.0
    %2869 = vmatprep.subr.mxu0 0.0
    %2870 = vmatpush1.xpose.msra.mxu0 0.0
    %2871 = vmatprep.subr.mxu0 0.0
    %2872 = vmatpush1.xpose.msra.mxu0 0.0
    %2873 = vmatprep.subr.mxu0 0.0
    %2874 = vmatpush1.xpose.msra.mxu0 0.0
    %2875 = vmatprep.subr.mxu0 0.0
    %2876 = vmatpush1.xpose.msra.mxu0 0.0
    %2877 = vmatprep.subr.mxu0 0.0
    %2878 = vmatpush1.xpose.msra.mxu0 0.0
    %2879 = vmatprep.subr.mxu0 0.0
    %2880 = vmatpush1.xpose.msra.mxu0 0.0
    %2881 = vmatprep.subr.mxu0 0.0
    %2882 = vmatpush1.xpose.msra.mxu0 0.0
    %2883 = vmatprep.subr.mxu0 0.0
    %2884 = vmatpush1.xpose.msra.mxu0 0.0
    %2885 = vmatprep.subr.mxu0 0.0
    %2886 = vmatpush1.xpose.msra.mxu0 0.0
    %2887 = vmatprep.subr.mxu0 0.0
    %2888 = vmatpush1.xpose.msra.mxu0 0.0
    %2889 = vmatprep.subr.mxu0 0.0
    %2890 = vmatpush1.xpose.msra.mxu0 0.0
    %2891 = vmatprep.subr.mxu0 0.0
    %2892 = vmatpush1.xpose.msra.mxu0 0.0
    %2893 = vmatprep.subr.mxu0 0.0
    %2894 = vmatpush1.xpose.msra.mxu0 0.0
    %2895 = vmatprep.subr.mxu0 0.0
    %2896 = vmatpush1.xpose.msra.mxu0 0.0
    %2897 = vmatprep.subr.mxu0 0.0
    %2898 = vmatpush1.xpose.msra.mxu0 0.0
    %2899 = vmatprep.subr.mxu0 0.0
    %2900 = vmatpush1.xpose.msra.mxu0 0.0
    %2901 = vmatprep.subr.mxu0 0.0
    %2902 = vmatpush1.xpose.msra.mxu0 0.0
    %2903 = vmatprep.subr.mxu0 0.0
    %2904 = vmatpush1.xpose.msra.mxu0 0.0
    %2905 = vmatprep.subr.mxu0 0.0
    %2906 = vmatpush1.xpose.msra.mxu0 0.0
    %2907 = vmatprep.subr.mxu0 0.0
    %2908 = vmatpush1.xpose.msra.mxu0 0.0
    %2909 = vmatprep.subr.mxu0 0.0
    %2910 = vmatpush1.xpose.msra.mxu0 0.0
    %2911 = vmatprep.subr.mxu0 0.0
    %2912 = vmatpush1.xpose.msra.mxu0 0.0
    %2913 = vmatprep.mubr.f32.mxu0 0.0
    %v2914 = vand.u32 %v2618, 4294901760
    %v2915 = vsub.f32 %v2618, %v2914
    %v2916 = vand.u32 %v2915, 4294901760
    %2917 = vmatmul.mubr.f32.gmra.mrb[0].mxu0 %v2916
    %v2918 = vpop.f32.mrb[0].mxu0
    %v2919 = vadd.f32 %v2845, %v2918
    %v2920 = vpop.f32.mrb[0].mxu0
    %2921 = vdwg.mxu0
    %2922 = vmatprep.subr.mxu0 0.0
    %v2923 = vand.u32 %v2620, 4294901760
    %v2924 = vsub.f32 %v2620, %v2923
    %v2925 = vand.u32 %v2924, 4294901760
    %2926 = vmatpush1.xpose.msra.mxu0 %v2925
    %2927 = vmatprep.subr.mxu0 0.0
    %2928 = vmatpush1.xpose.msra.mxu0 0.0
    %2929 = vmatprep.subr.mxu0 0.0
    %2930 = vmatpush1.xpose.msra.mxu0 0.0
    %2931 = vmatprep.subr.mxu0 0.0
    %2932 = vmatpush1.xpose.msra.mxu0 0.0
    %2933 = vmatprep.subr.mxu0 0.0
    %2934 = vmatpush1.xpose.msra.mxu0 0.0
    %2935 = vmatprep.subr.mxu0 0.0
    %2936 = vmatpush1.xpose.msra.mxu0 0.0
    %2937 = vmatprep.subr.mxu0 0.0
    %2938 = vmatpush1.xpose.msra.mxu0 0.0
    %2939 = vmatprep.subr.mxu0 0.0
    %2940 = vmatpush1.xpose.msra.mxu0 0.0
    %2941 = vmatprep.subr.mxu0 0.0
    %2942 = vmatpush1.xpose.msra.mxu0 0.0
    %2943 = vmatprep.subr.mxu0 0.0
    %2944 = vmatpush1.xpose.msra.mxu0 0.0
    %2945 = vmatprep.subr.mxu0 0.0
    %2946 = vmatpush1.xpose.msra.mxu0 0.0
    %2947 = vmatprep.subr.mxu0 0.0
    %2948 = vmatpush1.xpose.msra.mxu0 0.0
    %2949 = vmatprep.subr.mxu0 0.0
    %2950 = vmatpush1.xpose.msra.mxu0 0.0
    %2951 = vmatprep.subr.mxu0 0.0
    %2952 = vmatpush1.xpose.msra.mxu0 0.0
    %2953 = vmatprep.subr.mxu0 0.0
    %2954 = vmatpush1.xpose.msra.mxu0 0.0
    %2955 = vmatprep.subr.mxu0 0.0
    %2956 = vmatpush1.xpose.msra.mxu0 0.0
    %2957 = vmatprep.subr.mxu0 0.0
    %2958 = vmatpush1.xpose.msra.mxu0 0.0
    %2959 = vmatprep.subr.mxu0 0.0
    %2960 = vmatpush1.xpose.msra.mxu0 0.0
    %2961 = vmatprep.subr.mxu0 0.0
    %2962 = vmatpush1.xpose.msra.mxu0 0.0
    %2963 = vmatprep.subr.mxu0 0.0
    %2964 = vmatpush1.xpose.msra.mxu0 0.0
    %2965 = vmatprep.subr.mxu0 0.0
    %2966 = vmatpush1.xpose.msra.mxu0 0.0
    %2967 = vmatprep.subr.mxu0 0.0
    %2968 = vmatpush1.xpose.msra.mxu0 0.0
    %2969 = vmatprep.subr.mxu0 0.0
    %2970 = vmatpush1.xpose.msra.mxu0 0.0
    %2971 = vmatprep.subr.mxu0 0.0
    %2972 = vmatpush1.xpose.msra.mxu0 0.0
    %2973 = vmatprep.subr.mxu0 0.0
    %2974 = vmatpush1.xpose.msra.mxu0 0.0
    %2975 = vmatprep.subr.mxu0 0.0
    %2976 = vmatpush1.xpose.msra.mxu0 0.0
    %2977 = vmatprep.subr.mxu0 0.0
    %2978 = vmatpush1.xpose.msra.mxu0 0.0
    %2979 = vmatprep.subr.mxu0 0.0
    %2980 = vmatpush1.xpose.msra.mxu0 0.0
    %2981 = vmatprep.subr.mxu0 0.0
    %2982 = vmatpush1.xpose.msra.mxu0 0.0
    %2983 = vmatprep.subr.mxu0 0.0
    %2984 = vmatpush1.xpose.msra.mxu0 0.0
    %2985 = vmatprep.subr.mxu0 0.0
    %2986 = vmatpush1.xpose.msra.mxu0 0.0
    %2987 = vmatprep.subr.mxu0 0.0
    %2988 = vmatpush1.xpose.msra.mxu0 0.0
    %2989 = vmatprep.mubr.f32.mxu0 0.0
    %v2990 = vand.u32 %v2618, 4294901760
    %2991 = vmatmul.mubr.f32.gmra.mrb[0].mxu0 %v2990
    %v2992 = vpop.f32.mrb[0].mxu0
    %v2993 = vadd.f32 %v2919, %v2992
    %v2994 = vpop.f32.mrb[0].mxu0
    %2995 = vdwg.mxu0
    %2996 = vmatprep.subr.mxu0 0.0
    %v2997 = vand.u32 %v2620, 4294901760
    %2998 = vmatpush1.xpose.msra.mxu0 %v2997
    %2999 = vmatprep.subr.mxu0 0.0
    %3000 = vmatpush1.xpose.msra.mxu0 0.0
    %3001 = vmatprep.subr.mxu0 0.0
    %3002 = vmatpush1.xpose.msra.mxu0 0.0
    %3003 = vmatprep.subr.mxu0 0.0
    %3004 = vmatpush1.xpose.msra.mxu0 0.0
    %3005 = vmatprep.subr.mxu0 0.0
    %3006 = vmatpush1.xpose.msra.mxu0 0.0
    %3007 = vmatprep.subr.mxu0 0.0
    %3008 = vmatpush1.xpose.msra.mxu0 0.0
    %3009 = vmatprep.subr.mxu0 0.0
    %3010 = vmatpush1.xpose.msra.mxu0 0.0
    %3011 = vmatprep.subr.mxu0 0.0
    %3012 = vmatpush1.xpose.msra.mxu0 0.0
    %3013 = vmatprep.subr.mxu0 0.0
    %3014 = vmatpush1.xpose.msra.mxu0 0.0
    %3015 = vmatprep.subr.mxu0 0.0
    %3016 = vmatpush1.xpose.msra.mxu0 0.0
    %3017 = vmatprep.subr.mxu0 0.0
    %3018 = vmatpush1.xpose.msra.mxu0 0.0
    %3019 = vmatprep.subr.mxu0 0.0
    %3020 = vmatpush1.xpose.msra.mxu0 0.0
    %3021 = vmatprep.subr.mxu0 0.0
    %3022 = vmatpush1.xpose.msra.mxu0 0.0
    %3023 = vmatprep.subr.mxu0 0.0
    %3024 = vmatpush1.xpose.msra.mxu0 0.0
    %3025 = vmatprep.subr.mxu0 0.0
    %3026 = vmatpush1.xpose.msra.mxu0 0.0
    %3027 = vmatprep.subr.mxu0 0.0
    %3028 = vmatpush1.xpose.msra.mxu0 0.0
    %3029 = vmatprep.subr.mxu0 0.0
    %3030 = vmatpush1.xpose.msra.mxu0 0.0
    %3031 = vmatprep.subr.mxu0 0.0
    %3032 = vmatpush1.xpose.msra.mxu0 0.0
    %3033 = vmatprep.subr.mxu0 0.0
    %3034 = vmatpush1.xpose.msra.mxu0 0.0
    %3035 = vmatprep.subr.mxu0 0.0
    %3036 = vmatpush1.xpose.msra.mxu0 0.0
    %3037 = vmatprep.subr.mxu0 0.0
    %3038 = vmatpush1.xpose.msra.mxu0 0.0
    %3039 = vmatprep.subr.mxu0 0.0
    %3040 = vmatpush1.xpose.msra.mxu0 0.0
    %3041 = vmatprep.subr.mxu0 0.0
    %3042 = vmatpush1.xpose.msra.mxu0 0.0
    %3043 = vmatprep.subr.mxu0 0.0
    %3044 = vmatpush1.xpose.msra.mxu0 0.0
    %3045 = vmatprep.subr.mxu0 0.0
    %3046 = vmatpush1.xpose.msra.mxu0 0.0
    %3047 = vmatprep.subr.mxu0 0.0
    %3048 = vmatpush1.xpose.msra.mxu0 0.0
    %3049 = vmatprep.subr.mxu0 0.0
    %3050 = vmatpush1.xpose.msra.mxu0 0.0
    %3051 = vmatprep.subr.mxu0 0.0
    %3052 = vmatpush1.xpose.msra.mxu0 0.0
    %3053 = vmatprep.subr.mxu0 0.0
    %3054 = vmatpush1.xpose.msra.mxu0 0.0
    %3055 = vmatprep.subr.mxu0 0.0
    %3056 = vmatpush1.xpose.msra.mxu0 0.0
    %3057 = vmatprep.subr.mxu0 0.0
    %3058 = vmatpush1.xpose.msra.mxu0 0.0
    %3059 = vmatprep.subr.mxu0 0.0
    %3060 = vmatpush1.xpose.msra.mxu0 0.0
    %3061 = vmatprep.mubr.f32.mxu0 0.0
    %v3062 = vand.u32 %v2618, 4294901760
    %3063 = vmatmul.mubr.f32.gmra.mrb[0].mxu0 %v3062
    %v3064 = vpop.f32.mrb[0].mxu0
    %v3065 = vadd.f32 %v2993, %v3064
    %v3066 = vpop.f32.mrb[0].mxu0
    %3067 = vdwg.mxu0
    %v3068 = vsel %vm1700, %v3065, -inf
    %3069 = vmax.xlane.f32.xlu0 %v3068
    %v3070 = vpop.xlane.xlu0 %3069
    %v3071 = vsub.f32 %v3065, %v3070
    %v3072 = vmul.f32 %v3071, 1.442695
    %v3073 = vpow.pop %v3072
    %v3074 = vsel %vm1700, %v3073, 0.0
    %3075 = vadd.xlane.f32.xlu0 %v3074
    %v3076 = vpop.xlane.xlu0 %3075
    %v3077 = vrcp.pop %v3076
    %v3078 = vmul.f32 %v3073, %v3077
    %3080 = vrot.lane.b32.xlu0 %v1691, 120
    %v3081 = vpop.permute.xlu0 %3080
    %v3084 = vsel %vm1700, %v3078, 0
    %3086 = vmatprep.subr.mxu0 0.0
    %v3087 = vand.u32 %v3081, 4294901760
    %3088 = vmatpush1.msra.mxu0 %v3087
    %3089 = vmatprep.subr.mxu0 0.0
    %3090 = vmatpush1.msra.mxu0 0.0
    %3091 = vmatprep.subr.mxu0 0.0
    %3092 = vmatpush1.msra.mxu0 0.0
    %3093 = vmatprep.subr.mxu0 0.0
    %3094 = vmatpush1.msra.mxu0 0.0
    %3095 = vmatprep.subr.mxu0 0.0
    %3096 = vmatpush1.msra.mxu0 0.0
    %3097 = vmatprep.subr.mxu0 0.0
    %3098 = vmatpush1.msra.mxu0 0.0
    %3099 = vmatprep.subr.mxu0 0.0
    %3100 = vmatpush1.msra.mxu0 0.0
    %3101 = vmatprep.subr.mxu0 0.0
    %3102 = vmatpush1.msra.mxu0 0.0
    %3103 = vmatprep.subr.mxu0 0.0
    %3104 = vmatpush1.msra.mxu0 0.0
    %3105 = vmatprep.subr.mxu0 0.0
    %3106 = vmatpush1.msra.mxu0 0.0
    %3107 = vmatprep.subr.mxu0 0.0
    %3108 = vmatpush1.msra.mxu0 0.0
    %3109 = vmatprep.subr.mxu0 0.0
    %3110 = vmatpush1.msra.mxu0 0.0
    %3111 = vmatprep.subr.mxu0 0.0
    %3112 = vmatpush1.msra.mxu0 0.0
    %3113 = vmatprep.subr.mxu0 0.0
    %3114 = vmatpush1.msra.mxu0 0.0
    %3115 = vmatprep.subr.mxu0 0.0
    %3116 = vmatpush1.msra.mxu0 0.0
    %3117 = vmatprep.subr.mxu0 0.0
    %3118 = vmatpush1.msra.mxu0 0.0
    %3119 = vmatprep.subr.mxu0 0.0
    %3120 = vmatpush1.msra.mxu0 0.0
    %3121 = vmatprep.subr.mxu0 0.0
    %3122 = vmatpush1.msra.mxu0 0.0
    %3123 = vmatprep.subr.mxu0 0.0
    %3124 = vmatpush1.msra.mxu0 0.0
    %3125 = vmatprep.subr.mxu0 0.0
    %3126 = vmatpush1.msra.mxu0 0.0
    %3127 = vmatprep.subr.mxu0 0.0
    %3128 = vmatpush1.msra.mxu0 0.0
    %3129 = vmatprep.subr.mxu0 0.0
    %3130 = vmatpush1.msra.mxu0 0.0
    %3131 = vmatprep.subr.mxu0 0.0
    %3132 = vmatpush1.msra.mxu0 0.0
    %3133 = vmatprep.subr.mxu0 0.0
    %3134 = vmatpush1.msra.mxu0 0.0
    %3135 = vmatprep.subr.mxu0 0.0
    %3136 = vmatpush1.msra.mxu0 0.0
    %3137 = vmatprep.subr.mxu0 0.0
    %3138 = vmatpush1.msra.mxu0 0.0
    %3139 = vmatprep.subr.mxu0 0.0
    %3140 = vmatpush1.msra.mxu0 0.0
    %3141 = vmatprep.subr.mxu0 0.0
    %3142 = vmatpush1.msra.mxu0 0.0
    %3143 = vmatprep.subr.mxu0 0.0
    %3144 = vmatpush1.msra.mxu0 0.0
    %3145 = vmatprep.subr.mxu0 0.0
    %3146 = vmatpush1.msra.mxu0 0.0
    %3147 = vmatprep.subr.mxu0 0.0
    %3148 = vmatpush1.msra.mxu0 0.0
    %3149 = vmatprep.subr.mxu0 0.0
    %3150 = vmatpush1.msra.mxu0 0.0
    %3151 = vmatprep.mubr.f32.mxu0 0.0
    %v3152 = vand.u32 %v3084, 4294901760
    %v3153 = vsub.f32 %v3084, %v3152
    %v3154 = vand.u32 %v3153, 4294901760
    %v3155 = vsub.f32 %v3153, %v3154
    %v3156 = vand.u32 %v3155, 4294901760
    %3157 = vmatmul.mubr.f32.gmra.mrb[0].mxu0 %v3156
    %v3158 = vpop.f32.mrb[0].mxu0
    %v3159 = vadd.f32 0.0, %v3158
    %v3160 = vpop.f32.mrb[0].mxu0
    %3161 = vdwg.mxu0
    %3162 = vmatprep.subr.mxu0 0.0
    %v3163 = vand.u32 %v3081, 4294901760
    %v3164 = vsub.f32 %v3081, %v3163
    %v3165 = vand.u32 %v3164, 4294901760
    %v3166 = vsub.f32 %v3164, %v3165
    %v3167 = vand.u32 %v3166, 4294901760
    %3168 = vmatpush1.msra.mxu0 %v3167
    %3169 = vmatprep.subr.mxu0 0.0
    %3170 = vmatpush1.msra.mxu0 0.0
    %3171 = vmatprep.subr.mxu0 0.0
    %3172 = vmatpush1.msra.mxu0 0.0
    %3173 = vmatprep.subr.mxu0 0.0
    %3174 = vmatpush1.msra.mxu0 0.0
    %3175 = vmatprep.subr.mxu0 0.0
    %3176 = vmatpush1.msra.mxu0 0.0
    %3177 = vmatprep.subr.mxu0 0.0
    %3178 = vmatpush1.msra.mxu0 0.0
    %3179 = vmatprep.subr.mxu0 0.0
    %3180 = vmatpush1.msra.mxu0 0.0
    %3181 = vmatprep.subr.mxu0 0.0
    %3182 = vmatpush1.msra.mxu0 0.0
    %3183 = vmatprep.subr.mxu0 0.0
    %3184 = vmatpush1.msra.mxu0 0.0
    %3185 = vmatprep.subr.mxu0 0.0
    %3186 = vmatpush1.msra.mxu0 0.0
    %3187 = vmatprep.subr.mxu0 0.0
    %3188 = vmatpush1.msra.mxu0 0.0
    %3189 = vmatprep.subr.mxu0 0.0
    %3190 = vmatpush1.msra.mxu0 0.0
    %3191 = vmatprep.subr.mxu0 0.0
    %3192 = vmatpush1.msra.mxu0 0.0
    %3193 = vmatprep.subr.mxu0 0.0
    %3194 = vmatpush1.msra.mxu0 0.0
    %3195 = vmatprep.subr.mxu0 0.0
    %3196 = vmatpush1.msra.mxu0 0.0
    %3197 = vmatprep.subr.mxu0 0.0
    %3198 = vmatpush1.msra.mxu0 0.0
    %3199 = vmatprep.subr.mxu0 0.0
    %3200 = vmatpush1.msra.mxu0 0.0
    %3201 = vmatprep.subr.mxu0 0.0
    %3202 = vmatpush1.msra.mxu0 0.0
    %3203 = vmatprep.subr.mxu0 0.0
    %3204 = vmatpush1.msra.mxu0 0.0
    %3205 = vmatprep.subr.mxu0 0.0
    %3206 = vmatpush1.msra.mxu0 0.0
    %3207 = vmatprep.subr.mxu0 0.0
    %3208 = vmatpush1.msra.mxu0 0.0
    %3209 = vmatprep.subr.mxu0 0.0
    %3210 = vmatpush1.msra.mxu0 0.0
    %3211 = vmatprep.subr.mxu0 0.0
    %3212 = vmatpush1.msra.mxu0 0.0
    %3213 = vmatprep.subr.mxu0 0.0
    %3214 = vmatpush1.msra.mxu0 0.0
    %3215 = vmatprep.subr.mxu0 0.0
    %3216 = vmatpush1.msra.mxu0 0.0
    %3217 = vmatprep.subr.mxu0 0.0
    %3218 = vmatpush1.msra.mxu0 0.0
    %3219 = vmatprep.subr.mxu0 0.0
    %3220 = vmatpush1.msra.mxu0 0.0
    %3221 = vmatprep.subr.mxu0 0.0
    %3222 = vmatpush1.msra.mxu0 0.0
    %3223 = vmatprep.subr.mxu0 0.0
    %3224 = vmatpush1.msra.mxu0 0.0
    %3225 = vmatprep.subr.mxu0 0.0
    %3226 = vmatpush1.msra.mxu0 0.0
    %3227 = vmatprep.subr.mxu0 0.0
    %3228 = vmatpush1.msra.mxu0 0.0
    %3229 = vmatprep.subr.mxu0 0.0
    %3230 = vmatpush1.msra.mxu0 0.0
    %3231 = vmatprep.mubr.f32.mxu0 0.0
    %v3232 = vand.u32 %v3084, 4294901760
    %3233 = vmatmul.mubr.f32.gmra.mrb[0].mxu0 %v3232
    %v3234 = vpop.f32.mrb[0].mxu0
    %v3235 = vadd.f32 %v3159, %v3234
    %v3236 = vpop.f32.mrb[0].mxu0
    %3237 = vdwg.mxu0
    %3238 = vmatprep.subr.mxu0 0.0
    %v3239 = vand.u32 %v3081, 4294901760
    %v3240 = vsub.f32 %v3081, %v3239
    %3241 = vmatpush1.msra.mxu0 %v3240
    %3242 = vmatprep.subr.mxu0 0.0
    %3243 = vmatpush1.msra.mxu0 0.0
    %3244 = vmatprep.subr.mxu0 0.0
    %3245 = vmatpush1.msra.mxu0 0.0
    %3246 = vmatprep.subr.mxu0 0.0
    %3247 = vmatpush1.msra.mxu0 0.0
    %3248 = vmatprep.subr.mxu0 0.0
    %3249 = vmatpush1.msra.mxu0 0.0
    %3250 = vmatprep.subr.mxu0 0.0
    %3251 = vmatpush1.msra.mxu0 0.0
    %3252 = vmatprep.subr.mxu0 0.0
    %3253 = vmatpush1.msra.mxu0 0.0
    %3254 = vmatprep.subr.mxu0 0.0
    %3255 = vmatpush1.msra.mxu0 0.0
    %3256 = vmatprep.subr.mxu0 0.0
    %3257 = vmatpush1.msra.mxu0 0.0
    %3258 = vmatprep.subr.mxu0 0.0
    %3259 = vmatpush1.msra.mxu0 0.0
    %3260 = vmatprep.subr.mxu0 0.0
    %3261 = vmatpush1.msra.mxu0 0.0
    %3262 = vmatprep.subr.mxu0 0.0
    %3263 = vmatpush1.msra.mxu0 0.0
    %3264 = vmatprep.subr.mxu0 0.0
    %3265 = vmatpush1.msra.mxu0 0.0
    %3266 = vmatprep.subr.mxu0 0.0
    %3267 = vmatpush1.msra.mxu0 0.0
    %3268 = vmatprep.subr.mxu0 0.0
    %3269 = vmatpush1.msra.mxu0 0.0
    %3270 = vmatprep.subr.mxu0 0.0
    %3271 = vmatpush1.msra.mxu0 0.0
    %3272 = vmatprep.subr.mxu0 0.0
    %3273 = vmatpush1.msra.mxu0 0.0
    %3274 = vmatprep.subr.mxu0 0.0
    %3275 = vmatpush1.msra.mxu0 0.0
    %3276 = vmatprep.subr.mxu0 0.0
    %3277 = vmatpush1.msra.mxu0 0.0
    %3278 = vmatprep.subr.mxu0 0.0
    %3279 = vmatpush1.msra.mxu0 0.0
    %3280 = vmatprep.subr.mxu0 0.0
    %3281 = vmatpush1.msra.mxu0 0.0
    %3282 = vmatprep.subr.mxu0 0.0
    %3283 = vmatpush1.msra.mxu0 0.0
    %3284 = vmatprep.subr.mxu0 0.0
    %3285 = vmatpush1.msra.mxu0 0.0
    %3286 = vmatprep.subr.mxu0 0.0
    %3287 = vmatpush1.msra.mxu0 0.0
    %3288 = vmatprep.subr.mxu0 0.0
    %3289 = vmatpush1.msra.mxu0 0.0
    %3290 = vmatprep.subr.mxu0 0.0
    %3291 = vmatpush1.msra.mxu0 0.0
    %3292 = vmatprep.subr.mxu0 0.0
    %3293 = vmatpush1.msra.mxu0 0.0
    %3294 = vmatprep.subr.mxu0 0.0
    %3295 = vmatpush1.msra.mxu0 0.0
    %3296 = vmatprep.subr.mxu0 0.0
    %3297 = vmatpush1.msra.mxu0 0.0
    %3298 = vmatprep.subr.mxu0 0.0
    %3299 = vmatpush1.msra.mxu0 0.0
    %3300 = vmatprep.subr.mxu0 0.0
    %3301 = vmatpush1.msra.mxu0 0.0
    %3302 = vmatprep.subr.mxu0 0.0
    %3303 = vmatpush1.msra.mxu0 0.0
    %3304 = vmatprep.mubr.f32.mxu0 0.0
    %v3305 = vand.u32 %v3084, 4294901760
    %v3306 = vsub.f32 %v3084, %v3305
    %3307 = vmatmul.mubr.f32.gmra.mrb[0].mxu0 %v3306
    %v3308 = vpop.f32.mrb[0].mxu0
    %v3309 = vadd.f32 %v3235, %v3308
    %v3310 = vpop.f32.mrb[0].mxu0
    %3311 = vdwg.mxu0
    %3312 = vmatprep.subr.mxu0 0.0
    %v3313 = vand.u32 %v3081, 4294901760
    %3314 = vmatpush1.msra.mxu0 %v3313
    %3315 = vmatprep.subr.mxu0 0.0
    %3316 = vmatpush1.msra.mxu0 0.0
    %3317 = vmatprep.subr.mxu0 0.0
    %3318 = vmatpush1.msra.mxu0 0.0
    %3319 = vmatprep.subr.mxu0 0.0
    %3320 = vmatpush1.msra.mxu0 0.0
    %3321 = vmatprep.subr.mxu0 0.0
    %3322 = vmatpush1.msra.mxu0 0.0
    %3323 = vmatprep.subr.mxu0 0.0
    %3324 = vmatpush1.msra.mxu0 0.0
    %3325 = vmatprep.subr.mxu0 0.0
    %3326 = vmatpush1.msra.mxu0 0.0
    %3327 = vmatprep.subr.mxu0 0.0
    %3328 = vmatpush1.msra.mxu0 0.0
    %3329 = vmatprep.subr.mxu0 0.0
    %3330 = vmatpush1.msra.mxu0 0.0
    %3331 = vmatprep.subr.mxu0 0.0
    %3332 = vmatpush1.msra.mxu0 0.0
    %3333 = vmatprep.subr.mxu0 0.0
    %3334 = vmatpush1.msra.mxu0 0.0
    %3335 = vmatprep.subr.mxu0 0.0
    %3336 = vmatpush1.msra.mxu0 0.0
    %3337 = vmatprep.subr.mxu0 0.0
    %3338 = vmatpush1.msra.mxu0 0.0
    %3339 = vmatprep.subr.mxu0 0.0
    %3340 = vmatpush1.msra.mxu0 0.0
    %3341 = vmatprep.subr.mxu0 0.0
    %3342 = vmatpush1.msra.mxu0 0.0
    %3343 = vmatprep.subr.mxu0 0.0
    %3344 = vmatpush1.msra.mxu0 0.0
    %3345 = vmatprep.subr.mxu0 0.0
    %3346 = vmatpush1.msra.mxu0 0.0
    %3347 = vmatprep.subr.mxu0 0.0
    %3348 = vmatpush1.msra.mxu0 0.0
    %3349 = vmatprep.subr.mxu0 0.0
    %3350 = vmatpush1.msra.mxu0 0.0
    %3351 = vmatprep.subr.mxu0 0.0
    %3352 = vmatpush1.msra.mxu0 0.0
    %3353 = vmatprep.subr.mxu0 0.0
    %3354 = vmatpush1.msra.mxu0 0.0
    %3355 = vmatprep.subr.mxu0 0.0
    %3356 = vmatpush1.msra.mxu0 0.0
    %3357 = vmatprep.subr.mxu0 0.0
    %3358 = vmatpush1.msra.mxu0 0.0
    %3359 = vmatprep.subr.mxu0 0.0
    %3360 = vmatpush1.msra.mxu0 0.0
    %3361 = vmatprep.subr.mxu0 0.0
    %3362 = vmatpush1.msra.mxu0 0.0
    %3363 = vmatprep.subr.mxu0 0.0
    %3364 = vmatpush1.msra.mxu0 0.0
    %3365 = vmatprep.subr.mxu0 0.0
    %3366 = vmatpush1.msra.mxu0 0.0
    %3367 = vmatprep.subr.mxu0 0.0
    %3368 = vmatpush1.msra.mxu0 0.0
    %3369 = vmatprep.subr.mxu0 0.0
    %3370 = vmatpush1.msra.mxu0 0.0
    %3371 = vmatprep.subr.mxu0 0.0
    %3372 = vmatpush1.msra.mxu0 0.0
    %3373 = vmatprep.subr.mxu0 0.0
    %3374 = vmatpush1.msra.mxu0 0.0
    %3375 = vmatprep.subr.mxu0 0.0
    %3376 = vmatpush1.msra.mxu0 0.0
    %3377 = vmatprep.mubr.f32.mxu0 0.0
    %v3378 = vand.u32 %v3084, 4294901760
    %v3379 = vsub.f32 %v3084, %v3378
    %v3380 = vand.u32 %v3379, 4294901760
    %3381 = vmatmul.mubr.f32.gmra.mrb[0].mxu0 %v3380
    %v3382 = vpop.f32.mrb[0].mxu0
    %v3383 = vadd.f32 %v3309, %v3382
    %v3384 = vpop.f32.mrb[0].mxu0
    %3385 = vdwg.mxu0
    %3386 = vmatprep.subr.mxu0 0.0
    %v3387 = vand.u32 %v3081, 4294901760
    %v3388 = vsub.f32 %v3081, %v3387
    %v3389 = vand.u32 %v3388, 4294901760
    %3390 = vmatpush1.msra.mxu0 %v3389
    %3391 = vmatprep.subr.mxu0 0.0
    %3392 = vmatpush1.msra.mxu0 0.0
    %3393 = vmatprep.subr.mxu0 0.0
    %3394 = vmatpush1.msra.mxu0 0.0
    %3395 = vmatprep.subr.mxu0 0.0
    %3396 = vmatpush1.msra.mxu0 0.0
    %3397 = vmatprep.subr.mxu0 0.0
    %3398 = vmatpush1.msra.mxu0 0.0
    %3399 = vmatprep.subr.mxu0 0.0
    %3400 = vmatpush1.msra.mxu0 0.0
    %3401 = vmatprep.subr.mxu0 0.0
    %3402 = vmatpush1.msra.mxu0 0.0
    %3403 = vmatprep.subr.mxu0 0.0
    %3404 = vmatpush1.msra.mxu0 0.0
    %3405 = vmatprep.subr.mxu0 0.0
    %3406 = vmatpush1.msra.mxu0 0.0
    %3407 = vmatprep.subr.mxu0 0.0
    %3408 = vmatpush1.msra.mxu0 0.0
    %3409 = vmatprep.subr.mxu0 0.0
    %3410 = vmatpush1.msra.mxu0 0.0
    %3411 = vmatprep.subr.mxu0 0.0
    %3412 = vmatpush1.msra.mxu0 0.0
    %3413 = vmatprep.subr.mxu0 0.0
    %3414 = vmatpush1.msra.mxu0 0.0
    %3415 = vmatprep.subr.mxu0 0.0
    %3416 = vmatpush1.msra.mxu0 0.0
    %3417 = vmatprep.subr.mxu0 0.0
    %3418 = vmatpush1.msra.mxu0 0.0
    %3419 = vmatprep.subr.mxu0 0.0
    %3420 = vmatpush1.msra.mxu0 0.0
    %3421 = vmatprep.subr.mxu0 0.0
    %3422 = vmatpush1.msra.mxu0 0.0
    %3423 = vmatprep.subr.mxu0 0.0
    %3424 = vmatpush1.msra.mxu0 0.0
    %3425 = vmatprep.subr.mxu0 0.0
    %3426 = vmatpush1.msra.mxu0 0.0
    %3427 = vmatprep.subr.mxu0 0.0
    %3428 = vmatpush1.msra.mxu0 0.0
    %3429 = vmatprep.subr.mxu0 0.0
    %3430 = vmatpush1.msra.mxu0 0.0
    %3431 = vmatprep.subr.mxu0 0.0
    %3432 = vmatpush1.msra.mxu0 0.0
    %3433 = vmatprep.subr.mxu0 0.0
    %3434 = vmatpush1.msra.mxu0 0.0
    %3435 = vmatprep.subr.mxu0 0.0
    %3436 = vmatpush1.msra.mxu0 0.0
    %3437 = vmatprep.subr.mxu0 0.0
    %3438 = vmatpush1.msra.mxu0 0.0
    %3439 = vmatprep.subr.mxu0 0.0
    %3440 = vmatpush1.msra.mxu0 0.0
    %3441 = vmatprep.subr.mxu0 0.0
    %3442 = vmatpush1.msra.mxu0 0.0
    %3443 = vmatprep.subr.mxu0 0.0
    %3444 = vmatpush1.msra.mxu0 0.0
    %3445 = vmatprep.subr.mxu0 0.0
    %3446 = vmatpush1.msra.mxu0 0.0
    %3447 = vmatprep.subr.mxu0 0.0
    %3448 = vmatpush1.msra.mxu0 0.0
    %3449 = vmatprep.subr.mxu0 0.0
    %3450 = vmatpush1.msra.mxu0 0.0
    %3451 = vmatprep.subr.mxu0 0.0
    %3452 = vmatpush1.msra.mxu0 0.0
    %3453 = vmatprep.mubr.f32.mxu0 0.0
    %v3454 = vand.u32 %v3084, 4294901760
    %3455 = vmatmul.mubr.f32.gmra.mrb[0].mxu0 %v3454
    %v3456 = vpop.f32.mrb[0].mxu0
    %v3457 = vadd.f32 %v3383, %v3456
    %v3458 = vpop.f32.mrb[0].mxu0
    %3459 = vdwg.mxu0
    %3460 = vmatprep.subr.mxu0 0.0
    %v3461 = vand.u32 %v3081, 4294901760
    %3462 = vmatpush1.msra.mxu0 %v3461
    %3463 = vmatprep.subr.mxu0 0.0
    %3464 = vmatpush1.msra.mxu0 0.0
    %3465 = vmatprep.subr.mxu0 0.0
    %3466 = vmatpush1.msra.mxu0 0.0
    %3467 = vmatprep.subr.mxu0 0.0
    %3468 = vmatpush1.msra.mxu0 0.0
    %3469 = vmatprep.subr.mxu0 0.0
    %3470 = vmatpush1.msra.mxu0 0.0
    %3471 = vmatprep.subr.mxu0 0.0
    %3472 = vmatpush1.msra.mxu0 0.0
    %3473 = vmatprep.subr.mxu0 0.0
    %3474 = vmatpush1.msra.mxu0 0.0
    %3475 = vmatprep.subr.mxu0 0.0
    %3476 = vmatpush1.msra.mxu0 0.0
    %3477 = vmatprep.subr.mxu0 0.0
    %3478 = vmatpush1.msra.mxu0 0.0
    %3479 = vmatprep.subr.mxu0 0.0
    %3480 = vmatpush1.msra.mxu0 0.0
    %3481 = vmatprep.subr.mxu0 0.0
    %3482 = vmatpush1.msra.mxu0 0.0
    %3483 = vmatprep.subr.mxu0 0.0
    %3484 = vmatpush1.msra.mxu0 0.0
    %3485 = vmatprep.subr.mxu0 0.0
    %3486 = vmatpush1.msra.mxu0 0.0
    %3487 = vmatprep.subr.mxu0 0.0
    %3488 = vmatpush1.msra.mxu0 0.0
    %3489 = vmatprep.subr.mxu0 0.0
    %3490 = vmatpush1.msra.mxu0 0.0
    %3491 = vmatprep.subr.mxu0 0.0
    %3492 = vmatpush1.msra.mxu0 0.0
    %3493 = vmatprep.subr.mxu0 0.0
    %3494 = vmatpush1.msra.mxu0 0.0
    %3495 = vmatprep.subr.mxu0 0.0
    %3496 = vmatpush1.msra.mxu0 0.0
    %3497 = vmatprep.subr.mxu0 0.0
    %3498 = vmatpush1.msra.mxu0 0.0
    %3499 = vmatprep.subr.mxu0 0.0
    %3500 = vmatpush1.msra.mxu0 0.0
    %3501 = vmatprep.subr.mxu0 0.0
    %3502 = vmatpush1.msra.mxu0 0.0
    %3503 = vmatprep.subr.mxu0 0.0
    %3504 = vmatpush1.msra.mxu0 0.0
    %3505 = vmatprep.subr.mxu0 0.0
    %3506 = vmatpush1.msra.mxu0 0.0
    %3507 = vmatprep.subr.mxu0 0.0
    %3508 = vmatpush1.msra.mxu0 0.0
    %3509 = vmatprep.subr.mxu0 0.0
    %3510 = vmatpush1.msra.mxu0 0.0
    %3511 = vmatprep.subr.mxu0 0.0
    %3512 = vmatpush1.msra.mxu0 0.0
    %3513 = vmatprep.subr.mxu0 0.0
    %3514 = vmatpush1.msra.mxu0 0.0
    %3515 = vmatprep.subr.mxu0 0.0
    %3516 = vmatpush1.msra.mxu0 0.0
    %3517 = vmatprep.subr.mxu0 0.0
    %3518 = vmatpush1.msra.mxu0 0.0
    %3519 = vmatprep.subr.mxu0 0.0
    %3520 = vmatpush1.msra.mxu0 0.0
    %3521 = vmatprep.subr.mxu0 0.0
    %3522 = vmatpush1.msra.mxu0 0.0
    %3523 = vmatprep.subr.mxu0 0.0
    %3524 = vmatpush1.msra.mxu0 0.0
    %3525 = vmatprep.mubr.f32.mxu0 0.0
    %v3526 = vand.u32 %v3084, 4294901760
    %3527 = vmatmul.mubr.f32.gmra.mrb[0].mxu0 %v3526
    %v3528 = vpop.f32.mrb[0].mxu0
    %v3529 = vadd.f32 %v3457, %v3528
    %v3530 = vpop.f32.mrb[0].mxu0
    %3531 = vdwg.mxu0
    %3533 = vrot.lane.b32.xlu0 %v3529, 8
    %v3534 = vpop.permute.xlu0 %3533
    %vm3536 = vcmask 130112
    %3537 = vst.msk [vmem:[#allocation2] sm:$0xff] %vm3536, %v3534
    %3538 = vrot.lane.b32.xlu0 %v642, 112
    %v3539 = vpop.permute.xlu0 %3538
    %3540 = vrot.lane.b32.xlu0 %v1163, 112
    %v3541 = vpop.permute.xlu0 %3540
    %v3542 = vsel %vm1700, %v3539, 0
    %v3544 = vsel %vm1700, %v3541, 0
    %3546 = vmatprep.subr.mxu0 0.0
    %v3547 = vand.u32 %v3544, 4294901760
    %3548 = vmatpush1.xpose.msra.mxu0 %v3547
    %3549 = vmatprep.subr.mxu0 0.0
    %3550 = vmatpush1.xpose.msra.mxu0 0.0
    %3551 = vmatprep.subr.mxu0 0.0
    %3552 = vmatpush1.xpose.msra.mxu0 0.0
    %3553 = vmatprep.subr.mxu0 0.0
    %3554 = vmatpush1.xpose.msra.mxu0 0.0
    %3555 = vmatprep.subr.mxu0 0.0
    %3556 = vmatpush1.xpose.msra.mxu0 0.0
    %3557 = vmatprep.subr.mxu0 0.0
    %3558 = vmatpush1.xpose.msra.mxu0 0.0
    %3559 = vmatprep.subr.mxu0 0.0
    %3560 = vmatpush1.xpose.msra.mxu0 0.0
    %3561 = vmatprep.subr.mxu0 0.0
    %3562 = vmatpush1.xpose.msra.mxu0 0.0
    %3563 = vmatprep.subr.mxu0 0.0
    %3564 = vmatpush1.xpose.msra.mxu0 0.0
    %3565 = vmatprep.subr.mxu0 0.0
    %3566 = vmatpush1.xpose.msra.mxu0 0.0
    %3567 = vmatprep.subr.mxu0 0.0
    %3568 = vmatpush1.xpose.msra.mxu0 0.0
    %3569 = vmatprep.subr.mxu0 0.0
    %3570 = vmatpush1.xpose.msra.mxu0 0.0
    %3571 = vmatprep.subr.mxu0 0.0
    %3572 = vmatpush1.xpose.msra.mxu0 0.0
    %3573 = vmatprep.subr.mxu0 0.0
    %3574 = vmatpush1.xpose.msra.mxu0 0.0
    %3575 = vmatprep.subr.mxu0 0.0
    %3576 = vmatpush1.xpose.msra.mxu0 0.0
    %3577 = vmatprep.subr.mxu0 0.0
    %3578 = vmatpush1.xpose.msra.mxu0 0.0
    %3579 = vmatprep.subr.mxu0 0.0
    %3580 = vmatpush1.xpose.msra.mxu0 0.0
    %3581 = vmatprep.subr.mxu0 0.0
    %3582 = vmatpush1.xpose.msra.mxu0 0.0
    %3583 = vmatprep.subr.mxu0 0.0
    %3584 = vmatpush1.xpose.msra.mxu0 0.0
    %3585 = vmatprep.subr.mxu0 0.0
    %3586 = vmatpush1.xpose.msra.mxu0 0.0
    %3587 = vmatprep.subr.mxu0 0.0
    %3588 = vmatpush1.xpose.msra.mxu0 0.0
    %3589 = vmatprep.subr.mxu0 0.0
    %3590 = vmatpush1.xpose.msra.mxu0 0.0
    %3591 = vmatprep.subr.mxu0 0.0
    %3592 = vmatpush1.xpose.msra.mxu0 0.0
    %3593 = vmatprep.subr.mxu0 0.0
    %3594 = vmatpush1.xpose.msra.mxu0 0.0
    %3595 = vmatprep.subr.mxu0 0.0
    %3596 = vmatpush1.xpose.msra.mxu0 0.0
    %3597 = vmatprep.subr.mxu0 0.0
    %3598 = vmatpush1.xpose.msra.mxu0 0.0
    %3599 = vmatprep.subr.mxu0 0.0
    %3600 = vmatpush1.xpose.msra.mxu0 0.0
    %3601 = vmatprep.subr.mxu0 0.0
    %3602 = vmatpush1.xpose.msra.mxu0 0.0
    %3603 = vmatprep.subr.mxu0 0.0
    %3604 = vmatpush1.xpose.msra.mxu0 0.0
    %3605 = vmatprep.subr.mxu0 0.0
    %3606 = vmatpush1.xpose.msra.mxu0 0.0
    %3607 = vmatprep.subr.mxu0 0.0
    %3608 = vmatpush1.xpose.msra.mxu0 0.0
    %3609 = vmatprep.subr.mxu0 0.0
    %3610 = vmatpush1.xpose.msra.mxu0 0.0
    %3611 = vmatprep.mubr.f32.mxu0 0.0
    %v3612 = vand.u32 %v3542, 4294901760
    %v3613 = vsub.f32 %v3542, %v3612
    %v3614 = vand.u32 %v3613, 4294901760
    %v3615 = vsub.f32 %v3613, %v3614
    %v3616 = vand.u32 %v3615, 4294901760
    %3617 = vmatmul.mubr.f32.gmra.mrb[0].mxu0 %v3616
    %v3618 = vpop.f32.mrb[0].mxu0
    %v3619 = vadd.f32 0.0, %v3618
    %v3620 = vpop.f32.mrb[0].mxu0
    %3621 = vdwg.mxu0
    %3622 = vmatprep.subr.mxu0 0.0
    %v3623 = vand.u32 %v3544, 4294901760
    %v3624 = vsub.f32 %v3544, %v3623
    %v3625 = vand.u32 %v3624, 4294901760
    %v3626 = vsub.f32 %v3624, %v3625
    %v3627 = vand.u32 %v3626, 4294901760
    %3628 = vmatpush1.xpose.msra.mxu0 %v3627
    %3629 = vmatprep.subr.mxu0 0.0
    %3630 = vmatpush1.xpose.msra.mxu0 0.0
    %3631 = vmatprep.subr.mxu0 0.0
    %3632 = vmatpush1.xpose.msra.mxu0 0.0
    %3633 = vmatprep.subr.mxu0 0.0
    %3634 = vmatpush1.xpose.msra.mxu0 0.0
    %3635 = vmatprep.subr.mxu0 0.0
    %3636 = vmatpush1.xpose.msra.mxu0 0.0
    %3637 = vmatprep.subr.mxu0 0.0
    %3638 = vmatpush1.xpose.msra.mxu0 0.0
    %3639 = vmatprep.subr.mxu0 0.0
    %3640 = vmatpush1.xpose.msra.mxu0 0.0
    %3641 = vmatprep.subr.mxu0 0.0
    %3642 = vmatpush1.xpose.msra.mxu0 0.0
    %3643 = vmatprep.subr.mxu0 0.0
    %3644 = vmatpush1.xpose.msra.mxu0 0.0
    %3645 = vmatprep.subr.mxu0 0.0
    %3646 = vmatpush1.xpose.msra.mxu0 0.0
    %3647 = vmatprep.subr.mxu0 0.0
    %3648 = vmatpush1.xpose.msra.mxu0 0.0
    %3649 = vmatprep.subr.mxu0 0.0
    %3650 = vmatpush1.xpose.msra.mxu0 0.0
    %3651 = vmatprep.subr.mxu0 0.0
    %3652 = vmatpush1.xpose.msra.mxu0 0.0
    %3653 = vmatprep.subr.mxu0 0.0
    %3654 = vmatpush1.xpose.msra.mxu0 0.0
    %3655 = vmatprep.subr.mxu0 0.0
    %3656 = vmatpush1.xpose.msra.mxu0 0.0
    %3657 = vmatprep.subr.mxu0 0.0
    %3658 = vmatpush1.xpose.msra.mxu0 0.0
    %3659 = vmatprep.subr.mxu0 0.0
    %3660 = vmatpush1.xpose.msra.mxu0 0.0
    %3661 = vmatprep.subr.mxu0 0.0
    %3662 = vmatpush1.xpose.msra.mxu0 0.0
    %3663 = vmatprep.subr.mxu0 0.0
    %3664 = vmatpush1.xpose.msra.mxu0 0.0
    %3665 = vmatprep.subr.mxu0 0.0
    %3666 = vmatpush1.xpose.msra.mxu0 0.0
    %3667 = vmatprep.subr.mxu0 0.0
    %3668 = vmatpush1.xpose.msra.mxu0 0.0
    %3669 = vmatprep.subr.mxu0 0.0
    %3670 = vmatpush1.xpose.msra.mxu0 0.0
    %3671 = vmatprep.subr.mxu0 0.0
    %3672 = vmatpush1.xpose.msra.mxu0 0.0
    %3673 = vmatprep.subr.mxu0 0.0
    %3674 = vmatpush1.xpose.msra.mxu0 0.0
    %3675 = vmatprep.subr.mxu0 0.0
    %3676 = vmatpush1.xpose.msra.mxu0 0.0
    %3677 = vmatprep.subr.mxu0 0.0
    %3678 = vmatpush1.xpose.msra.mxu0 0.0
    %3679 = vmatprep.subr.mxu0 0.0
    %3680 = vmatpush1.xpose.msra.mxu0 0.0
    %3681 = vmatprep.subr.mxu0 0.0
    %3682 = vmatpush1.xpose.msra.mxu0 0.0
    %3683 = vmatprep.subr.mxu0 0.0
    %3684 = vmatpush1.xpose.msra.mxu0 0.0
    %3685 = vmatprep.subr.mxu0 0.0
    %3686 = vmatpush1.xpose.msra.mxu0 0.0
    %3687 = vmatprep.subr.mxu0 0.0
    %3688 = vmatpush1.xpose.msra.mxu0 0.0
    %3689 = vmatprep.subr.mxu0 0.0
    %3690 = vmatpush1.xpose.msra.mxu0 0.0
    %3691 = vmatprep.mubr.f32.mxu0 0.0
    %v3692 = vand.u32 %v3542, 4294901760
    %3693 = vmatmul.mubr.f32.gmra.mrb[0].mxu0 %v3692
    %v3694 = vpop.f32.mrb[0].mxu0
    %v3695 = vadd.f32 %v3619, %v3694
    %v3696 = vpop.f32.mrb[0].mxu0
    %3697 = vdwg.mxu0
    %3698 = vmatprep.subr.mxu0 0.0
    %v3699 = vand.u32 %v3544, 4294901760
    %v3700 = vsub.f32 %v3544, %v3699
    %3701 = vmatpush1.xpose.msra.mxu0 %v3700
    %3702 = vmatprep.subr.mxu0 0.0
    %3703 = vmatpush1.xpose.msra.mxu0 0.0
    %3704 = vmatprep.subr.mxu0 0.0
    %3705 = vmatpush1.xpose.msra.mxu0 0.0
    %3706 = vmatprep.subr.mxu0 0.0
    %3707 = vmatpush1.xpose.msra.mxu0 0.0
    %3708 = vmatprep.subr.mxu0 0.0
    %3709 = vmatpush1.xpose.msra.mxu0 0.0
    %3710 = vmatprep.subr.mxu0 0.0
    %3711 = vmatpush1.xpose.msra.mxu0 0.0
    %3712 = vmatprep.subr.mxu0 0.0
    %3713 = vmatpush1.xpose.msra.mxu0 0.0
    %3714 = vmatprep.subr.mxu0 0.0
    %3715 = vmatpush1.xpose.msra.mxu0 0.0
    %3716 = vmatprep.subr.mxu0 0.0
    %3717 = vmatpush1.xpose.msra.mxu0 0.0
    %3718 = vmatprep.subr.mxu0 0.0
    %3719 = vmatpush1.xpose.msra.mxu0 0.0
    %3720 = vmatprep.subr.mxu0 0.0
    %3721 = vmatpush1.xpose.msra.mxu0 0.0
    %3722 = vmatprep.subr.mxu0 0.0
    %3723 = vmatpush1.xpose.msra.mxu0 0.0
    %3724 = vmatprep.subr.mxu0 0.0
    %3725 = vmatpush1.xpose.msra.mxu0 0.0
    %3726 = vmatprep.subr.mxu0 0.0
    %3727 = vmatpush1.xpose.msra.mxu0 0.0
    %3728 = vmatprep.subr.mxu0 0.0
    %3729 = vmatpush1.xpose.msra.mxu0 0.0
    %3730 = vmatprep.subr.mxu0 0.0
    %3731 = vmatpush1.xpose.msra.mxu0 0.0
    %3732 = vmatprep.subr.mxu0 0.0
    %3733 = vmatpush1.xpose.msra.mxu0 0.0
    %3734 = vmatprep.subr.mxu0 0.0
    %3735 = vmatpush1.xpose.msra.mxu0 0.0
    %3736 = vmatprep.subr.mxu0 0.0
    %3737 = vmatpush1.xpose.msra.mxu0 0.0
    %3738 = vmatprep.subr.mxu0 0.0
    %3739 = vmatpush1.xpose.msra.mxu0 0.0
    %3740 = vmatprep.subr.mxu0 0.0
    %3741 = vmatpush1.xpose.msra.mxu0 0.0
    %3742 = vmatprep.subr.mxu0 0.0
    %3743 = vmatpush1.xpose.msra.mxu0 0.0
    %3744 = vmatprep.subr.mxu0 0.0
    %3745 = vmatpush1.xpose.msra.mxu0 0.0
    %3746 = vmatprep.subr.mxu0 0.0
    %3747 = vmatpush1.xpose.msra.mxu0 0.0
    %3748 = vmatprep.subr.mxu0 0.0
    %3749 = vmatpush1.xpose.msra.mxu0 0.0
    %3750 = vmatprep.subr.mxu0 0.0
    %3751 = vmatpush1.xpose.msra.mxu0 0.0
    %3752 = vmatprep.subr.mxu0 0.0
    %3753 = vmatpush1.xpose.msra.mxu0 0.0
    %3754 = vmatprep.subr.mxu0 0.0
    %3755 = vmatpush1.xpose.msra.mxu0 0.0
    %3756 = vmatprep.subr.mxu0 0.0
    %3757 = vmatpush1.xpose.msra.mxu0 0.0
    %3758 = vmatprep.subr.mxu0 0.0
    %3759 = vmatpush1.xpose.msra.mxu0 0.0
    %3760 = vmatprep.subr.mxu0 0.0
    %3761 = vmatpush1.xpose.msra.mxu0 0.0
    %3762 = vmatprep.subr.mxu0 0.0
    %3763 = vmatpush1.xpose.msra.mxu0 0.0
    %3764 = vmatprep.mubr.f32.mxu0 0.0
    %v3765 = vand.u32 %v3542, 4294901760
    %v3766 = vsub.f32 %v3542, %v3765
    %3767 = vmatmul.mubr.f32.gmra.mrb[0].mxu0 %v3766
    %v3768 = vpop.f32.mrb[0].mxu0
    %v3769 = vadd.f32 %v3695, %v3768
    %v3770 = vpop.f32.mrb[0].mxu0
    %3771 = vdwg.mxu0
    %3772 = vmatprep.subr.mxu0 0.0
    %v3773 = vand.u32 %v3544, 4294901760
    %3774 = vmatpush1.xpose.msra.mxu0 %v3773
    %3775 = vmatprep.subr.mxu0 0.0
    %3776 = vmatpush1.xpose.msra.mxu0 0.0
    %3777 = vmatprep.subr.mxu0 0.0
    %3778 = vmatpush1.xpose.msra.mxu0 0.0
    %3779 = vmatprep.subr.mxu0 0.0
    %3780 = vmatpush1.xpose.msra.mxu0 0.0
    %3781 = vmatprep.subr.mxu0 0.0
    %3782 = vmatpush1.xpose.msra.mxu0 0.0
    %3783 = vmatprep.subr.mxu0 0.0
    %3784 = vmatpush1.xpose.msra.mxu0 0.0
    %3785 = vmatprep.subr.mxu0 0.0
    %3786 = vmatpush1.xpose.msra.mxu0 0.0
    %3787 = vmatprep.subr.mxu0 0.0
    %3788 = vmatpush1.xpose.msra.mxu0 0.0
    %3789 = vmatprep.subr.mxu0 0.0
    %3790 = vmatpush1.xpose.msra.mxu0 0.0
    %3791 = vmatprep.subr.mxu0 0.0
    %3792 = vmatpush1.xpose.msra.mxu0 0.0
    %3793 = vmatprep.subr.mxu0 0.0
    %3794 = vmatpush1.xpose.msra.mxu0 0.0
    %3795 = vmatprep.subr.mxu0 0.0
    %3796 = vmatpush1.xpose.msra.mxu0 0.0
    %3797 = vmatprep.subr.mxu0 0.0
    %3798 = vmatpush1.xpose.msra.mxu0 0.0
    %3799 = vmatprep.subr.mxu0 0.0
    %3800 = vmatpush1.xpose.msra.mxu0 0.0
    %3801 = vmatprep.subr.mxu0 0.0
    %3802 = vmatpush1.xpose.msra.mxu0 0.0
    %3803 = vmatprep.subr.mxu0 0.0
    %3804 = vmatpush1.xpose.msra.mxu0 0.0
    %3805 = vmatprep.subr.mxu0 0.0
    %3806 = vmatpush1.xpose.msra.mxu0 0.0
    %3807 = vmatprep.subr.mxu0 0.0
    %3808 = vmatpush1.xpose.msra.mxu0 0.0
    %3809 = vmatprep.subr.mxu0 0.0
    %3810 = vmatpush1.xpose.msra.mxu0 0.0
    %3811 = vmatprep.subr.mxu0 0.0
    %3812 = vmatpush1.xpose.msra.mxu0 0.0
    %3813 = vmatprep.subr.mxu0 0.0
    %3814 = vmatpush1.xpose.msra.mxu0 0.0
    %3815 = vmatprep.subr.mxu0 0.0
    %3816 = vmatpush1.xpose.msra.mxu0 0.0
    %3817 = vmatprep.subr.mxu0 0.0
    %3818 = vmatpush1.xpose.msra.mxu0 0.0
    %3819 = vmatprep.subr.mxu0 0.0
    %3820 = vmatpush1.xpose.msra.mxu0 0.0
    %3821 = vmatprep.subr.mxu0 0.0
    %3822 = vmatpush1.xpose.msra.mxu0 0.0
    %3823 = vmatprep.subr.mxu0 0.0
    %3824 = vmatpush1.xpose.msra.mxu0 0.0
    %3825 = vmatprep.subr.mxu0 0.0
    %3826 = vmatpush1.xpose.msra.mxu0 0.0
    %3827 = vmatprep.subr.mxu0 0.0
    %3828 = vmatpush1.xpose.msra.mxu0 0.0
    %3829 = vmatprep.subr.mxu0 0.0
    %3830 = vmatpush1.xpose.msra.mxu0 0.0
    %3831 = vmatprep.subr.mxu0 0.0
    %3832 = vmatpush1.xpose.msra.mxu0 0.0
    %3833 = vmatprep.subr.mxu0 0.0
    %3834 = vmatpush1.xpose.msra.mxu0 0.0
    %3835 = vmatprep.subr.mxu0 0.0
    %3836 = vmatpush1.xpose.msra.mxu0 0.0
    %3837 = vmatprep.mubr.f32.mxu0 0.0
    %v3838 = vand.u32 %v3542, 4294901760
    %v3839 = vsub.f32 %v3542, %v3838
    %v3840 = vand.u32 %v3839, 4294901760
    %3841 = vmatmul.mubr.f32.gmra.mrb[0].mxu0 %v3840
    %v3842 = vpop.f32.mrb[0].mxu0
    %v3843 = vadd.f32 %v3769, %v3842
    %v3844 = vpop.f32.mrb[0].mxu0
    %3845 = vdwg.mxu0
    %3846 = vmatprep.subr.mxu0 0.0
    %v3847 = vand.u32 %v3544, 4294901760
    %v3848 = vsub.f32 %v3544, %v3847
    %v3849 = vand.u32 %v3848, 4294901760
    %3850 = vmatpush1.xpose.msra.mxu0 %v3849
    %3851 = vmatprep.subr.mxu0 0.0
    %3852 = vmatpush1.xpose.msra.mxu0 0.0
    %3853 = vmatprep.subr.mxu0 0.0
    %3854 = vmatpush1.xpose.msra.mxu0 0.0
    %3855 = vmatprep.subr.mxu0 0.0
    %3856 = vmatpush1.xpose.msra.mxu0 0.0
    %3857 = vmatprep.subr.mxu0 0.0
    %3858 = vmatpush1.xpose.msra.mxu0 0.0
    %3859 = vmatprep.subr.mxu0 0.0
    %3860 = vmatpush1.xpose.msra.mxu0 0.0
    %3861 = vmatprep.subr.mxu0 0.0
    %3862 = vmatpush1.xpose.msra.mxu0 0.0
    %3863 = vmatprep.subr.mxu0 0.0
    %3864 = vmatpush1.xpose.msra.mxu0 0.0
    %3865 = vmatprep.subr.mxu0 0.0
    %3866 = vmatpush1.xpose.msra.mxu0 0.0
    %3867 = vmatprep.subr.mxu0 0.0
    %3868 = vmatpush1.xpose.msra.mxu0 0.0
    %3869 = vmatprep.subr.mxu0 0.0
    %3870 = vmatpush1.xpose.msra.mxu0 0.0
    %3871 = vmatprep.subr.mxu0 0.0
    %3872 = vmatpush1.xpose.msra.mxu0 0.0
    %3873 = vmatprep.subr.mxu0 0.0
    %3874 = vmatpush1.xpose.msra.mxu0 0.0
    %3875 = vmatprep.subr.mxu0 0.0
    %3876 = vmatpush1.xpose.msra.mxu0 0.0
    %3877 = vmatprep.subr.mxu0 0.0
    %3878 = vmatpush1.xpose.msra.mxu0 0.0
    %3879 = vmatprep.subr.mxu0 0.0
    %3880 = vmatpush1.xpose.msra.mxu0 0.0
    %3881 = vmatprep.subr.mxu0 0.0
    %3882 = vmatpush1.xpose.msra.mxu0 0.0
    %3883 = vmatprep.subr.mxu0 0.0
    %3884 = vmatpush1.xpose.msra.mxu0 0.0
    %3885 = vmatprep.subr.mxu0 0.0
    %3886 = vmatpush1.xpose.msra.mxu0 0.0
    %3887 = vmatprep.subr.mxu0 0.0
    %3888 = vmatpush1.xpose.msra.mxu0 0.0
    %3889 = vmatprep.subr.mxu0 0.0
    %3890 = vmatpush1.xpose.msra.mxu0 0.0
    %3891 = vmatprep.subr.mxu0 0.0
    %3892 = vmatpush1.xpose.msra.mxu0 0.0
    %3893 = vmatprep.subr.mxu0 0.0
    %3894 = vmatpush1.xpose.msra.mxu0 0.0
    %3895 = vmatprep.subr.mxu0 0.0
    %3896 = vmatpush1.xpose.msra.mxu0 0.0
    %3897 = vmatprep.subr.mxu0 0.0
    %3898 = vmatpush1.xpose.msra.mxu0 0.0
    %3899 = vmatprep.subr.mxu0 0.0
    %3900 = vmatpush1.xpose.msra.mxu0 0.0
    %3901 = vmatprep.subr.mxu0 0.0
    %3902 = vmatpush1.xpose.msra.mxu0 0.0
    %3903 = vmatprep.subr.mxu0 0.0
    %3904 = vmatpush1.xpose.msra.mxu0 0.0
    %3905 = vmatprep.subr.mxu0 0.0
    %3906 = vmatpush1.xpose.msra.mxu0 0.0
    %3907 = vmatprep.subr.mxu0 0.0
    %3908 = vmatpush1.xpose.msra.mxu0 0.0
    %3909 = vmatprep.subr.mxu0 0.0
    %3910 = vmatpush1.xpose.msra.mxu0 0.0
    %3911 = vmatprep.subr.mxu0 0.0
    %3912 = vmatpush1.xpose.msra.mxu0 0.0
    %3913 = vmatprep.mubr.f32.mxu0 0.0
    %v3914 = vand.u32 %v3542, 4294901760
    %3915 = vmatmul.mubr.f32.gmra.mrb[0].mxu0 %v3914
    %v3916 = vpop.f32.mrb[0].mxu0
    %v3917 = vadd.f32 %v3843, %v3916
    %v3918 = vpop.f32.mrb[0].mxu0
    %3919 = vdwg.mxu0
    %3920 = vmatprep.subr.mxu0 0.0
    %v3921 = vand.u32 %v3544, 4294901760
    %3922 = vmatpush1.xpose.msra.mxu0 %v3921
    %3923 = vmatprep.subr.mxu0 0.0
    %3924 = vmatpush1.xpose.msra.mxu0 0.0
    %3925 = vmatprep.subr.mxu0 0.0
    %3926 = vmatpush1.xpose.msra.mxu0 0.0
    %3927 = vmatprep.subr.mxu0 0.0
    %3928 = vmatpush1.xpose.msra.mxu0 0.0
    %3929 = vmatprep.subr.mxu0 0.0
    %3930 = vmatpush1.xpose.msra.mxu0 0.0
    %3931 = vmatprep.subr.mxu0 0.0
    %3932 = vmatpush1.xpose.msra.mxu0 0.0
    %3933 = vmatprep.subr.mxu0 0.0
    %3934 = vmatpush1.xpose.msra.mxu0 0.0
    %3935 = vmatprep.subr.mxu0 0.0
    %3936 = vmatpush1.xpose.msra.mxu0 0.0
    %3937 = vmatprep.subr.mxu0 0.0
    %3938 = vmatpush1.xpose.msra.mxu0 0.0
    %3939 = vmatprep.subr.mxu0 0.0
    %3940 = vmatpush1.xpose.msra.mxu0 0.0
    %3941 = vmatprep.subr.mxu0 0.0
    %3942 = vmatpush1.xpose.msra.mxu0 0.0
    %3943 = vmatprep.subr.mxu0 0.0
    %3944 = vmatpush1.xpose.msra.mxu0 0.0
    %3945 = vmatprep.subr.mxu0 0.0
    %3946 = vmatpush1.xpose.msra.mxu0 0.0
    %3947 = vmatprep.subr.mxu0 0.0
    %3948 = vmatpush1.xpose.msra.mxu0 0.0
    %3949 = vmatprep.subr.mxu0 0.0
    %3950 = vmatpush1.xpose.msra.mxu0 0.0
    %3951 = vmatprep.subr.mxu0 0.0
    %3952 = vmatpush1.xpose.msra.mxu0 0.0
    %3953 = vmatprep.subr.mxu0 0.0
    %3954 = vmatpush1.xpose.msra.mxu0 0.0
    %3955 = vmatprep.subr.mxu0 0.0
    %3956 = vmatpush1.xpose.msra.mxu0 0.0
    %3957 = vmatprep.subr.mxu0 0.0
    %3958 = vmatpush1.xpose.msra.mxu0 0.0
    %3959 = vmatprep.subr.mxu0 0.0
    %3960 = vmatpush1.xpose.msra.mxu0 0.0
    %3961 = vmatprep.subr.mxu0 0.0
    %3962 = vmatpush1.xpose.msra.mxu0 0.0
    %3963 = vmatprep.subr.mxu0 0.0
    %3964 = vmatpush1.xpose.msra.mxu0 0.0
    %3965 = vmatprep.subr.mxu0 0.0
    %3966 = vmatpush1.xpose.msra.mxu0 0.0
    %3967 = vmatprep.subr.mxu0 0.0
    %3968 = vmatpush1.xpose.msra.mxu0 0.0
    %3969 = vmatprep.subr.mxu0 0.0
    %3970 = vmatpush1.xpose.msra.mxu0 0.0
    %3971 = vmatprep.subr.mxu0 0.0
    %3972 = vmatpush1.xpose.msra.mxu0 0.0
    %3973 = vmatprep.subr.mxu0 0.0
    %3974 = vmatpush1.xpose.msra.mxu0 0.0
    %3975 = vmatprep.subr.mxu0 0.0
    %3976 = vmatpush1.xpose.msra.mxu0 0.0
    %3977 = vmatprep.subr.mxu0 0.0
    %3978 = vmatpush1.xpose.msra.mxu0 0.0
    %3979 = vmatprep.subr.mxu0 0.0
    %3980 = vmatpush1.xpose.msra.mxu0 0.0
    %3981 = vmatprep.subr.mxu0 0.0
    %3982 = vmatpush1.xpose.msra.mxu0 0.0
    %3983 = vmatprep.subr.mxu0 0.0
    %3984 = vmatpush1.xpose.msra.mxu0 0.0
    %3985 = vmatprep.mubr.f32.mxu0 0.0
    %v3986 = vand.u32 %v3542, 4294901760
    %3987 = vmatmul.mubr.f32.gmra.mrb[0].mxu0 %v3986
    %v3988 = vpop.f32.mrb[0].mxu0
    %v3989 = vadd.f32 %v3917, %v3988
    %v3990 = vpop.f32.mrb[0].mxu0
    %3991 = vdwg.mxu0
    %v3992 = vsel %vm1700, %v3989, -inf
    %3993 = vmax.xlane.f32.xlu0 %v3992
    %v3994 = vpop.xlane.xlu0 %3993
    %v3995 = vsub.f32 %v3989, %v3994
    %v3996 = vmul.f32 %v3995, 1.442695
    %v3997 = vpow.pop %v3996
    %v3998 = vsel %vm1700, %v3997, 0.0
    %3999 = vadd.xlane.f32.xlu0 %v3998
    %v4000 = vpop.xlane.xlu0 %3999
    %v4001 = vrcp.pop %v4000
    %v4002 = vmul.f32 %v3997, %v4001
    %4003 = vrot.lane.b32.xlu0 %v1691, 112
    %v4004 = vpop.permute.xlu0 %4003
    %v4007 = vsel %vm1700, %v4002, 0
    %4009 = vmatprep.subr.mxu0 0.0
    %v4010 = vand.u32 %v4004, 4294901760
    %4011 = vmatpush1.msra.mxu0 %v4010
    %4012 = vmatprep.subr.mxu0 0.0
    %4013 = vmatpush1.msra.mxu0 0.0
    %4014 = vmatprep.subr.mxu0 0.0
    %4015 = vmatpush1.msra.mxu0 0.0
    %4016 = vmatprep.subr.mxu0 0.0
    %4017 = vmatpush1.msra.mxu0 0.0
    %4018 = vmatprep.subr.mxu0 0.0
    %4019 = vmatpush1.msra.mxu0 0.0
    %4020 = vmatprep.subr.mxu0 0.0
    %4021 = vmatpush1.msra.mxu0 0.0
    %4022 = vmatprep.subr.mxu0 0.0
    %4023 = vmatpush1.msra.mxu0 0.0
    %4024 = vmatprep.subr.mxu0 0.0
    %4025 = vmatpush1.msra.mxu0 0.0
    %4026 = vmatprep.subr.mxu0 0.0
    %4027 = vmatpush1.msra.mxu0 0.0
    %4028 = vmatprep.subr.mxu0 0.0
    %4029 = vmatpush1.msra.mxu0 0.0
    %4030 = vmatprep.subr.mxu0 0.0
    %4031 = vmatpush1.msra.mxu0 0.0
    %4032 = vmatprep.subr.mxu0 0.0
    %4033 = vmatpush1.msra.mxu0 0.0
    %4034 = vmatprep.subr.mxu0 0.0
    %4035 = vmatpush1.msra.mxu0 0.0
    %4036 = vmatprep.subr.mxu0 0.0
    %4037 = vmatpush1.msra.mxu0 0.0
    %4038 = vmatprep.subr.mxu0 0.0
    %4039 = vmatpush1.msra.mxu0 0.0
    %4040 = vmatprep.subr.mxu0 0.0
    %4041 = vmatpush1.msra.mxu0 0.0
    %4042 = vmatprep.subr.mxu0 0.0
    %4043 = vmatpush1.msra.mxu0 0.0
    %4044 = vmatprep.subr.mxu0 0.0
    %4045 = vmatpush1.msra.mxu0 0.0
    %4046 = vmatprep.subr.mxu0 0.0
    %4047 = vmatpush1.msra.mxu0 0.0
    %4048 = vmatprep.subr.mxu0 0.0
    %4049 = vmatpush1.msra.mxu0 0.0
    %4050 = vmatprep.subr.mxu0 0.0
    %4051 = vmatpush1.msra.mxu0 0.0
    %4052 = vmatprep.subr.mxu0 0.0
    %4053 = vmatpush1.msra.mxu0 0.0
    %4054 = vmatprep.subr.mxu0 0.0
    %4055 = vmatpush1.msra.mxu0 0.0
    %4056 = vmatprep.subr.mxu0 0.0
    %4057 = vmatpush1.msra.mxu0 0.0
    %4058 = vmatprep.subr.mxu0 0.0
    %4059 = vmatpush1.msra.mxu0 0.0
    %4060 = vmatprep.subr.mxu0 0.0
    %4061 = vmatpush1.msra.mxu0 0.0
    %4062 = vmatprep.subr.mxu0 0.0
    %4063 = vmatpush1.msra.mxu0 0.0
    %4064 = vmatprep.subr.mxu0 0.0
    %4065 = vmatpush1.msra.mxu0 0.0
    %4066 = vmatprep.subr.mxu0 0.0
    %4067 = vmatpush1.msra.mxu0 0.0
    %4068 = vmatprep.subr.mxu0 0.0
    %4069 = vmatpush1.msra.mxu0 0.0
    %4070 = vmatprep.subr.mxu0 0.0
    %4071 = vmatpush1.msra.mxu0 0.0
    %4072 = vmatprep.subr.mxu0 0.0
    %4073 = vmatpush1.msra.mxu0 0.0
    %4074 = vmatprep.mubr.f32.mxu0 0.0
    %v4075 = vand.u32 %v4007, 4294901760
    %v4076 = vsub.f32 %v4007, %v4075
    %v4077 = vand.u32 %v4076, 4294901760
    %v4078 = vsub.f32 %v4076, %v4077
    %v4079 = vand.u32 %v4078, 4294901760
    %4080 = vmatmul.mubr.f32.gmra.mrb[0].mxu0 %v4079
    %v4081 = vpop.f32.mrb[0].mxu0
    %v4082 = vadd.f32 0.0, %v4081
    %v4083 = vpop.f32.mrb[0].mxu0
    %4084 = vdwg.mxu0
    %4085 = vmatprep.subr.mxu0 0.0
    %v4086 = vand.u32 %v4004, 4294901760
    %v4087 = vsub.f32 %v4004, %v4086
    %v4088 = vand.u32 %v4087, 4294901760
    %v4089 = vsub.f32 %v4087, %v4088
    %v4090 = vand.u32 %v4089, 4294901760
    %4091 = vmatpush1.msra.mxu0 %v4090
    %4092 = vmatprep.subr.mxu0 0.0
    %4093 = vmatpush1.msra.mxu0 0.0
    %4094 = vmatprep.subr.mxu0 0.0
    %4095 = vmatpush1.msra.mxu0 0.0
    %4096 = vmatprep.subr.mxu0 0.0
    %4097 = vmatpush1.msra.mxu0 0.0
    %4098 = vmatprep.subr.mxu0 0.0
    %4099 = vmatpush1.msra.mxu0 0.0
    %4100 = vmatprep.subr.mxu0 0.0
    %4101 = vmatpush1.msra.mxu0 0.0
    %4102 = vmatprep.subr.mxu0 0.0
    %4103 = vmatpush1.msra.mxu0 0.0
    %4104 = vmatprep.subr.mxu0 0.0
    %4105 = vmatpush1.msra.mxu0 0.0
    %4106 = vmatprep.subr.mxu0 0.0
    %4107 = vmatpush1.msra.mxu0 0.0
    %4108 = vmatprep.subr.mxu0 0.0
    %4109 = vmatpush1.msra.mxu0 0.0
    %4110 = vmatprep.subr.mxu0 0.0
    %4111 = vmatpush1.msra.mxu0 0.0
    %4112 = vmatprep.subr.mxu0 0.0
    %4113 = vmatpush1.msra.mxu0 0.0
    %4114 = vmatprep.subr.mxu0 0.0
    %4115 = vmatpush1.msra.mxu0 0.0
    %4116 = vmatprep.subr.mxu0 0.0
    %4117 = vmatpush1.msra.mxu0 0.0
    %4118 = vmatprep.subr.mxu0 0.0
    %4119 = vmatpush1.msra.mxu0 0.0
    %4120 = vmatprep.subr.mxu0 0.0
    %4121 = vmatpush1.msra.mxu0 0.0
    %4122 = vmatprep.subr.mxu0 0.0
    %4123 = vmatpush1.msra.mxu0 0.0
    %4124 = vmatprep.subr.mxu0 0.0
    %4125 = vmatpush1.msra.mxu0 0.0
    %4126 = vmatprep.subr.mxu0 0.0
    %4127 = vmatpush1.msra.mxu0 0.0
    %4128 = vmatprep.subr.mxu0 0.0
    %4129 = vmatpush1.msra.mxu0 0.0
    %4130 = vmatprep.subr.mxu0 0.0
    %4131 = vmatpush1.msra.mxu0 0.0
    %4132 = vmatprep.subr.mxu0 0.0
    %4133 = vmatpush1.msra.mxu0 0.0
    %4134 = vmatprep.subr.mxu0 0.0
    %4135 = vmatpush1.msra.mxu0 0.0
    %4136 = vmatprep.subr.mxu0 0.0
    %4137 = vmatpush1.msra.mxu0 0.0
    %4138 = vmatprep.subr.mxu0 0.0
    %4139 = vmatpush1.msra.mxu0 0.0
    %4140 = vmatprep.subr.mxu0 0.0
    %4141 = vmatpush1.msra.mxu0 0.0
    %4142 = vmatprep.subr.mxu0 0.0
    %4143 = vmatpush1.msra.mxu0 0.0
    %4144 = vmatprep.subr.mxu0 0.0
    %4145 = vmatpush1.msra.mxu0 0.0
    %4146 = vmatprep.subr.mxu0 0.0
    %4147 = vmatpush1.msra.mxu0 0.0
    %4148 = vmatprep.subr.mxu0 0.0
    %4149 = vmatpush1.msra.mxu0 0.0
    %4150 = vmatprep.subr.mxu0 0.0
    %4151 = vmatpush1.msra.mxu0 0.0
    %4152 = vmatprep.subr.mxu0 0.0
    %4153 = vmatpush1.msra.mxu0 0.0
    %4154 = vmatprep.mubr.f32.mxu0 0.0
    %v4155 = vand.u32 %v4007, 4294901760
    %4156 = vmatmul.mubr.f32.gmra.mrb[0].mxu0 %v4155
    %v4157 = vpop.f32.mrb[0].mxu0
    %v4158 = vadd.f32 %v4082, %v4157
    %v4159 = vpop.f32.mrb[0].mxu0
    %4160 = vdwg.mxu0
    %4161 = vmatprep.subr.mxu0 0.0
    %v4162 = vand.u32 %v4004, 4294901760
    %v4163 = vsub.f32 %v4004, %v4162
    %4164 = vmatpush1.msra.mxu0 %v4163
    %4165 = vmatprep.subr.mxu0 0.0
    %4166 = vmatpush1.msra.mxu0 0.0
    %4167 = vmatprep.subr.mxu0 0.0
    %4168 = vmatpush1.msra.mxu0 0.0
    %4169 = vmatprep.subr.mxu0 0.0
    %4170 = vmatpush1.msra.mxu0 0.0
    %4171 = vmatprep.subr.mxu0 0.0
    %4172 = vmatpush1.msra.mxu0 0.0
    %4173 = vmatprep.subr.mxu0 0.0
    %4174 = vmatpush1.msra.mxu0 0.0
    %4175 = vmatprep.subr.mxu0 0.0
    %4176 = vmatpush1.msra.mxu0 0.0
    %4177 = vmatprep.subr.mxu0 0.0
    %4178 = vmatpush1.msra.mxu0 0.0
    %4179 = vmatprep.subr.mxu0 0.0
    %4180 = vmatpush1.msra.mxu0 0.0
    %4181 = vmatprep.subr.mxu0 0.0
    %4182 = vmatpush1.msra.mxu0 0.0
    %4183 = vmatprep.subr.mxu0 0.0
    %4184 = vmatpush1.msra.mxu0 0.0
    %4185 = vmatprep.subr.mxu0 0.0
    %4186 = vmatpush1.msra.mxu0 0.0
    %4187 = vmatprep.subr.mxu0 0.0
    %4188 = vmatpush1.msra.mxu0 0.0
    %4189 = vmatprep.subr.mxu0 0.0
    %4190 = vmatpush1.msra.mxu0 0.0
    %4191 = vmatprep.subr.mxu0 0.0
    %4192 = vmatpush1.msra.mxu0 0.0
    %4193 = vmatprep.subr.mxu0 0.0
    %4194 = vmatpush1.msra.mxu0 0.0
    %4195 = vmatprep.subr.mxu0 0.0
    %4196 = vmatpush1.msra.mxu0 0.0
    %4197 = vmatprep.subr.mxu0 0.0
    %4198 = vmatpush1.msra.mxu0 0.0
    %4199 = vmatprep.subr.mxu0 0.0
    %4200 = vmatpush1.msra.mxu0 0.0
    %4201 = vmatprep.subr.mxu0 0.0
    %4202 = vmatpush1.msra.mxu0 0.0
    %4203 = vmatprep.subr.mxu0 0.0
    %4204 = vmatpush1.msra.mxu0 0.0
    %4205 = vmatprep.subr.mxu0 0.0
    %4206 = vmatpush1.msra.mxu0 0.0
    %4207 = vmatprep.subr.mxu0 0.0
    %4208 = vmatpush1.msra.mxu0 0.0
    %4209 = vmatprep.subr.mxu0 0.0
    %4210 = vmatpush1.msra.mxu0 0.0
    %4211 = vmatprep.subr.mxu0 0.0
    %4212 = vmatpush1.msra.mxu0 0.0
    %4213 = vmatprep.subr.mxu0 0.0
    %4214 = vmatpush1.msra.mxu0 0.0
    %4215 = vmatprep.subr.mxu0 0.0
    %4216 = vmatpush1.msra.mxu0 0.0
    %4217 = vmatprep.subr.mxu0 0.0
    %4218 = vmatpush1.msra.mxu0 0.0
    %4219 = vmatprep.subr.mxu0 0.0
    %4220 = vmatpush1.msra.mxu0 0.0
    %4221 = vmatprep.subr.mxu0 0.0
    %4222 = vmatpush1.msra.mxu0 0.0
    %4223 = vmatprep.subr.mxu0 0.0
    %4224 = vmatpush1.msra.mxu0 0.0
    %4225 = vmatprep.subr.mxu0 0.0
    %4226 = vmatpush1.msra.mxu0 0.0
    %4227 = vmatprep.mubr.f32.mxu0 0.0
    %v4228 = vand.u32 %v4007, 4294901760
    %v4229 = vsub.f32 %v4007, %v4228
    %4230 = vmatmul.mubr.f32.gmra.mrb[0].mxu0 %v4229
    %v4231 = vpop.f32.mrb[0].mxu0
    %v4232 = vadd.f32 %v4158, %v4231
    %v4233 = vpop.f32.mrb[0].mxu0
    %4234 = vdwg.mxu0
    %4235 = vmatprep.subr.mxu0 0.0
    %v4236 = vand.u32 %v4004, 4294901760
    %4237 = vmatpush1.msra.mxu0 %v4236
    %4238 = vmatprep.subr.mxu0 0.0
    %4239 = vmatpush1.msra.mxu0 0.0
    %4240 = vmatprep.subr.mxu0 0.0
    %4241 = vmatpush1.msra.mxu0 0.0
    %4242 = vmatprep.subr.mxu0 0.0
    %4243 = vmatpush1.msra.mxu0 0.0
    %4244 = vmatprep.subr.mxu0 0.0
    %4245 = vmatpush1.msra.mxu0 0.0
    %4246 = vmatprep.subr.mxu0 0.0
    %4247 = vmatpush1.msra.mxu0 0.0
    %4248 = vmatprep.subr.mxu0 0.0
    %4249 = vmatpush1.msra.mxu0 0.0
    %4250 = vmatprep.subr.mxu0 0.0
    %4251 = vmatpush1.msra.mxu0 0.0
    %4252 = vmatprep.subr.mxu0 0.0
    %4253 = vmatpush1.msra.mxu0 0.0
    %4254 = vmatprep.subr.mxu0 0.0
    %4255 = vmatpush1.msra.mxu0 0.0
    %4256 = vmatprep.subr.mxu0 0.0
    %4257 = vmatpush1.msra.mxu0 0.0
    %4258 = vmatprep.subr.mxu0 0.0
    %4259 = vmatpush1.msra.mxu0 0.0
    %4260 = vmatprep.subr.mxu0 0.0
    %4261 = vmatpush1.msra.mxu0 0.0
    %4262 = vmatprep.subr.mxu0 0.0
    %4263 = vmatpush1.msra.mxu0 0.0
    %4264 = vmatprep.subr.mxu0 0.0
    %4265 = vmatpush1.msra.mxu0 0.0
    %4266 = vmatprep.subr.mxu0 0.0
    %4267 = vmatpush1.msra.mxu0 0.0
    %4268 = vmatprep.subr.mxu0 0.0
    %4269 = vmatpush1.msra.mxu0 0.0
    %4270 = vmatprep.subr.mxu0 0.0
    %4271 = vmatpush1.msra.mxu0 0.0
    %4272 = vmatprep.subr.mxu0 0.0
    %4273 = vmatpush1.msra.mxu0 0.0
    %4274 = vmatprep.subr.mxu0 0.0
    %4275 = vmatpush1.msra.mxu0 0.0
    %4276 = vmatprep.subr.mxu0 0.0
    %4277 = vmatpush1.msra.mxu0 0.0
    %4278 = vmatprep.subr.mxu0 0.0
    %4279 = vmatpush1.msra.mxu0 0.0
    %4280 = vmatprep.subr.mxu0 0.0
    %4281 = vmatpush1.msra.mxu0 0.0
    %4282 = vmatprep.subr.mxu0 0.0
    %4283 = vmatpush1.msra.mxu0 0.0
    %4284 = vmatprep.subr.mxu0 0.0
    %4285 = vmatpush1.msra.mxu0 0.0
    %4286 = vmatprep.subr.mxu0 0.0
    %4287 = vmatpush1.msra.mxu0 0.0
    %4288 = vmatprep.subr.mxu0 0.0
    %4289 = vmatpush1.msra.mxu0 0.0
    %4290 = vmatprep.subr.mxu0 0.0
    %4291 = vmatpush1.msra.mxu0 0.0
    %4292 = vmatprep.subr.mxu0 0.0
    %4293 = vmatpush1.msra.mxu0 0.0
    %4294 = vmatprep.subr.mxu0 0.0
    %4295 = vmatpush1.msra.mxu0 0.0
    %4296 = vmatprep.subr.mxu0 0.0
    %4297 = vmatpush1.msra.mxu0 0.0
    %4298 = vmatprep.subr.mxu0 0.0
    %4299 = vmatpush1.msra.mxu0 0.0
    %4300 = vmatprep.mubr.f32.mxu0 0.0
    %v4301 = vand.u32 %v4007, 4294901760
    %v4302 = vsub.f32 %v4007, %v4301
    %v4303 = vand.u32 %v4302, 4294901760
    %4304 = vmatmul.mubr.f32.gmra.mrb[0].mxu0 %v4303
    %v4305 = vpop.f32.mrb[0].mxu0
    %v4306 = vadd.f32 %v4232, %v4305
    %v4307 = vpop.f32.mrb[0].mxu0
    %4308 = vdwg.mxu0
    %4309 = vmatprep.subr.mxu0 0.0
    %v4310 = vand.u32 %v4004, 4294901760
    %v4311 = vsub.f32 %v4004, %v4310
    %v4312 = vand.u32 %v4311, 4294901760
    %4313 = vmatpush1.msra.mxu0 %v4312
    %4314 = vmatprep.subr.mxu0 0.0
    %4315 = vmatpush1.msra.mxu0 0.0
    %4316 = vmatprep.subr.mxu0 0.0
    %4317 = vmatpush1.msra.mxu0 0.0
    %4318 = vmatprep.subr.mxu0 0.0
    %4319 = vmatpush1.msra.mxu0 0.0
    %4320 = vmatprep.subr.mxu0 0.0
    %4321 = vmatpush1.msra.mxu0 0.0
    %4322 = vmatprep.subr.mxu0 0.0
    %4323 = vmatpush1.msra.mxu0 0.0
    %4324 = vmatprep.subr.mxu0 0.0
    %4325 = vmatpush1.msra.mxu0 0.0
    %4326 = vmatprep.subr.mxu0 0.0
    %4327 = vmatpush1.msra.mxu0 0.0
    %4328 = vmatprep.subr.mxu0 0.0
    %4329 = vmatpush1.msra.mxu0 0.0
    %4330 = vmatprep.subr.mxu0 0.0
    %4331 = vmatpush1.msra.mxu0 0.0
    %4332 = vmatprep.subr.mxu0 0.0
    %4333 = vmatpush1.msra.mxu0 0.0
    %4334 = vmatprep.subr.mxu0 0.0
    %4335 = vmatpush1.msra.mxu0 0.0
    %4336 = vmatprep.subr.mxu0 0.0
    %4337 = vmatpush1.msra.mxu0 0.0
    %4338 = vmatprep.subr.mxu0 0.0
    %4339 = vmatpush1.msra.mxu0 0.0
    %4340 = vmatprep.subr.mxu0 0.0
    %4341 = vmatpush1.msra.mxu0 0.0
    %4342 = vmatprep.subr.mxu0 0.0
    %4343 = vmatpush1.msra.mxu0 0.0
    %4344 = vmatprep.subr.mxu0 0.0
    %4345 = vmatpush1.msra.mxu0 0.0
    %4346 = vmatprep.subr.mxu0 0.0
    %4347 = vmatpush1.msra.mxu0 0.0
    %4348 = vmatprep.subr.mxu0 0.0
    %4349 = vmatpush1.msra.mxu0 0.0
    %4350 = vmatprep.subr.mxu0 0.0
    %4351 = vmatpush1.msra.mxu0 0.0
    %4352 = vmatprep.subr.mxu0 0.0
    %4353 = vmatpush1.msra.mxu0 0.0
    %4354 = vmatprep.subr.mxu0 0.0
    %4355 = vmatpush1.msra.mxu0 0.0
    %4356 = vmatprep.subr.mxu0 0.0
    %4357 = vmatpush1.msra.mxu0 0.0
    %4358 = vmatprep.subr.mxu0 0.0
    %4359 = vmatpush1.msra.mxu0 0.0
    %4360 = vmatprep.subr.mxu0 0.0
    %4361 = vmatpush1.msra.mxu0 0.0
    %4362 = vmatprep.subr.mxu0 0.0
    %4363 = vmatpush1.msra.mxu0 0.0
    %4364 = vmatprep.subr.mxu0 0.0
    %4365 = vmatpush1.msra.mxu0 0.0
    %4366 = vmatprep.subr.mxu0 0.0
    %4367 = vmatpush1.msra.mxu0 0.0
    %4368 = vmatprep.subr.mxu0 0.0
    %4369 = vmatpush1.msra.mxu0 0.0
    %4370 = vmatprep.subr.mxu0 0.0
    %4371 = vmatpush1.msra.mxu0 0.0
    %4372 = vmatprep.subr.mxu0 0.0
    %4373 = vmatpush1.msra.mxu0 0.0
    %4374 = vmatprep.subr.mxu0 0.0
    %4375 = vmatpush1.msra.mxu0 0.0
    %4376 = vmatprep.mubr.f32.mxu0 0.0
    %v4377 = vand.u32 %v4007, 4294901760
    %4378 = vmatmul.mubr.f32.gmra.mrb[0].mxu0 %v4377
    %v4379 = vpop.f32.mrb[0].mxu0
    %v4380 = vadd.f32 %v4306, %v4379
    %v4381 = vpop.f32.mrb[0].mxu0
    %4382 = vdwg.mxu0
    %4383 = vmatprep.subr.mxu0 0.0
    %v4384 = vand.u32 %v4004, 4294901760
    %4385 = vmatpush1.msra.mxu0 %v4384
    %4386 = vmatprep.subr.mxu0 0.0
    %4387 = vmatpush1.msra.mxu0 0.0
    %4388 = vmatprep.subr.mxu0 0.0
    %4389 = vmatpush1.msra.mxu0 0.0
    %4390 = vmatprep.subr.mxu0 0.0
    %4391 = vmatpush1.msra.mxu0 0.0
    %4392 = vmatprep.subr.mxu0 0.0
    %4393 = vmatpush1.msra.mxu0 0.0
    %4394 = vmatprep.subr.mxu0 0.0
    %4395 = vmatpush1.msra.mxu0 0.0
    %4396 = vmatprep.subr.mxu0 0.0
    %4397 = vmatpush1.msra.mxu0 0.0
    %4398 = vmatprep.subr.mxu0 0.0
    %4399 = vmatpush1.msra.mxu0 0.0
    %4400 = vmatprep.subr.mxu0 0.0
    %4401 = vmatpush1.msra.mxu0 0.0
    %4402 = vmatprep.subr.mxu0 0.0
    %4403 = vmatpush1.msra.mxu0 0.0
    %4404 = vmatprep.subr.mxu0 0.0
    %4405 = vmatpush1.msra.mxu0 0.0
    %4406 = vmatprep.subr.mxu0 0.0
    %4407 = vmatpush1.msra.mxu0 0.0
    %4408 = vmatprep.subr.mxu0 0.0
    %4409 = vmatpush1.msra.mxu0 0.0
    %4410 = vmatprep.subr.mxu0 0.0
    %4411 = vmatpush1.msra.mxu0 0.0
    %4412 = vmatprep.subr.mxu0 0.0
    %4413 = vmatpush1.msra.mxu0 0.0
    %4414 = vmatprep.subr.mxu0 0.0
    %4415 = vmatpush1.msra.mxu0 0.0
    %4416 = vmatprep.subr.mxu0 0.0
    %4417 = vmatpush1.msra.mxu0 0.0
    %4418 = vmatprep.subr.mxu0 0.0
    %4419 = vmatpush1.msra.mxu0 0.0
    %4420 = vmatprep.subr.mxu0 0.0
    %4421 = vmatpush1.msra.mxu0 0.0
    %4422 = vmatprep.subr.mxu0 0.0
    %4423 = vmatpush1.msra.mxu0 0.0
    %4424 = vmatprep.subr.mxu0 0.0
    %4425 = vmatpush1.msra.mxu0 0.0
    %4426 = vmatprep.subr.mxu0 0.0
    %4427 = vmatpush1.msra.mxu0 0.0
    %4428 = vmatprep.subr.mxu0 0.0
    %4429 = vmatpush1.msra.mxu0 0.0
    %4430 = vmatprep.subr.mxu0 0.0
    %4431 = vmatpush1.msra.mxu0 0.0
    %4432 = vmatprep.subr.mxu0 0.0
    %4433 = vmatpush1.msra.mxu0 0.0
    %4434 = vmatprep.subr.mxu0 0.0
    %4435 = vmatpush1.msra.mxu0 0.0
    %4436 = vmatprep.subr.mxu0 0.0
    %4437 = vmatpush1.msra.mxu0 0.0
    %4438 = vmatprep.subr.mxu0 0.0
    %4439 = vmatpush1.msra.mxu0 0.0
    %4440 = vmatprep.subr.mxu0 0.0
    %4441 = vmatpush1.msra.mxu0 0.0
    %4442 = vmatprep.subr.mxu0 0.0
    %4443 = vmatpush1.msra.mxu0 0.0
    %4444 = vmatprep.subr.mxu0 0.0
    %4445 = vmatpush1.msra.mxu0 0.0
    %4446 = vmatprep.subr.mxu0 0.0
    %4447 = vmatpush1.msra.mxu0 0.0
    %4448 = vmatprep.mubr.f32.mxu0 0.0
    %v4449 = vand.u32 %v4007, 4294901760
    %4450 = vmatmul.mubr.f32.gmra.mrb[0].mxu0 %v4449
    %v4451 = vpop.f32.mrb[0].mxu0
    %v4452 = vadd.f32 %v4380, %v4451
    %v4453 = vpop.f32.mrb[0].mxu0
    %4454 = vdwg.mxu0
    %4456 = vrot.lane.b32.xlu0 %v4452, 16
    %v4457 = vpop.permute.xlu0 %4456
    %vm4459 = vcmask 195712
    %4460 = vst.msk [vmem:[#allocation2] sm:$0xff] %vm4459, %v4457
    %4461 = vrot.lane.b32.xlu0 %v642, 104
    %v4462 = vpop.permute.xlu0 %4461
    %4463 = vrot.lane.b32.xlu0 %v1163, 104
    %v4464 = vpop.permute.xlu0 %4463
    %v4465 = vsel %vm1700, %v4462, 0
    %v4467 = vsel %vm1700, %v4464, 0
    %4469 = vmatprep.subr.mxu0 0.0
    %v4470 = vand.u32 %v4467, 4294901760
    %4471 = vmatpush1.xpose.msra.mxu0 %v4470
    %4472 = vmatprep.subr.mxu0 0.0
    %4473 = vmatpush1.xpose.msra.mxu0 0.0
    %4474 = vmatprep.subr.mxu0 0.0
    %4475 = vmatpush1.xpose.msra.mxu0 0.0
    %4476 = vmatprep.subr.mxu0 0.0
    %4477 = vmatpush1.xpose.msra.mxu0 0.0
    %4478 = vmatprep.subr.mxu0 0.0
    %4479 = vmatpush1.xpose.msra.mxu0 0.0
    %4480 = vmatprep.subr.mxu0 0.0
    %4481 = vmatpush1.xpose.msra.mxu0 0.0
    %4482 = vmatprep.subr.mxu0 0.0
    %4483 = vmatpush1.xpose.msra.mxu0 0.0
    %4484 = vmatprep.subr.mxu0 0.0
    %4485 = vmatpush1.xpose.msra.mxu0 0.0
    %4486 = vmatprep.subr.mxu0 0.0
    %4487 = vmatpush1.xpose.msra.mxu0 0.0
    %4488 = vmatprep.subr.mxu0 0.0
    %4489 = vmatpush1.xpose.msra.mxu0 0.0
    %4490 = vmatprep.subr.mxu0 0.0
    %4491 = vmatpush1.xpose.msra.mxu0 0.0
    %4492 = vmatprep.subr.mxu0 0.0
    %4493 = vmatpush1.xpose.msra.mxu0 0.0
    %4494 = vmatprep.subr.mxu0 0.0
    %4495 = vmatpush1.xpose.msra.mxu0 0.0
    %4496 = vmatprep.subr.mxu0 0.0
    %4497 = vmatpush1.xpose.msra.mxu0 0.0
    %4498 = vmatprep.subr.mxu0 0.0
    %4499 = vmatpush1.xpose.msra.mxu0 0.0
    %4500 = vmatprep.subr.mxu0 0.0
    %4501 = vmatpush1.xpose.msra.mxu0 0.0
    %4502 = vmatprep.subr.mxu0 0.0
    %4503 = vmatpush1.xpose.msra.mxu0 0.0
    %4504 = vmatprep.subr.mxu0 0.0
    %4505 = vmatpush1.xpose.msra.mxu0 0.0
    %4506 = vmatprep.subr.mxu0 0.0
    %4507 = vmatpush1.xpose.msra.mxu0 0.0
    %4508 = vmatprep.subr.mxu0 0.0
    %4509 = vmatpush1.xpose.msra.mxu0 0.0
    %4510 = vmatprep.subr.mxu0 0.0
    %4511 = vmatpush1.xpose.msra.mxu0 0.0
    %4512 = vmatprep.subr.mxu0 0.0
    %4513 = vmatpush1.xpose.msra.mxu0 0.0
    %4514 = vmatprep.subr.mxu0 0.0
    %4515 = vmatpush1.xpose.msra.mxu0 0.0
    %4516 = vmatprep.subr.mxu0 0.0
    %4517 = vmatpush1.xpose.msra.mxu0 0.0
    %4518 = vmatprep.subr.mxu0 0.0
    %4519 = vmatpush1.xpose.msra.mxu0 0.0
    %4520 = vmatprep.subr.mxu0 0.0
    %4521 = vmatpush1.xpose.msra.mxu0 0.0
    %4522 = vmatprep.subr.mxu0 0.0
    %4523 = vmatpush1.xpose.msra.mxu0 0.0
    %4524 = vmatprep.subr.mxu0 0.0
    %4525 = vmatpush1.xpose.msra.mxu0 0.0
    %4526 = vmatprep.subr.mxu0 0.0
    %4527 = vmatpush1.xpose.msra.mxu0 0.0
    %4528 = vmatprep.subr.mxu0 0.0
    %4529 = vmatpush1.xpose.msra.mxu0 0.0
    %4530 = vmatprep.subr.mxu0 0.0
    %4531 = vmatpush1.xpose.msra.mxu0 0.0
    %4532 = vmatprep.subr.mxu0 0.0
    %4533 = vmatpush1.xpose.msra.mxu0 0.0
    %4534 = vmatprep.mubr.f32.mxu0 0.0
    %v4535 = vand.u32 %v4465, 4294901760
    %v4536 = vsub.f32 %v4465, %v4535
    %v4537 = vand.u32 %v4536, 4294901760
    %v4538 = vsub.f32 %v4536, %v4537
    %v4539 = vand.u32 %v4538, 4294901760
    %4540 = vmatmul.mubr.f32.gmra.mrb[0].mxu0 %v4539
    %v4541 = vpop.f32.mrb[0].mxu0
    %v4542 = vadd.f32 0.0, %v4541
    %v4543 = vpop.f32.mrb[0].mxu0
    %4544 = vdwg.mxu0
    %4545 = vmatprep.subr.mxu0 0.0
    %v4546 = vand.u32 %v4467, 4294901760
    %v4547 = vsub.f32 %v4467, %v4546
    %v4548 = vand.u32 %v4547, 4294901760
    %v4549 = vsub.f32 %v4547, %v4548
    %v4550 = vand.u32 %v4549, 4294901760
    %4551 = vmatpush1.xpose.msra.mxu0 %v4550
    %4552 = vmatprep.subr.mxu0 0.0
    %4553 = vmatpush1.xpose.msra.mxu0 0.0
    %4554 = vmatprep.subr.mxu0 0.0
    %4555 = vmatpush1.xpose.msra.mxu0 0.0
    %4556 = vmatprep.subr.mxu0 0.0
    %4557 = vmatpush1.xpose.msra.mxu0 0.0
    %4558 = vmatprep.subr.mxu0 0.0
    %4559 = vmatpush1.xpose.msra.mxu0 0.0
    %4560 = vmatprep.subr.mxu0 0.0
    %4561 = vmatpush1.xpose.msra.mxu0 0.0
    %4562 = vmatprep.subr.mxu0 0.0
    %4563 = vmatpush1.xpose.msra.mxu0 0.0
    %4564 = vmatprep.subr.mxu0 0.0
    %4565 = vmatpush1.xpose.msra.mxu0 0.0
    %4566 = vmatprep.subr.mxu0 0.0
    %4567 = vmatpush1.xpose.msra.mxu0 0.0
    %4568 = vmatprep.subr.mxu0 0.0
    %4569 = vmatpush1.xpose.msra.mxu0 0.0
    %4570 = vmatprep.subr.mxu0 0.0
    %4571 = vmatpush1.xpose.msra.mxu0 0.0
    %4572 = vmatprep.subr.mxu0 0.0
    %4573 = vmatpush1.xpose.msra.mxu0 0.0
    %4574 = vmatprep.subr.mxu0 0.0
    %4575 = vmatpush1.xpose.msra.mxu0 0.0
    %4576 = vmatprep.subr.mxu0 0.0
    %4577 = vmatpush1.xpose.msra.mxu0 0.0
    %4578 = vmatprep.subr.mxu0 0.0
    %4579 = vmatpush1.xpose.msra.mxu0 0.0
    %4580 = vmatprep.subr.mxu0 0.0
    %4581 = vmatpush1.xpose.msra.mxu0 0.0
    %4582 = vmatprep.subr.mxu0 0.0
    %4583 = vmatpush1.xpose.msra.mxu0 0.0
    %4584 = vmatprep.subr.mxu0 0.0
    %4585 = vmatpush1.xpose.msra.mxu0 0.0
    %4586 = vmatprep.subr.mxu0 0.0
    %4587 = vmatpush1.xpose.msra.mxu0 0.0
    %4588 = vmatprep.subr.mxu0 0.0
    %4589 = vmatpush1.xpose.msra.mxu0 0.0
    %4590 = vmatprep.subr.mxu0 0.0
    %4591 = vmatpush1.xpose.msra.mxu0 0.0
    %4592 = vmatprep.subr.mxu0 0.0
    %4593 = vmatpush1.xpose.msra.mxu0 0.0
    %4594 = vmatprep.subr.mxu0 0.0
    %4595 = vmatpush1.xpose.msra.mxu0 0.0
    %4596 = vmatprep.subr.mxu0 0.0
    %4597 = vmatpush1.xpose.msra.mxu0 0.0
    %4598 = vmatprep.subr.mxu0 0.0
    %4599 = vmatpush1.xpose.msra.mxu0 0.0
    %4600 = vmatprep.subr.mxu0 0.0
    %4601 = vmatpush1.xpose.msra.mxu0 0.0
    %4602 = vmatprep.subr.mxu0 0.0
    %4603 = vmatpush1.xpose.msra.mxu0 0.0
    %4604 = vmatprep.subr.mxu0 0.0
    %4605 = vmatpush1.xpose.msra.mxu0 0.0
    %4606 = vmatprep.subr.mxu0 0.0
    %4607 = vmatpush1.xpose.msra.mxu0 0.0
    %4608 = vmatprep.subr.mxu0 0.0
    %4609 = vmatpush1.xpose.msra.mxu0 0.0
    %4610 = vmatprep.subr.mxu0 0.0
    %4611 = vmatpush1.xpose.msra.mxu0 0.0
    %4612 = vmatprep.subr.mxu0 0.0
    %4613 = vmatpush1.xpose.msra.mxu0 0.0
    %4614 = vmatprep.mubr.f32.mxu0 0.0
    %v4615 = vand.u32 %v4465, 4294901760
    %4616 = vmatmul.mubr.f32.gmra.mrb[0].mxu0 %v4615
    %v4617 = vpop.f32.mrb[0].mxu0
    %v4618 = vadd.f32 %v4542, %v4617
    %v4619 = vpop.f32.mrb[0].mxu0
    %4620 = vdwg.mxu0
    %4621 = vmatprep.subr.mxu0 0.0
    %v4622 = vand.u32 %v4467, 4294901760
    %v4623 = vsub.f32 %v4467, %v4622
    %4624 = vmatpush1.xpose.msra.mxu0 %v4623
    %4625 = vmatprep.subr.mxu0 0.0
    %4626 = vmatpush1.xpose.msra.mxu0 0.0
    %4627 = vmatprep.subr.mxu0 0.0
    %4628 = vmatpush1.xpose.msra.mxu0 0.0
    %4629 = vmatprep.subr.mxu0 0.0
    %4630 = vmatpush1.xpose.msra.mxu0 0.0
    %4631 = vmatprep.subr.mxu0 0.0
    %4632 = vmatpush1.xpose.msra.mxu0 0.0
    %4633 = vmatprep.subr.mxu0 0.0
    %4634 = vmatpush1.xpose.msra.mxu0 0.0
    %4635 = vmatprep.subr.mxu0 0.0
    %4636 = vmatpush1.xpose.msra.mxu0 0.0
    %4637 = vmatprep.subr.mxu0 0.0
    %4638 = vmatpush1.xpose.msra.mxu0 0.0
    %4639 = vmatprep.subr.mxu0 0.0
    %4640 = vmatpush1.xpose.msra.mxu0 0.0
    %4641 = vmatprep.subr.mxu0 0.0
    %4642 = vmatpush1.xpose.msra.mxu0 0.0
    %4643 = vmatprep.subr.mxu0 0.0
    %4644 = vmatpush1.xpose.msra.mxu0 0.0
    %4645 = vmatprep.subr.mxu0 0.0
    %4646 = vmatpush1.xpose.msra.mxu0 0.0
    %4647 = vmatprep.subr.mxu0 0.0
    %4648 = vmatpush1.xpose.msra.mxu0 0.0
    %4649 = vmatprep.subr.mxu0 0.0
    %4650 = vmatpush1.xpose.msra.mxu0 0.0
    %4651 = vmatprep.subr.mxu0 0.0
    %4652 = vmatpush1.xpose.msra.mxu0 0.0
    %4653 = vmatprep.subr.mxu0 0.0
    %4654 = vmatpush1.xpose.msra.mxu0 0.0
    %4655 = vmatprep.subr.mxu0 0.0
    %4656 = vmatpush1.xpose.msra.mxu0 0.0
    %4657 = vmatprep.subr.mxu0 0.0
    %4658 = vmatpush1.xpose.msra.mxu0 0.0
    %4659 = vmatprep.subr.mxu0 0.0
    %4660 = vmatpush1.xpose.msra.mxu0 0.0
    %4661 = vmatprep.subr.mxu0 0.0
    %4662 = vmatpush1.xpose.msra.mxu0 0.0
    %4663 = vmatprep.subr.mxu0 0.0
    %4664 = vmatpush1.xpose.msra.mxu0 0.0
    %4665 = vmatprep.subr.mxu0 0.0
    %4666 = vmatpush1.xpose.msra.mxu0 0.0
    %4667 = vmatprep.subr.mxu0 0.0
    %4668 = vmatpush1.xpose.msra.mxu0 0.0
    %4669 = vmatprep.subr.mxu0 0.0
    %4670 = vmatpush1.xpose.msra.mxu0 0.0
    %4671 = vmatprep.subr.mxu0 0.0
    %4672 = vmatpush1.xpose.msra.mxu0 0.0
    %4673 = vmatprep.subr.mxu0 0.0
    %4674 = vmatpush1.xpose.msra.mxu0 0.0
    %4675 = vmatprep.subr.mxu0 0.0
    %4676 = vmatpush1.xpose.msra.mxu0 0.0
    %4677 = vmatprep.subr.mxu0 0.0
    %4678 = vmatpush1.xpose.msra.mxu0 0.0
    %4679 = vmatprep.subr.mxu0 0.0
    %4680 = vmatpush1.xpose.msra.mxu0 0.0
    %4681 = vmatprep.subr.mxu0 0.0
    %4682 = vmatpush1.xpose.msra.mxu0 0.0
    %4683 = vmatprep.subr.mxu0 0.0
    %4684 = vmatpush1.xpose.msra.mxu0 0.0
    %4685 = vmatprep.subr.mxu0 0.0
    %4686 = vmatpush1.xpose.msra.mxu0 0.0
    %4687 = vmatprep.mubr.f32.mxu0 0.0
    %v4688 = vand.u32 %v4465, 4294901760
    %v4689 = vsub.f32 %v4465, %v4688
    %4690 = vmatmul.mubr.f32.gmra.mrb[0].mxu0 %v4689
    %v4691 = vpop.f32.mrb[0].mxu0
    %v4692 = vadd.f32 %v4618, %v4691
    %v4693 = vpop.f32.mrb[0].mxu0
    %4694 = vdwg.mxu0
    %4695 = vmatprep.subr.mxu0 0.0
    %v4696 = vand.u32 %v4467, 4294901760
    %4697 = vmatpush1.xpose.msra.mxu0 %v4696
    %4698 = vmatprep.subr.mxu0 0.0
    %4699 = vmatpush1.xpose.msra.mxu0 0.0
    %4700 = vmatprep.subr.mxu0 0.0
    %4701 = vmatpush1.xpose.msra.mxu0 0.0
    %4702 = vmatprep.subr.mxu0 0.0
    %4703 = vmatpush1.xpose.msra.mxu0 0.0
    %4704 = vmatprep.subr.mxu0 0.0
    %4705 = vmatpush1.xpose.msra.mxu0 0.0
    %4706 = vmatprep.subr.mxu0 0.0
    %4707 = vmatpush1.xpose.msra.mxu0 0.0
    %4708 = vmatprep.subr.mxu0 0.0
    %4709 = vmatpush1.xpose.msra.mxu0 0.0
    %4710 = vmatprep.subr.mxu0 0.0
    %4711 = vmatpush1.xpose.msra.mxu0 0.0
    %4712 = vmatprep.subr.mxu0 0.0
    %4713 = vmatpush1.xpose.msra.mxu0 0.0
    %4714 = vmatprep.subr.mxu0 0.0
    %4715 = vmatpush1.xpose.msra.mxu0 0.0
    %4716 = vmatprep.subr.mxu0 0.0
    %4717 = vmatpush1.xpose.msra.mxu0 0.0
    %4718 = vmatprep.subr.mxu0 0.0
    %4719 = vmatpush1.xpose.msra.mxu0 0.0
    %4720 = vmatprep.subr.mxu0 0.0
    %4721 = vmatpush1.xpose.msra.mxu0 0.0
    %4722 = vmatprep.subr.mxu0 0.0
    %4723 = vmatpush1.xpose.msra.mxu0 0.0
    %4724 = vmatprep.subr.mxu0 0.0
    %4725 = vmatpush1.xpose.msra.mxu0 0.0
    %4726 = vmatprep.subr.mxu0 0.0
    %4727 = vmatpush1.xpose.msra.mxu0 0.0
    %4728 = vmatprep.subr.mxu0 0.0
    %4729 = vmatpush1.xpose.msra.mxu0 0.0
    %4730 = vmatprep.subr.mxu0 0.0
    %4731 = vmatpush1.xpose.msra.mxu0 0.0
    %4732 = vmatprep.subr.mxu0 0.0
    %4733 = vmatpush1.xpose.msra.mxu0 0.0
    %4734 = vmatprep.subr.mxu0 0.0
    %4735 = vmatpush1.xpose.msra.mxu0 0.0
    %4736 = vmatprep.subr.mxu0 0.0
    %4737 = vmatpush1.xpose.msra.mxu0 0.0
    %4738 = vmatprep.subr.mxu0 0.0
    %4739 = vmatpush1.xpose.msra.mxu0 0.0
    %4740 = vmatprep.subr.mxu0 0.0
    %4741 = vmatpush1.xpose.msra.mxu0 0.0
    %4742 = vmatprep.subr.mxu0 0.0
    %4743 = vmatpush1.xpose.msra.mxu0 0.0
    %4744 = vmatprep.subr.mxu0 0.0
    %4745 = vmatpush1.xpose.msra.mxu0 0.0
    %4746 = vmatprep.subr.mxu0 0.0
    %4747 = vmatpush1.xpose.msra.mxu0 0.0
    %4748 = vmatprep.subr.mxu0 0.0
    %4749 = vmatpush1.xpose.msra.mxu0 0.0
    %4750 = vmatprep.subr.mxu0 0.0
    %4751 = vmatpush1.xpose.msra.mxu0 0.0
    %4752 = vmatprep.subr.mxu0 0.0
    %4753 = vmatpush1.xpose.msra.mxu0 0.0
    %4754 = vmatprep.subr.mxu0 0.0
    %4755 = vmatpush1.xpose.msra.mxu0 0.0
    %4756 = vmatprep.subr.mxu0 0.0
    %4757 = vmatpush1.xpose.msra.mxu0 0.0
    %4758 = vmatprep.subr.mxu0 0.0
    %4759 = vmatpush1.xpose.msra.mxu0 0.0
    %4760 = vmatprep.mubr.f32.mxu0 0.0
    %v4761 = vand.u32 %v4465, 4294901760
    %v4762 = vsub.f32 %v4465, %v4761
    %v4763 = vand.u32 %v4762, 4294901760
    %4764 = vmatmul.mubr.f32.gmra.mrb[0].mxu0 %v4763
    %v4765 = vpop.f32.mrb[0].mxu0
    %v4766 = vadd.f32 %v4692, %v4765
    %v4767 = vpop.f32.mrb[0].mxu0
    %4768 = vdwg.mxu0
    %4769 = vmatprep.subr.mxu0 0.0
    %v4770 = vand.u32 %v4467, 4294901760
    %v4771 = vsub.f32 %v4467, %v4770
    %v4772 = vand.u32 %v4771, 4294901760
    %4773 = vmatpush1.xpose.msra.mxu0 %v4772
    %4774 = vmatprep.subr.mxu0 0.0
    %4775 = vmatpush1.xpose.msra.mxu0 0.0
    %4776 = vmatprep.subr.mxu0 0.0
    %4777 = vmatpush1.xpose.msra.mxu0 0.0
    %4778 = vmatprep.subr.mxu0 0.0
    %4779 = vmatpush1.xpose.msra.mxu0 0.0
    %4780 = vmatprep.subr.mxu0 0.0
    %4781 = vmatpush1.xpose.msra.mxu0 0.0
    %4782 = vmatprep.subr.mxu0 0.0
    %4783 = vmatpush1.xpose.msra.mxu0 0.0
    %4784 = vmatprep.subr.mxu0 0.0
    %4785 = vmatpush1.xpose.msra.mxu0 0.0
    %4786 = vmatprep.subr.mxu0 0.0
    %4787 = vmatpush1.xpose.msra.mxu0 0.0
    %4788 = vmatprep.subr.mxu0 0.0
    %4789 = vmatpush1.xpose.msra.mxu0 0.0
    %4790 = vmatprep.subr.mxu0 0.0
    %4791 = vmatpush1.xpose.msra.mxu0 0.0
    %4792 = vmatprep.subr.mxu0 0.0
    %4793 = vmatpush1.xpose.msra.mxu0 0.0
    %4794 = vmatprep.subr.mxu0 0.0
    %4795 = vmatpush1.xpose.msra.mxu0 0.0
    %4796 = vmatprep.subr.mxu0 0.0
    %4797 = vmatpush1.xpose.msra.mxu0 0.0
    %4798 = vmatprep.subr.mxu0 0.0
    %4799 = vmatpush1.xpose.msra.mxu0 0.0
    %4800 = vmatprep.subr.mxu0 0.0
    %4801 = vmatpush1.xpose.msra.mxu0 0.0
    %4802 = vmatprep.subr.mxu0 0.0
    %4803 = vmatpush1.xpose.msra.mxu0 0.0
    %4804 = vmatprep.subr.mxu0 0.0
    %4805 = vmatpush1.xpose.msra.mxu0 0.0
    %4806 = vmatprep.subr.mxu0 0.0
    %4807 = vmatpush1.xpose.msra.mxu0 0.0
    %4808 = vmatprep.subr.mxu0 0.0
    %4809 = vmatpush1.xpose.msra.mxu0 0.0
    %4810 = vmatprep.subr.mxu0 0.0
    %4811 = vmatpush1.xpose.msra.mxu0 0.0
    %4812 = vmatprep.subr.mxu0 0.0
    %4813 = vmatpush1.xpose.msra.mxu0 0.0
    %4814 = vmatprep.subr.mxu0 0.0
    %4815 = vmatpush1.xpose.msra.mxu0 0.0
    %4816 = vmatprep.subr.mxu0 0.0
    %4817 = vmatpush1.xpose.msra.mxu0 0.0
    %4818 = vmatprep.subr.mxu0 0.0
    %4819 = vmatpush1.xpose.msra.mxu0 0.0
    %4820 = vmatprep.subr.mxu0 0.0
    %4821 = vmatpush1.xpose.msra.mxu0 0.0
    %4822 = vmatprep.subr.mxu0 0.0
    %4823 = vmatpush1.xpose.msra.mxu0 0.0
    %4824 = vmatprep.subr.mxu0 0.0
    %4825 = vmatpush1.xpose.msra.mxu0 0.0
    %4826 = vmatprep.subr.mxu0 0.0
    %4827 = vmatpush1.xpose.msra.mxu0 0.0
    %4828 = vmatprep.subr.mxu0 0.0
    %4829 = vmatpush1.xpose.msra.mxu0 0.0
    %4830 = vmatprep.subr.mxu0 0.0
    %4831 = vmatpush1.xpose.msra.mxu0 0.0
    %4832 = vmatprep.subr.mxu0 0.0
    %4833 = vmatpush1.xpose.msra.mxu0 0.0
    %4834 = vmatprep.subr.mxu0 0.0
    %4835 = vmatpush1.xpose.msra.mxu0 0.0
    %4836 = vmatprep.mubr.f32.mxu0 0.0
    %v4837 = vand.u32 %v4465, 4294901760
    %4838 = vmatmul.mubr.f32.gmra.mrb[0].mxu0 %v4837
    %v4839 = vpop.f32.mrb[0].mxu0
    %v4840 = vadd.f32 %v4766, %v4839
    %v4841 = vpop.f32.mrb[0].mxu0
    %4842 = vdwg.mxu0
    %4843 = vmatprep.subr.mxu0 0.0
    %v4844 = vand.u32 %v4467, 4294901760
    %4845 = vmatpush1.xpose.msra.mxu0 %v4844
    %4846 = vmatprep.subr.mxu0 0.0
    %4847 = vmatpush1.xpose.msra.mxu0 0.0
    %4848 = vmatprep.subr.mxu0 0.0
    %4849 = vmatpush1.xpose.msra.mxu0 0.0
    %4850 = vmatprep.subr.mxu0 0.0
    %4851 = vmatpush1.xpose.msra.mxu0 0.0
    %4852 = vmatprep.subr.mxu0 0.0
    %4853 = vmatpush1.xpose.msra.mxu0 0.0
    %4854 = vmatprep.subr.mxu0 0.0
    %4855 = vmatpush1.xpose.msra.mxu0 0.0
    %4856 = vmatprep.subr.mxu0 0.0
    %4857 = vmatpush1.xpose.msra.mxu0 0.0
    %4858 = vmatprep.subr.mxu0 0.0
    %4859 = vmatpush1.xpose.msra.mxu0 0.0
    %4860 = vmatprep.subr.mxu0 0.0
    %4861 = vmatpush1.xpose.msra.mxu0 0.0
    %4862 = vmatprep.subr.mxu0 0.0
    %4863 = vmatpush1.xpose.msra.mxu0 0.0
    %4864 = vmatprep.subr.mxu0 0.0
    %4865 = vmatpush1.xpose.msra.mxu0 0.0
    %4866 = vmatprep.subr.mxu0 0.0
    %4867 = vmatpush1.xpose.msra.mxu0 0.0
    %4868 = vmatprep.subr.mxu0 0.0
    %4869 = vmatpush1.xpose.msra.mxu0 0.0
    %4870 = vmatprep.subr.mxu0 0.0
    %4871 = vmatpush1.xpose.msra.mxu0 0.0
    %4872 = vmatprep.subr.mxu0 0.0
    %4873 = vmatpush1.xpose.msra.mxu0 0.0
    %4874 = vmatprep.subr.mxu0 0.0
    %4875 = vmatpush1.xpose.msra.mxu0 0.0
    %4876 = vmatprep.subr.mxu0 0.0
    %4877 = vmatpush1.xpose.msra.mxu0 0.0
    %4878 = vmatprep.subr.mxu0 0.0
    %4879 = vmatpush1.xpose.msra.mxu0 0.0
    %4880 = vmatprep.subr.mxu0 0.0
    %4881 = vmatpush1.xpose.msra.mxu0 0.0
    %4882 = vmatprep.subr.mxu0 0.0
    %4883 = vmatpush1.xpose.msra.mxu0 0.0
    %4884 = vmatprep.subr.mxu0 0.0
    %4885 = vmatpush1.xpose.msra.mxu0 0.0
    %4886 = vmatprep.subr.mxu0 0.0
    %4887 = vmatpush1.xpose.msra.mxu0 0.0
    %4888 = vmatprep.subr.mxu0 0.0
    %4889 = vmatpush1.xpose.msra.mxu0 0.0
    %4890 = vmatprep.subr.mxu0 0.0
    %4891 = vmatpush1.xpose.msra.mxu0 0.0
    %4892 = vmatprep.subr.mxu0 0.0
    %4893 = vmatpush1.xpose.msra.mxu0 0.0
    %4894 = vmatprep.subr.mxu0 0.0
    %4895 = vmatpush1.xpose.msra.mxu0 0.0
    %4896 = vmatprep.subr.mxu0 0.0
    %4897 = vmatpush1.xpose.msra.mxu0 0.0
    %4898 = vmatprep.subr.mxu0 0.0
    %4899 = vmatpush1.xpose.msra.mxu0 0.0
    %4900 = vmatprep.subr.mxu0 0.0
    %4901 = vmatpush1.xpose.msra.mxu0 0.0
    %4902 = vmatprep.subr.mxu0 0.0
    %4903 = vmatpush1.xpose.msra.mxu0 0.0
    %4904 = vmatprep.subr.mxu0 0.0
    %4905 = vmatpush1.xpose.msra.mxu0 0.0
    %4906 = vmatprep.subr.mxu0 0.0
    %4907 = vmatpush1.xpose.msra.mxu0 0.0
    %4908 = vmatprep.mubr.f32.mxu0 0.0
    %v4909 = vand.u32 %v4465, 4294901760
    %4910 = vmatmul.mubr.f32.gmra.mrb[0].mxu0 %v4909
    %v4911 = vpop.f32.mrb[0].mxu0
    %v4912 = vadd.f32 %v4840, %v4911
    %v4913 = vpop.f32.mrb[0].mxu0
    %4914 = vdwg.mxu0
    %v4915 = vsel %vm1700, %v4912, -inf
    %4916 = vmax.xlane.f32.xlu0 %v4915
    %v4917 = vpop.xlane.xlu0 %4916
    %v4918 = vsub.f32 %v4912, %v4917
    %v4919 = vmul.f32 %v4918, 1.442695
    %v4920 = vpow.pop %v4919
    %v4921 = vsel %vm1700, %v4920, 0.0
    %4922 = vadd.xlane.f32.xlu0 %v4921
    %v4923 = vpop.xlane.xlu0 %4922
    %v4924 = vrcp.pop %v4923
    %v4925 = vmul.f32 %v4920, %v4924
    %4926 = vrot.lane.b32.xlu0 %v1691, 104
    %v4927 = vpop.permute.xlu0 %4926
    %v4930 = vsel %vm1700, %v4925, 0
    %4932 = vmatprep.subr.mxu0 0.0
    %v4933 = vand.u32 %v4927, 4294901760
    %4934 = vmatpush1.msra.mxu0 %v4933
    %4935 = vmatprep.subr.mxu0 0.0
    %4936 = vmatpush1.msra.mxu0 0.0
    %4937 = vmatprep.subr.mxu0 0.0
    %4938 = vmatpush1.msra.mxu0 0.0
    %4939 = vmatprep.subr.mxu0 0.0
    %4940 = vmatpush1.msra.mxu0 0.0
    %4941 = vmatprep.subr.mxu0 0.0
    %4942 = vmatpush1.msra.mxu0 0.0
    %4943 = vmatprep.subr.mxu0 0.0
    %4944 = vmatpush1.msra.mxu0 0.0
    %4945 = vmatprep.subr.mxu0 0.0
    %4946 = vmatpush1.msra.mxu0 0.0
    %4947 = vmatprep.subr.mxu0 0.0
    %4948 = vmatpush1.msra.mxu0 0.0
    %4949 = vmatprep.subr.mxu0 0.0
    %4950 = vmatpush1.msra.mxu0 0.0
    %4951 = vmatprep.subr.mxu0 0.0
    %4952 = vmatpush1.msra.mxu0 0.0
    %4953 = vmatprep.subr.mxu0 0.0
    %4954 = vmatpush1.msra.mxu0 0.0
    %4955 = vmatprep.subr.mxu0 0.0
    %4956 = vmatpush1.msra.mxu0 0.0
    %4957 = vmatprep.subr.mxu0 0.0
    %4958 = vmatpush1.msra.mxu0 0.0
    %4959 = vmatprep.subr.mxu0 0.0
    %4960 = vmatpush1.msra.mxu0 0.0
    %4961 = vmatprep.subr.mxu0 0.0
    %4962 = vmatpush1.msra.mxu0 0.0
    %4963 = vmatprep.subr.mxu0 0.0
    %4964 = vmatpush1.msra.mxu0 0.0
    %4965 = vmatprep.subr.mxu0 0.0
    %4966 = vmatpush1.msra.mxu0 0.0
    %4967 = vmatprep.subr.mxu0 0.0
    %4968 = vmatpush1.msra.mxu0 0.0
    %4969 = vmatprep.subr.mxu0 0.0
    %4970 = vmatpush1.msra.mxu0 0.0
    %4971 = vmatprep.subr.mxu0 0.0
    %4972 = vmatpush1.msra.mxu0 0.0
    %4973 = vmatprep.subr.mxu0 0.0
    %4974 = vmatpush1.msra.mxu0 0.0
    %4975 = vmatprep.subr.mxu0 0.0
    %4976 = vmatpush1.msra.mxu0 0.0
    %4977 = vmatprep.subr.mxu0 0.0
    %4978 = vmatpush1.msra.mxu0 0.0
    %4979 = vmatprep.subr.mxu0 0.0
    %4980 = vmatpush1.msra.mxu0 0.0
    %4981 = vmatprep.subr.mxu0 0.0
    %4982 = vmatpush1.msra.mxu0 0.0
    %4983 = vmatprep.subr.mxu0 0.0
    %4984 = vmatpush1.msra.mxu0 0.0
    %4985 = vmatprep.subr.mxu0 0.0
    %4986 = vmatpush1.msra.mxu0 0.0
    %4987 = vmatprep.subr.mxu0 0.0
    %4988 = vmatpush1.msra.mxu0 0.0
    %4989 = vmatprep.subr.mxu0 0.0
    %4990 = vmatpush1.msra.mxu0 0.0
    %4991 = vmatprep.subr.mxu0 0.0
    %4992 = vmatpush1.msra.mxu0 0.0
    %4993 = vmatprep.subr.mxu0 0.0
    %4994 = vmatpush1.msra.mxu0 0.0
    %4995 = vmatprep.subr.mxu0 0.0
    %4996 = vmatpush1.msra.mxu0 0.0
    %4997 = vmatprep.mubr.f32.mxu0 0.0
    %v4998 = vand.u32 %v4930, 4294901760
    %v4999 = vsub.f32 %v4930, %v4998
    %v5000 = vand.u32 %v4999, 4294901760
    %v5001 = vsub.f32 %v4999, %v5000
    %v5002 = vand.u32 %v5001, 4294901760
    %5003 = vmatmul.mubr.f32.gmra.mrb[0].mxu0 %v5002
    %v5004 = vpop.f32.mrb[0].mxu0
    %v5005 = vadd.f32 0.0, %v5004
    %v5006 = vpop.f32.mrb[0].mxu0
    %5007 = vdwg.mxu0
    %5008 = vmatprep.subr.mxu0 0.0
    %v5009 = vand.u32 %v4927, 4294901760
    %v5010 = vsub.f32 %v4927, %v5009
    %v5011 = vand.u32 %v5010, 4294901760
    %v5012 = vsub.f32 %v5010, %v5011
    %v5013 = vand.u32 %v5012, 4294901760
    %5014 = vmatpush1.msra.mxu0 %v5013
    %5015 = vmatprep.subr.mxu0 0.0
    %5016 = vmatpush1.msra.mxu0 0.0
    %5017 = vmatprep.subr.mxu0 0.0
    %5018 = vmatpush1.msra.mxu0 0.0
    %5019 = vmatprep.subr.mxu0 0.0
    %5020 = vmatpush1.msra.mxu0 0.0
    %5021 = vmatprep.subr.mxu0 0.0
    %5022 = vmatpush1.msra.mxu0 0.0
    %5023 = vmatprep.subr.mxu0 0.0
    %5024 = vmatpush1.msra.mxu0 0.0
    %5025 = vmatprep.subr.mxu0 0.0
    %5026 = vmatpush1.msra.mxu0 0.0
    %5027 = vmatprep.subr.mxu0 0.0
    %5028 = vmatpush1.msra.mxu0 0.0
    %5029 = vmatprep.subr.mxu0 0.0
    %5030 = vmatpush1.msra.mxu0 0.0
    %5031 = vmatprep.subr.mxu0 0.0
    %5032 = vmatpush1.msra.mxu0 0.0
    %5033 = vmatprep.subr.mxu0 0.0
    %5034 = vmatpush1.msra.mxu0 0.0
    %5035 = vmatprep.subr.mxu0 0.0
    %5036 = vmatpush1.msra.mxu0 0.0
    %5037 = vmatprep.subr.mxu0 0.0
    %5038 = vmatpush1.msra.mxu0 0.0
    %5039 = vmatprep.subr.mxu0 0.0
    %5040 = vmatpush1.msra.mxu0 0.0
    %5041 = vmatprep.subr.mxu0 0.0
    %5042 = vmatpush1.msra.mxu0 0.0
    %5043 = vmatprep.subr.mxu0 0.0
    %5044 = vmatpush1.msra.mxu0 0.0
    %5045 = vmatprep.subr.mxu0 0.0
    %5046 = vmatpush1.msra.mxu0 0.0
    %5047 = vmatprep.subr.mxu0 0.0
    %5048 = vmatpush1.msra.mxu0 0.0
    %5049 = vmatprep.subr.mxu0 0.0
    %5050 = vmatpush1.msra.mxu0 0.0
    %5051 = vmatprep.subr.mxu0 0.0
    %5052 = vmatpush1.msra.mxu0 0.0
    %5053 = vmatprep.subr.mxu0 0.0
    %5054 = vmatpush1.msra.mxu0 0.0
    %5055 = vmatprep.subr.mxu0 0.0
    %5056 = vmatpush1.msra.mxu0 0.0
    %5057 = vmatprep.subr.mxu0 0.0
    %5058 = vmatpush1.msra.mxu0 0.0
    %5059 = vmatprep.subr.mxu0 0.0
    %5060 = vmatpush1.msra.mxu0 0.0
    %5061 = vmatprep.subr.mxu0 0.0
    %5062 = vmatpush1.msra.mxu0 0.0
    %5063 = vmatprep.subr.mxu0 0.0
    %5064 = vmatpush1.msra.mxu0 0.0
    %5065 = vmatprep.subr.mxu0 0.0
    %5066 = vmatpush1.msra.mxu0 0.0
    %5067 = vmatprep.subr.mxu0 0.0
    %5068 = vmatpush1.msra.mxu0 0.0
    %5069 = vmatprep.subr.mxu0 0.0
    %5070 = vmatpush1.msra.mxu0 0.0
    %5071 = vmatprep.subr.mxu0 0.0
    %5072 = vmatpush1.msra.mxu0 0.0
    %5073 = vmatprep.subr.mxu0 0.0
    %5074 = vmatpush1.msra.mxu0 0.0
    %5075 = vmatprep.subr.mxu0 0.0
    %5076 = vmatpush1.msra.mxu0 0.0
    %5077 = vmatprep.mubr.f32.mxu0 0.0
    %v5078 = vand.u32 %v4930, 4294901760
    %5079 = vmatmul.mubr.f32.gmra.mrb[0].mxu0 %v5078
    %v5080 = vpop.f32.mrb[0].mxu0
    %v5081 = vadd.f32 %v5005, %v5080
    %v5082 = vpop.f32.mrb[0].mxu0
    %5083 = vdwg.mxu0
    %5084 = vmatprep.subr.mxu0 0.0
    %v5085 = vand.u32 %v4927, 4294901760
    %v5086 = vsub.f32 %v4927, %v5085
    %5087 = vmatpush1.msra.mxu0 %v5086
    %5088 = vmatprep.subr.mxu0 0.0
    %5089 = vmatpush1.msra.mxu0 0.0
    %5090 = vmatprep.subr.mxu0 0.0
    %5091 = vmatpush1.msra.mxu0 0.0
    %5092 = vmatprep.subr.mxu0 0.0
    %5093 = vmatpush1.msra.mxu0 0.0
    %5094 = vmatprep.subr.mxu0 0.0
    %5095 = vmatpush1.msra.mxu0 0.0
    %5096 = vmatprep.subr.mxu0 0.0
    %5097 = vmatpush1.msra.mxu0 0.0
    %5098 = vmatprep.subr.mxu0 0.0
    %5099 = vmatpush1.msra.mxu0 0.0
    %5100 = vmatprep.subr.mxu0 0.0
    %5101 = vmatpush1.msra.mxu0 0.0
    %5102 = vmatprep.subr.mxu0 0.0
    %5103 = vmatpush1.msra.mxu0 0.0
    %5104 = vmatprep.subr.mxu0 0.0
    %5105 = vmatpush1.msra.mxu0 0.0
    %5106 = vmatprep.subr.mxu0 0.0
    %5107 = vmatpush1.msra.mxu0 0.0
    %5108 = vmatprep.subr.mxu0 0.0
    %5109 = vmatpush1.msra.mxu0 0.0
    %5110 = vmatprep.subr.mxu0 0.0
    %5111 = vmatpush1.msra.mxu0 0.0
    %5112 = vmatprep.subr.mxu0 0.0
    %5113 = vmatpush1.msra.mxu0 0.0
    %5114 = vmatprep.subr.mxu0 0.0
    %5115 = vmatpush1.msra.mxu0 0.0
    %5116 = vmatprep.subr.mxu0 0.0
    %5117 = vmatpush1.msra.mxu0 0.0
    %5118 = vmatprep.subr.mxu0 0.0
    %5119 = vmatpush1.msra.mxu0 0.0
    %5120 = vmatprep.subr.mxu0 0.0
    %5121 = vmatpush1.msra.mxu0 0.0
    %5122 = vmatprep.subr.mxu0 0.0
    %5123 = vmatpush1.msra.mxu0 0.0
    %5124 = vmatprep.subr.mxu0 0.0
    %5125 = vmatpush1.msra.mxu0 0.0
    %5126 = vmatprep.subr.mxu0 0.0
    %5127 = vmatpush1.msra.mxu0 0.0
    %5128 = vmatprep.subr.mxu0 0.0
    %5129 = vmatpush1.msra.mxu0 0.0
    %5130 = vmatprep.subr.mxu0 0.0
    %5131 = vmatpush1.msra.mxu0 0.0
    %5132 = vmatprep.subr.mxu0 0.0
    %5133 = vmatpush1.msra.mxu0 0.0
    %5134 = vmatprep.subr.mxu0 0.0
    %5135 = vmatpush1.msra.mxu0 0.0
    %5136 = vmatprep.subr.mxu0 0.0
    %5137 = vmatpush1.msra.mxu0 0.0
    %5138 = vmatprep.subr.mxu0 0.0
    %5139 = vmatpush1.msra.mxu0 0.0
    %5140 = vmatprep.subr.mxu0 0.0
    %5141 = vmatpush1.msra.mxu0 0.0
    %5142 = vmatprep.subr.mxu0 0.0
    %5143 = vmatpush1.msra.mxu0 0.0
    %5144 = vmatprep.subr.mxu0 0.0
    %5145 = vmatpush1.msra.mxu0 0.0
    %5146 = vmatprep.subr.mxu0 0.0
    %5147 = vmatpush1.msra.mxu0 0.0
    %5148 = vmatprep.subr.mxu0 0.0
    %5149 = vmatpush1.msra.mxu0 0.0
    %5150 = vmatprep.mubr.f32.mxu0 0.0
    %v5151 = vand.u32 %v4930, 4294901760
    %v5152 = vsub.f32 %v4930, %v5151
    %5153 = vmatmul.mubr.f32.gmra.mrb[0].mxu0 %v5152
    %v5154 = vpop.f32.mrb[0].mxu0
    %v5155 = vadd.f32 %v5081, %v5154
    %v5156 = vpop.f32.mrb[0].mxu0
    %5157 = vdwg.mxu0
    %5158 = vmatprep.subr.mxu0 0.0
    %v5159 = vand.u32 %v4927, 4294901760
    %5160 = vmatpush1.msra.mxu0 %v5159
    %5161 = vmatprep.subr.mxu0 0.0
    %5162 = vmatpush1.msra.mxu0 0.0
    %5163 = vmatprep.subr.mxu0 0.0
    %5164 = vmatpush1.msra.mxu0 0.0
    %5165 = vmatprep.subr.mxu0 0.0
    %5166 = vmatpush1.msra.mxu0 0.0
    %5167 = vmatprep.subr.mxu0 0.0
    %5168 = vmatpush1.msra.mxu0 0.0
    %5169 = vmatprep.subr.mxu0 0.0
    %5170 = vmatpush1.msra.mxu0 0.0
    %5171 = vmatprep.subr.mxu0 0.0
    %5172 = vmatpush1.msra.mxu0 0.0
    %5173 = vmatprep.subr.mxu0 0.0
    %5174 = vmatpush1.msra.mxu0 0.0
    %5175 = vmatprep.subr.mxu0 0.0
    %5176 = vmatpush1.msra.mxu0 0.0
    %5177 = vmatprep.subr.mxu0 0.0
    %5178 = vmatpush1.msra.mxu0 0.0
    %5179 = vmatprep.subr.mxu0 0.0
    %5180 = vmatpush1.msra.mxu0 0.0
    %5181 = vmatprep.subr.mxu0 0.0
    %5182 = vmatpush1.msra.mxu0 0.0
    %5183 = vmatprep.subr.mxu0 0.0
    %5184 = vmatpush1.msra.mxu0 0.0
    %5185 = vmatprep.subr.mxu0 0.0
    %5186 = vmatpush1.msra.mxu0 0.0
    %5187 = vmatprep.subr.mxu0 0.0
    %5188 = vmatpush1.msra.mxu0 0.0
    %5189 = vmatprep.subr.mxu0 0.0
    %5190 = vmatpush1.msra.mxu0 0.0
    %5191 = vmatprep.subr.mxu0 0.0
    %5192 = vmatpush1.msra.mxu0 0.0
    %5193 = vmatprep.subr.mxu0 0.0
    %5194 = vmatpush1.msra.mxu0 0.0
    %5195 = vmatprep.subr.mxu0 0.0
    %5196 = vmatpush1.msra.mxu0 0.0
    %5197 = vmatprep.subr.mxu0 0.0
    %5198 = vmatpush1.msra.mxu0 0.0
    %5199 = vmatprep.subr.mxu0 0.0
    %5200 = vmatpush1.msra.mxu0 0.0
    %5201 = vmatprep.subr.mxu0 0.0
    %5202 = vmatpush1.msra.mxu0 0.0
    %5203 = vmatprep.subr.mxu0 0.0
    %5204 = vmatpush1.msra.mxu0 0.0
    %5205 = vmatprep.subr.mxu0 0.0
    %5206 = vmatpush1.msra.mxu0 0.0
    %5207 = vmatprep.subr.mxu0 0.0
    %5208 = vmatpush1.msra.mxu0 0.0
    %5209 = vmatprep.subr.mxu0 0.0
    %5210 = vmatpush1.msra.mxu0 0.0
    %5211 = vmatprep.subr.mxu0 0.0
    %5212 = vmatpush1.msra.mxu0 0.0
    %5213 = vmatprep.subr.mxu0 0.0
    %5214 = vmatpush1.msra.mxu0 0.0
    %5215 = vmatprep.subr.mxu0 0.0
    %5216 = vmatpush1.msra.mxu0 0.0
    %5217 = vmatprep.subr.mxu0 0.0
    %5218 = vmatpush1.msra.mxu0 0.0
    %5219 = vmatprep.subr.mxu0 0.0
    %5220 = vmatpush1.msra.mxu0 0.0
    %5221 = vmatprep.subr.mxu0 0.0
    %5222 = vmatpush1.msra.mxu0 0.0
    %5223 = vmatprep.mubr.f32.mxu0 0.0
    %v5224 = vand.u32 %v4930, 4294901760
    %v5225 = vsub.f32 %v4930, %v5224
    %v5226 = vand.u32 %v5225, 4294901760
    %5227 = vmatmul.mubr.f32.gmra.mrb[0].mxu0 %v5226
    %v5228 = vpop.f32.mrb[0].mxu0
    %v5229 = vadd.f32 %v5155, %v5228
    %v5230 = vpop.f32.mrb[0].mxu0
    %5231 = vdwg.mxu0
    %5232 = vmatprep.subr.mxu0 0.0
    %v5233 = vand.u32 %v4927, 4294901760
    %v5234 = vsub.f32 %v4927, %v5233
    %v5235 = vand.u32 %v5234, 4294901760
    %5236 = vmatpush1.msra.mxu0 %v5235
    %5237 = vmatprep.subr.mxu0 0.0
    %5238 = vmatpush1.msra.mxu0 0.0
    %5239 = vmatprep.subr.mxu0 0.0
    %5240 = vmatpush1.msra.mxu0 0.0
    %5241 = vmatprep.subr.mxu0 0.0
    %5242 = vmatpush1.msra.mxu0 0.0
    %5243 = vmatprep.subr.mxu0 0.0
    %5244 = vmatpush1.msra.mxu0 0.0
    %5245 = vmatprep.subr.mxu0 0.0
    %5246 = vmatpush1.msra.mxu0 0.0
    %5247 = vmatprep.subr.mxu0 0.0
    %5248 = vmatpush1.msra.mxu0 0.0
    %5249 = vmatprep.subr.mxu0 0.0
    %5250 = vmatpush1.msra.mxu0 0.0
    %5251 = vmatprep.subr.mxu0 0.0
    %5252 = vmatpush1.msra.mxu0 0.0
    %5253 = vmatprep.subr.mxu0 0.0
    %5254 = vmatpush1.msra.mxu0 0.0
    %5255 = vmatprep.subr.mxu0 0.0
    %5256 = vmatpush1.msra.mxu0 0.0
    %5257 = vmatprep.subr.mxu0 0.0
    %5258 = vmatpush1.msra.mxu0 0.0
    %5259 = vmatprep.subr.mxu0 0.0
    %5260 = vmatpush1.msra.mxu0 0.0
    %5261 = vmatprep.subr.mxu0 0.0
    %5262 = vmatpush1.msra.mxu0 0.0
    %5263 = vmatprep.subr.mxu0 0.0
    %5264 = vmatpush1.msra.mxu0 0.0
    %5265 = vmatprep.subr.mxu0 0.0
    %5266 = vmatpush1.msra.mxu0 0.0
    %5267 = vmatprep.subr.mxu0 0.0
    %5268 = vmatpush1.msra.mxu0 0.0
    %5269 = vmatprep.subr.mxu0 0.0
    %5270 = vmatpush1.msra.mxu0 0.0
    %5271 = vmatprep.subr.mxu0 0.0
    %5272 = vmatpush1.msra.mxu0 0.0
    %5273 = vmatprep.subr.mxu0 0.0
    %5274 = vmatpush1.msra.mxu0 0.0
    %5275 = vmatprep.subr.mxu0 0.0
    %5276 = vmatpush1.msra.mxu0 0.0
    %5277 = vmatprep.subr.mxu0 0.0
    %5278 = vmatpush1.msra.mxu0 0.0
    %5279 = vmatprep.subr.mxu0 0.0
    %5280 = vmatpush1.msra.mxu0 0.0
    %5281 = vmatprep.subr.mxu0 0.0
    %5282 = vmatpush1.msra.mxu0 0.0
    %5283 = vmatprep.subr.mxu0 0.0
    %5284 = vmatpush1.msra.mxu0 0.0
    %5285 = vmatprep.subr.mxu0 0.0
    %5286 = vmatpush1.msra.mxu0 0.0
    %5287 = vmatprep.subr.mxu0 0.0
    %5288 = vmatpush1.msra.mxu0 0.0
    %5289 = vmatprep.subr.mxu0 0.0
    %5290 = vmatpush1.msra.mxu0 0.0
    %5291 = vmatprep.subr.mxu0 0.0
    %5292 = vmatpush1.msra.mxu0 0.0
    %5293 = vmatprep.subr.mxu0 0.0
    %5294 = vmatpush1.msra.mxu0 0.0
    %5295 = vmatprep.subr.mxu0 0.0
    %5296 = vmatpush1.msra.mxu0 0.0
    %5297 = vmatprep.subr.mxu0 0.0
    %5298 = vmatpush1.msra.mxu0 0.0
    %5299 = vmatprep.mubr.f32.mxu0 0.0
    %v5300 = vand.u32 %v4930, 4294901760
    %5301 = vmatmul.mubr.f32.gmra.mrb[0].mxu0 %v5300
    %v5302 = vpop.f32.mrb[0].mxu0
    %v5303 = vadd.f32 %v5229, %v5302
    %v5304 = vpop.f32.mrb[0].mxu0
    %5305 = vdwg.mxu0
    %5306 = vmatprep.subr.mxu0 0.0
    %v5307 = vand.u32 %v4927, 4294901760
    %5308 = vmatpush1.msra.mxu0 %v5307
    %5309 = vmatprep.subr.mxu0 0.0
    %5310 = vmatpush1.msra.mxu0 0.0
    %5311 = vmatprep.subr.mxu0 0.0
    %5312 = vmatpush1.msra.mxu0 0.0
    %5313 = vmatprep.subr.mxu0 0.0
    %5314 = vmatpush1.msra.mxu0 0.0
    %5315 = vmatprep.subr.mxu0 0.0
    %5316 = vmatpush1.msra.mxu0 0.0
    %5317 = vmatprep.subr.mxu0 0.0
    %5318 = vmatpush1.msra.mxu0 0.0
    %5319 = vmatprep.subr.mxu0 0.0
    %5320 = vmatpush1.msra.mxu0 0.0
    %5321 = vmatprep.subr.mxu0 0.0
    %5322 = vmatpush1.msra.mxu0 0.0
    %5323 = vmatprep.subr.mxu0 0.0
    %5324 = vmatpush1.msra.mxu0 0.0
    %5325 = vmatprep.subr.mxu0 0.0
    %5326 = vmatpush1.msra.mxu0 0.0
    %5327 = vmatprep.subr.mxu0 0.0
    %5328 = vmatpush1.msra.mxu0 0.0
    %5329 = vmatprep.subr.mxu0 0.0
    %5330 = vmatpush1.msra.mxu0 0.0
    %5331 = vmatprep.subr.mxu0 0.0
    %5332 = vmatpush1.msra.mxu0 0.0
    %5333 = vmatprep.subr.mxu0 0.0
    %5334 = vmatpush1.msra.mxu0 0.0
    %5335 = vmatprep.subr.mxu0 0.0
    %5336 = vmatpush1.msra.mxu0 0.0
    %5337 = vmatprep.subr.mxu0 0.0
    %5338 = vmatpush1.msra.mxu0 0.0
    %5339 = vmatprep.subr.mxu0 0.0
    %5340 = vmatpush1.msra.mxu0 0.0
    %5341 = vmatprep.subr.mxu0 0.0
    %5342 = vmatpush1.msra.mxu0 0.0
    %5343 = vmatprep.subr.mxu0 0.0
    %5344 = vmatpush1.msra.mxu0 0.0
    %5345 = vmatprep.subr.mxu0 0.0
    %5346 = vmatpush1.msra.mxu0 0.0
    %5347 = vmatprep.subr.mxu0 0.0
    %5348 = vmatpush1.msra.mxu0 0.0
    %5349 = vmatprep.subr.mxu0 0.0
    %5350 = vmatpush1.msra.mxu0 0.0
    %5351 = vmatprep.subr.mxu0 0.0
    %5352 = vmatpush1.msra.mxu0 0.0
    %5353 = vmatprep.subr.mxu0 0.0
    %5354 = vmatpush1.msra.mxu0 0.0
    %5355 = vmatprep.subr.mxu0 0.0
    %5356 = vmatpush1.msra.mxu0 0.0
    %5357 = vmatprep.subr.mxu0 0.0
    %5358 = vmatpush1.msra.mxu0 0.0
    %5359 = vmatprep.subr.mxu0 0.0
    %5360 = vmatpush1.msra.mxu0 0.0
    %5361 = vmatprep.subr.mxu0 0.0
    %5362 = vmatpush1.msra.mxu0 0.0
    %5363 = vmatprep.subr.mxu0 0.0
    %5364 = vmatpush1.msra.mxu0 0.0
    %5365 = vmatprep.subr.mxu0 0.0
    %5366 = vmatpush1.msra.mxu0 0.0
    %5367 = vmatprep.subr.mxu0 0.0
    %5368 = vmatpush1.msra.mxu0 0.0
    %5369 = vmatprep.subr.mxu0 0.0
    %5370 = vmatpush1.msra.mxu0 0.0
    %5371 = vmatprep.mubr.f32.mxu0 0.0
    %v5372 = vand.u32 %v4930, 4294901760
    %5373 = vmatmul.mubr.f32.gmra.mrb[0].mxu0 %v5372
    %v5374 = vpop.f32.mrb[0].mxu0
    %v5375 = vadd.f32 %v5303, %v5374
    %v5376 = vpop.f32.mrb[0].mxu0
    %5377 = vdwg.mxu0
    %5379 = vrot.lane.b32.xlu0 %v5375, 24
    %v5380 = vpop.permute.xlu0 %5379
    %vm5382 = vcmask 261312
    %5383 = vst.msk [vmem:[#allocation2] sm:$0xff] %vm5382, %v5380
    %v5385 = vsel %vm1700, %v643, 0
    %v5388 = vsel %vm1700, %v1169, 0
    %5390 = vmatprep.subr.mxu0 0.0
    %v5391 = vand.u32 %v5388, 4294901760
    %5392 = vmatpush1.xpose.msra.mxu0 %v5391
    %5393 = vmatprep.subr.mxu0 0.0
    %5394 = vmatpush1.xpose.msra.mxu0 0.0
    %5395 = vmatprep.subr.mxu0 0.0
    %5396 = vmatpush1.xpose.msra.mxu0 0.0
    %5397 = vmatprep.subr.mxu0 0.0
    %5398 = vmatpush1.xpose.msra.mxu0 0.0
    %5399 = vmatprep.subr.mxu0 0.0
    %5400 = vmatpush1.xpose.msra.mxu0 0.0
    %5401 = vmatprep.subr.mxu0 0.0
    %5402 = vmatpush1.xpose.msra.mxu0 0.0
    %5403 = vmatprep.subr.mxu0 0.0
    %5404 = vmatpush1.xpose.msra.mxu0 0.0
    %5405 = vmatprep.subr.mxu0 0.0
    %5406 = vmatpush1.xpose.msra.mxu0 0.0
    %5407 = vmatprep.subr.mxu0 0.0
    %5408 = vmatpush1.xpose.msra.mxu0 0.0
    %5409 = vmatprep.subr.mxu0 0.0
    %5410 = vmatpush1.xpose.msra.mxu0 0.0
    %5411 = vmatprep.subr.mxu0 0.0
    %5412 = vmatpush1.xpose.msra.mxu0 0.0
    %5413 = vmatprep.subr.mxu0 0.0
    %5414 = vmatpush1.xpose.msra.mxu0 0.0
    %5415 = vmatprep.subr.mxu0 0.0
    %5416 = vmatpush1.xpose.msra.mxu0 0.0
    %5417 = vmatprep.subr.mxu0 0.0
    %5418 = vmatpush1.xpose.msra.mxu0 0.0
    %5419 = vmatprep.subr.mxu0 0.0
    %5420 = vmatpush1.xpose.msra.mxu0 0.0
    %5421 = vmatprep.subr.mxu0 0.0
    %5422 = vmatpush1.xpose.msra.mxu0 0.0
    %5423 = vmatprep.subr.mxu0 0.0
    %5424 = vmatpush1.xpose.msra.mxu0 0.0
    %5425 = vmatprep.subr.mxu0 0.0
    %5426 = vmatpush1.xpose.msra.mxu0 0.0
    %5427 = vmatprep.subr.mxu0 0.0
    %5428 = vmatpush1.xpose.msra.mxu0 0.0
    %5429 = vmatprep.subr.mxu0 0.0
    %5430 = vmatpush1.xpose.msra.mxu0 0.0
    %5431 = vmatprep.subr.mxu0 0.0
    %5432 = vmatpush1.xpose.msra.mxu0 0.0
    %5433 = vmatprep.subr.mxu0 0.0
    %5434 = vmatpush1.xpose.msra.mxu0 0.0
    %5435 = vmatprep.subr.mxu0 0.0
    %5436 = vmatpush1.xpose.msra.mxu0 0.0
    %5437 = vmatprep.subr.mxu0 0.0
    %5438 = vmatpush1.xpose.msra.mxu0 0.0
    %5439 = vmatprep.subr.mxu0 0.0
    %5440 = vmatpush1.xpose.msra.mxu0 0.0
    %5441 = vmatprep.subr.mxu0 0.0
    %5442 = vmatpush1.xpose.msra.mxu0 0.0
    %5443 = vmatprep.subr.mxu0 0.0
    %5444 = vmatpush1.xpose.msra.mxu0 0.0
    %5445 = vmatprep.subr.mxu0 0.0
    %5446 = vmatpush1.xpose.msra.mxu0 0.0
    %5447 = vmatprep.subr.mxu0 0.0
    %5448 = vmatpush1.xpose.msra.mxu0 0.0
    %5449 = vmatprep.subr.mxu0 0.0
    %5450 = vmatpush1.xpose.msra.mxu0 0.0
    %5451 = vmatprep.subr.mxu0 0.0
    %5452 = vmatpush1.xpose.msra.mxu0 0.0
    %5453 = vmatprep.subr.mxu0 0.0
    %5454 = vmatpush1.xpose.msra.mxu0 0.0
    %5455 = vmatprep.mubr.f32.mxu0 0.0
    %v5456 = vand.u32 %v5385, 4294901760
    %v5457 = vsub.f32 %v5385, %v5456
    %v5458 = vand.u32 %v5457, 4294901760
    %v5459 = vsub.f32 %v5457, %v5458
    %v5460 = vand.u32 %v5459, 4294901760
    %5461 = vmatmul.mubr.f32.gmra.mrb[0].mxu0 %v5460
    %v5462 = vpop.f32.mrb[0].mxu0
    %v5463 = vadd.f32 0.0, %v5462
    %v5464 = vpop.f32.mrb[0].mxu0
    %5465 = vdwg.mxu0
    %5466 = vmatprep.subr.mxu0 0.0
    %v5467 = vand.u32 %v5388, 4294901760
    %v5468 = vsub.f32 %v5388, %v5467
    %v5469 = vand.u32 %v5468, 4294901760
    %v5470 = vsub.f32 %v5468, %v5469
    %v5471 = vand.u32 %v5470, 4294901760
    %5472 = vmatpush1.xpose.msra.mxu0 %v5471
    %5473 = vmatprep.subr.mxu0 0.0
    %5474 = vmatpush1.xpose.msra.mxu0 0.0
    %5475 = vmatprep.subr.mxu0 0.0
    %5476 = vmatpush1.xpose.msra.mxu0 0.0
    %5477 = vmatprep.subr.mxu0 0.0
    %5478 = vmatpush1.xpose.msra.mxu0 0.0
    %5479 = vmatprep.subr.mxu0 0.0
    %5480 = vmatpush1.xpose.msra.mxu0 0.0
    %5481 = vmatprep.subr.mxu0 0.0
    %5482 = vmatpush1.xpose.msra.mxu0 0.0
    %5483 = vmatprep.subr.mxu0 0.0
    %5484 = vmatpush1.xpose.msra.mxu0 0.0
    %5485 = vmatprep.subr.mxu0 0.0
    %5486 = vmatpush1.xpose.msra.mxu0 0.0
    %5487 = vmatprep.subr.mxu0 0.0
    %5488 = vmatpush1.xpose.msra.mxu0 0.0
    %5489 = vmatprep.subr.mxu0 0.0
    %5490 = vmatpush1.xpose.msra.mxu0 0.0
    %5491 = vmatprep.subr.mxu0 0.0
    %5492 = vmatpush1.xpose.msra.mxu0 0.0
    %5493 = vmatprep.subr.mxu0 0.0
    %5494 = vmatpush1.xpose.msra.mxu0 0.0
    %5495 = vmatprep.subr.mxu0 0.0
    %5496 = vmatpush1.xpose.msra.mxu0 0.0
    %5497 = vmatprep.subr.mxu0 0.0
    %5498 = vmatpush1.xpose.msra.mxu0 0.0
    %5499 = vmatprep.subr.mxu0 0.0
    %5500 = vmatpush1.xpose.msra.mxu0 0.0
    %5501 = vmatprep.subr.mxu0 0.0
    %5502 = vmatpush1.xpose.msra.mxu0 0.0
    %5503 = vmatprep.subr.mxu0 0.0
    %5504 = vmatpush1.xpose.msra.mxu0 0.0
    %5505 = vmatprep.subr.mxu0 0.0
    %5506 = vmatpush1.xpose.msra.mxu0 0.0
    %5507 = vmatprep.subr.mxu0 0.0
    %5508 = vmatpush1.xpose.msra.mxu0 0.0
    %5509 = vmatprep.subr.mxu0 0.0
    %5510 = vmatpush1.xpose.msra.mxu0 0.0
    %5511 = vmatprep.subr.mxu0 0.0
    %5512 = vmatpush1.xpose.msra.mxu0 0.0
    %5513 = vmatprep.subr.mxu0 0.0
    %5514 = vmatpush1.xpose.msra.mxu0 0.0
    %5515 = vmatprep.subr.mxu0 0.0
    %5516 = vmatpush1.xpose.msra.mxu0 0.0
    %5517 = vmatprep.subr.mxu0 0.0
    %5518 = vmatpush1.xpose.msra.mxu0 0.0
    %5519 = vmatprep.subr.mxu0 0.0
    %5520 = vmatpush1.xpose.msra.mxu0 0.0
    %5521 = vmatprep.subr.mxu0 0.0
    %5522 = vmatpush1.xpose.msra.mxu0 0.0
    %5523 = vmatprep.subr.mxu0 0.0
    %5524 = vmatpush1.xpose.msra.mxu0 0.0
    %5525 = vmatprep.subr.mxu0 0.0
    %5526 = vmatpush1.xpose.msra.mxu0 0.0
    %5527 = vmatprep.subr.mxu0 0.0
    %5528 = vmatpush1.xpose.msra.mxu0 0.0
    %5529 = vmatprep.subr.mxu0 0.0
    %5530 = vmatpush1.xpose.msra.mxu0 0.0
    %5531 = vmatprep.subr.mxu0 0.0
    %5532 = vmatpush1.xpose.msra.mxu0 0.0
    %5533 = vmatprep.subr.mxu0 0.0
    %5534 = vmatpush1.xpose.msra.mxu0 0.0
    %5535 = vmatprep.mubr.f32.mxu0 0.0
    %v5536 = vand.u32 %v5385, 4294901760
    %5537 = vmatmul.mubr.f32.gmra.mrb[0].mxu0 %v5536
    %v5538 = vpop.f32.mrb[0].mxu0
    %v5539 = vadd.f32 %v5463, %v5538
    %v5540 = vpop.f32.mrb[0].mxu0
    %5541 = vdwg.mxu0
    %5542 = vmatprep.subr.mxu0 0.0
    %v5543 = vand.u32 %v5388, 4294901760
    %v5544 = vsub.f32 %v5388, %v5543
    %5545 = vmatpush1.xpose.msra.mxu0 %v5544
    %5546 = vmatprep.subr.mxu0 0.0
    %5547 = vmatpush1.xpose.msra.mxu0 0.0
    %5548 = vmatprep.subr.mxu0 0.0
    %5549 = vmatpush1.xpose.msra.mxu0 0.0
    %5550 = vmatprep.subr.mxu0 0.0
    %5551 = vmatpush1.xpose.msra.mxu0 0.0
    %5552 = vmatprep.subr.mxu0 0.0
    %5553 = vmatpush1.xpose.msra.mxu0 0.0
    %5554 = vmatprep.subr.mxu0 0.0
    %5555 = vmatpush1.xpose.msra.mxu0 0.0
    %5556 = vmatprep.subr.mxu0 0.0
    %5557 = vmatpush1.xpose.msra.mxu0 0.0
    %5558 = vmatprep.subr.mxu0 0.0
    %5559 = vmatpush1.xpose.msra.mxu0 0.0
    %5560 = vmatprep.subr.mxu0 0.0
    %5561 = vmatpush1.xpose.msra.mxu0 0.0
    %5562 = vmatprep.subr.mxu0 0.0
    %5563 = vmatpush1.xpose.msra.mxu0 0.0
    %5564 = vmatprep.subr.mxu0 0.0
    %5565 = vmatpush1.xpose.msra.mxu0 0.0
    %5566 = vmatprep.subr.mxu0 0.0
    %5567 = vmatpush1.xpose.msra.mxu0 0.0
    %5568 = vmatprep.subr.mxu0 0.0
    %5569 = vmatpush1.xpose.msra.mxu0 0.0
    %5570 = vmatprep.subr.mxu0 0.0
    %5571 = vmatpush1.xpose.msra.mxu0 0.0
    %5572 = vmatprep.subr.mxu0 0.0
    %5573 = vmatpush1.xpose.msra.mxu0 0.0
    %5574 = vmatprep.subr.mxu0 0.0
    %5575 = vmatpush1.xpose.msra.mxu0 0.0
    %5576 = vmatprep.subr.mxu0 0.0
    %5577 = vmatpush1.xpose.msra.mxu0 0.0
    %5578 = vmatprep.subr.mxu0 0.0
    %5579 = vmatpush1.xpose.msra.mxu0 0.0
    %5580 = vmatprep.subr.mxu0 0.0
    %5581 = vmatpush1.xpose.msra.mxu0 0.0
    %5582 = vmatprep.subr.mxu0 0.0
    %5583 = vmatpush1.xpose.msra.mxu0 0.0
    %5584 = vmatprep.subr.mxu0 0.0
    %5585 = vmatpush1.xpose.msra.mxu0 0.0
    %5586 = vmatprep.subr.mxu0 0.0
    %5587 = vmatpush1.xpose.msra.mxu0 0.0
    %5588 = vmatprep.subr.mxu0 0.0
    %5589 = vmatpush1.xpose.msra.mxu0 0.0
    %5590 = vmatprep.subr.mxu0 0.0
    %5591 = vmatpush1.xpose.msra.mxu0 0.0
    %5592 = vmatprep.subr.mxu0 0.0
    %5593 = vmatpush1.xpose.msra.mxu0 0.0
    %5594 = vmatprep.subr.mxu0 0.0
    %5595 = vmatpush1.xpose.msra.mxu0 0.0
    %5596 = vmatprep.subr.mxu0 0.0
    %5597 = vmatpush1.xpose.msra.mxu0 0.0
    %5598 = vmatprep.subr.mxu0 0.0
    %5599 = vmatpush1.xpose.msra.mxu0 0.0
    %5600 = vmatprep.subr.mxu0 0.0
    %5601 = vmatpush1.xpose.msra.mxu0 0.0
    %5602 = vmatprep.subr.mxu0 0.0
    %5603 = vmatpush1.xpose.msra.mxu0 0.0
    %5604 = vmatprep.subr.mxu0 0.0
    %5605 = vmatpush1.xpose.msra.mxu0 0.0
    %5606 = vmatprep.subr.mxu0 0.0
    %5607 = vmatpush1.xpose.msra.mxu0 0.0
    %5608 = vmatprep.mubr.f32.mxu0 0.0
    %v5609 = vand.u32 %v5385, 4294901760
    %v5610 = vsub.f32 %v5385, %v5609
    %5611 = vmatmul.mubr.f32.gmra.mrb[0].mxu0 %v5610
    %v5612 = vpop.f32.mrb[0].mxu0
    %v5613 = vadd.f32 %v5539, %v5612
    %v5614 = vpop.f32.mrb[0].mxu0
    %5615 = vdwg.mxu0
    %5616 = vmatprep.subr.mxu0 0.0
    %v5617 = vand.u32 %v5388, 4294901760
    %5618 = vmatpush1.xpose.msra.mxu0 %v5617
    %5619 = vmatprep.subr.mxu0 0.0
    %5620 = vmatpush1.xpose.msra.mxu0 0.0
    %5621 = vmatprep.subr.mxu0 0.0
    %5622 = vmatpush1.xpose.msra.mxu0 0.0
    %5623 = vmatprep.subr.mxu0 0.0
    %5624 = vmatpush1.xpose.msra.mxu0 0.0
    %5625 = vmatprep.subr.mxu0 0.0
    %5626 = vmatpush1.xpose.msra.mxu0 0.0
    %5627 = vmatprep.subr.mxu0 0.0
    %5628 = vmatpush1.xpose.msra.mxu0 0.0
    %5629 = vmatprep.subr.mxu0 0.0
    %5630 = vmatpush1.xpose.msra.mxu0 0.0
    %5631 = vmatprep.subr.mxu0 0.0
    %5632 = vmatpush1.xpose.msra.mxu0 0.0
    %5633 = vmatprep.subr.mxu0 0.0
    %5634 = vmatpush1.xpose.msra.mxu0 0.0
    %5635 = vmatprep.subr.mxu0 0.0
    %5636 = vmatpush1.xpose.msra.mxu0 0.0
    %5637 = vmatprep.subr.mxu0 0.0
    %5638 = vmatpush1.xpose.msra.mxu0 0.0
    %5639 = vmatprep.subr.mxu0 0.0
    %5640 = vmatpush1.xpose.msra.mxu0 0.0
    %5641 = vmatprep.subr.mxu0 0.0
    %5642 = vmatpush1.xpose.msra.mxu0 0.0
    %5643 = vmatprep.subr.mxu0 0.0
    %5644 = vmatpush1.xpose.msra.mxu0 0.0
    %5645 = vmatprep.subr.mxu0 0.0
    %5646 = vmatpush1.xpose.msra.mxu0 0.0
    %5647 = vmatprep.subr.mxu0 0.0
    %5648 = vmatpush1.xpose.msra.mxu0 0.0
    %5649 = vmatprep.subr.mxu0 0.0
    %5650 = vmatpush1.xpose.msra.mxu0 0.0
    %5651 = vmatprep.subr.mxu0 0.0
    %5652 = vmatpush1.xpose.msra.mxu0 0.0
    %5653 = vmatprep.subr.mxu0 0.0
    %5654 = vmatpush1.xpose.msra.mxu0 0.0
    %5655 = vmatprep.subr.mxu0 0.0
    %5656 = vmatpush1.xpose.msra.mxu0 0.0
    %5657 = vmatprep.subr.mxu0 0.0
    %5658 = vmatpush1.xpose.msra.mxu0 0.0
    %5659 = vmatprep.subr.mxu0 0.0
    %5660 = vmatpush1.xpose.msra.mxu0 0.0
    %5661 = vmatprep.subr.mxu0 0.0
    %5662 = vmatpush1.xpose.msra.mxu0 0.0
    %5663 = vmatprep.subr.mxu0 0.0
    %5664 = vmatpush1.xpose.msra.mxu0 0.0
    %5665 = vmatprep.subr.mxu0 0.0
    %5666 = vmatpush1.xpose.msra.mxu0 0.0
    %5667 = vmatprep.subr.mxu0 0.0
    %5668 = vmatpush1.xpose.msra.mxu0 0.0
    %5669 = vmatprep.subr.mxu0 0.0
    %5670 = vmatpush1.xpose.msra.mxu0 0.0
    %5671 = vmatprep.subr.mxu0 0.0
    %5672 = vmatpush1.xpose.msra.mxu0 0.0
    %5673 = vmatprep.subr.mxu0 0.0
    %5674 = vmatpush1.xpose.msra.mxu0 0.0
    %5675 = vmatprep.subr.mxu0 0.0
    %5676 = vmatpush1.xpose.msra.mxu0 0.0
    %5677 = vmatprep.subr.mxu0 0.0
    %5678 = vmatpush1.xpose.msra.mxu0 0.0
    %5679 = vmatprep.subr.mxu0 0.0
    %5680 = vmatpush1.xpose.msra.mxu0 0.0
    %5681 = vmatprep.mubr.f32.mxu0 0.0
    %v5682 = vand.u32 %v5385, 4294901760
    %v5683 = vsub.f32 %v5385, %v5682
    %v5684 = vand.u32 %v5683, 4294901760
    %5685 = vmatmul.mubr.f32.gmra.mrb[0].mxu0 %v5684
    %v5686 = vpop.f32.mrb[0].mxu0
    %v5687 = vadd.f32 %v5613, %v5686
    %v5688 = vpop.f32.mrb[0].mxu0
    %5689 = vdwg.mxu0
    %5690 = vmatprep.subr.mxu0 0.0
    %v5691 = vand.u32 %v5388, 4294901760
    %v5692 = vsub.f32 %v5388, %v5691
    %v5693 = vand.u32 %v5692, 4294901760
    %5694 = vmatpush1.xpose.msra.mxu0 %v5693
    %5695 = vmatprep.subr.mxu0 0.0
    %5696 = vmatpush1.xpose.msra.mxu0 0.0
    %5697 = vmatprep.subr.mxu0 0.0
    %5698 = vmatpush1.xpose.msra.mxu0 0.0
    %5699 = vmatprep.subr.mxu0 0.0
    %5700 = vmatpush1.xpose.msra.mxu0 0.0
    %5701 = vmatprep.subr.mxu0 0.0
    %5702 = vmatpush1.xpose.msra.mxu0 0.0
    %5703 = vmatprep.subr.mxu0 0.0
    %5704 = vmatpush1.xpose.msra.mxu0 0.0
    %5705 = vmatprep.subr.mxu0 0.0
    %5706 = vmatpush1.xpose.msra.mxu0 0.0
    %5707 = vmatprep.subr.mxu0 0.0
    %5708 = vmatpush1.xpose.msra.mxu0 0.0
    %5709 = vmatprep.subr.mxu0 0.0
    %5710 = vmatpush1.xpose.msra.mxu0 0.0
    %5711 = vmatprep.subr.mxu0 0.0
    %5712 = vmatpush1.xpose.msra.mxu0 0.0
    %5713 = vmatprep.subr.mxu0 0.0
    %5714 = vmatpush1.xpose.msra.mxu0 0.0
    %5715 = vmatprep.subr.mxu0 0.0
    %5716 = vmatpush1.xpose.msra.mxu0 0.0
    %5717 = vmatprep.subr.mxu0 0.0
    %5718 = vmatpush1.xpose.msra.mxu0 0.0
    %5719 = vmatprep.subr.mxu0 0.0
    %5720 = vmatpush1.xpose.msra.mxu0 0.0
    %5721 = vmatprep.subr.mxu0 0.0
    %5722 = vmatpush1.xpose.msra.mxu0 0.0
    %5723 = vmatprep.subr.mxu0 0.0
    %5724 = vmatpush1.xpose.msra.mxu0 0.0
    %5725 = vmatprep.subr.mxu0 0.0
    %5726 = vmatpush1.xpose.msra.mxu0 0.0
    %5727 = vmatprep.subr.mxu0 0.0
    %5728 = vmatpush1.xpose.msra.mxu0 0.0
    %5729 = vmatprep.subr.mxu0 0.0
    %5730 = vmatpush1.xpose.msra.mxu0 0.0
    %5731 = vmatprep.subr.mxu0 0.0
    %5732 = vmatpush1.xpose.msra.mxu0 0.0
    %5733 = vmatprep.subr.mxu0 0.0
    %5734 = vmatpush1.xpose.msra.mxu0 0.0
    %5735 = vmatprep.subr.mxu0 0.0
    %5736 = vmatpush1.xpose.msra.mxu0 0.0
    %5737 = vmatprep.subr.mxu0 0.0
    %5738 = vmatpush1.xpose.msra.mxu0 0.0
    %5739 = vmatprep.subr.mxu0 0.0
    %5740 = vmatpush1.xpose.msra.mxu0 0.0
    %5741 = vmatprep.subr.mxu0 0.0
    %5742 = vmatpush1.xpose.msra.mxu0 0.0
    %5743 = vmatprep.subr.mxu0 0.0
    %5744 = vmatpush1.xpose.msra.mxu0 0.0
    %5745 = vmatprep.subr.mxu0 0.0
    %5746 = vmatpush1.xpose.msra.mxu0 0.0
    %5747 = vmatprep.subr.mxu0 0.0
    %5748 = vmatpush1.xpose.msra.mxu0 0.0
    %5749 = vmatprep.subr.mxu0 0.0
    %5750 = vmatpush1.xpose.msra.mxu0 0.0
    %5751 = vmatprep.subr.mxu0 0.0
    %5752 = vmatpush1.xpose.msra.mxu0 0.0
    %5753 = vmatprep.subr.mxu0 0.0
    %5754 = vmatpush1.xpose.msra.mxu0 0.0
    %5755 = vmatprep.subr.mxu0 0.0
    %5756 = vmatpush1.xpose.msra.mxu0 0.0
    %5757 = vmatprep.mubr.f32.mxu0 0.0
    %v5758 = vand.u32 %v5385, 4294901760
    %5759 = vmatmul.mubr.f32.gmra.mrb[0].mxu0 %v5758
    %v5760 = vpop.f32.mrb[0].mxu0
    %v5761 = vadd.f32 %v5687, %v5760
    %v5762 = vpop.f32.mrb[0].mxu0
    %5763 = vdwg.mxu0
    %5764 = vmatprep.subr.mxu0 0.0
    %v5765 = vand.u32 %v5388, 4294901760
    %5766 = vmatpush1.xpose.msra.mxu0 %v5765
    %5767 = vmatprep.subr.mxu0 0.0
    %5768 = vmatpush1.xpose.msra.mxu0 0.0
    %5769 = vmatprep.subr.mxu0 0.0
    %5770 = vmatpush1.xpose.msra.mxu0 0.0
    %5771 = vmatprep.subr.mxu0 0.0
    %5772 = vmatpush1.xpose.msra.mxu0 0.0
    %5773 = vmatprep.subr.mxu0 0.0
    %5774 = vmatpush1.xpose.msra.mxu0 0.0
    %5775 = vmatprep.subr.mxu0 0.0
    %5776 = vmatpush1.xpose.msra.mxu0 0.0
    %5777 = vmatprep.subr.mxu0 0.0
    %5778 = vmatpush1.xpose.msra.mxu0 0.0
    %5779 = vmatprep.subr.mxu0 0.0
    %5780 = vmatpush1.xpose.msra.mxu0 0.0
    %5781 = vmatprep.subr.mxu0 0.0
    %5782 = vmatpush1.xpose.msra.mxu0 0.0
    %5783 = vmatprep.subr.mxu0 0.0
    %5784 = vmatpush1.xpose.msra.mxu0 0.0
    %5785 = vmatprep.subr.mxu0 0.0
    %5786 = vmatpush1.xpose.msra.mxu0 0.0
    %5787 = vmatprep.subr.mxu0 0.0
    %5788 = vmatpush1.xpose.msra.mxu0 0.0
    %5789 = vmatprep.subr.mxu0 0.0
    %5790 = vmatpush1.xpose.msra.mxu0 0.0
    %5791 = vmatprep.subr.mxu0 0.0
    %5792 = vmatpush1.xpose.msra.mxu0 0.0
    %5793 = vmatprep.subr.mxu0 0.0
    %5794 = vmatpush1.xpose.msra.mxu0 0.0
    %5795 = vmatprep.subr.mxu0 0.0
    %5796 = vmatpush1.xpose.msra.mxu0 0.0
    %5797 = vmatprep.subr.mxu0 0.0
    %5798 = vmatpush1.xpose.msra.mxu0 0.0
    %5799 = vmatprep.subr.mxu0 0.0
    %5800 = vmatpush1.xpose.msra.mxu0 0.0
    %5801 = vmatprep.subr.mxu0 0.0
    %5802 = vmatpush1.xpose.msra.mxu0 0.0
    %5803 = vmatprep.subr.mxu0 0.0
    %5804 = vmatpush1.xpose.msra.mxu0 0.0
    %5805 = vmatprep.subr.mxu0 0.0
    %5806 = vmatpush1.xpose.msra.mxu0 0.0
    %5807 = vmatprep.subr.mxu0 0.0
    %5808 = vmatpush1.xpose.msra.mxu0 0.0
    %5809 = vmatprep.subr.mxu0 0.0
    %5810 = vmatpush1.xpose.msra.mxu0 0.0
    %5811 = vmatprep.subr.mxu0 0.0
    %5812 = vmatpush1.xpose.msra.mxu0 0.0
    %5813 = vmatprep.subr.mxu0 0.0
    %5814 = vmatpush1.xpose.msra.mxu0 0.0
    %5815 = vmatprep.subr.mxu0 0.0
    %5816 = vmatpush1.xpose.msra.mxu0 0.0
    %5817 = vmatprep.subr.mxu0 0.0
    %5818 = vmatpush1.xpose.msra.mxu0 0.0
    %5819 = vmatprep.subr.mxu0 0.0
    %5820 = vmatpush1.xpose.msra.mxu0 0.0
    %5821 = vmatprep.subr.mxu0 0.0
    %5822 = vmatpush1.xpose.msra.mxu0 0.0
    %5823 = vmatprep.subr.mxu0 0.0
    %5824 = vmatpush1.xpose.msra.mxu0 0.0
    %5825 = vmatprep.subr.mxu0 0.0
    %5826 = vmatpush1.xpose.msra.mxu0 0.0
    %5827 = vmatprep.subr.mxu0 0.0
    %5828 = vmatpush1.xpose.msra.mxu0 0.0
    %5829 = vmatprep.mubr.f32.mxu0 0.0
    %v5830 = vand.u32 %v5385, 4294901760
    %5831 = vmatmul.mubr.f32.gmra.mrb[0].mxu0 %v5830
    %v5832 = vpop.f32.mrb[0].mxu0
    %v5833 = vadd.f32 %v5761, %v5832
    %v5834 = vpop.f32.mrb[0].mxu0
    %5835 = vdwg.mxu0
    %v5836 = vsel %vm1700, %v5833, -inf
    %5837 = vmax.xlane.f32.xlu0 %v5836
    %v5838 = vpop.xlane.xlu0 %5837
    %v5839 = vsub.f32 %v5833, %v5838
    %v5840 = vmul.f32 %v5839, 1.442695
    %v5841 = vpow.pop %v5840
    %v5842 = vsel %vm1700, %v5841, 0.0
    %5843 = vadd.xlane.f32.xlu0 %v5842
    %v5844 = vpop.xlane.xlu0 %5843
    %v5845 = vrcp.pop %v5844
    %v5846 = vmul.f32 %v5841, %v5845
    %v5848 = vsel %vm1700, %v5846, 0
    %5850 = vmatprep.subr.mxu0 0.0
    %v5851 = vand.u32 %v1697, 4294901760
    %5852 = vmatpush1.msra.mxu0 %v5851
    %5853 = vmatprep.subr.mxu0 0.0
    %5854 = vmatpush1.msra.mxu0 0.0
    %5855 = vmatprep.subr.mxu0 0.0
    %5856 = vmatpush1.msra.mxu0 0.0
    %5857 = vmatprep.subr.mxu0 0.0
    %5858 = vmatpush1.msra.mxu0 0.0
    %5859 = vmatprep.subr.mxu0 0.0
    %5860 = vmatpush1.msra.mxu0 0.0
    %5861 = vmatprep.subr.mxu0 0.0
    %5862 = vmatpush1.msra.mxu0 0.0
    %5863 = vmatprep.subr.mxu0 0.0
    %5864 = vmatpush1.msra.mxu0 0.0
    %5865 = vmatprep.subr.mxu0 0.0
    %5866 = vmatpush1.msra.mxu0 0.0
    %5867 = vmatprep.subr.mxu0 0.0
    %5868 = vmatpush1.msra.mxu0 0.0
    %5869 = vmatprep.subr.mxu0 0.0
    %5870 = vmatpush1.msra.mxu0 0.0
    %5871 = vmatprep.subr.mxu0 0.0
    %5872 = vmatpush1.msra.mxu0 0.0
    %5873 = vmatprep.subr.mxu0 0.0
    %5874 = vmatpush1.msra.mxu0 0.0
    %5875 = vmatprep.subr.mxu0 0.0
    %5876 = vmatpush1.msra.mxu0 0.0
    %5877 = vmatprep.subr.mxu0 0.0
    %5878 = vmatpush1.msra.mxu0 0.0
    %5879 = vmatprep.subr.mxu0 0.0
    %5880 = vmatpush1.msra.mxu0 0.0
    %5881 = vmatprep.subr.mxu0 0.0
    %5882 = vmatpush1.msra.mxu0 0.0
    %5883 = vmatprep.subr.mxu0 0.0
    %5884 = vmatpush1.msra.mxu0 0.0
    %5885 = vmatprep.subr.mxu0 0.0
    %5886 = vmatpush1.msra.mxu0 0.0
    %5887 = vmatprep.subr.mxu0 0.0
    %5888 = vmatpush1.msra.mxu0 0.0
    %5889 = vmatprep.subr.mxu0 0.0
    %5890 = vmatpush1.msra.mxu0 0.0
    %5891 = vmatprep.subr.mxu0 0.0
    %5892 = vmatpush1.msra.mxu0 0.0
    %5893 = vmatprep.subr.mxu0 0.0
    %5894 = vmatpush1.msra.mxu0 0.0
    %5895 = vmatprep.subr.mxu0 0.0
    %5896 = vmatpush1.msra.mxu0 0.0
    %5897 = vmatprep.subr.mxu0 0.0
    %5898 = vmatpush1.msra.mxu0 0.0
    %5899 = vmatprep.subr.mxu0 0.0
    %5900 = vmatpush1.msra.mxu0 0.0
    %5901 = vmatprep.subr.mxu0 0.0
    %5902 = vmatpush1.msra.mxu0 0.0
    %5903 = vmatprep.subr.mxu0 0.0
    %5904 = vmatpush1.msra.mxu0 0.0
    %5905 = vmatprep.subr.mxu0 0.0
    %5906 = vmatpush1.msra.mxu0 0.0
    %5907 = vmatprep.subr.mxu0 0.0
    %5908 = vmatpush1.msra.mxu0 0.0
    %5909 = vmatprep.subr.mxu0 0.0
    %5910 = vmatpush1.msra.mxu0 0.0
    %5911 = vmatprep.subr.mxu0 0.0
    %5912 = vmatpush1.msra.mxu0 0.0
    %5913 = vmatprep.subr.mxu0 0.0
    %5914 = vmatpush1.msra.mxu0 0.0
    %5915 = vmatprep.mubr.f32.mxu0 0.0
    %v5916 = vand.u32 %v5848, 4294901760
    %v5917 = vsub.f32 %v5848, %v5916
    %v5918 = vand.u32 %v5917, 4294901760
    %v5919 = vsub.f32 %v5917, %v5918
    %v5920 = vand.u32 %v5919, 4294901760
    %5921 = vmatmul.mubr.f32.gmra.mrb[0].mxu0 %v5920
    %v5922 = vpop.f32.mrb[0].mxu0
    %v5923 = vadd.f32 0.0, %v5922
    %v5924 = vpop.f32.mrb[0].mxu0
    %5925 = vdwg.mxu0
    %5926 = vmatprep.subr.mxu0 0.0
    %v5927 = vand.u32 %v1697, 4294901760
    %v5928 = vsub.f32 %v1697, %v5927
    %v5929 = vand.u32 %v5928, 4294901760
    %v5930 = vsub.f32 %v5928, %v5929
    %v5931 = vand.u32 %v5930, 4294901760
    %5932 = vmatpush1.msra.mxu0 %v5931
    %5933 = vmatprep.subr.mxu0 0.0
    %5934 = vmatpush1.msra.mxu0 0.0
    %5935 = vmatprep.subr.mxu0 0.0
    %5936 = vmatpush1.msra.mxu0 0.0
    %5937 = vmatprep.subr.mxu0 0.0
    %5938 = vmatpush1.msra.mxu0 0.0
    %5939 = vmatprep.subr.mxu0 0.0
    %5940 = vmatpush1.msra.mxu0 0.0
    %5941 = vmatprep.subr.mxu0 0.0
    %5942 = vmatpush1.msra.mxu0 0.0
    %5943 = vmatprep.subr.mxu0 0.0
    %5944 = vmatpush1.msra.mxu0 0.0
    %5945 = vmatprep.subr.mxu0 0.0
    %5946 = vmatpush1.msra.mxu0 0.0
    %5947 = vmatprep.subr.mxu0 0.0
    %5948 = vmatpush1.msra.mxu0 0.0
    %5949 = vmatprep.subr.mxu0 0.0
    %5950 = vmatpush1.msra.mxu0 0.0
    %5951 = vmatprep.subr.mxu0 0.0
    %5952 = vmatpush1.msra.mxu0 0.0
    %5953 = vmatprep.subr.mxu0 0.0
    %5954 = vmatpush1.msra.mxu0 0.0
    %5955 = vmatprep.subr.mxu0 0.0
    %5956 = vmatpush1.msra.mxu0 0.0
    %5957 = vmatprep.subr.mxu0 0.0
    %5958 = vmatpush1.msra.mxu0 0.0
    %5959 = vmatprep.subr.mxu0 0.0
    %5960 = vmatpush1.msra.mxu0 0.0
    %5961 = vmatprep.subr.mxu0 0.0
    %5962 = vmatpush1.msra.mxu0 0.0
    %5963 = vmatprep.subr.mxu0 0.0
    %5964 = vmatpush1.msra.mxu0 0.0
    %5965 = vmatprep.subr.mxu0 0.0
    %5966 = vmatpush1.msra.mxu0 0.0
    %5967 = vmatprep.subr.mxu0 0.0
    %5968 = vmatpush1.msra.mxu0 0.0
    %5969 = vmatprep.subr.mxu0 0.0
    %5970 = vmatpush1.msra.mxu0 0.0
    %5971 = vmatprep.subr.mxu0 0.0
    %5972 = vmatpush1.msra.mxu0 0.0
    %5973 = vmatprep.subr.mxu0 0.0
    %5974 = vmatpush1.msra.mxu0 0.0
    %5975 = vmatprep.subr.mxu0 0.0
    %5976 = vmatpush1.msra.mxu0 0.0
    %5977 = vmatprep.subr.mxu0 0.0
    %5978 = vmatpush1.msra.mxu0 0.0
    %5979 = vmatprep.subr.mxu0 0.0
    %5980 = vmatpush1.msra.mxu0 0.0
    %5981 = vmatprep.subr.mxu0 0.0
    %5982 = vmatpush1.msra.mxu0 0.0
    %5983 = vmatprep.subr.mxu0 0.0
    %5984 = vmatpush1.msra.mxu0 0.0
    %5985 = vmatprep.subr.mxu0 0.0
    %5986 = vmatpush1.msra.mxu0 0.0
    %5987 = vmatprep.subr.mxu0 0.0
    %5988 = vmatpush1.msra.mxu0 0.0
    %5989 = vmatprep.subr.mxu0 0.0
    %5990 = vmatpush1.msra.mxu0 0.0
    %5991 = vmatprep.subr.mxu0 0.0
    %5992 = vmatpush1.msra.mxu0 0.0
    %5993 = vmatprep.subr.mxu0 0.0
    %5994 = vmatpush1.msra.mxu0 0.0
    %5995 = vmatprep.mubr.f32.mxu0 0.0
    %v5996 = vand.u32 %v5848, 4294901760
    %5997 = vmatmul.mubr.f32.gmra.mrb[0].mxu0 %v5996
    %v5998 = vpop.f32.mrb[0].mxu0
    %v5999 = vadd.f32 %v5923, %v5998
    %v6000 = vpop.f32.mrb[0].mxu0
    %6001 = vdwg.mxu0
    %6002 = vmatprep.subr.mxu0 0.0
    %v6003 = vand.u32 %v1697, 4294901760
    %v6004 = vsub.f32 %v1697, %v6003
    %6005 = vmatpush1.msra.mxu0 %v6004
    %6006 = vmatprep.subr.mxu0 0.0
    %6007 = vmatpush1.msra.mxu0 0.0
    %6008 = vmatprep.subr.mxu0 0.0
    %6009 = vmatpush1.msra.mxu0 0.0
    %6010 = vmatprep.subr.mxu0 0.0
    %6011 = vmatpush1.msra.mxu0 0.0
    %6012 = vmatprep.subr.mxu0 0.0
    %6013 = vmatpush1.msra.mxu0 0.0
    %6014 = vmatprep.subr.mxu0 0.0
    %6015 = vmatpush1.msra.mxu0 0.0
    %6016 = vmatprep.subr.mxu0 0.0
    %6017 = vmatpush1.msra.mxu0 0.0
    %6018 = vmatprep.subr.mxu0 0.0
    %6019 = vmatpush1.msra.mxu0 0.0
    %6020 = vmatprep.subr.mxu0 0.0
    %6021 = vmatpush1.msra.mxu0 0.0
    %6022 = vmatprep.subr.mxu0 0.0
    %6023 = vmatpush1.msra.mxu0 0.0
    %6024 = vmatprep.subr.mxu0 0.0
    %6025 = vmatpush1.msra.mxu0 0.0
    %6026 = vmatprep.subr.mxu0 0.0
    %6027 = vmatpush1.msra.mxu0 0.0
    %6028 = vmatprep.subr.mxu0 0.0
    %6029 = vmatpush1.msra.mxu0 0.0
    %6030 = vmatprep.subr.mxu0 0.0
    %6031 = vmatpush1.msra.mxu0 0.0
    %6032 = vmatprep.subr.mxu0 0.0
    %6033 = vmatpush1.msra.mxu0 0.0
    %6034 = vmatprep.subr.mxu0 0.0
    %6035 = vmatpush1.msra.mxu0 0.0
    %6036 = vmatprep.subr.mxu0 0.0
    %6037 = vmatpush1.msra.mxu0 0.0
    %6038 = vmatprep.subr.mxu0 0.0
    %6039 = vmatpush1.msra.mxu0 0.0
    %6040 = vmatprep.subr.mxu0 0.0
    %6041 = vmatpush1.msra.mxu0 0.0
    %6042 = vmatprep.subr.mxu0 0.0
    %6043 = vmatpush1.msra.mxu0 0.0
    %6044 = vmatprep.subr.mxu0 0.0
    %6045 = vmatpush1.msra.mxu0 0.0
    %6046 = vmatprep.subr.mxu0 0.0
    %6047 = vmatpush1.msra.mxu0 0.0
    %6048 = vmatprep.subr.mxu0 0.0
    %6049 = vmatpush1.msra.mxu0 0.0
    %6050 = vmatprep.subr.mxu0 0.0
    %6051 = vmatpush1.msra.mxu0 0.0
    %6052 = vmatprep.subr.mxu0 0.0
    %6053 = vmatpush1.msra.mxu0 0.0
    %6054 = vmatprep.subr.mxu0 0.0
    %6055 = vmatpush1.msra.mxu0 0.0
    %6056 = vmatprep.subr.mxu0 0.0
    %6057 = vmatpush1.msra.mxu0 0.0
    %6058 = vmatprep.subr.mxu0 0.0
    %6059 = vmatpush1.msra.mxu0 0.0
    %6060 = vmatprep.subr.mxu0 0.0
    %6061 = vmatpush1.msra.mxu0 0.0
    %6062 = vmatprep.subr.mxu0 0.0
    %6063 = vmatpush1.msra.mxu0 0.0
    %6064 = vmatprep.subr.mxu0 0.0
    %6065 = vmatpush1.msra.mxu0 0.0
    %6066 = vmatprep.subr.mxu0 0.0
    %6067 = vmatpush1.msra.mxu0 0.0
    %6068 = vmatprep.mubr.f32.mxu0 0.0
    %v6069 = vand.u32 %v5848, 4294901760
    %v6070 = vsub.f32 %v5848, %v6069
    %6071 = vmatmul.mubr.f32.gmra.mrb[0].mxu0 %v6070
    %v6072 = vpop.f32.mrb[0].mxu0
    %v6073 = vadd.f32 %v5999, %v6072
    %v6074 = vpop.f32.mrb[0].mxu0
    %6075 = vdwg.mxu0
    %6076 = vmatprep.subr.mxu0 0.0
    %v6077 = vand.u32 %v1697, 4294901760
    %6078 = vmatpush1.msra.mxu0 %v6077
    %6079 = vmatprep.subr.mxu0 0.0
    %6080 = vmatpush1.msra.mxu0 0.0
    %6081 = vmatprep.subr.mxu0 0.0
    %6082 = vmatpush1.msra.mxu0 0.0
    %6083 = vmatprep.subr.mxu0 0.0
    %6084 = vmatpush1.msra.mxu0 0.0
    %6085 = vmatprep.subr.mxu0 0.0
    %6086 = vmatpush1.msra.mxu0 0.0
    %6087 = vmatprep.subr.mxu0 0.0
    %6088 = vmatpush1.msra.mxu0 0.0
    %6089 = vmatprep.subr.mxu0 0.0
    %6090 = vmatpush1.msra.mxu0 0.0
    %6091 = vmatprep.subr.mxu0 0.0
    %6092 = vmatpush1.msra.mxu0 0.0
    %6093 = vmatprep.subr.mxu0 0.0
    %6094 = vmatpush1.msra.mxu0 0.0
    %6095 = vmatprep.subr.mxu0 0.0
    %6096 = vmatpush1.msra.mxu0 0.0
    %6097 = vmatprep.subr.mxu0 0.0
    %6098 = vmatpush1.msra.mxu0 0.0
    %6099 = vmatprep.subr.mxu0 0.0
    %6100 = vmatpush1.msra.mxu0 0.0
    %6101 = vmatprep.subr.mxu0 0.0
    %6102 = vmatpush1.msra.mxu0 0.0
    %6103 = vmatprep.subr.mxu0 0.0
    %6104 = vmatpush1.msra.mxu0 0.0
    %6105 = vmatprep.subr.mxu0 0.0
    %6106 = vmatpush1.msra.mxu0 0.0
    %6107 = vmatprep.subr.mxu0 0.0
    %6108 = vmatpush1.msra.mxu0 0.0
    %6109 = vmatprep.subr.mxu0 0.0
    %6110 = vmatpush1.msra.mxu0 0.0
    %6111 = vmatprep.subr.mxu0 0.0
    %6112 = vmatpush1.msra.mxu0 0.0
    %6113 = vmatprep.subr.mxu0 0.0
    %6114 = vmatpush1.msra.mxu0 0.0
    %6115 = vmatprep.subr.mxu0 0.0
    %6116 = vmatpush1.msra.mxu0 0.0
    %6117 = vmatprep.subr.mxu0 0.0
    %6118 = vmatpush1.msra.mxu0 0.0
    %6119 = vmatprep.subr.mxu0 0.0
    %6120 = vmatpush1.msra.mxu0 0.0
    %6121 = vmatprep.subr.mxu0 0.0
    %6122 = vmatpush1.msra.mxu0 0.0
    %6123 = vmatprep.subr.mxu0 0.0
    %6124 = vmatpush1.msra.mxu0 0.0
    %6125 = vmatprep.subr.mxu0 0.0
    %6126 = vmatpush1.msra.mxu0 0.0
    %6127 = vmatprep.subr.mxu0 0.0
    %6128 = vmatpush1.msra.mxu0 0.0
    %6129 = vmatprep.subr.mxu0 0.0
    %6130 = vmatpush1.msra.mxu0 0.0
    %6131 = vmatprep.subr.mxu0 0.0
    %6132 = vmatpush1.msra.mxu0 0.0
    %6133 = vmatprep.subr.mxu0 0.0
    %6134 = vmatpush1.msra.mxu0 0.0
    %6135 = vmatprep.subr.mxu0 0.0
    %6136 = vmatpush1.msra.mxu0 0.0
    %6137 = vmatprep.subr.mxu0 0.0
    %6138 = vmatpush1.msra.mxu0 0.0
    %6139 = vmatprep.subr.mxu0 0.0
    %6140 = vmatpush1.msra.mxu0 0.0
    %6141 = vmatprep.mubr.f32.mxu0 0.0
    %v6142 = vand.u32 %v5848, 4294901760
    %v6143 = vsub.f32 %v5848, %v6142
    %v6144 = vand.u32 %v6143, 4294901760
    %6145 = vmatmul.mubr.f32.gmra.mrb[0].mxu0 %v6144
    %v6146 = vpop.f32.mrb[0].mxu0
    %v6147 = vadd.f32 %v6073, %v6146
    %v6148 = vpop.f32.mrb[0].mxu0
    %6149 = vdwg.mxu0
    %6150 = vmatprep.subr.mxu0 0.0
    %v6151 = vand.u32 %v1697, 4294901760
    %v6152 = vsub.f32 %v1697, %v6151
    %v6153 = vand.u32 %v6152, 4294901760
    %6154 = vmatpush1.msra.mxu0 %v6153
    %6155 = vmatprep.subr.mxu0 0.0
    %6156 = vmatpush1.msra.mxu0 0.0
    %6157 = vmatprep.subr.mxu0 0.0
    %6158 = vmatpush1.msra.mxu0 0.0
    %6159 = vmatprep.subr.mxu0 0.0
    %6160 = vmatpush1.msra.mxu0 0.0
    %6161 = vmatprep.subr.mxu0 0.0
    %6162 = vmatpush1.msra.mxu0 0.0
    %6163 = vmatprep.subr.mxu0 0.0
    %6164 = vmatpush1.msra.mxu0 0.0
    %6165 = vmatprep.subr.mxu0 0.0
    %6166 = vmatpush1.msra.mxu0 0.0
    %6167 = vmatprep.subr.mxu0 0.0
    %6168 = vmatpush1.msra.mxu0 0.0
    %6169 = vmatprep.subr.mxu0 0.0
    %6170 = vmatpush1.msra.mxu0 0.0
    %6171 = vmatprep.subr.mxu0 0.0
    %6172 = vmatpush1.msra.mxu0 0.0
    %6173 = vmatprep.subr.mxu0 0.0
    %6174 = vmatpush1.msra.mxu0 0.0
    %6175 = vmatprep.subr.mxu0 0.0
    %6176 = vmatpush1.msra.mxu0 0.0
    %6177 = vmatprep.subr.mxu0 0.0
    %6178 = vmatpush1.msra.mxu0 0.0
    %6179 = vmatprep.subr.mxu0 0.0
    %6180 = vmatpush1.msra.mxu0 0.0
    %6181 = vmatprep.subr.mxu0 0.0
    %6182 = vmatpush1.msra.mxu0 0.0
    %6183 = vmatprep.subr.mxu0 0.0
    %6184 = vmatpush1.msra.mxu0 0.0
    %6185 = vmatprep.subr.mxu0 0.0
    %6186 = vmatpush1.msra.mxu0 0.0
    %6187 = vmatprep.subr.mxu0 0.0
    %6188 = vmatpush1.msra.mxu0 0.0
    %6189 = vmatprep.subr.mxu0 0.0
    %6190 = vmatpush1.msra.mxu0 0.0
    %6191 = vmatprep.subr.mxu0 0.0
    %6192 = vmatpush1.msra.mxu0 0.0
    %6193 = vmatprep.subr.mxu0 0.0
    %6194 = vmatpush1.msra.mxu0 0.0
    %6195 = vmatprep.subr.mxu0 0.0
    %6196 = vmatpush1.msra.mxu0 0.0
    %6197 = vmatprep.subr.mxu0 0.0
    %6198 = vmatpush1.msra.mxu0 0.0
    %6199 = vmatprep.subr.mxu0 0.0
    %6200 = vmatpush1.msra.mxu0 0.0
    %6201 = vmatprep.subr.mxu0 0.0
    %6202 = vmatpush1.msra.mxu0 0.0
    %6203 = vmatprep.subr.mxu0 0.0
    %6204 = vmatpush1.msra.mxu0 0.0
    %6205 = vmatprep.subr.mxu0 0.0
    %6206 = vmatpush1.msra.mxu0 0.0
    %6207 = vmatprep.subr.mxu0 0.0
    %6208 = vmatpush1.msra.mxu0 0.0
    %6209 = vmatprep.subr.mxu0 0.0
    %6210 = vmatpush1.msra.mxu0 0.0
    %6211 = vmatprep.subr.mxu0 0.0
    %6212 = vmatpush1.msra.mxu0 0.0
    %6213 = vmatprep.subr.mxu0 0.0
    %6214 = vmatpush1.msra.mxu0 0.0
    %6215 = vmatprep.subr.mxu0 0.0
    %6216 = vmatpush1.msra.mxu0 0.0
    %6217 = vmatprep.mubr.f32.mxu0 0.0
    %v6218 = vand.u32 %v5848, 4294901760
    %6219 = vmatmul.mubr.f32.gmra.mrb[0].mxu0 %v6218
    %v6220 = vpop.f32.mrb[0].mxu0
    %v6221 = vadd.f32 %v6147, %v6220
    %v6222 = vpop.f32.mrb[0].mxu0
    %6223 = vdwg.mxu0
    %6224 = vmatprep.subr.mxu0 0.0
    %v6225 = vand.u32 %v1697, 4294901760
    %6226 = vmatpush1.msra.mxu0 %v6225
    %6227 = vmatprep.subr.mxu0 0.0
    %6228 = vmatpush1.msra.mxu0 0.0
    %6229 = vmatprep.subr.mxu0 0.0
    %6230 = vmatpush1.msra.mxu0 0.0
    %6231 = vmatprep.subr.mxu0 0.0
    %6232 = vmatpush1.msra.mxu0 0.0
    %6233 = vmatprep.subr.mxu0 0.0
    %6234 = vmatpush1.msra.mxu0 0.0
    %6235 = vmatprep.subr.mxu0 0.0
    %6236 = vmatpush1.msra.mxu0 0.0
    %6237 = vmatprep.subr.mxu0 0.0
    %6238 = vmatpush1.msra.mxu0 0.0
    %6239 = vmatprep.subr.mxu0 0.0
    %6240 = vmatpush1.msra.mxu0 0.0
    %6241 = vmatprep.subr.mxu0 0.0
    %6242 = vmatpush1.msra.mxu0 0.0
    %6243 = vmatprep.subr.mxu0 0.0
    %6244 = vmatpush1.msra.mxu0 0.0
    %6245 = vmatprep.subr.mxu0 0.0
    %6246 = vmatpush1.msra.mxu0 0.0
    %6247 = vmatprep.subr.mxu0 0.0
    %6248 = vmatpush1.msra.mxu0 0.0
    %6249 = vmatprep.subr.mxu0 0.0
    %6250 = vmatpush1.msra.mxu0 0.0
    %6251 = vmatprep.subr.mxu0 0.0
    %6252 = vmatpush1.msra.mxu0 0.0
    %6253 = vmatprep.subr.mxu0 0.0
    %6254 = vmatpush1.msra.mxu0 0.0
    %6255 = vmatprep.subr.mxu0 0.0
    %6256 = vmatpush1.msra.mxu0 0.0
    %6257 = vmatprep.subr.mxu0 0.0
    %6258 = vmatpush1.msra.mxu0 0.0
    %6259 = vmatprep.subr.mxu0 0.0
    %6260 = vmatpush1.msra.mxu0 0.0
    %6261 = vmatprep.subr.mxu0 0.0
    %6262 = vmatpush1.msra.mxu0 0.0
    %6263 = vmatprep.subr.mxu0 0.0
    %6264 = vmatpush1.msra.mxu0 0.0
    %6265 = vmatprep.subr.mxu0 0.0
    %6266 = vmatpush1.msra.mxu0 0.0
    %6267 = vmatprep.subr.mxu0 0.0
    %6268 = vmatpush1.msra.mxu0 0.0
    %6269 = vmatprep.subr.mxu0 0.0
    %6270 = vmatpush1.msra.mxu0 0.0
    %6271 = vmatprep.subr.mxu0 0.0
    %6272 = vmatpush1.msra.mxu0 0.0
    %6273 = vmatprep.subr.mxu0 0.0
    %6274 = vmatpush1.msra.mxu0 0.0
    %6275 = vmatprep.subr.mxu0 0.0
    %6276 = vmatpush1.msra.mxu0 0.0
    %6277 = vmatprep.subr.mxu0 0.0
    %6278 = vmatpush1.msra.mxu0 0.0
    %6279 = vmatprep.subr.mxu0 0.0
    %6280 = vmatpush1.msra.mxu0 0.0
    %6281 = vmatprep.subr.mxu0 0.0
    %6282 = vmatpush1.msra.mxu0 0.0
    %6283 = vmatprep.subr.mxu0 0.0
    %6284 = vmatpush1.msra.mxu0 0.0
    %6285 = vmatprep.subr.mxu0 0.0
    %6286 = vmatpush1.msra.mxu0 0.0
    %6287 = vmatprep.subr.mxu0 0.0
    %6288 = vmatpush1.msra.mxu0 0.0
    %6289 = vmatprep.mubr.f32.mxu0 0.0
    %v6290 = vand.u32 %v5848, 4294901760
    %6291 = vmatmul.mubr.f32.gmra.mrb[0].mxu0 %v6290
    %v6292 = vpop.f32.mrb[0].mxu0
    %v6293 = vadd.f32 %v6221, %v6292
    %v6294 = vpop.f32.mrb[0].mxu0
    %6295 = vdwg.mxu0
    %6296 = vst.msk [vmem:[#allocation2 + $0x8] sm:$0xff] %vm1700, %v6293
    %6297 = vrot.lane.b32.xlu0 %v643, 120
    %v6298 = vpop.permute.xlu0 %6297
    %6299 = vrot.lane.b32.xlu0 %v1169, 120
    %v6300 = vpop.permute.xlu0 %6299
    %v6301 = vsel %vm1700, %v6298, 0
    %v6303 = vsel %vm1700, %v6300, 0
    %6305 = vmatprep.subr.mxu0 0.0
    %v6306 = vand.u32 %v6303, 4294901760
    %6307 = vmatpush1.xpose.msra.mxu0 %v6306
    %6308 = vmatprep.subr.mxu0 0.0
    %6309 = vmatpush1.xpose.msra.mxu0 0.0
    %6310 = vmatprep.subr.mxu0 0.0
    %6311 = vmatpush1.xpose.msra.mxu0 0.0
    %6312 = vmatprep.subr.mxu0 0.0
    %6313 = vmatpush1.xpose.msra.mxu0 0.0
    %6314 = vmatprep.subr.mxu0 0.0
    %6315 = vmatpush1.xpose.msra.mxu0 0.0
    %6316 = vmatprep.subr.mxu0 0.0
    %6317 = vmatpush1.xpose.msra.mxu0 0.0
    %6318 = vmatprep.subr.mxu0 0.0
    %6319 = vmatpush1.xpose.msra.mxu0 0.0
    %6320 = vmatprep.subr.mxu0 0.0
    %6321 = vmatpush1.xpose.msra.mxu0 0.0
    %6322 = vmatprep.subr.mxu0 0.0
    %6323 = vmatpush1.xpose.msra.mxu0 0.0
    %6324 = vmatprep.subr.mxu0 0.0
    %6325 = vmatpush1.xpose.msra.mxu0 0.0
    %6326 = vmatprep.subr.mxu0 0.0
    %6327 = vmatpush1.xpose.msra.mxu0 0.0
    %6328 = vmatprep.subr.mxu0 0.0
    %6329 = vmatpush1.xpose.msra.mxu0 0.0
    %6330 = vmatprep.subr.mxu0 0.0
    %6331 = vmatpush1.xpose.msra.mxu0 0.0
    %6332 = vmatprep.subr.mxu0 0.0
    %6333 = vmatpush1.xpose.msra.mxu0 0.0
    %6334 = vmatprep.subr.mxu0 0.0
    %6335 = vmatpush1.xpose.msra.mxu0 0.0
    %6336 = vmatprep.subr.mxu0 0.0
    %6337 = vmatpush1.xpose.msra.mxu0 0.0
    %6338 = vmatprep.subr.mxu0 0.0
    %6339 = vmatpush1.xpose.msra.mxu0 0.0
    %6340 = vmatprep.subr.mxu0 0.0
    %6341 = vmatpush1.xpose.msra.mxu0 0.0
    %6342 = vmatprep.subr.mxu0 0.0
    %6343 = vmatpush1.xpose.msra.mxu0 0.0
    %6344 = vmatprep.subr.mxu0 0.0
    %6345 = vmatpush1.xpose.msra.mxu0 0.0
    %6346 = vmatprep.subr.mxu0 0.0
    %6347 = vmatpush1.xpose.msra.mxu0 0.0
    %6348 = vmatprep.subr.mxu0 0.0
    %6349 = vmatpush1.xpose.msra.mxu0 0.0
    %6350 = vmatprep.subr.mxu0 0.0
    %6351 = vmatpush1.xpose.msra.mxu0 0.0
    %6352 = vmatprep.subr.mxu0 0.0
    %6353 = vmatpush1.xpose.msra.mxu0 0.0
    %6354 = vmatprep.subr.mxu0 0.0
    %6355 = vmatpush1.xpose.msra.mxu0 0.0
    %6356 = vmatprep.subr.mxu0 0.0
    %6357 = vmatpush1.xpose.msra.mxu0 0.0
    %6358 = vmatprep.subr.mxu0 0.0
    %6359 = vmatpush1.xpose.msra.mxu0 0.0
    %6360 = vmatprep.subr.mxu0 0.0
    %6361 = vmatpush1.xpose.msra.mxu0 0.0
    %6362 = vmatprep.subr.mxu0 0.0
    %6363 = vmatpush1.xpose.msra.mxu0 0.0
    %6364 = vmatprep.subr.mxu0 0.0
    %6365 = vmatpush1.xpose.msra.mxu0 0.0
    %6366 = vmatprep.subr.mxu0 0.0
    %6367 = vmatpush1.xpose.msra.mxu0 0.0
    %6368 = vmatprep.subr.mxu0 0.0
    %6369 = vmatpush1.xpose.msra.mxu0 0.0
    %6370 = vmatprep.mubr.f32.mxu0 0.0
    %v6371 = vand.u32 %v6301, 4294901760
    %v6372 = vsub.f32 %v6301, %v6371
    %v6373 = vand.u32 %v6372, 4294901760
    %v6374 = vsub.f32 %v6372, %v6373
    %v6375 = vand.u32 %v6374, 4294901760
    %6376 = vmatmul.mubr.f32.gmra.mrb[0].mxu0 %v6375
    %v6377 = vpop.f32.mrb[0].mxu0
    %v6378 = vadd.f32 0.0, %v6377
    %v6379 = vpop.f32.mrb[0].mxu0
    %6380 = vdwg.mxu0
    %6381 = vmatprep.subr.mxu0 0.0
    %v6382 = vand.u32 %v6303, 4294901760
    %v6383 = vsub.f32 %v6303, %v6382
    %v6384 = vand.u32 %v6383, 4294901760
    %v6385 = vsub.f32 %v6383, %v6384
    %v6386 = vand.u32 %v6385, 4294901760
    %6387 = vmatpush1.xpose.msra.mxu0 %v6386
    %6388 = vmatprep.subr.mxu0 0.0
    %6389 = vmatpush1.xpose.msra.mxu0 0.0
    %6390 = vmatprep.subr.mxu0 0.0
    %6391 = vmatpush1.xpose.msra.mxu0 0.0
    %6392 = vmatprep.subr.mxu0 0.0
    %6393 = vmatpush1.xpose.msra.mxu0 0.0
    %6394 = vmatprep.subr.mxu0 0.0
    %6395 = vmatpush1.xpose.msra.mxu0 0.0
    %6396 = vmatprep.subr.mxu0 0.0
    %6397 = vmatpush1.xpose.msra.mxu0 0.0
    %6398 = vmatprep.subr.mxu0 0.0
    %6399 = vmatpush1.xpose.msra.mxu0 0.0
    %6400 = vmatprep.subr.mxu0 0.0
    %6401 = vmatpush1.xpose.msra.mxu0 0.0
    %6402 = vmatprep.subr.mxu0 0.0
    %6403 = vmatpush1.xpose.msra.mxu0 0.0
    %6404 = vmatprep.subr.mxu0 0.0
    %6405 = vmatpush1.xpose.msra.mxu0 0.0
    %6406 = vmatprep.subr.mxu0 0.0
    %6407 = vmatpush1.xpose.msra.mxu0 0.0
    %6408 = vmatprep.subr.mxu0 0.0
    %6409 = vmatpush1.xpose.msra.mxu0 0.0
    %6410 = vmatprep.subr.mxu0 0.0
    %6411 = vmatpush1.xpose.msra.mxu0 0.0
    %6412 = vmatprep.subr.mxu0 0.0
    %6413 = vmatpush1.xpose.msra.mxu0 0.0
    %6414 = vmatprep.subr.mxu0 0.0
    %6415 = vmatpush1.xpose.msra.mxu0 0.0
    %6416 = vmatprep.subr.mxu0 0.0
    %6417 = vmatpush1.xpose.msra.mxu0 0.0
    %6418 = vmatprep.subr.mxu0 0.0
    %6419 = vmatpush1.xpose.msra.mxu0 0.0
    %6420 = vmatprep.subr.mxu0 0.0
    %6421 = vmatpush1.xpose.msra.mxu0 0.0
    %6422 = vmatprep.subr.mxu0 0.0
    %6423 = vmatpush1.xpose.msra.mxu0 0.0
    %6424 = vmatprep.subr.mxu0 0.0
    %6425 = vmatpush1.xpose.msra.mxu0 0.0
    %6426 = vmatprep.subr.mxu0 0.0
    %6427 = vmatpush1.xpose.msra.mxu0 0.0
    %6428 = vmatprep.subr.mxu0 0.0
    %6429 = vmatpush1.xpose.msra.mxu0 0.0
    %6430 = vmatprep.subr.mxu0 0.0
    %6431 = vmatpush1.xpose.msra.mxu0 0.0
    %6432 = vmatprep.subr.mxu0 0.0
    %6433 = vmatpush1.xpose.msra.mxu0 0.0
    %6434 = vmatprep.subr.mxu0 0.0
    %6435 = vmatpush1.xpose.msra.mxu0 0.0
    %6436 = vmatprep.subr.mxu0 0.0
    %6437 = vmatpush1.xpose.msra.mxu0 0.0
    %6438 = vmatprep.subr.mxu0 0.0
    %6439 = vmatpush1.xpose.msra.mxu0 0.0
    %6440 = vmatprep.subr.mxu0 0.0
    %6441 = vmatpush1.xpose.msra.mxu0 0.0
    %6442 = vmatprep.subr.mxu0 0.0
    %6443 = vmatpush1.xpose.msra.mxu0 0.0
    %6444 = vmatprep.subr.mxu0 0.0
    %6445 = vmatpush1.xpose.msra.mxu0 0.0
    %6446 = vmatprep.subr.mxu0 0.0
    %6447 = vmatpush1.xpose.msra.mxu0 0.0
    %6448 = vmatprep.subr.mxu0 0.0
    %6449 = vmatpush1.xpose.msra.mxu0 0.0
    %6450 = vmatprep.mubr.f32.mxu0 0.0
    %v6451 = vand.u32 %v6301, 4294901760
    %6452 = vmatmul.mubr.f32.gmra.mrb[0].mxu0 %v6451
    %v6453 = vpop.f32.mrb[0].mxu0
    %v6454 = vadd.f32 %v6378, %v6453
    %v6455 = vpop.f32.mrb[0].mxu0
    %6456 = vdwg.mxu0
    %6457 = vmatprep.subr.mxu0 0.0
    %v6458 = vand.u32 %v6303, 4294901760
    %v6459 = vsub.f32 %v6303, %v6458
    %6460 = vmatpush1.xpose.msra.mxu0 %v6459
    %6461 = vmatprep.subr.mxu0 0.0
    %6462 = vmatpush1.xpose.msra.mxu0 0.0
    %6463 = vmatprep.subr.mxu0 0.0
    %6464 = vmatpush1.xpose.msra.mxu0 0.0
    %6465 = vmatprep.subr.mxu0 0.0
    %6466 = vmatpush1.xpose.msra.mxu0 0.0
    %6467 = vmatprep.subr.mxu0 0.0
    %6468 = vmatpush1.xpose.msra.mxu0 0.0
    %6469 = vmatprep.subr.mxu0 0.0
    %6470 = vmatpush1.xpose.msra.mxu0 0.0
    %6471 = vmatprep.subr.mxu0 0.0
    %6472 = vmatpush1.xpose.msra.mxu0 0.0
    %6473 = vmatprep.subr.mxu0 0.0
    %6474 = vmatpush1.xpose.msra.mxu0 0.0
    %6475 = vmatprep.subr.mxu0 0.0
    %6476 = vmatpush1.xpose.msra.mxu0 0.0
    %6477 = vmatprep.subr.mxu0 0.0
    %6478 = vmatpush1.xpose.msra.mxu0 0.0
    %6479 = vmatprep.subr.mxu0 0.0
    %6480 = vmatpush1.xpose.msra.mxu0 0.0
    %6481 = vmatprep.subr.mxu0 0.0
    %6482 = vmatpush1.xpose.msra.mxu0 0.0
    %6483 = vmatprep.subr.mxu0 0.0
    %6484 = vmatpush1.xpose.msra.mxu0 0.0
    %6485 = vmatprep.subr.mxu0 0.0
    %6486 = vmatpush1.xpose.msra.mxu0 0.0
    %6487 = vmatprep.subr.mxu0 0.0
    %6488 = vmatpush1.xpose.msra.mxu0 0.0
    %6489 = vmatprep.subr.mxu0 0.0
    %6490 = vmatpush1.xpose.msra.mxu0 0.0
    %6491 = vmatprep.subr.mxu0 0.0
    %6492 = vmatpush1.xpose.msra.mxu0 0.0
    %6493 = vmatprep.subr.mxu0 0.0
    %6494 = vmatpush1.xpose.msra.mxu0 0.0
    %6495 = vmatprep.subr.mxu0 0.0
    %6496 = vmatpush1.xpose.msra.mxu0 0.0
    %6497 = vmatprep.subr.mxu0 0.0
    %6498 = vmatpush1.xpose.msra.mxu0 0.0
    %6499 = vmatprep.subr.mxu0 0.0
    %6500 = vmatpush1.xpose.msra.mxu0 0.0
    %6501 = vmatprep.subr.mxu0 0.0
    %6502 = vmatpush1.xpose.msra.mxu0 0.0
    %6503 = vmatprep.subr.mxu0 0.0
    %6504 = vmatpush1.xpose.msra.mxu0 0.0
    %6505 = vmatprep.subr.mxu0 0.0
    %6506 = vmatpush1.xpose.msra.mxu0 0.0
    %6507 = vmatprep.subr.mxu0 0.0
    %6508 = vmatpush1.xpose.msra.mxu0 0.0
    %6509 = vmatprep.subr.mxu0 0.0
    %6510 = vmatpush1.xpose.msra.mxu0 0.0
    %6511 = vmatprep.subr.mxu0 0.0
    %6512 = vmatpush1.xpose.msra.mxu0 0.0
    %6513 = vmatprep.subr.mxu0 0.0
    %6514 = vmatpush1.xpose.msra.mxu0 0.0
    %6515 = vmatprep.subr.mxu0 0.0
    %6516 = vmatpush1.xpose.msra.mxu0 0.0
    %6517 = vmatprep.subr.mxu0 0.0
    %6518 = vmatpush1.xpose.msra.mxu0 0.0
    %6519 = vmatprep.subr.mxu0 0.0
    %6520 = vmatpush1.xpose.msra.mxu0 0.0
    %6521 = vmatprep.subr.mxu0 0.0
    %6522 = vmatpush1.xpose.msra.mxu0 0.0
    %6523 = vmatprep.mubr.f32.mxu0 0.0
    %v6524 = vand.u32 %v6301, 4294901760
    %v6525 = vsub.f32 %v6301, %v6524
    %6526 = vmatmul.mubr.f32.gmra.mrb[0].mxu0 %v6525
    %v6527 = vpop.f32.mrb[0].mxu0
    %v6528 = vadd.f32 %v6454, %v6527
    %v6529 = vpop.f32.mrb[0].mxu0
    %6530 = vdwg.mxu0
    %6531 = vmatprep.subr.mxu0 0.0
    %v6532 = vand.u32 %v6303, 4294901760
    %6533 = vmatpush1.xpose.msra.mxu0 %v6532
    %6534 = vmatprep.subr.mxu0 0.0
    %6535 = vmatpush1.xpose.msra.mxu0 0.0
    %6536 = vmatprep.subr.mxu0 0.0
    %6537 = vmatpush1.xpose.msra.mxu0 0.0
    %6538 = vmatprep.subr.mxu0 0.0
    %6539 = vmatpush1.xpose.msra.mxu0 0.0
    %6540 = vmatprep.subr.mxu0 0.0
    %6541 = vmatpush1.xpose.msra.mxu0 0.0
    %6542 = vmatprep.subr.mxu0 0.0
    %6543 = vmatpush1.xpose.msra.mxu0 0.0
    %6544 = vmatprep.subr.mxu0 0.0
    %6545 = vmatpush1.xpose.msra.mxu0 0.0
    %6546 = vmatprep.subr.mxu0 0.0
    %6547 = vmatpush1.xpose.msra.mxu0 0.0
    %6548 = vmatprep.subr.mxu0 0.0
    %6549 = vmatpush1.xpose.msra.mxu0 0.0
    %6550 = vmatprep.subr.mxu0 0.0
    %6551 = vmatpush1.xpose.msra.mxu0 0.0
    %6552 = vmatprep.subr.mxu0 0.0
    %6553 = vmatpush1.xpose.msra.mxu0 0.0
    %6554 = vmatprep.subr.mxu0 0.0
    %6555 = vmatpush1.xpose.msra.mxu0 0.0
    %6556 = vmatprep.subr.mxu0 0.0
    %6557 = vmatpush1.xpose.msra.mxu0 0.0
    %6558 = vmatprep.subr.mxu0 0.0
    %6559 = vmatpush1.xpose.msra.mxu0 0.0
    %6560 = vmatprep.subr.mxu0 0.0
    %6561 = vmatpush1.xpose.msra.mxu0 0.0
    %6562 = vmatprep.subr.mxu0 0.0
    %6563 = vmatpush1.xpose.msra.mxu0 0.0
    %6564 = vmatprep.subr.mxu0 0.0
    %6565 = vmatpush1.xpose.msra.mxu0 0.0
    %6566 = vmatprep.subr.mxu0 0.0
    %6567 = vmatpush1.xpose.msra.mxu0 0.0
    %6568 = vmatprep.subr.mxu0 0.0
    %6569 = vmatpush1.xpose.msra.mxu0 0.0
    %6570 = vmatprep.subr.mxu0 0.0
    %6571 = vmatpush1.xpose.msra.mxu0 0.0
    %6572 = vmatprep.subr.mxu0 0.0
    %6573 = vmatpush1.xpose.msra.mxu0 0.0
    %6574 = vmatprep.subr.mxu0 0.0
    %6575 = vmatpush1.xpose.msra.mxu0 0.0
    %6576 = vmatprep.subr.mxu0 0.0
    %6577 = vmatpush1.xpose.msra.mxu0 0.0
    %6578 = vmatprep.subr.mxu0 0.0
    %6579 = vmatpush1.xpose.msra.mxu0 0.0
    %6580 = vmatprep.subr.mxu0 0.0
    %6581 = vmatpush1.xpose.msra.mxu0 0.0
    %6582 = vmatprep.subr.mxu0 0.0
    %6583 = vmatpush1.xpose.msra.mxu0 0.0
    %6584 = vmatprep.subr.mxu0 0.0
    %6585 = vmatpush1.xpose.msra.mxu0 0.0
    %6586 = vmatprep.subr.mxu0 0.0
    %6587 = vmatpush1.xpose.msra.mxu0 0.0
    %6588 = vmatprep.subr.mxu0 0.0
    %6589 = vmatpush1.xpose.msra.mxu0 0.0
    %6590 = vmatprep.subr.mxu0 0.0
    %6591 = vmatpush1.xpose.msra.mxu0 0.0
    %6592 = vmatprep.subr.mxu0 0.0
    %6593 = vmatpush1.xpose.msra.mxu0 0.0
    %6594 = vmatprep.subr.mxu0 0.0
    %6595 = vmatpush1.xpose.msra.mxu0 0.0
    %6596 = vmatprep.mubr.f32.mxu0 0.0
    %v6597 = vand.u32 %v6301, 4294901760
    %v6598 = vsub.f32 %v6301, %v6597
    %v6599 = vand.u32 %v6598, 4294901760
    %6600 = vmatmul.mubr.f32.gmra.mrb[0].mxu0 %v6599
    %v6601 = vpop.f32.mrb[0].mxu0
    %v6602 = vadd.f32 %v6528, %v6601
    %v6603 = vpop.f32.mrb[0].mxu0
    %6604 = vdwg.mxu0
    %6605 = vmatprep.subr.mxu0 0.0
    %v6606 = vand.u32 %v6303, 4294901760
    %v6607 = vsub.f32 %v6303, %v6606
    %v6608 = vand.u32 %v6607, 4294901760
    %6609 = vmatpush1.xpose.msra.mxu0 %v6608
    %6610 = vmatprep.subr.mxu0 0.0
    %6611 = vmatpush1.xpose.msra.mxu0 0.0
    %6612 = vmatprep.subr.mxu0 0.0
    %6613 = vmatpush1.xpose.msra.mxu0 0.0
    %6614 = vmatprep.subr.mxu0 0.0
    %6615 = vmatpush1.xpose.msra.mxu0 0.0
    %6616 = vmatprep.subr.mxu0 0.0
    %6617 = vmatpush1.xpose.msra.mxu0 0.0
    %6618 = vmatprep.subr.mxu0 0.0
    %6619 = vmatpush1.xpose.msra.mxu0 0.0
    %6620 = vmatprep.subr.mxu0 0.0
    %6621 = vmatpush1.xpose.msra.mxu0 0.0
    %6622 = vmatprep.subr.mxu0 0.0
    %6623 = vmatpush1.xpose.msra.mxu0 0.0
    %6624 = vmatprep.subr.mxu0 0.0
    %6625 = vmatpush1.xpose.msra.mxu0 0.0
    %6626 = vmatprep.subr.mxu0 0.0
    %6627 = vmatpush1.xpose.msra.mxu0 0.0
    %6628 = vmatprep.subr.mxu0 0.0
    %6629 = vmatpush1.xpose.msra.mxu0 0.0
    %6630 = vmatprep.subr.mxu0 0.0
    %6631 = vmatpush1.xpose.msra.mxu0 0.0
    %6632 = vmatprep.subr.mxu0 0.0
    %6633 = vmatpush1.xpose.msra.mxu0 0.0
    %6634 = vmatprep.subr.mxu0 0.0
    %6635 = vmatpush1.xpose.msra.mxu0 0.0
    %6636 = vmatprep.subr.mxu0 0.0
    %6637 = vmatpush1.xpose.msra.mxu0 0.0
    %6638 = vmatprep.subr.mxu0 0.0
    %6639 = vmatpush1.xpose.msra.mxu0 0.0
    %6640 = vmatprep.subr.mxu0 0.0
    %6641 = vmatpush1.xpose.msra.mxu0 0.0
    %6642 = vmatprep.subr.mxu0 0.0
    %6643 = vmatpush1.xpose.msra.mxu0 0.0
    %6644 = vmatprep.subr.mxu0 0.0
    %6645 = vmatpush1.xpose.msra.mxu0 0.0
    %6646 = vmatprep.subr.mxu0 0.0
    %6647 = vmatpush1.xpose.msra.mxu0 0.0
    %6648 = vmatprep.subr.mxu0 0.0
    %6649 = vmatpush1.xpose.msra.mxu0 0.0
    %6650 = vmatprep.subr.mxu0 0.0
    %6651 = vmatpush1.xpose.msra.mxu0 0.0
    %6652 = vmatprep.subr.mxu0 0.0
    %6653 = vmatpush1.xpose.msra.mxu0 0.0
    %6654 = vmatprep.subr.mxu0 0.0
    %6655 = vmatpush1.xpose.msra.mxu0 0.0
    %6656 = vmatprep.subr.mxu0 0.0
    %6657 = vmatpush1.xpose.msra.mxu0 0.0
    %6658 = vmatprep.subr.mxu0 0.0
    %6659 = vmatpush1.xpose.msra.mxu0 0.0
    %6660 = vmatprep.subr.mxu0 0.0
    %6661 = vmatpush1.xpose.msra.mxu0 0.0
    %6662 = vmatprep.subr.mxu0 0.0
    %6663 = vmatpush1.xpose.msra.mxu0 0.0
    %6664 = vmatprep.subr.mxu0 0.0
    %6665 = vmatpush1.xpose.msra.mxu0 0.0
    %6666 = vmatprep.subr.mxu0 0.0
    %6667 = vmatpush1.xpose.msra.mxu0 0.0
    %6668 = vmatprep.subr.mxu0 0.0
    %6669 = vmatpush1.xpose.msra.mxu0 0.0
    %6670 = vmatprep.subr.mxu0 0.0
    %6671 = vmatpush1.xpose.msra.mxu0 0.0
    %6672 = vmatprep.mubr.f32.mxu0 0.0
    %v6673 = vand.u32 %v6301, 4294901760
    %6674 = vmatmul.mubr.f32.gmra.mrb[0].mxu0 %v6673
    %v6675 = vpop.f32.mrb[0].mxu0
    %v6676 = vadd.f32 %v6602, %v6675
    %v6677 = vpop.f32.mrb[0].mxu0
    %6678 = vdwg.mxu0
    %6679 = vmatprep.subr.mxu0 0.0
    %v6680 = vand.u32 %v6303, 4294901760
    %6681 = vmatpush1.xpose.msra.mxu0 %v6680
    %6682 = vmatprep.subr.mxu0 0.0
    %6683 = vmatpush1.xpose.msra.mxu0 0.0
    %6684 = vmatprep.subr.mxu0 0.0
    %6685 = vmatpush1.xpose.msra.mxu0 0.0
    %6686 = vmatprep.subr.mxu0 0.0
    %6687 = vmatpush1.xpose.msra.mxu0 0.0
    %6688 = vmatprep.subr.mxu0 0.0
    %6689 = vmatpush1.xpose.msra.mxu0 0.0
    %6690 = vmatprep.subr.mxu0 0.0
    %6691 = vmatpush1.xpose.msra.mxu0 0.0
    %6692 = vmatprep.subr.mxu0 0.0
    %6693 = vmatpush1.xpose.msra.mxu0 0.0
    %6694 = vmatprep.subr.mxu0 0.0
    %6695 = vmatpush1.xpose.msra.mxu0 0.0
    %6696 = vmatprep.subr.mxu0 0.0
    %6697 = vmatpush1.xpose.msra.mxu0 0.0
    %6698 = vmatprep.subr.mxu0 0.0
    %6699 = vmatpush1.xpose.msra.mxu0 0.0
    %6700 = vmatprep.subr.mxu0 0.0
    %6701 = vmatpush1.xpose.msra.mxu0 0.0
    %6702 = vmatprep.subr.mxu0 0.0
    %6703 = vmatpush1.xpose.msra.mxu0 0.0
    %6704 = vmatprep.subr.mxu0 0.0
    %6705 = vmatpush1.xpose.msra.mxu0 0.0
    %6706 = vmatprep.subr.mxu0 0.0
    %6707 = vmatpush1.xpose.msra.mxu0 0.0
    %6708 = vmatprep.subr.mxu0 0.0
    %6709 = vmatpush1.xpose.msra.mxu0 0.0
    %6710 = vmatprep.subr.mxu0 0.0
    %6711 = vmatpush1.xpose.msra.mxu0 0.0
    %6712 = vmatprep.subr.mxu0 0.0
    %6713 = vmatpush1.xpose.msra.mxu0 0.0
    %6714 = vmatprep.subr.mxu0 0.0
    %6715 = vmatpush1.xpose.msra.mxu0 0.0
    %6716 = vmatprep.subr.mxu0 0.0
    %6717 = vmatpush1.xpose.msra.mxu0 0.0
    %6718 = vmatprep.subr.mxu0 0.0
    %6719 = vmatpush1.xpose.msra.mxu0 0.0
    %6720 = vmatprep.subr.mxu0 0.0
    %6721 = vmatpush1.xpose.msra.mxu0 0.0
    %6722 = vmatprep.subr.mxu0 0.0
    %6723 = vmatpush1.xpose.msra.mxu0 0.0
    %6724 = vmatprep.subr.mxu0 0.0
    %6725 = vmatpush1.xpose.msra.mxu0 0.0
    %6726 = vmatprep.subr.mxu0 0.0
    %6727 = vmatpush1.xpose.msra.mxu0 0.0
    %6728 = vmatprep.subr.mxu0 0.0
    %6729 = vmatpush1.xpose.msra.mxu0 0.0
    %6730 = vmatprep.subr.mxu0 0.0
    %6731 = vmatpush1.xpose.msra.mxu0 0.0
    %6732 = vmatprep.subr.mxu0 0.0
    %6733 = vmatpush1.xpose.msra.mxu0 0.0
    %6734 = vmatprep.subr.mxu0 0.0
    %6735 = vmatpush1.xpose.msra.mxu0 0.0
    %6736 = vmatprep.subr.mxu0 0.0
    %6737 = vmatpush1.xpose.msra.mxu0 0.0
    %6738 = vmatprep.subr.mxu0 0.0
    %6739 = vmatpush1.xpose.msra.mxu0 0.0
    %6740 = vmatprep.subr.mxu0 0.0
    %6741 = vmatpush1.xpose.msra.mxu0 0.0
    %6742 = vmatprep.subr.mxu0 0.0
    %6743 = vmatpush1.xpose.msra.mxu0 0.0
    %6744 = vmatprep.mubr.f32.mxu0 0.0
    %v6745 = vand.u32 %v6301, 4294901760
    %6746 = vmatmul.mubr.f32.gmra.mrb[0].mxu0 %v6745
    %v6747 = vpop.f32.mrb[0].mxu0
    %v6748 = vadd.f32 %v6676, %v6747
    %v6749 = vpop.f32.mrb[0].mxu0
    %6750 = vdwg.mxu0
    %v6751 = vsel %vm1700, %v6748, -inf
    %6752 = vmax.xlane.f32.xlu0 %v6751
    %v6753 = vpop.xlane.xlu0 %6752
    %v6754 = vsub.f32 %v6748, %v6753
    %v6755 = vmul.f32 %v6754, 1.442695
    %v6756 = vpow.pop %v6755
    %v6757 = vsel %vm1700, %v6756, 0.0
    %6758 = vadd.xlane.f32.xlu0 %v6757
    %v6759 = vpop.xlane.xlu0 %6758
    %v6760 = vrcp.pop %v6759
    %v6761 = vmul.f32 %v6756, %v6760
    %6763 = vrot.lane.b32.xlu0 %v1697, 120
    %v6764 = vpop.permute.xlu0 %6763
    %v6767 = vsel %vm1700, %v6761, 0
    %6769 = vmatprep.subr.mxu0 0.0
    %v6770 = vand.u32 %v6764, 4294901760
    %6771 = vmatpush1.msra.mxu0 %v6770
    %6772 = vmatprep.subr.mxu0 0.0
    %6773 = vmatpush1.msra.mxu0 0.0
    %6774 = vmatprep.subr.mxu0 0.0
    %6775 = vmatpush1.msra.mxu0 0.0
    %6776 = vmatprep.subr.mxu0 0.0
    %6777 = vmatpush1.msra.mxu0 0.0
    %6778 = vmatprep.subr.mxu0 0.0
    %6779 = vmatpush1.msra.mxu0 0.0
    %6780 = vmatprep.subr.mxu0 0.0
    %6781 = vmatpush1.msra.mxu0 0.0
    %6782 = vmatprep.subr.mxu0 0.0
    %6783 = vmatpush1.msra.mxu0 0.0
    %6784 = vmatprep.subr.mxu0 0.0
    %6785 = vmatpush1.msra.mxu0 0.0
    %6786 = vmatprep.subr.mxu0 0.0
    %6787 = vmatpush1.msra.mxu0 0.0
    %6788 = vmatprep.subr.mxu0 0.0
    %6789 = vmatpush1.msra.mxu0 0.0
    %6790 = vmatprep.subr.mxu0 0.0
    %6791 = vmatpush1.msra.mxu0 0.0
    %6792 = vmatprep.subr.mxu0 0.0
    %6793 = vmatpush1.msra.mxu0 0.0
    %6794 = vmatprep.subr.mxu0 0.0
    %6795 = vmatpush1.msra.mxu0 0.0
    %6796 = vmatprep.subr.mxu0 0.0
    %6797 = vmatpush1.msra.mxu0 0.0
    %6798 = vmatprep.subr.mxu0 0.0
    %6799 = vmatpush1.msra.mxu0 0.0
    %6800 = vmatprep.subr.mxu0 0.0
    %6801 = vmatpush1.msra.mxu0 0.0
    %6802 = vmatprep.subr.mxu0 0.0
    %6803 = vmatpush1.msra.mxu0 0.0
    %6804 = vmatprep.subr.mxu0 0.0
    %6805 = vmatpush1.msra.mxu0 0.0
    %6806 = vmatprep.subr.mxu0 0.0
    %6807 = vmatpush1.msra.mxu0 0.0
    %6808 = vmatprep.subr.mxu0 0.0
    %6809 = vmatpush1.msra.mxu0 0.0
    %6810 = vmatprep.subr.mxu0 0.0
    %6811 = vmatpush1.msra.mxu0 0.0
    %6812 = vmatprep.subr.mxu0 0.0
    %6813 = vmatpush1.msra.mxu0 0.0
    %6814 = vmatprep.subr.mxu0 0.0
    %6815 = vmatpush1.msra.mxu0 0.0
    %6816 = vmatprep.subr.mxu0 0.0
    %6817 = vmatpush1.msra.mxu0 0.0
    %6818 = vmatprep.subr.mxu0 0.0
    %6819 = vmatpush1.msra.mxu0 0.0
    %6820 = vmatprep.subr.mxu0 0.0
    %6821 = vmatpush1.msra.mxu0 0.0
    %6822 = vmatprep.subr.mxu0 0.0
    %6823 = vmatpush1.msra.mxu0 0.0
    %6824 = vmatprep.subr.mxu0 0.0
    %6825 = vmatpush1.msra.mxu0 0.0
    %6826 = vmatprep.subr.mxu0 0.0
    %6827 = vmatpush1.msra.mxu0 0.0
    %6828 = vmatprep.subr.mxu0 0.0
    %6829 = vmatpush1.msra.mxu0 0.0
    %6830 = vmatprep.subr.mxu0 0.0
    %6831 = vmatpush1.msra.mxu0 0.0
    %6832 = vmatprep.subr.mxu0 0.0
    %6833 = vmatpush1.msra.mxu0 0.0
    %6834 = vmatprep.mubr.f32.mxu0 0.0
    %v6835 = vand.u32 %v6767, 4294901760
    %v6836 = vsub.f32 %v6767, %v6835
    %v6837 = vand.u32 %v6836, 4294901760
    %v6838 = vsub.f32 %v6836, %v6837
    %v6839 = vand.u32 %v6838, 4294901760
    %6840 = vmatmul.mubr.f32.gmra.mrb[0].mxu0 %v6839
    %v6841 = vpop.f32.mrb[0].mxu0
    %v6842 = vadd.f32 0.0, %v6841
    %v6843 = vpop.f32.mrb[0].mxu0
    %6844 = vdwg.mxu0
    %6845 = vmatprep.subr.mxu0 0.0
    %v6846 = vand.u32 %v6764, 4294901760
    %v6847 = vsub.f32 %v6764, %v6846
    %v6848 = vand.u32 %v6847, 4294901760
    %v6849 = vsub.f32 %v6847, %v6848
    %v6850 = vand.u32 %v6849, 4294901760
    %6851 = vmatpush1.msra.mxu0 %v6850
    %6852 = vmatprep.subr.mxu0 0.0
    %6853 = vmatpush1.msra.mxu0 0.0
    %6854 = vmatprep.subr.mxu0 0.0
    %6855 = vmatpush1.msra.mxu0 0.0
    %6856 = vmatprep.subr.mxu0 0.0
    %6857 = vmatpush1.msra.mxu0 0.0
    %6858 = vmatprep.subr.mxu0 0.0
    %6859 = vmatpush1.msra.mxu0 0.0
    %6860 = vmatprep.subr.mxu0 0.0
    %6861 = vmatpush1.msra.mxu0 0.0
    %6862 = vmatprep.subr.mxu0 0.0
    %6863 = vmatpush1.msra.mxu0 0.0
    %6864 = vmatprep.subr.mxu0 0.0
    %6865 = vmatpush1.msra.mxu0 0.0
    %6866 = vmatprep.subr.mxu0 0.0
    %6867 = vmatpush1.msra.mxu0 0.0
    %6868 = vmatprep.subr.mxu0 0.0
    %6869 = vmatpush1.msra.mxu0 0.0
    %6870 = vmatprep.subr.mxu0 0.0
    %6871 = vmatpush1.msra.mxu0 0.0
    %6872 = vmatprep.subr.mxu0 0.0
    %6873 = vmatpush1.msra.mxu0 0.0
    %6874 = vmatprep.subr.mxu0 0.0
    %6875 = vmatpush1.msra.mxu0 0.0
    %6876 = vmatprep.subr.mxu0 0.0
    %6877 = vmatpush1.msra.mxu0 0.0
    %6878 = vmatprep.subr.mxu0 0.0
    %6879 = vmatpush1.msra.mxu0 0.0
    %6880 = vmatprep.subr.mxu0 0.0
    %6881 = vmatpush1.msra.mxu0 0.0
    %6882 = vmatprep.subr.mxu0 0.0
    %6883 = vmatpush1.msra.mxu0 0.0
    %6884 = vmatprep.subr.mxu0 0.0
    %6885 = vmatpush1.msra.mxu0 0.0
    %6886 = vmatprep.subr.mxu0 0.0
    %6887 = vmatpush1.msra.mxu0 0.0
    %6888 = vmatprep.subr.mxu0 0.0
    %6889 = vmatpush1.msra.mxu0 0.0
    %6890 = vmatprep.subr.mxu0 0.0
    %6891 = vmatpush1.msra.mxu0 0.0
    %6892 = vmatprep.subr.mxu0 0.0
    %6893 = vmatpush1.msra.mxu0 0.0
    %6894 = vmatprep.subr.mxu0 0.0
    %6895 = vmatpush1.msra.mxu0 0.0
    %6896 = vmatprep.subr.mxu0 0.0
    %6897 = vmatpush1.msra.mxu0 0.0
    %6898 = vmatprep.subr.mxu0 0.0
    %6899 = vmatpush1.msra.mxu0 0.0
    %6900 = vmatprep.subr.mxu0 0.0
    %6901 = vmatpush1.msra.mxu0 0.0
    %6902 = vmatprep.subr.mxu0 0.0
    %6903 = vmatpush1.msra.mxu0 0.0
    %6904 = vmatprep.subr.mxu0 0.0
    %6905 = vmatpush1.msra.mxu0 0.0
    %6906 = vmatprep.subr.mxu0 0.0
    %6907 = vmatpush1.msra.mxu0 0.0
    %6908 = vmatprep.subr.mxu0 0.0
    %6909 = vmatpush1.msra.mxu0 0.0
    %6910 = vmatprep.subr.mxu0 0.0
    %6911 = vmatpush1.msra.mxu0 0.0
    %6912 = vmatprep.subr.mxu0 0.0
    %6913 = vmatpush1.msra.mxu0 0.0
    %6914 = vmatprep.mubr.f32.mxu0 0.0
    %v6915 = vand.u32 %v6767, 4294901760
    %6916 = vmatmul.mubr.f32.gmra.mrb[0].mxu0 %v6915
    %v6917 = vpop.f32.mrb[0].mxu0
    %v6918 = vadd.f32 %v6842, %v6917
    %v6919 = vpop.f32.mrb[0].mxu0
    %6920 = vdwg.mxu0
    %6921 = vmatprep.subr.mxu0 0.0
    %v6922 = vand.u32 %v6764, 4294901760
    %v6923 = vsub.f32 %v6764, %v6922
    %6924 = vmatpush1.msra.mxu0 %v6923
    %6925 = vmatprep.subr.mxu0 0.0
    %6926 = vmatpush1.msra.mxu0 0.0
    %6927 = vmatprep.subr.mxu0 0.0
    %6928 = vmatpush1.msra.mxu0 0.0
    %6929 = vmatprep.subr.mxu0 0.0
    %6930 = vmatpush1.msra.mxu0 0.0
    %6931 = vmatprep.subr.mxu0 0.0
    %6932 = vmatpush1.msra.mxu0 0.0
    %6933 = vmatprep.subr.mxu0 0.0
    %6934 = vmatpush1.msra.mxu0 0.0
    %6935 = vmatprep.subr.mxu0 0.0
    %6936 = vmatpush1.msra.mxu0 0.0
    %6937 = vmatprep.subr.mxu0 0.0
    %6938 = vmatpush1.msra.mxu0 0.0
    %6939 = vmatprep.subr.mxu0 0.0
    %6940 = vmatpush1.msra.mxu0 0.0
    %6941 = vmatprep.subr.mxu0 0.0
    %6942 = vmatpush1.msra.mxu0 0.0
    %6943 = vmatprep.subr.mxu0 0.0
    %6944 = vmatpush1.msra.mxu0 0.0
    %6945 = vmatprep.subr.mxu0 0.0
    %6946 = vmatpush1.msra.mxu0 0.0
    %6947 = vmatprep.subr.mxu0 0.0
    %6948 = vmatpush1.msra.mxu0 0.0
    %6949 = vmatprep.subr.mxu0 0.0
    %6950 = vmatpush1.msra.mxu0 0.0
    %6951 = vmatprep.subr.mxu0 0.0
    %6952 = vmatpush1.msra.mxu0 0.0
    %6953 = vmatprep.subr.mxu0 0.0
    %6954 = vmatpush1.msra.mxu0 0.0
    %6955 = vmatprep.subr.mxu0 0.0
    %6956 = vmatpush1.msra.mxu0 0.0
    %6957 = vmatprep.subr.mxu0 0.0
    %6958 = vmatpush1.msra.mxu0 0.0
    %6959 = vmatprep.subr.mxu0 0.0
    %6960 = vmatpush1.msra.mxu0 0.0
    %6961 = vmatprep.subr.mxu0 0.0
    %6962 = vmatpush1.msra.mxu0 0.0
    %6963 = vmatprep.subr.mxu0 0.0
    %6964 = vmatpush1.msra.mxu0 0.0
    %6965 = vmatprep.subr.mxu0 0.0
    %6966 = vmatpush1.msra.mxu0 0.0
    %6967 = vmatprep.subr.mxu0 0.0
    %6968 = vmatpush1.msra.mxu0 0.0
    %6969 = vmatprep.subr.mxu0 0.0
    %6970 = vmatpush1.msra.mxu0 0.0
    %6971 = vmatprep.subr.mxu0 0.0
    %6972 = vmatpush1.msra.mxu0 0.0
    %6973 = vmatprep.subr.mxu0 0.0
    %6974 = vmatpush1.msra.mxu0 0.0
    %6975 = vmatprep.subr.mxu0 0.0
    %6976 = vmatpush1.msra.mxu0 0.0
    %6977 = vmatprep.subr.mxu0 0.0
    %6978 = vmatpush1.msra.mxu0 0.0
    %6979 = vmatprep.subr.mxu0 0.0
    %6980 = vmatpush1.msra.mxu0 0.0
    %6981 = vmatprep.subr.mxu0 0.0
    %6982 = vmatpush1.msra.mxu0 0.0
    %6983 = vmatprep.subr.mxu0 0.0
    %6984 = vmatpush1.msra.mxu0 0.0
    %6985 = vmatprep.subr.mxu0 0.0
    %6986 = vmatpush1.msra.mxu0 0.0
    %6987 = vmatprep.mubr.f32.mxu0 0.0
    %v6988 = vand.u32 %v6767, 4294901760
    %v6989 = vsub.f32 %v6767, %v6988
    %6990 = vmatmul.mubr.f32.gmra.mrb[0].mxu0 %v6989
    %v6991 = vpop.f32.mrb[0].mxu0
    %v6992 = vadd.f32 %v6918, %v6991
    %v6993 = vpop.f32.mrb[0].mxu0
    %6994 = vdwg.mxu0
    %6995 = vmatprep.subr.mxu0 0.0
    %v6996 = vand.u32 %v6764, 4294901760
    %6997 = vmatpush1.msra.mxu0 %v6996
    %6998 = vmatprep.subr.mxu0 0.0
    %6999 = vmatpush1.msra.mxu0 0.0
    %7000 = vmatprep.subr.mxu0 0.0
    %7001 = vmatpush1.msra.mxu0 0.0
    %7002 = vmatprep.subr.mxu0 0.0
    %7003 = vmatpush1.msra.mxu0 0.0
    %7004 = vmatprep.subr.mxu0 0.0
    %7005 = vmatpush1.msra.mxu0 0.0
    %7006 = vmatprep.subr.mxu0 0.0
    %7007 = vmatpush1.msra.mxu0 0.0
    %7008 = vmatprep.subr.mxu0 0.0
    %7009 = vmatpush1.msra.mxu0 0.0
    %7010 = vmatprep.subr.mxu0 0.0
    %7011 = vmatpush1.msra.mxu0 0.0
    %7012 = vmatprep.subr.mxu0 0.0
    %7013 = vmatpush1.msra.mxu0 0.0
    %7014 = vmatprep.subr.mxu0 0.0
    %7015 = vmatpush1.msra.mxu0 0.0
    %7016 = vmatprep.subr.mxu0 0.0
    %7017 = vmatpush1.msra.mxu0 0.0
    %7018 = vmatprep.subr.mxu0 0.0
    %7019 = vmatpush1.msra.mxu0 0.0
    %7020 = vmatprep.subr.mxu0 0.0
    %7021 = vmatpush1.msra.mxu0 0.0
    %7022 = vmatprep.subr.mxu0 0.0
    %7023 = vmatpush1.msra.mxu0 0.0
    %7024 = vmatprep.subr.mxu0 0.0
    %7025 = vmatpush1.msra.mxu0 0.0
    %7026 = vmatprep.subr.mxu0 0.0
    %7027 = vmatpush1.msra.mxu0 0.0
    %7028 = vmatprep.subr.mxu0 0.0
    %7029 = vmatpush1.msra.mxu0 0.0
    %7030 = vmatprep.subr.mxu0 0.0
    %7031 = vmatpush1.msra.mxu0 0.0
    %7032 = vmatprep.subr.mxu0 0.0
    %7033 = vmatpush1.msra.mxu0 0.0
    %7034 = vmatprep.subr.mxu0 0.0
    %7035 = vmatpush1.msra.mxu0 0.0
    %7036 = vmatprep.subr.mxu0 0.0
    %7037 = vmatpush1.msra.mxu0 0.0
    %7038 = vmatprep.subr.mxu0 0.0
    %7039 = vmatpush1.msra.mxu0 0.0
    %7040 = vmatprep.subr.mxu0 0.0
    %7041 = vmatpush1.msra.mxu0 0.0
    %7042 = vmatprep.subr.mxu0 0.0
    %7043 = vmatpush1.msra.mxu0 0.0
    %7044 = vmatprep.subr.mxu0 0.0
    %7045 = vmatpush1.msra.mxu0 0.0
    %7046 = vmatprep.subr.mxu0 0.0
    %7047 = vmatpush1.msra.mxu0 0.0
    %7048 = vmatprep.subr.mxu0 0.0
    %7049 = vmatpush1.msra.mxu0 0.0
    %7050 = vmatprep.subr.mxu0 0.0
    %7051 = vmatpush1.msra.mxu0 0.0
    %7052 = vmatprep.subr.mxu0 0.0
    %7053 = vmatpush1.msra.mxu0 0.0
    %7054 = vmatprep.subr.mxu0 0.0
    %7055 = vmatpush1.msra.mxu0 0.0
    %7056 = vmatprep.subr.mxu0 0.0
    %7057 = vmatpush1.msra.mxu0 0.0
    %7058 = vmatprep.subr.mxu0 0.0
    %7059 = vmatpush1.msra.mxu0 0.0
    %7060 = vmatprep.mubr.f32.mxu0 0.0
    %v7061 = vand.u32 %v6767, 4294901760
    %v7062 = vsub.f32 %v6767, %v7061
    %v7063 = vand.u32 %v7062, 4294901760
    %7064 = vmatmul.mubr.f32.gmra.mrb[0].mxu0 %v7063
    %v7065 = vpop.f32.mrb[0].mxu0
    %v7066 = vadd.f32 %v6992, %v7065
    %v7067 = vpop.f32.mrb[0].mxu0
    %7068 = vdwg.mxu0
    %7069 = vmatprep.subr.mxu0 0.0
    %v7070 = vand.u32 %v6764, 4294901760
    %v7071 = vsub.f32 %v6764, %v7070
    %v7072 = vand.u32 %v7071, 4294901760
    %7073 = vmatpush1.msra.mxu0 %v7072
    %7074 = vmatprep.subr.mxu0 0.0
    %7075 = vmatpush1.msra.mxu0 0.0
    %7076 = vmatprep.subr.mxu0 0.0
    %7077 = vmatpush1.msra.mxu0 0.0
    %7078 = vmatprep.subr.mxu0 0.0
    %7079 = vmatpush1.msra.mxu0 0.0
    %7080 = vmatprep.subr.mxu0 0.0
    %7081 = vmatpush1.msra.mxu0 0.0
    %7082 = vmatprep.subr.mxu0 0.0
    %7083 = vmatpush1.msra.mxu0 0.0
    %7084 = vmatprep.subr.mxu0 0.0
    %7085 = vmatpush1.msra.mxu0 0.0
    %7086 = vmatprep.subr.mxu0 0.0
    %7087 = vmatpush1.msra.mxu0 0.0
    %7088 = vmatprep.subr.mxu0 0.0
    %7089 = vmatpush1.msra.mxu0 0.0
    %7090 = vmatprep.subr.mxu0 0.0
    %7091 = vmatpush1.msra.mxu0 0.0
    %7092 = vmatprep.subr.mxu0 0.0
    %7093 = vmatpush1.msra.mxu0 0.0
    %7094 = vmatprep.subr.mxu0 0.0
    %7095 = vmatpush1.msra.mxu0 0.0
    %7096 = vmatprep.subr.mxu0 0.0
    %7097 = vmatpush1.msra.mxu0 0.0
    %7098 = vmatprep.subr.mxu0 0.0
    %7099 = vmatpush1.msra.mxu0 0.0
    %7100 = vmatprep.subr.mxu0 0.0
    %7101 = vmatpush1.msra.mxu0 0.0
    %7102 = vmatprep.subr.mxu0 0.0
    %7103 = vmatpush1.msra.mxu0 0.0
    %7104 = vmatprep.subr.mxu0 0.0
    %7105 = vmatpush1.msra.mxu0 0.0
    %7106 = vmatprep.subr.mxu0 0.0
    %7107 = vmatpush1.msra.mxu0 0.0
    %7108 = vmatprep.subr.mxu0 0.0
    %7109 = vmatpush1.msra.mxu0 0.0
    %7110 = vmatprep.subr.mxu0 0.0
    %7111 = vmatpush1.msra.mxu0 0.0
    %7112 = vmatprep.subr.mxu0 0.0
    %7113 = vmatpush1.msra.mxu0 0.0
    %7114 = vmatprep.subr.mxu0 0.0
    %7115 = vmatpush1.msra.mxu0 0.0
    %7116 = vmatprep.subr.mxu0 0.0
    %7117 = vmatpush1.msra.mxu0 0.0
    %7118 = vmatprep.subr.mxu0 0.0
    %7119 = vmatpush1.msra.mxu0 0.0
    %7120 = vmatprep.subr.mxu0 0.0
    %7121 = vmatpush1.msra.mxu0 0.0
    %7122 = vmatprep.subr.mxu0 0.0
    %7123 = vmatpush1.msra.mxu0 0.0
    %7124 = vmatprep.subr.mxu0 0.0
    %7125 = vmatpush1.msra.mxu0 0.0
    %7126 = vmatprep.subr.mxu0 0.0
    %7127 = vmatpush1.msra.mxu0 0.0
    %7128 = vmatprep.subr.mxu0 0.0
    %7129 = vmatpush1.msra.mxu0 0.0
    %7130 = vmatprep.subr.mxu0 0.0
    %7131 = vmatpush1.msra.mxu0 0.0
    %7132 = vmatprep.subr.mxu0 0.0
    %7133 = vmatpush1.msra.mxu0 0.0
    %7134 = vmatprep.subr.mxu0 0.0
    %7135 = vmatpush1.msra.mxu0 0.0
    %7136 = vmatprep.mubr.f32.mxu0 0.0
    %v7137 = vand.u32 %v6767, 4294901760
    %7138 = vmatmul.mubr.f32.gmra.mrb[0].mxu0 %v7137
    %v7139 = vpop.f32.mrb[0].mxu0
    %v7140 = vadd.f32 %v7066, %v7139
    %v7141 = vpop.f32.mrb[0].mxu0
    %7142 = vdwg.mxu0
    %7143 = vmatprep.subr.mxu0 0.0
    %v7144 = vand.u32 %v6764, 4294901760
    %7145 = vmatpush1.msra.mxu0 %v7144
    %7146 = vmatprep.subr.mxu0 0.0
    %7147 = vmatpush1.msra.mxu0 0.0
    %7148 = vmatprep.subr.mxu0 0.0
    %7149 = vmatpush1.msra.mxu0 0.0
    %7150 = vmatprep.subr.mxu0 0.0
    %7151 = vmatpush1.msra.mxu0 0.0
    %7152 = vmatprep.subr.mxu0 0.0
    %7153 = vmatpush1.msra.mxu0 0.0
    %7154 = vmatprep.subr.mxu0 0.0
    %7155 = vmatpush1.msra.mxu0 0.0
    %7156 = vmatprep.subr.mxu0 0.0
    %7157 = vmatpush1.msra.mxu0 0.0
    %7158 = vmatprep.subr.mxu0 0.0
    %7159 = vmatpush1.msra.mxu0 0.0
    %7160 = vmatprep.subr.mxu0 0.0
    %7161 = vmatpush1.msra.mxu0 0.0
    %7162 = vmatprep.subr.mxu0 0.0
    %7163 = vmatpush1.msra.mxu0 0.0
    %7164 = vmatprep.subr.mxu0 0.0
    %7165 = vmatpush1.msra.mxu0 0.0
    %7166 = vmatprep.subr.mxu0 0.0
    %7167 = vmatpush1.msra.mxu0 0.0
    %7168 = vmatprep.subr.mxu0 0.0
    %7169 = vmatpush1.msra.mxu0 0.0
    %7170 = vmatprep.subr.mxu0 0.0
    %7171 = vmatpush1.msra.mxu0 0.0
    %7172 = vmatprep.subr.mxu0 0.0
    %7173 = vmatpush1.msra.mxu0 0.0
    %7174 = vmatprep.subr.mxu0 0.0
    %7175 = vmatpush1.msra.mxu0 0.0
    %7176 = vmatprep.subr.mxu0 0.0
    %7177 = vmatpush1.msra.mxu0 0.0
    %7178 = vmatprep.subr.mxu0 0.0
    %7179 = vmatpush1.msra.mxu0 0.0
    %7180 = vmatprep.subr.mxu0 0.0
    %7181 = vmatpush1.msra.mxu0 0.0
    %7182 = vmatprep.subr.mxu0 0.0
    %7183 = vmatpush1.msra.mxu0 0.0
    %7184 = vmatprep.subr.mxu0 0.0
    %7185 = vmatpush1.msra.mxu0 0.0
    %7186 = vmatprep.subr.mxu0 0.0
    %7187 = vmatpush1.msra.mxu0 0.0
    %7188 = vmatprep.subr.mxu0 0.0
    %7189 = vmatpush1.msra.mxu0 0.0
    %7190 = vmatprep.subr.mxu0 0.0
    %7191 = vmatpush1.msra.mxu0 0.0
    %7192 = vmatprep.subr.mxu0 0.0
    %7193 = vmatpush1.msra.mxu0 0.0
    %7194 = vmatprep.subr.mxu0 0.0
    %7195 = vmatpush1.msra.mxu0 0.0
    %7196 = vmatprep.subr.mxu0 0.0
    %7197 = vmatpush1.msra.mxu0 0.0
    %7198 = vmatprep.subr.mxu0 0.0
    %7199 = vmatpush1.msra.mxu0 0.0
    %7200 = vmatprep.subr.mxu0 0.0
    %7201 = vmatpush1.msra.mxu0 0.0
    %7202 = vmatprep.subr.mxu0 0.0
    %7203 = vmatpush1.msra.mxu0 0.0
    %7204 = vmatprep.subr.mxu0 0.0
    %7205 = vmatpush1.msra.mxu0 0.0
    %7206 = vmatprep.subr.mxu0 0.0
    %7207 = vmatpush1.msra.mxu0 0.0
    %7208 = vmatprep.mubr.f32.mxu0 0.0
    %v7209 = vand.u32 %v6767, 4294901760
    %7210 = vmatmul.mubr.f32.gmra.mrb[0].mxu0 %v7209
    %v7211 = vpop.f32.mrb[0].mxu0
    %v7212 = vadd.f32 %v7140, %v7211
    %v7213 = vpop.f32.mrb[0].mxu0
    %7214 = vdwg.mxu0
    %7216 = vrot.lane.b32.xlu0 %v7212, 8
    %v7217 = vpop.permute.xlu0 %7216
    %7219 = vst.msk [vmem:[#allocation2 + $0x8] sm:$0xff] %vm3536, %v7217
    %7220 = vrot.lane.b32.xlu0 %v643, 112
    %v7221 = vpop.permute.xlu0 %7220
    %7222 = vrot.lane.b32.xlu0 %v1169, 112
    %v7223 = vpop.permute.xlu0 %7222
    %v7224 = vsel %vm1700, %v7221, 0
    %v7226 = vsel %vm1700, %v7223, 0
    %7228 = vmatprep.subr.mxu0 0.0
    %v7229 = vand.u32 %v7226, 4294901760
    %7230 = vmatpush1.xpose.msra.mxu0 %v7229
    %7231 = vmatprep.subr.mxu0 0.0
    %7232 = vmatpush1.xpose.msra.mxu0 0.0
    %7233 = vmatprep.subr.mxu0 0.0
    %7234 = vmatpush1.xpose.msra.mxu0 0.0
    %7235 = vmatprep.subr.mxu0 0.0
    %7236 = vmatpush1.xpose.msra.mxu0 0.0
    %7237 = vmatprep.subr.mxu0 0.0
    %7238 = vmatpush1.xpose.msra.mxu0 0.0
    %7239 = vmatprep.subr.mxu0 0.0
    %7240 = vmatpush1.xpose.msra.mxu0 0.0
    %7241 = vmatprep.subr.mxu0 0.0
    %7242 = vmatpush1.xpose.msra.mxu0 0.0
    %7243 = vmatprep.subr.mxu0 0.0
    %7244 = vmatpush1.xpose.msra.mxu0 0.0
    %7245 = vmatprep.subr.mxu0 0.0
    %7246 = vmatpush1.xpose.msra.mxu0 0.0
    %7247 = vmatprep.subr.mxu0 0.0
    %7248 = vmatpush1.xpose.msra.mxu0 0.0
    %7249 = vmatprep.subr.mxu0 0.0
    %7250 = vmatpush1.xpose.msra.mxu0 0.0
    %7251 = vmatprep.subr.mxu0 0.0
    %7252 = vmatpush1.xpose.msra.mxu0 0.0
    %7253 = vmatprep.subr.mxu0 0.0
    %7254 = vmatpush1.xpose.msra.mxu0 0.0
    %7255 = vmatprep.subr.mxu0 0.0
    %7256 = vmatpush1.xpose.msra.mxu0 0.0
    %7257 = vmatprep.subr.mxu0 0.0
    %7258 = vmatpush1.xpose.msra.mxu0 0.0
    %7259 = vmatprep.subr.mxu0 0.0
    %7260 = vmatpush1.xpose.msra.mxu0 0.0
    %7261 = vmatprep.subr.mxu0 0.0
    %7262 = vmatpush1.xpose.msra.mxu0 0.0
    %7263 = vmatprep.subr.mxu0 0.0
    %7264 = vmatpush1.xpose.msra.mxu0 0.0
    %7265 = vmatprep.subr.mxu0 0.0
    %7266 = vmatpush1.xpose.msra.mxu0 0.0
    %7267 = vmatprep.subr.mxu0 0.0
    %7268 = vmatpush1.xpose.msra.mxu0 0.0
    %7269 = vmatprep.subr.mxu0 0.0
    %7270 = vmatpush1.xpose.msra.mxu0 0.0
    %7271 = vmatprep.subr.mxu0 0.0
    %7272 = vmatpush1.xpose.msra.mxu0 0.0
    %7273 = vmatprep.subr.mxu0 0.0
    %7274 = vmatpush1.xpose.msra.mxu0 0.0
    %7275 = vmatprep.subr.mxu0 0.0
    %7276 = vmatpush1.xpose.msra.mxu0 0.0
    %7277 = vmatprep.subr.mxu0 0.0
    %7278 = vmatpush1.xpose.msra.mxu0 0.0
    %7279 = vmatprep.subr.mxu0 0.0
    %7280 = vmatpush1.xpose.msra.mxu0 0.0
    %7281 = vmatprep.subr.mxu0 0.0
    %7282 = vmatpush1.xpose.msra.mxu0 0.0
    %7283 = vmatprep.subr.mxu0 0.0
    %7284 = vmatpush1.xpose.msra.mxu0 0.0
    %7285 = vmatprep.subr.mxu0 0.0
    %7286 = vmatpush1.xpose.msra.mxu0 0.0
    %7287 = vmatprep.subr.mxu0 0.0
    %7288 = vmatpush1.xpose.msra.mxu0 0.0
    %7289 = vmatprep.subr.mxu0 0.0
    %7290 = vmatpush1.xpose.msra.mxu0 0.0
    %7291 = vmatprep.subr.mxu0 0.0
    %7292 = vmatpush1.xpose.msra.mxu0 0.0
    %7293 = vmatprep.mubr.f32.mxu0 0.0
    %v7294 = vand.u32 %v7224, 4294901760
    %v7295 = vsub.f32 %v7224, %v7294
    %v7296 = vand.u32 %v7295, 4294901760
    %v7297 = vsub.f32 %v7295, %v7296
    %v7298 = vand.u32 %v7297, 4294901760
    %7299 = vmatmul.mubr.f32.gmra.mrb[0].mxu0 %v7298
    %v7300 = vpop.f32.mrb[0].mxu0
    %v7301 = vadd.f32 0.0, %v7300
    %v7302 = vpop.f32.mrb[0].mxu0
    %7303 = vdwg.mxu0
    %7304 = vmatprep.subr.mxu0 0.0
    %v7305 = vand.u32 %v7226, 4294901760
    %v7306 = vsub.f32 %v7226, %v7305
    %v7307 = vand.u32 %v7306, 4294901760
    %v7308 = vsub.f32 %v7306, %v7307
    %v7309 = vand.u32 %v7308, 4294901760
    %7310 = vmatpush1.xpose.msra.mxu0 %v7309
    %7311 = vmatprep.subr.mxu0 0.0
    %7312 = vmatpush1.xpose.msra.mxu0 0.0
    %7313 = vmatprep.subr.mxu0 0.0
    %7314 = vmatpush1.xpose.msra.mxu0 0.0
    %7315 = vmatprep.subr.mxu0 0.0
    %7316 = vmatpush1.xpose.msra.mxu0 0.0
    %7317 = vmatprep.subr.mxu0 0.0
    %7318 = vmatpush1.xpose.msra.mxu0 0.0
    %7319 = vmatprep.subr.mxu0 0.0
    %7320 = vmatpush1.xpose.msra.mxu0 0.0
    %7321 = vmatprep.subr.mxu0 0.0
    %7322 = vmatpush1.xpose.msra.mxu0 0.0
    %7323 = vmatprep.subr.mxu0 0.0
    %7324 = vmatpush1.xpose.msra.mxu0 0.0
    %7325 = vmatprep.subr.mxu0 0.0
    %7326 = vmatpush1.xpose.msra.mxu0 0.0
    %7327 = vmatprep.subr.mxu0 0.0
    %7328 = vmatpush1.xpose.msra.mxu0 0.0
    %7329 = vmatprep.subr.mxu0 0.0
    %7330 = vmatpush1.xpose.msra.mxu0 0.0
    %7331 = vmatprep.subr.mxu0 0.0
    %7332 = vmatpush1.xpose.msra.mxu0 0.0
    %7333 = vmatprep.subr.mxu0 0.0
    %7334 = vmatpush1.xpose.msra.mxu0 0.0
    %7335 = vmatprep.subr.mxu0 0.0
    %7336 = vmatpush1.xpose.msra.mxu0 0.0
    %7337 = vmatprep.subr.mxu0 0.0
    %7338 = vmatpush1.xpose.msra.mxu0 0.0
    %7339 = vmatprep.subr.mxu0 0.0
    %7340 = vmatpush1.xpose.msra.mxu0 0.0
    %7341 = vmatprep.subr.mxu0 0.0
    %7342 = vmatpush1.xpose.msra.mxu0 0.0
    %7343 = vmatprep.subr.mxu0 0.0
    %7344 = vmatpush1.xpose.msra.mxu0 0.0
    %7345 = vmatprep.subr.mxu0 0.0
    %7346 = vmatpush1.xpose.msra.mxu0 0.0
    %7347 = vmatprep.subr.mxu0 0.0
    %7348 = vmatpush1.xpose.msra.mxu0 0.0
    %7349 = vmatprep.subr.mxu0 0.0
    %7350 = vmatpush1.xpose.msra.mxu0 0.0
    %7351 = vmatprep.subr.mxu0 0.0
    %7352 = vmatpush1.xpose.msra.mxu0 0.0
    %7353 = vmatprep.subr.mxu0 0.0
    %7354 = vmatpush1.xpose.msra.mxu0 0.0
    %7355 = vmatprep.subr.mxu0 0.0
    %7356 = vmatpush1.xpose.msra.mxu0 0.0
    %7357 = vmatprep.subr.mxu0 0.0
    %7358 = vmatpush1.xpose.msra.mxu0 0.0
    %7359 = vmatprep.subr.mxu0 0.0
    %7360 = vmatpush1.xpose.msra.mxu0 0.0
    %7361 = vmatprep.subr.mxu0 0.0
    %7362 = vmatpush1.xpose.msra.mxu0 0.0
    %7363 = vmatprep.subr.mxu0 0.0
    %7364 = vmatpush1.xpose.msra.mxu0 0.0
    %7365 = vmatprep.subr.mxu0 0.0
    %7366 = vmatpush1.xpose.msra.mxu0 0.0
    %7367 = vmatprep.subr.mxu0 0.0
    %7368 = vmatpush1.xpose.msra.mxu0 0.0
    %7369 = vmatprep.subr.mxu0 0.0
    %7370 = vmatpush1.xpose.msra.mxu0 0.0
    %7371 = vmatprep.subr.mxu0 0.0
    %7372 = vmatpush1.xpose.msra.mxu0 0.0
    %7373 = vmatprep.mubr.f32.mxu0 0.0
    %v7374 = vand.u32 %v7224, 4294901760
    %7375 = vmatmul.mubr.f32.gmra.mrb[0].mxu0 %v7374
    %v7376 = vpop.f32.mrb[0].mxu0
    %v7377 = vadd.f32 %v7301, %v7376
    %v7378 = vpop.f32.mrb[0].mxu0
    %7379 = vdwg.mxu0
    %7380 = vmatprep.subr.mxu0 0.0
    %v7381 = vand.u32 %v7226, 4294901760
    %v7382 = vsub.f32 %v7226, %v7381
    %7383 = vmatpush1.xpose.msra.mxu0 %v7382
    %7384 = vmatprep.subr.mxu0 0.0
    %7385 = vmatpush1.xpose.msra.mxu0 0.0
    %7386 = vmatprep.subr.mxu0 0.0
    %7387 = vmatpush1.xpose.msra.mxu0 0.0
    %7388 = vmatprep.subr.mxu0 0.0
    %7389 = vmatpush1.xpose.msra.mxu0 0.0
    %7390 = vmatprep.subr.mxu0 0.0
    %7391 = vmatpush1.xpose.msra.mxu0 0.0
    %7392 = vmatprep.subr.mxu0 0.0
    %7393 = vmatpush1.xpose.msra.mxu0 0.0
    %7394 = vmatprep.subr.mxu0 0.0
    %7395 = vmatpush1.xpose.msra.mxu0 0.0
    %7396 = vmatprep.subr.mxu0 0.0
    %7397 = vmatpush1.xpose.msra.mxu0 0.0
    %7398 = vmatprep.subr.mxu0 0.0
    %7399 = vmatpush1.xpose.msra.mxu0 0.0
    %7400 = vmatprep.subr.mxu0 0.0
    %7401 = vmatpush1.xpose.msra.mxu0 0.0
    %7402 = vmatprep.subr.mxu0 0.0
    %7403 = vmatpush1.xpose.msra.mxu0 0.0
    %7404 = vmatprep.subr.mxu0 0.0
    %7405 = vmatpush1.xpose.msra.mxu0 0.0
    %7406 = vmatprep.subr.mxu0 0.0
    %7407 = vmatpush1.xpose.msra.mxu0 0.0
    %7408 = vmatprep.subr.mxu0 0.0
    %7409 = vmatpush1.xpose.msra.mxu0 0.0
    %7410 = vmatprep.subr.mxu0 0.0
    %7411 = vmatpush1.xpose.msra.mxu0 0.0
    %7412 = vmatprep.subr.mxu0 0.0
    %7413 = vmatpush1.xpose.msra.mxu0 0.0
    %7414 = vmatprep.subr.mxu0 0.0
    %7415 = vmatpush1.xpose.msra.mxu0 0.0
    %7416 = vmatprep.subr.mxu0 0.0
    %7417 = vmatpush1.xpose.msra.mxu0 0.0
    %7418 = vmatprep.subr.mxu0 0.0
    %7419 = vmatpush1.xpose.msra.mxu0 0.0
    %7420 = vmatprep.subr.mxu0 0.0
    %7421 = vmatpush1.xpose.msra.mxu0 0.0
    %7422 = vmatprep.subr.mxu0 0.0
    %7423 = vmatpush1.xpose.msra.mxu0 0.0
    %7424 = vmatprep.subr.mxu0 0.0
    %7425 = vmatpush1.xpose.msra.mxu0 0.0
    %7426 = vmatprep.subr.mxu0 0.0
    %7427 = vmatpush1.xpose.msra.mxu0 0.0
    %7428 = vmatprep.subr.mxu0 0.0
    %7429 = vmatpush1.xpose.msra.mxu0 0.0
    %7430 = vmatprep.subr.mxu0 0.0
    %7431 = vmatpush1.xpose.msra.mxu0 0.0
    %7432 = vmatprep.subr.mxu0 0.0
    %7433 = vmatpush1.xpose.msra.mxu0 0.0
    %7434 = vmatprep.subr.mxu0 0.0
    %7435 = vmatpush1.xpose.msra.mxu0 0.0
    %7436 = vmatprep.subr.mxu0 0.0
    %7437 = vmatpush1.xpose.msra.mxu0 0.0
    %7438 = vmatprep.subr.mxu0 0.0
    %7439 = vmatpush1.xpose.msra.mxu0 0.0
    %7440 = vmatprep.subr.mxu0 0.0
    %7441 = vmatpush1.xpose.msra.mxu0 0.0
    %7442 = vmatprep.subr.mxu0 0.0
    %7443 = vmatpush1.xpose.msra.mxu0 0.0
    %7444 = vmatprep.subr.mxu0 0.0
    %7445 = vmatpush1.xpose.msra.mxu0 0.0
    %7446 = vmatprep.mubr.f32.mxu0 0.0
    %v7447 = vand.u32 %v7224, 4294901760
    %v7448 = vsub.f32 %v7224, %v7447
    %7449 = vmatmul.mubr.f32.gmra.mrb[0].mxu0 %v7448
    %v7450 = vpop.f32.mrb[0].mxu0
    %v7451 = vadd.f32 %v7377, %v7450
    %v7452 = vpop.f32.mrb[0].mxu0
    %7453 = vdwg.mxu0
    %7454 = vmatprep.subr.mxu0 0.0
    %v7455 = vand.u32 %v7226, 4294901760
    %7456 = vmatpush1.xpose.msra.mxu0 %v7455
    %7457 = vmatprep.subr.mxu0 0.0
    %7458 = vmatpush1.xpose.msra.mxu0 0.0
    %7459 = vmatprep.subr.mxu0 0.0
    %7460 = vmatpush1.xpose.msra.mxu0 0.0
    %7461 = vmatprep.subr.mxu0 0.0
    %7462 = vmatpush1.xpose.msra.mxu0 0.0
    %7463 = vmatprep.subr.mxu0 0.0
    %7464 = vmatpush1.xpose.msra.mxu0 0.0
    %7465 = vmatprep.subr.mxu0 0.0
    %7466 = vmatpush1.xpose.msra.mxu0 0.0
    %7467 = vmatprep.subr.mxu0 0.0
    %7468 = vmatpush1.xpose.msra.mxu0 0.0
    %7469 = vmatprep.subr.mxu0 0.0
    %7470 = vmatpush1.xpose.msra.mxu0 0.0
    %7471 = vmatprep.subr.mxu0 0.0
    %7472 = vmatpush1.xpose.msra.mxu0 0.0
    %7473 = vmatprep.subr.mxu0 0.0
    %7474 = vmatpush1.xpose.msra.mxu0 0.0
    %7475 = vmatprep.subr.mxu0 0.0
    %7476 = vmatpush1.xpose.msra.mxu0 0.0
    %7477 = vmatprep.subr.mxu0 0.0
    %7478 = vmatpush1.xpose.msra.mxu0 0.0
    %7479 = vmatprep.subr.mxu0 0.0
    %7480 = vmatpush1.xpose.msra.mxu0 0.0
    %7481 = vmatprep.subr.mxu0 0.0
    %7482 = vmatpush1.xpose.msra.mxu0 0.0
    %7483 = vmatprep.subr.mxu0 0.0
    %7484 = vmatpush1.xpose.msra.mxu0 0.0
    %7485 = vmatprep.subr.mxu0 0.0
    %7486 = vmatpush1.xpose.msra.mxu0 0.0
    %7487 = vmatprep.subr.mxu0 0.0
    %7488 = vmatpush1.xpose.msra.mxu0 0.0
    %7489 = vmatprep.subr.mxu0 0.0
    %7490 = vmatpush1.xpose.msra.mxu0 0.0
    %7491 = vmatprep.subr.mxu0 0.0
    %7492 = vmatpush1.xpose.msra.mxu0 0.0
    %7493 = vmatprep.subr.mxu0 0.0
    %7494 = vmatpush1.xpose.msra.mxu0 0.0
    %7495 = vmatprep.subr.mxu0 0.0
    %7496 = vmatpush1.xpose.msra.mxu0 0.0
    %7497 = vmatprep.subr.mxu0 0.0
    %7498 = vmatpush1.xpose.msra.mxu0 0.0
    %7499 = vmatprep.subr.mxu0 0.0
    %7500 = vmatpush1.xpose.msra.mxu0 0.0
    %7501 = vmatprep.subr.mxu0 0.0
    %7502 = vmatpush1.xpose.msra.mxu0 0.0
    %7503 = vmatprep.subr.mxu0 0.0
    %7504 = vmatpush1.xpose.msra.mxu0 0.0
    %7505 = vmatprep.subr.mxu0 0.0
    %7506 = vmatpush1.xpose.msra.mxu0 0.0
    %7507 = vmatprep.subr.mxu0 0.0
    %7508 = vmatpush1.xpose.msra.mxu0 0.0
    %7509 = vmatprep.subr.mxu0 0.0
    %7510 = vmatpush1.xpose.msra.mxu0 0.0
    %7511 = vmatprep.subr.mxu0 0.0
    %7512 = vmatpush1.xpose.msra.mxu0 0.0
    %7513 = vmatprep.subr.mxu0 0.0
    %7514 = vmatpush1.xpose.msra.mxu0 0.0
    %7515 = vmatprep.subr.mxu0 0.0
    %7516 = vmatpush1.xpose.msra.mxu0 0.0
    %7517 = vmatprep.subr.mxu0 0.0
    %7518 = vmatpush1.xpose.msra.mxu0 0.0
    %7519 = vmatprep.mubr.f32.mxu0 0.0
    %v7520 = vand.u32 %v7224, 4294901760
    %v7521 = vsub.f32 %v7224, %v7520
    %v7522 = vand.u32 %v7521, 4294901760
    %7523 = vmatmul.mubr.f32.gmra.mrb[0].mxu0 %v7522
    %v7524 = vpop.f32.mrb[0].mxu0
    %v7525 = vadd.f32 %v7451, %v7524
    %v7526 = vpop.f32.mrb[0].mxu0
    %7527 = vdwg.mxu0
    %7528 = vmatprep.subr.mxu0 0.0
    %v7529 = vand.u32 %v7226, 4294901760
    %v7530 = vsub.f32 %v7226, %v7529
    %v7531 = vand.u32 %v7530, 4294901760
    %7532 = vmatpush1.xpose.msra.mxu0 %v7531
    %7533 = vmatprep.subr.mxu0 0.0
    %7534 = vmatpush1.xpose.msra.mxu0 0.0
    %7535 = vmatprep.subr.mxu0 0.0
    %7536 = vmatpush1.xpose.msra.mxu0 0.0
    %7537 = vmatprep.subr.mxu0 0.0
    %7538 = vmatpush1.xpose.msra.mxu0 0.0
    %7539 = vmatprep.subr.mxu0 0.0
    %7540 = vmatpush1.xpose.msra.mxu0 0.0
    %7541 = vmatprep.subr.mxu0 0.0
    %7542 = vmatpush1.xpose.msra.mxu0 0.0
    %7543 = vmatprep.subr.mxu0 0.0
    %7544 = vmatpush1.xpose.msra.mxu0 0.0
    %7545 = vmatprep.subr.mxu0 0.0
    %7546 = vmatpush1.xpose.msra.mxu0 0.0
    %7547 = vmatprep.subr.mxu0 0.0
    %7548 = vmatpush1.xpose.msra.mxu0 0.0
    %7549 = vmatprep.subr.mxu0 0.0
    %7550 = vmatpush1.xpose.msra.mxu0 0.0
    %7551 = vmatprep.subr.mxu0 0.0
    %7552 = vmatpush1.xpose.msra.mxu0 0.0
    %7553 = vmatprep.subr.mxu0 0.0
    %7554 = vmatpush1.xpose.msra.mxu0 0.0
    %7555 = vmatprep.subr.mxu0 0.0
    %7556 = vmatpush1.xpose.msra.mxu0 0.0
    %7557 = vmatprep.subr.mxu0 0.0
    %7558 = vmatpush1.xpose.msra.mxu0 0.0
    %7559 = vmatprep.subr.mxu0 0.0
    %7560 = vmatpush1.xpose.msra.mxu0 0.0
    %7561 = vmatprep.subr.mxu0 0.0
    %7562 = vmatpush1.xpose.msra.mxu0 0.0
    %7563 = vmatprep.subr.mxu0 0.0
    %7564 = vmatpush1.xpose.msra.mxu0 0.0
    %7565 = vmatprep.subr.mxu0 0.0
    %7566 = vmatpush1.xpose.msra.mxu0 0.0
    %7567 = vmatprep.subr.mxu0 0.0
    %7568 = vmatpush1.xpose.msra.mxu0 0.0
    %7569 = vmatprep.subr.mxu0 0.0
    %7570 = vmatpush1.xpose.msra.mxu0 0.0
    %7571 = vmatprep.subr.mxu0 0.0
    %7572 = vmatpush1.xpose.msra.mxu0 0.0
    %7573 = vmatprep.subr.mxu0 0.0
    %7574 = vmatpush1.xpose.msra.mxu0 0.0
    %7575 = vmatprep.subr.mxu0 0.0
    %7576 = vmatpush1.xpose.msra.mxu0 0.0
    %7577 = vmatprep.subr.mxu0 0.0
    %7578 = vmatpush1.xpose.msra.mxu0 0.0
    %7579 = vmatprep.subr.mxu0 0.0
    %7580 = vmatpush1.xpose.msra.mxu0 0.0
    %7581 = vmatprep.subr.mxu0 0.0
    %7582 = vmatpush1.xpose.msra.mxu0 0.0
    %7583 = vmatprep.subr.mxu0 0.0
    %7584 = vmatpush1.xpose.msra.mxu0 0.0
    %7585 = vmatprep.subr.mxu0 0.0
    %7586 = vmatpush1.xpose.msra.mxu0 0.0
    %7587 = vmatprep.subr.mxu0 0.0
    %7588 = vmatpush1.xpose.msra.mxu0 0.0
    %7589 = vmatprep.subr.mxu0 0.0
    %7590 = vmatpush1.xpose.msra.mxu0 0.0
    %7591 = vmatprep.subr.mxu0 0.0
    %7592 = vmatpush1.xpose.msra.mxu0 0.0
    %7593 = vmatprep.subr.mxu0 0.0
    %7594 = vmatpush1.xpose.msra.mxu0 0.0
    %7595 = vmatprep.mubr.f32.mxu0 0.0
    %v7596 = vand.u32 %v7224, 4294901760
    %7597 = vmatmul.mubr.f32.gmra.mrb[0].mxu0 %v7596
    %v7598 = vpop.f32.mrb[0].mxu0
    %v7599 = vadd.f32 %v7525, %v7598
    %v7600 = vpop.f32.mrb[0].mxu0
    %7601 = vdwg.mxu0
    %7602 = vmatprep.subr.mxu0 0.0
    %v7603 = vand.u32 %v7226, 4294901760
    %7604 = vmatpush1.xpose.msra.mxu0 %v7603
    %7605 = vmatprep.subr.mxu0 0.0
    %7606 = vmatpush1.xpose.msra.mxu0 0.0
    %7607 = vmatprep.subr.mxu0 0.0
    %7608 = vmatpush1.xpose.msra.mxu0 0.0
    %7609 = vmatprep.subr.mxu0 0.0
    %7610 = vmatpush1.xpose.msra.mxu0 0.0
    %7611 = vmatprep.subr.mxu0 0.0
    %7612 = vmatpush1.xpose.msra.mxu0 0.0
    %7613 = vmatprep.subr.mxu0 0.0
    %7614 = vmatpush1.xpose.msra.mxu0 0.0
    %7615 = vmatprep.subr.mxu0 0.0
    %7616 = vmatpush1.xpose.msra.mxu0 0.0
    %7617 = vmatprep.subr.mxu0 0.0
    %7618 = vmatpush1.xpose.msra.mxu0 0.0
    %7619 = vmatprep.subr.mxu0 0.0
    %7620 = vmatpush1.xpose.msra.mxu0 0.0
    %7621 = vmatprep.subr.mxu0 0.0
    %7622 = vmatpush1.xpose.msra.mxu0 0.0
    %7623 = vmatprep.subr.mxu0 0.0
    %7624 = vmatpush1.xpose.msra.mxu0 0.0
    %7625 = vmatprep.subr.mxu0 0.0
    %7626 = vmatpush1.xpose.msra.mxu0 0.0
    %7627 = vmatprep.subr.mxu0 0.0
    %7628 = vmatpush1.xpose.msra.mxu0 0.0
    %7629 = vmatprep.subr.mxu0 0.0
    %7630 = vmatpush1.xpose.msra.mxu0 0.0
    %7631 = vmatprep.subr.mxu0 0.0
    %7632 = vmatpush1.xpose.msra.mxu0 0.0
    %7633 = vmatprep.subr.mxu0 0.0
    %7634 = vmatpush1.xpose.msra.mxu0 0.0
    %7635 = vmatprep.subr.mxu0 0.0
    %7636 = vmatpush1.xpose.msra.mxu0 0.0
    %7637 = vmatprep.subr.mxu0 0.0
    %7638 = vmatpush1.xpose.msra.mxu0 0.0
    %7639 = vmatprep.subr.mxu0 0.0
    %7640 = vmatpush1.xpose.msra.mxu0 0.0
    %7641 = vmatprep.subr.mxu0 0.0
    %7642 = vmatpush1.xpose.msra.mxu0 0.0
    %7643 = vmatprep.subr.mxu0 0.0
    %7644 = vmatpush1.xpose.msra.mxu0 0.0
    %7645 = vmatprep.subr.mxu0 0.0
    %7646 = vmatpush1.xpose.msra.mxu0 0.0
    %7647 = vmatprep.subr.mxu0 0.0
    %7648 = vmatpush1.xpose.msra.mxu0 0.0
    %7649 = vmatprep.subr.mxu0 0.0
    %7650 = vmatpush1.xpose.msra.mxu0 0.0
    %7651 = vmatprep.subr.mxu0 0.0
    %7652 = vmatpush1.xpose.msra.mxu0 0.0
    %7653 = vmatprep.subr.mxu0 0.0
    %7654 = vmatpush1.xpose.msra.mxu0 0.0
    %7655 = vmatprep.subr.mxu0 0.0
    %7656 = vmatpush1.xpose.msra.mxu0 0.0
    %7657 = vmatprep.subr.mxu0 0.0
    %7658 = vmatpush1.xpose.msra.mxu0 0.0
    %7659 = vmatprep.subr.mxu0 0.0
    %7660 = vmatpush1.xpose.msra.mxu0 0.0
    %7661 = vmatprep.subr.mxu0 0.0
    %7662 = vmatpush1.xpose.msra.mxu0 0.0
    %7663 = vmatprep.subr.mxu0 0.0
    %7664 = vmatpush1.xpose.msra.mxu0 0.0
    %7665 = vmatprep.subr.mxu0 0.0
    %7666 = vmatpush1.xpose.msra.mxu0 0.0
    %7667 = vmatprep.mubr.f32.mxu0 0.0
    %v7668 = vand.u32 %v7224, 4294901760
    %7669 = vmatmul.mubr.f32.gmra.mrb[0].mxu0 %v7668
    %v7670 = vpop.f32.mrb[0].mxu0
    %v7671 = vadd.f32 %v7599, %v7670
    %v7672 = vpop.f32.mrb[0].mxu0
    %7673 = vdwg.mxu0
    %v7674 = vsel %vm1700, %v7671, -inf
    %7675 = vmax.xlane.f32.xlu0 %v7674
    %v7676 = vpop.xlane.xlu0 %7675
    %v7677 = vsub.f32 %v7671, %v7676
    %v7678 = vmul.f32 %v7677, 1.442695
    %v7679 = vpow.pop %v7678
    %v7680 = vsel %vm1700, %v7679, 0.0
    %7681 = vadd.xlane.f32.xlu0 %v7680
    %v7682 = vpop.xlane.xlu0 %7681
    %v7683 = vrcp.pop %v7682
    %v7684 = vmul.f32 %v7679, %v7683
    %7685 = vrot.lane.b32.xlu0 %v1697, 112
    %v7686 = vpop.permute.xlu0 %7685
    %v7689 = vsel %vm1700, %v7684, 0
    %7691 = vmatprep.subr.mxu0 0.0
    %v7692 = vand.u32 %v7686, 4294901760
    %7693 = vmatpush1.msra.mxu0 %v7692
    %7694 = vmatprep.subr.mxu0 0.0
    %7695 = vmatpush1.msra.mxu0 0.0
    %7696 = vmatprep.subr.mxu0 0.0
    %7697 = vmatpush1.msra.mxu0 0.0
    %7698 = vmatprep.subr.mxu0 0.0
    %7699 = vmatpush1.msra.mxu0 0.0
    %7700 = vmatprep.subr.mxu0 0.0
    %7701 = vmatpush1.msra.mxu0 0.0
    %7702 = vmatprep.subr.mxu0 0.0
    %7703 = vmatpush1.msra.mxu0 0.0
    %7704 = vmatprep.subr.mxu0 0.0
    %7705 = vmatpush1.msra.mxu0 0.0
    %7706 = vmatprep.subr.mxu0 0.0
    %7707 = vmatpush1.msra.mxu0 0.0
    %7708 = vmatprep.subr.mxu0 0.0
    %7709 = vmatpush1.msra.mxu0 0.0
    %7710 = vmatprep.subr.mxu0 0.0
    %7711 = vmatpush1.msra.mxu0 0.0
    %7712 = vmatprep.subr.mxu0 0.0
    %7713 = vmatpush1.msra.mxu0 0.0
    %7714 = vmatprep.subr.mxu0 0.0
    %7715 = vmatpush1.msra.mxu0 0.0
    %7716 = vmatprep.subr.mxu0 0.0
    %7717 = vmatpush1.msra.mxu0 0.0
    %7718 = vmatprep.subr.mxu0 0.0
    %7719 = vmatpush1.msra.mxu0 0.0
    %7720 = vmatprep.subr.mxu0 0.0
    %7721 = vmatpush1.msra.mxu0 0.0
    %7722 = vmatprep.subr.mxu0 0.0
    %7723 = vmatpush1.msra.mxu0 0.0
    %7724 = vmatprep.subr.mxu0 0.0
    %7725 = vmatpush1.msra.mxu0 0.0
    %7726 = vmatprep.subr.mxu0 0.0
    %7727 = vmatpush1.msra.mxu0 0.0
    %7728 = vmatprep.subr.mxu0 0.0
    %7729 = vmatpush1.msra.mxu0 0.0
    %7730 = vmatprep.subr.mxu0 0.0
    %7731 = vmatpush1.msra.mxu0 0.0
    %7732 = vmatprep.subr.mxu0 0.0
    %7733 = vmatpush1.msra.mxu0 0.0
    %7734 = vmatprep.subr.mxu0 0.0
    %7735 = vmatpush1.msra.mxu0 0.0
    %7736 = vmatprep.subr.mxu0 0.0
    %7737 = vmatpush1.msra.mxu0 0.0
    %7738 = vmatprep.subr.mxu0 0.0
    %7739 = vmatpush1.msra.mxu0 0.0
    %7740 = vmatprep.subr.mxu0 0.0
    %7741 = vmatpush1.msra.mxu0 0.0
    %7742 = vmatprep.subr.mxu0 0.0
    %7743 = vmatpush1.msra.mxu0 0.0
    %7744 = vmatprep.subr.mxu0 0.0
    %7745 = vmatpush1.msra.mxu0 0.0
    %7746 = vmatprep.subr.mxu0 0.0
    %7747 = vmatpush1.msra.mxu0 0.0
    %7748 = vmatprep.subr.mxu0 0.0
    %7749 = vmatpush1.msra.mxu0 0.0
    %7750 = vmatprep.subr.mxu0 0.0
    %7751 = vmatpush1.msra.mxu0 0.0
    %7752 = vmatprep.subr.mxu0 0.0
    %7753 = vmatpush1.msra.mxu0 0.0
    %7754 = vmatprep.subr.mxu0 0.0
    %7755 = vmatpush1.msra.mxu0 0.0
    %7756 = vmatprep.mubr.f32.mxu0 0.0
    %v7757 = vand.u32 %v7689, 4294901760
    %v7758 = vsub.f32 %v7689, %v7757
    %v7759 = vand.u32 %v7758, 4294901760
    %v7760 = vsub.f32 %v7758, %v7759
    %v7761 = vand.u32 %v7760, 4294901760
    %7762 = vmatmul.mubr.f32.gmra.mrb[0].mxu0 %v7761
    %v7763 = vpop.f32.mrb[0].mxu0
    %v7764 = vadd.f32 0.0, %v7763
    %v7765 = vpop.f32.mrb[0].mxu0
    %7766 = vdwg.mxu0
    %7767 = vmatprep.subr.mxu0 0.0
    %v7768 = vand.u32 %v7686, 4294901760
    %v7769 = vsub.f32 %v7686, %v7768
    %v7770 = vand.u32 %v7769, 4294901760
    %v7771 = vsub.f32 %v7769, %v7770
    %v7772 = vand.u32 %v7771, 4294901760
    %7773 = vmatpush1.msra.mxu0 %v7772
    %7774 = vmatprep.subr.mxu0 0.0
    %7775 = vmatpush1.msra.mxu0 0.0
    %7776 = vmatprep.subr.mxu0 0.0
    %7777 = vmatpush1.msra.mxu0 0.0
    %7778 = vmatprep.subr.mxu0 0.0
    %7779 = vmatpush1.msra.mxu0 0.0
    %7780 = vmatprep.subr.mxu0 0.0
    %7781 = vmatpush1.msra.mxu0 0.0
    %7782 = vmatprep.subr.mxu0 0.0
    %7783 = vmatpush1.msra.mxu0 0.0
    %7784 = vmatprep.subr.mxu0 0.0
    %7785 = vmatpush1.msra.mxu0 0.0
    %7786 = vmatprep.subr.mxu0 0.0
    %7787 = vmatpush1.msra.mxu0 0.0
    %7788 = vmatprep.subr.mxu0 0.0
    %7789 = vmatpush1.msra.mxu0 0.0
    %7790 = vmatprep.subr.mxu0 0.0
    %7791 = vmatpush1.msra.mxu0 0.0
    %7792 = vmatprep.subr.mxu0 0.0
    %7793 = vmatpush1.msra.mxu0 0.0
    %7794 = vmatprep.subr.mxu0 0.0
    %7795 = vmatpush1.msra.mxu0 0.0
    %7796 = vmatprep.subr.mxu0 0.0
    %7797 = vmatpush1.msra.mxu0 0.0
    %7798 = vmatprep.subr.mxu0 0.0
    %7799 = vmatpush1.msra.mxu0 0.0
    %7800 = vmatprep.subr.mxu0 0.0
    %7801 = vmatpush1.msra.mxu0 0.0
    %7802 = vmatprep.subr.mxu0 0.0
    %7803 = vmatpush1.msra.mxu0 0.0
    %7804 = vmatprep.subr.mxu0 0.0
    %7805 = vmatpush1.msra.mxu0 0.0
    %7806 = vmatprep.subr.mxu0 0.0
    %7807 = vmatpush1.msra.mxu0 0.0
    %7808 = vmatprep.subr.mxu0 0.0
    %7809 = vmatpush1.msra.mxu0 0.0
    %7810 = vmatprep.subr.mxu0 0.0
    %7811 = vmatpush1.msra.mxu0 0.0
    %7812 = vmatprep.subr.mxu0 0.0
    %7813 = vmatpush1.msra.mxu0 0.0
    %7814 = vmatprep.subr.mxu0 0.0
    %7815 = vmatpush1.msra.mxu0 0.0
    %7816 = vmatprep.subr.mxu0 0.0
    %7817 = vmatpush1.msra.mxu0 0.0
    %7818 = vmatprep.subr.mxu0 0.0
    %7819 = vmatpush1.msra.mxu0 0.0
    %7820 = vmatprep.subr.mxu0 0.0
    %7821 = vmatpush1.msra.mxu0 0.0
    %7822 = vmatprep.subr.mxu0 0.0
    %7823 = vmatpush1.msra.mxu0 0.0
    %7824 = vmatprep.subr.mxu0 0.0
    %7825 = vmatpush1.msra.mxu0 0.0
    %7826 = vmatprep.subr.mxu0 0.0
    %7827 = vmatpush1.msra.mxu0 0.0
    %7828 = vmatprep.subr.mxu0 0.0
    %7829 = vmatpush1.msra.mxu0 0.0
    %7830 = vmatprep.subr.mxu0 0.0
    %7831 = vmatpush1.msra.mxu0 0.0
    %7832 = vmatprep.subr.mxu0 0.0
    %7833 = vmatpush1.msra.mxu0 0.0
    %7834 = vmatprep.subr.mxu0 0.0
    %7835 = vmatpush1.msra.mxu0 0.0
    %7836 = vmatprep.mubr.f32.mxu0 0.0
    %v7837 = vand.u32 %v7689, 4294901760
    %7838 = vmatmul.mubr.f32.gmra.mrb[0].mxu0 %v7837
    %v7839 = vpop.f32.mrb[0].mxu0
    %v7840 = vadd.f32 %v7764, %v7839
    %v7841 = vpop.f32.mrb[0].mxu0
    %7842 = vdwg.mxu0
    %7843 = vmatprep.subr.mxu0 0.0
    %v7844 = vand.u32 %v7686, 4294901760
    %v7845 = vsub.f32 %v7686, %v7844
    %7846 = vmatpush1.msra.mxu0 %v7845
    %7847 = vmatprep.subr.mxu0 0.0
    %7848 = vmatpush1.msra.mxu0 0.0
    %7849 = vmatprep.subr.mxu0 0.0
    %7850 = vmatpush1.msra.mxu0 0.0
    %7851 = vmatprep.subr.mxu0 0.0
    %7852 = vmatpush1.msra.mxu0 0.0
    %7853 = vmatprep.subr.mxu0 0.0
    %7854 = vmatpush1.msra.mxu0 0.0
    %7855 = vmatprep.subr.mxu0 0.0
    %7856 = vmatpush1.msra.mxu0 0.0
    %7857 = vmatprep.subr.mxu0 0.0
    %7858 = vmatpush1.msra.mxu0 0.0
    %7859 = vmatprep.subr.mxu0 0.0
    %7860 = vmatpush1.msra.mxu0 0.0
    %7861 = vmatprep.subr.mxu0 0.0
    %7862 = vmatpush1.msra.mxu0 0.0
    %7863 = vmatprep.subr.mxu0 0.0
    %7864 = vmatpush1.msra.mxu0 0.0
    %7865 = vmatprep.subr.mxu0 0.0
    %7866 = vmatpush1.msra.mxu0 0.0
    %7867 = vmatprep.subr.mxu0 0.0
    %7868 = vmatpush1.msra.mxu0 0.0
    %7869 = vmatprep.subr.mxu0 0.0
    %7870 = vmatpush1.msra.mxu0 0.0
    %7871 = vmatprep.subr.mxu0 0.0
    %7872 = vmatpush1.msra.mxu0 0.0
    %7873 = vmatprep.subr.mxu0 0.0
    %7874 = vmatpush1.msra.mxu0 0.0
    %7875 = vmatprep.subr.mxu0 0.0
    %7876 = vmatpush1.msra.mxu0 0.0
    %7877 = vmatprep.subr.mxu0 0.0
    %7878 = vmatpush1.msra.mxu0 0.0
    %7879 = vmatprep.subr.mxu0 0.0
    %7880 = vmatpush1.msra.mxu0 0.0
    %7881 = vmatprep.subr.mxu0 0.0
    %7882 = vmatpush1.msra.mxu0 0.0
    %7883 = vmatprep.subr.mxu0 0.0
    %7884 = vmatpush1.msra.mxu0 0.0
    %7885 = vmatprep.subr.mxu0 0.0
    %7886 = vmatpush1.msra.mxu0 0.0
    %7887 = vmatprep.subr.mxu0 0.0
    %7888 = vmatpush1.msra.mxu0 0.0
    %7889 = vmatprep.subr.mxu0 0.0
    %7890 = vmatpush1.msra.mxu0 0.0
    %7891 = vmatprep.subr.mxu0 0.0
    %7892 = vmatpush1.msra.mxu0 0.0
    %7893 = vmatprep.subr.mxu0 0.0
    %7894 = vmatpush1.msra.mxu0 0.0
    %7895 = vmatprep.subr.mxu0 0.0
    %7896 = vmatpush1.msra.mxu0 0.0
    %7897 = vmatprep.subr.mxu0 0.0
    %7898 = vmatpush1.msra.mxu0 0.0
    %7899 = vmatprep.subr.mxu0 0.0
    %7900 = vmatpush1.msra.mxu0 0.0
    %7901 = vmatprep.subr.mxu0 0.0
    %7902 = vmatpush1.msra.mxu0 0.0
    %7903 = vmatprep.subr.mxu0 0.0
    %7904 = vmatpush1.msra.mxu0 0.0
    %7905 = vmatprep.subr.mxu0 0.0
    %7906 = vmatpush1.msra.mxu0 0.0
    %7907 = vmatprep.subr.mxu0 0.0
    %7908 = vmatpush1.msra.mxu0 0.0
    %7909 = vmatprep.mubr.f32.mxu0 0.0
    %v7910 = vand.u32 %v7689, 4294901760
    %v7911 = vsub.f32 %v7689, %v7910
    %7912 = vmatmul.mubr.f32.gmra.mrb[0].mxu0 %v7911
    %v7913 = vpop.f32.mrb[0].mxu0
    %v7914 = vadd.f32 %v7840, %v7913
    %v7915 = vpop.f32.mrb[0].mxu0
    %7916 = vdwg.mxu0
    %7917 = vmatprep.subr.mxu0 0.0
    %v7918 = vand.u32 %v7686, 4294901760
    %7919 = vmatpush1.msra.mxu0 %v7918
    %7920 = vmatprep.subr.mxu0 0.0
    %7921 = vmatpush1.msra.mxu0 0.0
    %7922 = vmatprep.subr.mxu0 0.0
    %7923 = vmatpush1.msra.mxu0 0.0
    %7924 = vmatprep.subr.mxu0 0.0
    %7925 = vmatpush1.msra.mxu0 0.0
    %7926 = vmatprep.subr.mxu0 0.0
    %7927 = vmatpush1.msra.mxu0 0.0
    %7928 = vmatprep.subr.mxu0 0.0
    %7929 = vmatpush1.msra.mxu0 0.0
    %7930 = vmatprep.subr.mxu0 0.0
    %7931 = vmatpush1.msra.mxu0 0.0
    %7932 = vmatprep.subr.mxu0 0.0
    %7933 = vmatpush1.msra.mxu0 0.0
    %7934 = vmatprep.subr.mxu0 0.0
    %7935 = vmatpush1.msra.mxu0 0.0
    %7936 = vmatprep.subr.mxu0 0.0
    %7937 = vmatpush1.msra.mxu0 0.0
    %7938 = vmatprep.subr.mxu0 0.0
    %7939 = vmatpush1.msra.mxu0 0.0
    %7940 = vmatprep.subr.mxu0 0.0
    %7941 = vmatpush1.msra.mxu0 0.0
    %7942 = vmatprep.subr.mxu0 0.0
    %7943 = vmatpush1.msra.mxu0 0.0
    %7944 = vmatprep.subr.mxu0 0.0
    %7945 = vmatpush1.msra.mxu0 0.0
    %7946 = vmatprep.subr.mxu0 0.0
    %7947 = vmatpush1.msra.mxu0 0.0
    %7948 = vmatprep.subr.mxu0 0.0
    %7949 = vmatpush1.msra.mxu0 0.0
    %7950 = vmatprep.subr.mxu0 0.0
    %7951 = vmatpush1.msra.mxu0 0.0
    %7952 = vmatprep.subr.mxu0 0.0
    %7953 = vmatpush1.msra.mxu0 0.0
    %7954 = vmatprep.subr.mxu0 0.0
    %7955 = vmatpush1.msra.mxu0 0.0
    %7956 = vmatprep.subr.mxu0 0.0
    %7957 = vmatpush1.msra.mxu0 0.0
    %7958 = vmatprep.subr.mxu0 0.0
    %7959 = vmatpush1.msra.mxu0 0.0
    %7960 = vmatprep.subr.mxu0 0.0
    %7961 = vmatpush1.msra.mxu0 0.0
    %7962 = vmatprep.subr.mxu0 0.0
    %7963 = vmatpush1.msra.mxu0 0.0
    %7964 = vmatprep.subr.mxu0 0.0
    %7965 = vmatpush1.msra.mxu0 0.0
    %7966 = vmatprep.subr.mxu0 0.0
    %7967 = vmatpush1.msra.mxu0 0.0
    %7968 = vmatprep.subr.mxu0 0.0
    %7969 = vmatpush1.msra.mxu0 0.0
    %7970 = vmatprep.subr.mxu0 0.0
    %7971 = vmatpush1.msra.mxu0 0.0
    %7972 = vmatprep.subr.mxu0 0.0
    %7973 = vmatpush1.msra.mxu0 0.0
    %7974 = vmatprep.subr.mxu0 0.0
    %7975 = vmatpush1.msra.mxu0 0.0
    %7976 = vmatprep.subr.mxu0 0.0
    %7977 = vmatpush1.msra.mxu0 0.0
    %7978 = vmatprep.subr.mxu0 0.0
    %7979 = vmatpush1.msra.mxu0 0.0
    %7980 = vmatprep.subr.mxu0 0.0
    %7981 = vmatpush1.msra.mxu0 0.0
    %7982 = vmatprep.mubr.f32.mxu0 0.0
    %v7983 = vand.u32 %v7689, 4294901760
    %v7984 = vsub.f32 %v7689, %v7983
    %v7985 = vand.u32 %v7984, 4294901760
    %7986 = vmatmul.mubr.f32.gmra.mrb[0].mxu0 %v7985
    %v7987 = vpop.f32.mrb[0].mxu0
    %v7988 = vadd.f32 %v7914, %v7987
    %v7989 = vpop.f32.mrb[0].mxu0
    %7990 = vdwg.mxu0
    %7991 = vmatprep.subr.mxu0 0.0
    %v7992 = vand.u32 %v7686, 4294901760
    %v7993 = vsub.f32 %v7686, %v7992
    %v7994 = vand.u32 %v7993, 4294901760
    %7995 = vmatpush1.msra.mxu0 %v7994
    %7996 = vmatprep.subr.mxu0 0.0
    %7997 = vmatpush1.msra.mxu0 0.0
    %7998 = vmatprep.subr.mxu0 0.0
    %7999 = vmatpush1.msra.mxu0 0.0
    %8000 = vmatprep.subr.mxu0 0.0
    %8001 = vmatpush1.msra.mxu0 0.0
    %8002 = vmatprep.subr.mxu0 0.0
    %8003 = vmatpush1.msra.mxu0 0.0
    %8004 = vmatprep.subr.mxu0 0.0
    %8005 = vmatpush1.msra.mxu0 0.0
    %8006 = vmatprep.subr.mxu0 0.0
    %8007 = vmatpush1.msra.mxu0 0.0
    %8008 = vmatprep.subr.mxu0 0.0
    %8009 = vmatpush1.msra.mxu0 0.0
    %8010 = vmatprep.subr.mxu0 0.0
    %8011 = vmatpush1.msra.mxu0 0.0
    %8012 = vmatprep.subr.mxu0 0.0
    %8013 = vmatpush1.msra.mxu0 0.0
    %8014 = vmatprep.subr.mxu0 0.0
    %8015 = vmatpush1.msra.mxu0 0.0
    %8016 = vmatprep.subr.mxu0 0.0
    %8017 = vmatpush1.msra.mxu0 0.0
    %8018 = vmatprep.subr.mxu0 0.0
    %8019 = vmatpush1.msra.mxu0 0.0
    %8020 = vmatprep.subr.mxu0 0.0
    %8021 = vmatpush1.msra.mxu0 0.0
    %8022 = vmatprep.subr.mxu0 0.0
    %8023 = vmatpush1.msra.mxu0 0.0
    %8024 = vmatprep.subr.mxu0 0.0
    %8025 = vmatpush1.msra.mxu0 0.0
    %8026 = vmatprep.subr.mxu0 0.0
    %8027 = vmatpush1.msra.mxu0 0.0
    %8028 = vmatprep.subr.mxu0 0.0
    %8029 = vmatpush1.msra.mxu0 0.0
    %8030 = vmatprep.subr.mxu0 0.0
    %8031 = vmatpush1.msra.mxu0 0.0
    %8032 = vmatprep.subr.mxu0 0.0
    %8033 = vmatpush1.msra.mxu0 0.0
    %8034 = vmatprep.subr.mxu0 0.0
    %8035 = vmatpush1.msra.mxu0 0.0
    %8036 = vmatprep.subr.mxu0 0.0
    %8037 = vmatpush1.msra.mxu0 0.0
    %8038 = vmatprep.subr.mxu0 0.0
    %8039 = vmatpush1.msra.mxu0 0.0
    %8040 = vmatprep.subr.mxu0 0.0
    %8041 = vmatpush1.msra.mxu0 0.0
    %8042 = vmatprep.subr.mxu0 0.0
    %8043 = vmatpush1.msra.mxu0 0.0
    %8044 = vmatprep.subr.mxu0 0.0
    %8045 = vmatpush1.msra.mxu0 0.0
    %8046 = vmatprep.subr.mxu0 0.0
    %8047 = vmatpush1.msra.mxu0 0.0
    %8048 = vmatprep.subr.mxu0 0.0
    %8049 = vmatpush1.msra.mxu0 0.0
    %8050 = vmatprep.subr.mxu0 0.0
    %8051 = vmatpush1.msra.mxu0 0.0
    %8052 = vmatprep.subr.mxu0 0.0
    %8053 = vmatpush1.msra.mxu0 0.0
    %8054 = vmatprep.subr.mxu0 0.0
    %8055 = vmatpush1.msra.mxu0 0.0
    %8056 = vmatprep.subr.mxu0 0.0
    %8057 = vmatpush1.msra.mxu0 0.0
    %8058 = vmatprep.mubr.f32.mxu0 0.0
    %v8059 = vand.u32 %v7689, 4294901760
    %8060 = vmatmul.mubr.f32.gmra.mrb[0].mxu0 %v8059
    %v8061 = vpop.f32.mrb[0].mxu0
    %v8062 = vadd.f32 %v7988, %v8061
    %v8063 = vpop.f32.mrb[0].mxu0
    %8064 = vdwg.mxu0
    %8065 = vmatprep.subr.mxu0 0.0
    %v8066 = vand.u32 %v7686, 4294901760
    %8067 = vmatpush1.msra.mxu0 %v8066
    %8068 = vmatprep.subr.mxu0 0.0
    %8069 = vmatpush1.msra.mxu0 0.0
    %8070 = vmatprep.subr.mxu0 0.0
    %8071 = vmatpush1.msra.mxu0 0.0
    %8072 = vmatprep.subr.mxu0 0.0
    %8073 = vmatpush1.msra.mxu0 0.0
    %8074 = vmatprep.subr.mxu0 0.0
    %8075 = vmatpush1.msra.mxu0 0.0
    %8076 = vmatprep.subr.mxu0 0.0
    %8077 = vmatpush1.msra.mxu0 0.0
    %8078 = vmatprep.subr.mxu0 0.0
    %8079 = vmatpush1.msra.mxu0 0.0
    %8080 = vmatprep.subr.mxu0 0.0
    %8081 = vmatpush1.msra.mxu0 0.0
    %8082 = vmatprep.subr.mxu0 0.0
    %8083 = vmatpush1.msra.mxu0 0.0
    %8084 = vmatprep.subr.mxu0 0.0
    %8085 = vmatpush1.msra.mxu0 0.0
    %8086 = vmatprep.subr.mxu0 0.0
    %8087 = vmatpush1.msra.mxu0 0.0
    %8088 = vmatprep.subr.mxu0 0.0
    %8089 = vmatpush1.msra.mxu0 0.0
    %8090 = vmatprep.subr.mxu0 0.0
    %8091 = vmatpush1.msra.mxu0 0.0
    %8092 = vmatprep.subr.mxu0 0.0
    %8093 = vmatpush1.msra.mxu0 0.0
    %8094 = vmatprep.subr.mxu0 0.0
    %8095 = vmatpush1.msra.mxu0 0.0
    %8096 = vmatprep.subr.mxu0 0.0
    %8097 = vmatpush1.msra.mxu0 0.0
    %8098 = vmatprep.subr.mxu0 0.0
    %8099 = vmatpush1.msra.mxu0 0.0
    %8100 = vmatprep.subr.mxu0 0.0
    %8101 = vmatpush1.msra.mxu0 0.0
    %8102 = vmatprep.subr.mxu0 0.0
    %8103 = vmatpush1.msra.mxu0 0.0
    %8104 = vmatprep.subr.mxu0 0.0
    %8105 = vmatpush1.msra.mxu0 0.0
    %8106 = vmatprep.subr.mxu0 0.0
    %8107 = vmatpush1.msra.mxu0 0.0
    %8108 = vmatprep.subr.mxu0 0.0
    %8109 = vmatpush1.msra.mxu0 0.0
    %8110 = vmatprep.subr.mxu0 0.0
    %8111 = vmatpush1.msra.mxu0 0.0
    %8112 = vmatprep.subr.mxu0 0.0
    %8113 = vmatpush1.msra.mxu0 0.0
    %8114 = vmatprep.subr.mxu0 0.0
    %8115 = vmatpush1.msra.mxu0 0.0
    %8116 = vmatprep.subr.mxu0 0.0
    %8117 = vmatpush1.msra.mxu0 0.0
    %8118 = vmatprep.subr.mxu0 0.0
    %8119 = vmatpush1.msra.mxu0 0.0
    %8120 = vmatprep.subr.mxu0 0.0
    %8121 = vmatpush1.msra.mxu0 0.0
    %8122 = vmatprep.subr.mxu0 0.0
    %8123 = vmatpush1.msra.mxu0 0.0
    %8124 = vmatprep.subr.mxu0 0.0
    %8125 = vmatpush1.msra.mxu0 0.0
    %8126 = vmatprep.subr.mxu0 0.0
    %8127 = vmatpush1.msra.mxu0 0.0
    %8128 = vmatprep.subr.mxu0 0.0
    %8129 = vmatpush1.msra.mxu0 0.0
    %8130 = vmatprep.mubr.f32.mxu0 0.0
    %v8131 = vand.u32 %v7689, 4294901760
    %8132 = vmatmul.mubr.f32.gmra.mrb[0].mxu0 %v8131
    %v8133 = vpop.f32.mrb[0].mxu0
    %v8134 = vadd.f32 %v8062, %v8133
    %v8135 = vpop.f32.mrb[0].mxu0
    %8136 = vdwg.mxu0
    %8138 = vrot.lane.b32.xlu0 %v8134, 16
    %v8139 = vpop.permute.xlu0 %8138
    %8141 = vst.msk [vmem:[#allocation2 + $0x8] sm:$0xff] %vm4459, %v8139
    %8142 = vrot.lane.b32.xlu0 %v643, 104
    %v8143 = vpop.permute.xlu0 %8142
    %8144 = vrot.lane.b32.xlu0 %v1169, 104
    %v8145 = vpop.permute.xlu0 %8144
    %v8146 = vsel %vm1700, %v8143, 0
    %v8148 = vsel %vm1700, %v8145, 0
    %8150 = vmatprep.subr.mxu0 0.0
    %v8151 = vand.u32 %v8148, 4294901760
    %8152 = vmatpush1.xpose.msra.mxu0 %v8151
    %8153 = vmatprep.subr.mxu0 0.0
    %8154 = vmatpush1.xpose.msra.mxu0 0.0
    %8155 = vmatprep.subr.mxu0 0.0
    %8156 = vmatpush1.xpose.msra.mxu0 0.0
    %8157 = vmatprep.subr.mxu0 0.0
    %8158 = vmatpush1.xpose.msra.mxu0 0.0
    %8159 = vmatprep.subr.mxu0 0.0
    %8160 = vmatpush1.xpose.msra.mxu0 0.0
    %8161 = vmatprep.subr.mxu0 0.0
    %8162 = vmatpush1.xpose.msra.mxu0 0.0
    %8163 = vmatprep.subr.mxu0 0.0
    %8164 = vmatpush1.xpose.msra.mxu0 0.0
    %8165 = vmatprep.subr.mxu0 0.0
    %8166 = vmatpush1.xpose.msra.mxu0 0.0
    %8167 = vmatprep.subr.mxu0 0.0
    %8168 = vmatpush1.xpose.msra.mxu0 0.0
    %8169 = vmatprep.subr.mxu0 0.0
    %8170 = vmatpush1.xpose.msra.mxu0 0.0
    %8171 = vmatprep.subr.mxu0 0.0
    %8172 = vmatpush1.xpose.msra.mxu0 0.0
    %8173 = vmatprep.subr.mxu0 0.0
    %8174 = vmatpush1.xpose.msra.mxu0 0.0
    %8175 = vmatprep.subr.mxu0 0.0
    %8176 = vmatpush1.xpose.msra.mxu0 0.0
    %8177 = vmatprep.subr.mxu0 0.0
    %8178 = vmatpush1.xpose.msra.mxu0 0.0
    %8179 = vmatprep.subr.mxu0 0.0
    %8180 = vmatpush1.xpose.msra.mxu0 0.0
    %8181 = vmatprep.subr.mxu0 0.0
    %8182 = vmatpush1.xpose.msra.mxu0 0.0
    %8183 = vmatprep.subr.mxu0 0.0
    %8184 = vmatpush1.xpose.msra.mxu0 0.0
    %8185 = vmatprep.subr.mxu0 0.0
    %8186 = vmatpush1.xpose.msra.mxu0 0.0
    %8187 = vmatprep.subr.mxu0 0.0
    %8188 = vmatpush1.xpose.msra.mxu0 0.0
    %8189 = vmatprep.subr.mxu0 0.0
    %8190 = vmatpush1.xpose.msra.mxu0 0.0
    %8191 = vmatprep.subr.mxu0 0.0
    %8192 = vmatpush1.xpose.msra.mxu0 0.0
    %8193 = vmatprep.subr.mxu0 0.0
    %8194 = vmatpush1.xpose.msra.mxu0 0.0
    %8195 = vmatprep.subr.mxu0 0.0
    %8196 = vmatpush1.xpose.msra.mxu0 0.0
    %8197 = vmatprep.subr.mxu0 0.0
    %8198 = vmatpush1.xpose.msra.mxu0 0.0
    %8199 = vmatprep.subr.mxu0 0.0
    %8200 = vmatpush1.xpose.msra.mxu0 0.0
    %8201 = vmatprep.subr.mxu0 0.0
    %8202 = vmatpush1.xpose.msra.mxu0 0.0
    %8203 = vmatprep.subr.mxu0 0.0
    %8204 = vmatpush1.xpose.msra.mxu0 0.0
    %8205 = vmatprep.subr.mxu0 0.0
    %8206 = vmatpush1.xpose.msra.mxu0 0.0
    %8207 = vmatprep.subr.mxu0 0.0
    %8208 = vmatpush1.xpose.msra.mxu0 0.0
    %8209 = vmatprep.subr.mxu0 0.0
    %8210 = vmatpush1.xpose.msra.mxu0 0.0
    %8211 = vmatprep.subr.mxu0 0.0
    %8212 = vmatpush1.xpose.msra.mxu0 0.0
    %8213 = vmatprep.subr.mxu0 0.0
    %8214 = vmatpush1.xpose.msra.mxu0 0.0
    %8215 = vmatprep.mubr.f32.mxu0 0.0
    %v8216 = vand.u32 %v8146, 4294901760
    %v8217 = vsub.f32 %v8146, %v8216
    %v8218 = vand.u32 %v8217, 4294901760
    %v8219 = vsub.f32 %v8217, %v8218
    %v8220 = vand.u32 %v8219, 4294901760
    %8221 = vmatmul.mubr.f32.gmra.mrb[0].mxu0 %v8220
    %v8222 = vpop.f32.mrb[0].mxu0
    %v8223 = vadd.f32 0.0, %v8222
    %v8224 = vpop.f32.mrb[0].mxu0
    %8225 = vdwg.mxu0
    %8226 = vmatprep.subr.mxu0 0.0
    %v8227 = vand.u32 %v8148, 4294901760
    %v8228 = vsub.f32 %v8148, %v8227
    %v8229 = vand.u32 %v8228, 4294901760
    %v8230 = vsub.f32 %v8228, %v8229
    %v8231 = vand.u32 %v8230, 4294901760
    %8232 = vmatpush1.xpose.msra.mxu0 %v8231
    %8233 = vmatprep.subr.mxu0 0.0
    %8234 = vmatpush1.xpose.msra.mxu0 0.0
    %8235 = vmatprep.subr.mxu0 0.0
    %8236 = vmatpush1.xpose.msra.mxu0 0.0
    %8237 = vmatprep.subr.mxu0 0.0
    %8238 = vmatpush1.xpose.msra.mxu0 0.0
    %8239 = vmatprep.subr.mxu0 0.0
    %8240 = vmatpush1.xpose.msra.mxu0 0.0
    %8241 = vmatprep.subr.mxu0 0.0
    %8242 = vmatpush1.xpose.msra.mxu0 0.0
    %8243 = vmatprep.subr.mxu0 0.0
    %8244 = vmatpush1.xpose.msra.mxu0 0.0
    %8245 = vmatprep.subr.mxu0 0.0
    %8246 = vmatpush1.xpose.msra.mxu0 0.0
    %8247 = vmatprep.subr.mxu0 0.0
    %8248 = vmatpush1.xpose.msra.mxu0 0.0
    %8249 = vmatprep.subr.mxu0 0.0
    %8250 = vmatpush1.xpose.msra.mxu0 0.0
    %8251 = vmatprep.subr.mxu0 0.0
    %8252 = vmatpush1.xpose.msra.mxu0 0.0
    %8253 = vmatprep.subr.mxu0 0.0
    %8254 = vmatpush1.xpose.msra.mxu0 0.0
    %8255 = vmatprep.subr.mxu0 0.0
    %8256 = vmatpush1.xpose.msra.mxu0 0.0
    %8257 = vmatprep.subr.mxu0 0.0
    %8258 = vmatpush1.xpose.msra.mxu0 0.0
    %8259 = vmatprep.subr.mxu0 0.0
    %8260 = vmatpush1.xpose.msra.mxu0 0.0
    %8261 = vmatprep.subr.mxu0 0.0
    %8262 = vmatpush1.xpose.msra.mxu0 0.0
    %8263 = vmatprep.subr.mxu0 0.0
    %8264 = vmatpush1.xpose.msra.mxu0 0.0
    %8265 = vmatprep.subr.mxu0 0.0
    %8266 = vmatpush1.xpose.msra.mxu0 0.0
    %8267 = vmatprep.subr.mxu0 0.0
    %8268 = vmatpush1.xpose.msra.mxu0 0.0
    %8269 = vmatprep.subr.mxu0 0.0
    %8270 = vmatpush1.xpose.msra.mxu0 0.0
    %8271 = vmatprep.subr.mxu0 0.0
    %8272 = vmatpush1.xpose.msra.mxu0 0.0
    %8273 = vmatprep.subr.mxu0 0.0
    %8274 = vmatpush1.xpose.msra.mxu0 0.0
    %8275 = vmatprep.subr.mxu0 0.0
    %8276 = vmatpush1.xpose.msra.mxu0 0.0
    %8277 = vmatprep.subr.mxu0 0.0
    %8278 = vmatpush1.xpose.msra.mxu0 0.0
    %8279 = vmatprep.subr.mxu0 0.0
    %8280 = vmatpush1.xpose.msra.mxu0 0.0
    %8281 = vmatprep.subr.mxu0 0.0
    %8282 = vmatpush1.xpose.msra.mxu0 0.0
    %8283 = vmatprep.subr.mxu0 0.0
    %8284 = vmatpush1.xpose.msra.mxu0 0.0
    %8285 = vmatprep.subr.mxu0 0.0
    %8286 = vmatpush1.xpose.msra.mxu0 0.0
    %8287 = vmatprep.subr.mxu0 0.0
    %8288 = vmatpush1.xpose.msra.mxu0 0.0
    %8289 = vmatprep.subr.mxu0 0.0
    %8290 = vmatpush1.xpose.msra.mxu0 0.0
    %8291 = vmatprep.subr.mxu0 0.0
    %8292 = vmatpush1.xpose.msra.mxu0 0.0
    %8293 = vmatprep.subr.mxu0 0.0
    %8294 = vmatpush1.xpose.msra.mxu0 0.0
    %8295 = vmatprep.mubr.f32.mxu0 0.0
    %v8296 = vand.u32 %v8146, 4294901760
    %8297 = vmatmul.mubr.f32.gmra.mrb[0].mxu0 %v8296
    %v8298 = vpop.f32.mrb[0].mxu0
    %v8299 = vadd.f32 %v8223, %v8298
    %v8300 = vpop.f32.mrb[0].mxu0
    %8301 = vdwg.mxu0
    %8302 = vmatprep.subr.mxu0 0.0
    %v8303 = vand.u32 %v8148, 4294901760
    %v8304 = vsub.f32 %v8148, %v8303
    %8305 = vmatpush1.xpose.msra.mxu0 %v8304
    %8306 = vmatprep.subr.mxu0 0.0
    %8307 = vmatpush1.xpose.msra.mxu0 0.0
    %8308 = vmatprep.subr.mxu0 0.0
    %8309 = vmatpush1.xpose.msra.mxu0 0.0
    %8310 = vmatprep.subr.mxu0 0.0
    %8311 = vmatpush1.xpose.msra.mxu0 0.0
    %8312 = vmatprep.subr.mxu0 0.0
    %8313 = vmatpush1.xpose.msra.mxu0 0.0
    %8314 = vmatprep.subr.mxu0 0.0
    %8315 = vmatpush1.xpose.msra.mxu0 0.0
    %8316 = vmatprep.subr.mxu0 0.0
    %8317 = vmatpush1.xpose.msra.mxu0 0.0
    %8318 = vmatprep.subr.mxu0 0.0
    %8319 = vmatpush1.xpose.msra.mxu0 0.0
    %8320 = vmatprep.subr.mxu0 0.0
    %8321 = vmatpush1.xpose.msra.mxu0 0.0
    %8322 = vmatprep.subr.mxu0 0.0
    %8323 = vmatpush1.xpose.msra.mxu0 0.0
    %8324 = vmatprep.subr.mxu0 0.0
    %8325 = vmatpush1.xpose.msra.mxu0 0.0
    %8326 = vmatprep.subr.mxu0 0.0
    %8327 = vmatpush1.xpose.msra.mxu0 0.0
    %8328 = vmatprep.subr.mxu0 0.0
    %8329 = vmatpush1.xpose.msra.mxu0 0.0
    %8330 = vmatprep.subr.mxu0 0.0
    %8331 = vmatpush1.xpose.msra.mxu0 0.0
    %8332 = vmatprep.subr.mxu0 0.0
    %8333 = vmatpush1.xpose.msra.mxu0 0.0
    %8334 = vmatprep.subr.mxu0 0.0
    %8335 = vmatpush1.xpose.msra.mxu0 0.0
    %8336 = vmatprep.subr.mxu0 0.0
    %8337 = vmatpush1.xpose.msra.mxu0 0.0
    %8338 = vmatprep.subr.mxu0 0.0
    %8339 = vmatpush1.xpose.msra.mxu0 0.0
    %8340 = vmatprep.subr.mxu0 0.0
    %8341 = vmatpush1.xpose.msra.mxu0 0.0
    %8342 = vmatprep.subr.mxu0 0.0
    %8343 = vmatpush1.xpose.msra.mxu0 0.0
    %8344 = vmatprep.subr.mxu0 0.0
    %8345 = vmatpush1.xpose.msra.mxu0 0.0
    %8346 = vmatprep.subr.mxu0 0.0
    %8347 = vmatpush1.xpose.msra.mxu0 0.0
    %8348 = vmatprep.subr.mxu0 0.0
    %8349 = vmatpush1.xpose.msra.mxu0 0.0
    %8350 = vmatprep.subr.mxu0 0.0
    %8351 = vmatpush1.xpose.msra.mxu0 0.0
    %8352 = vmatprep.subr.mxu0 0.0
    %8353 = vmatpush1.xpose.msra.mxu0 0.0
    %8354 = vmatprep.subr.mxu0 0.0
    %8355 = vmatpush1.xpose.msra.mxu0 0.0
    %8356 = vmatprep.subr.mxu0 0.0
    %8357 = vmatpush1.xpose.msra.mxu0 0.0
    %8358 = vmatprep.subr.mxu0 0.0
    %8359 = vmatpush1.xpose.msra.mxu0 0.0
    %8360 = vmatprep.subr.mxu0 0.0
    %8361 = vmatpush1.xpose.msra.mxu0 0.0
    %8362 = vmatprep.subr.mxu0 0.0
    %8363 = vmatpush1.xpose.msra.mxu0 0.0
    %8364 = vmatprep.subr.mxu0 0.0
    %8365 = vmatpush1.xpose.msra.mxu0 0.0
    %8366 = vmatprep.subr.mxu0 0.0
    %8367 = vmatpush1.xpose.msra.mxu0 0.0
    %8368 = vmatprep.mubr.f32.mxu0 0.0
    %v8369 = vand.u32 %v8146, 4294901760
    %v8370 = vsub.f32 %v8146, %v8369
    %8371 = vmatmul.mubr.f32.gmra.mrb[0].mxu0 %v8370
    %v8372 = vpop.f32.mrb[0].mxu0
    %v8373 = vadd.f32 %v8299, %v8372
    %v8374 = vpop.f32.mrb[0].mxu0
    %8375 = vdwg.mxu0
    %8376 = vmatprep.subr.mxu0 0.0
    %v8377 = vand.u32 %v8148, 4294901760
    %8378 = vmatpush1.xpose.msra.mxu0 %v8377
    %8379 = vmatprep.subr.mxu0 0.0
    %8380 = vmatpush1.xpose.msra.mxu0 0.0
    %8381 = vmatprep.subr.mxu0 0.0
    %8382 = vmatpush1.xpose.msra.mxu0 0.0
    %8383 = vmatprep.subr.mxu0 0.0
    %8384 = vmatpush1.xpose.msra.mxu0 0.0
    %8385 = vmatprep.subr.mxu0 0.0
    %8386 = vmatpush1.xpose.msra.mxu0 0.0
    %8387 = vmatprep.subr.mxu0 0.0
    %8388 = vmatpush1.xpose.msra.mxu0 0.0
    %8389 = vmatprep.subr.mxu0 0.0
    %8390 = vmatpush1.xpose.msra.mxu0 0.0
    %8391 = vmatprep.subr.mxu0 0.0
    %8392 = vmatpush1.xpose.msra.mxu0 0.0
    %8393 = vmatprep.subr.mxu0 0.0
    %8394 = vmatpush1.xpose.msra.mxu0 0.0
    %8395 = vmatprep.subr.mxu0 0.0
    %8396 = vmatpush1.xpose.msra.mxu0 0.0
    %8397 = vmatprep.subr.mxu0 0.0
    %8398 = vmatpush1.xpose.msra.mxu0 0.0
    %8399 = vmatprep.subr.mxu0 0.0
    %8400 = vmatpush1.xpose.msra.mxu0 0.0
    %8401 = vmatprep.subr.mxu0 0.0
    %8402 = vmatpush1.xpose.msra.mxu0 0.0
    %8403 = vmatprep.subr.mxu0 0.0
    %8404 = vmatpush1.xpose.msra.mxu0 0.0
    %8405 = vmatprep.subr.mxu0 0.0
    %8406 = vmatpush1.xpose.msra.mxu0 0.0
    %8407 = vmatprep.subr.mxu0 0.0
    %8408 = vmatpush1.xpose.msra.mxu0 0.0
    %8409 = vmatprep.subr.mxu0 0.0
    %8410 = vmatpush1.xpose.msra.mxu0 0.0
    %8411 = vmatprep.subr.mxu0 0.0
    %8412 = vmatpush1.xpose.msra.mxu0 0.0
    %8413 = vmatprep.subr.mxu0 0.0
    %8414 = vmatpush1.xpose.msra.mxu0 0.0
    %8415 = vmatprep.subr.mxu0 0.0
    %8416 = vmatpush1.xpose.msra.mxu0 0.0
    %8417 = vmatprep.subr.mxu0 0.0
    %8418 = vmatpush1.xpose.msra.mxu0 0.0
    %8419 = vmatprep.subr.mxu0 0.0
    %8420 = vmatpush1.xpose.msra.mxu0 0.0
    %8421 = vmatprep.subr.mxu0 0.0
    %8422 = vmatpush1.xpose.msra.mxu0 0.0
    %8423 = vmatprep.subr.mxu0 0.0
    %8424 = vmatpush1.xpose.msra.mxu0 0.0
    %8425 = vmatprep.subr.mxu0 0.0
    %8426 = vmatpush1.xpose.msra.mxu0 0.0
    %8427 = vmatprep.subr.mxu0 0.0
    %8428 = vmatpush1.xpose.msra.mxu0 0.0
    %8429 = vmatprep.subr.mxu0 0.0
    %8430 = vmatpush1.xpose.msra.mxu0 0.0
    %8431 = vmatprep.subr.mxu0 0.0
    %8432 = vmatpush1.xpose.msra.mxu0 0.0
    %8433 = vmatprep.subr.mxu0 0.0
    %8434 = vmatpush1.xpose.msra.mxu0 0.0
    %8435 = vmatprep.subr.mxu0 0.0
    %8436 = vmatpush1.xpose.msra.mxu0 0.0
    %8437 = vmatprep.subr.mxu0 0.0
    %8438 = vmatpush1.xpose.msra.mxu0 0.0
    %8439 = vmatprep.subr.mxu0 0.0
    %8440 = vmatpush1.xpose.msra.mxu0 0.0
    %8441 = vmatprep.mubr.f32.mxu0 0.0
    %v8442 = vand.u32 %v8146, 4294901760
    %v8443 = vsub.f32 %v8146, %v8442
    %v8444 = vand.u32 %v8443, 4294901760
    %8445 = vmatmul.mubr.f32.gmra.mrb[0].mxu0 %v8444
    %v8446 = vpop.f32.mrb[0].mxu0
    %v8447 = vadd.f32 %v8373, %v8446
    %v8448 = vpop.f32.mrb[0].mxu0
    %8449 = vdwg.mxu0
    %8450 = vmatprep.subr.mxu0 0.0
    %v8451 = vand.u32 %v8148, 4294901760
    %v8452 = vsub.f32 %v8148, %v8451
    %v8453 = vand.u32 %v8452, 4294901760
    %8454 = vmatpush1.xpose.msra.mxu0 %v8453
    %8455 = vmatprep.subr.mxu0 0.0
    %8456 = vmatpush1.xpose.msra.mxu0 0.0
    %8457 = vmatprep.subr.mxu0 0.0
    %8458 = vmatpush1.xpose.msra.mxu0 0.0
    %8459 = vmatprep.subr.mxu0 0.0
    %8460 = vmatpush1.xpose.msra.mxu0 0.0
    %8461 = vmatprep.subr.mxu0 0.0
    %8462 = vmatpush1.xpose.msra.mxu0 0.0
    %8463 = vmatprep.subr.mxu0 0.0
    %8464 = vmatpush1.xpose.msra.mxu0 0.0
    %8465 = vmatprep.subr.mxu0 0.0
    %8466 = vmatpush1.xpose.msra.mxu0 0.0
    %8467 = vmatprep.subr.mxu0 0.0
    %8468 = vmatpush1.xpose.msra.mxu0 0.0
    %8469 = vmatprep.subr.mxu0 0.0
    %8470 = vmatpush1.xpose.msra.mxu0 0.0
    %8471 = vmatprep.subr.mxu0 0.0
    %8472 = vmatpush1.xpose.msra.mxu0 0.0
    %8473 = vmatprep.subr.mxu0 0.0
    %8474 = vmatpush1.xpose.msra.mxu0 0.0
    %8475 = vmatprep.subr.mxu0 0.0
    %8476 = vmatpush1.xpose.msra.mxu0 0.0
    %8477 = vmatprep.subr.mxu0 0.0
    %8478 = vmatpush1.xpose.msra.mxu0 0.0
    %8479 = vmatprep.subr.mxu0 0.0
    %8480 = vmatpush1.xpose.msra.mxu0 0.0
    %8481 = vmatprep.subr.mxu0 0.0
    %8482 = vmatpush1.xpose.msra.mxu0 0.0
    %8483 = vmatprep.subr.mxu0 0.0
    %8484 = vmatpush1.xpose.msra.mxu0 0.0
    %8485 = vmatprep.subr.mxu0 0.0
    %8486 = vmatpush1.xpose.msra.mxu0 0.0
    %8487 = vmatprep.subr.mxu0 0.0
    %8488 = vmatpush1.xpose.msra.mxu0 0.0
    %8489 = vmatprep.subr.mxu0 0.0
    %8490 = vmatpush1.xpose.msra.mxu0 0.0
    %8491 = vmatprep.subr.mxu0 0.0
    %8492 = vmatpush1.xpose.msra.mxu0 0.0
    %8493 = vmatprep.subr.mxu0 0.0
    %8494 = vmatpush1.xpose.msra.mxu0 0.0
    %8495 = vmatprep.subr.mxu0 0.0
    %8496 = vmatpush1.xpose.msra.mxu0 0.0
    %8497 = vmatprep.subr.mxu0 0.0
    %8498 = vmatpush1.xpose.msra.mxu0 0.0
    %8499 = vmatprep.subr.mxu0 0.0
    %8500 = vmatpush1.xpose.msra.mxu0 0.0
    %8501 = vmatprep.subr.mxu0 0.0
    %8502 = vmatpush1.xpose.msra.mxu0 0.0
    %8503 = vmatprep.subr.mxu0 0.0
    %8504 = vmatpush1.xpose.msra.mxu0 0.0
    %8505 = vmatprep.subr.mxu0 0.0
    %8506 = vmatpush1.xpose.msra.mxu0 0.0
    %8507 = vmatprep.subr.mxu0 0.0
    %8508 = vmatpush1.xpose.msra.mxu0 0.0
    %8509 = vmatprep.subr.mxu0 0.0
    %8510 = vmatpush1.xpose.msra.mxu0 0.0
    %8511 = vmatprep.subr.mxu0 0.0
    %8512 = vmatpush1.xpose.msra.mxu0 0.0
    %8513 = vmatprep.subr.mxu0 0.0
    %8514 = vmatpush1.xpose.msra.mxu0 0.0
    %8515 = vmatprep.subr.mxu0 0.0
    %8516 = vmatpush1.xpose.msra.mxu0 0.0
    %8517 = vmatprep.mubr.f32.mxu0 0.0
    %v8518 = vand.u32 %v8146, 4294901760
    %8519 = vmatmul.mubr.f32.gmra.mrb[0].mxu0 %v8518
    %v8520 = vpop.f32.mrb[0].mxu0
    %v8521 = vadd.f32 %v8447, %v8520
    %v8522 = vpop.f32.mrb[0].mxu0
    %8523 = vdwg.mxu0
    %8524 = vmatprep.subr.mxu0 0.0
    %v8525 = vand.u32 %v8148, 4294901760
    %8526 = vmatpush1.xpose.msra.mxu0 %v8525
    %8527 = vmatprep.subr.mxu0 0.0
    %8528 = vmatpush1.xpose.msra.mxu0 0.0
    %8529 = vmatprep.subr.mxu0 0.0
    %8530 = vmatpush1.xpose.msra.mxu0 0.0
    %8531 = vmatprep.subr.mxu0 0.0
    %8532 = vmatpush1.xpose.msra.mxu0 0.0
    %8533 = vmatprep.subr.mxu0 0.0
    %8534 = vmatpush1.xpose.msra.mxu0 0.0
    %8535 = vmatprep.subr.mxu0 0.0
    %8536 = vmatpush1.xpose.msra.mxu0 0.0
    %8537 = vmatprep.subr.mxu0 0.0
    %8538 = vmatpush1.xpose.msra.mxu0 0.0
    %8539 = vmatprep.subr.mxu0 0.0
    %8540 = vmatpush1.xpose.msra.mxu0 0.0
    %8541 = vmatprep.subr.mxu0 0.0
    %8542 = vmatpush1.xpose.msra.mxu0 0.0
    %8543 = vmatprep.subr.mxu0 0.0
    %8544 = vmatpush1.xpose.msra.mxu0 0.0
    %8545 = vmatprep.subr.mxu0 0.0
    %8546 = vmatpush1.xpose.msra.mxu0 0.0
    %8547 = vmatprep.subr.mxu0 0.0
    %8548 = vmatpush1.xpose.msra.mxu0 0.0
    %8549 = vmatprep.subr.mxu0 0.0
    %8550 = vmatpush1.xpose.msra.mxu0 0.0
    %8551 = vmatprep.subr.mxu0 0.0
    %8552 = vmatpush1.xpose.msra.mxu0 0.0
    %8553 = vmatprep.subr.mxu0 0.0
    %8554 = vmatpush1.xpose.msra.mxu0 0.0
    %8555 = vmatprep.subr.mxu0 0.0
    %8556 = vmatpush1.xpose.msra.mxu0 0.0
    %8557 = vmatprep.subr.mxu0 0.0
    %8558 = vmatpush1.xpose.msra.mxu0 0.0
    %8559 = vmatprep.subr.mxu0 0.0
    %8560 = vmatpush1.xpose.msra.mxu0 0.0
    %8561 = vmatprep.subr.mxu0 0.0
    %8562 = vmatpush1.xpose.msra.mxu0 0.0
    %8563 = vmatprep.subr.mxu0 0.0
    %8564 = vmatpush1.xpose.msra.mxu0 0.0
    %8565 = vmatprep.subr.mxu0 0.0
    %8566 = vmatpush1.xpose.msra.mxu0 0.0
    %8567 = vmatprep.subr.mxu0 0.0
    %8568 = vmatpush1.xpose.msra.mxu0 0.0
    %8569 = vmatprep.subr.mxu0 0.0
    %8570 = vmatpush1.xpose.msra.mxu0 0.0
    %8571 = vmatprep.subr.mxu0 0.0
    %8572 = vmatpush1.xpose.msra.mxu0 0.0
    %8573 = vmatprep.subr.mxu0 0.0
    %8574 = vmatpush1.xpose.msra.mxu0 0.0
    %8575 = vmatprep.subr.mxu0 0.0
    %8576 = vmatpush1.xpose.msra.mxu0 0.0
    %8577 = vmatprep.subr.mxu0 0.0
    %8578 = vmatpush1.xpose.msra.mxu0 0.0
    %8579 = vmatprep.subr.mxu0 0.0
    %8580 = vmatpush1.xpose.msra.mxu0 0.0
    %8581 = vmatprep.subr.mxu0 0.0
    %8582 = vmatpush1.xpose.msra.mxu0 0.0
    %8583 = vmatprep.subr.mxu0 0.0
    %8584 = vmatpush1.xpose.msra.mxu0 0.0
    %8585 = vmatprep.subr.mxu0 0.0
    %8586 = vmatpush1.xpose.msra.mxu0 0.0
    %8587 = vmatprep.subr.mxu0 0.0
    %8588 = vmatpush1.xpose.msra.mxu0 0.0
    %8589 = vmatprep.mubr.f32.mxu0 0.0
    %v8590 = vand.u32 %v8146, 4294901760
    %8591 = vmatmul.mubr.f32.gmra.mrb[0].mxu0 %v8590
    %v8592 = vpop.f32.mrb[0].mxu0
    %v8593 = vadd.f32 %v8521, %v8592
    %v8594 = vpop.f32.mrb[0].mxu0
    %8595 = vdwg.mxu0
    %v8596 = vsel %vm1700, %v8593, -inf
    %8597 = vmax.xlane.f32.xlu0 %v8596
    %v8598 = vpop.xlane.xlu0 %8597
    %v8599 = vsub.f32 %v8593, %v8598
    %v8600 = vmul.f32 %v8599, 1.442695
    %v8601 = vpow.pop %v8600
    %v8602 = vsel %vm1700, %v8601, 0.0
    %8603 = vadd.xlane.f32.xlu0 %v8602
    %v8604 = vpop.xlane.xlu0 %8603
    %v8605 = vrcp.pop %v8604
    %v8606 = vmul.f32 %v8601, %v8605
    %8607 = vrot.lane.b32.xlu0 %v1697, 104
    %v8608 = vpop.permute.xlu0 %8607
    %v8611 = vsel %vm1700, %v8606, 0
    %8613 = vmatprep.subr.mxu0 0.0
    %v8614 = vand.u32 %v8608, 4294901760
    %8615 = vmatpush1.msra.mxu0 %v8614
    %8616 = vmatprep.subr.mxu0 0.0
    %8617 = vmatpush1.msra.mxu0 0.0
    %8618 = vmatprep.subr.mxu0 0.0
    %8619 = vmatpush1.msra.mxu0 0.0
    %8620 = vmatprep.subr.mxu0 0.0
    %8621 = vmatpush1.msra.mxu0 0.0
    %8622 = vmatprep.subr.mxu0 0.0
    %8623 = vmatpush1.msra.mxu0 0.0
    %8624 = vmatprep.subr.mxu0 0.0
    %8625 = vmatpush1.msra.mxu0 0.0
    %8626 = vmatprep.subr.mxu0 0.0
    %8627 = vmatpush1.msra.mxu0 0.0
    %8628 = vmatprep.subr.mxu0 0.0
    %8629 = vmatpush1.msra.mxu0 0.0
    %8630 = vmatprep.subr.mxu0 0.0
    %8631 = vmatpush1.msra.mxu0 0.0
    %8632 = vmatprep.subr.mxu0 0.0
    %8633 = vmatpush1.msra.mxu0 0.0
    %8634 = vmatprep.subr.mxu0 0.0
    %8635 = vmatpush1.msra.mxu0 0.0
    %8636 = vmatprep.subr.mxu0 0.0
    %8637 = vmatpush1.msra.mxu0 0.0
    %8638 = vmatprep.subr.mxu0 0.0
    %8639 = vmatpush1.msra.mxu0 0.0
    %8640 = vmatprep.subr.mxu0 0.0
    %8641 = vmatpush1.msra.mxu0 0.0
    %8642 = vmatprep.subr.mxu0 0.0
    %8643 = vmatpush1.msra.mxu0 0.0
    %8644 = vmatprep.subr.mxu0 0.0
    %8645 = vmatpush1.msra.mxu0 0.0
    %8646 = vmatprep.subr.mxu0 0.0
    %8647 = vmatpush1.msra.mxu0 0.0
    %8648 = vmatprep.subr.mxu0 0.0
    %8649 = vmatpush1.msra.mxu0 0.0
    %8650 = vmatprep.subr.mxu0 0.0
    %8651 = vmatpush1.msra.mxu0 0.0
    %8652 = vmatprep.subr.mxu0 0.0
    %8653 = vmatpush1.msra.mxu0 0.0
    %8654 = vmatprep.subr.mxu0 0.0
    %8655 = vmatpush1.msra.mxu0 0.0
    %8656 = vmatprep.subr.mxu0 0.0
    %8657 = vmatpush1.msra.mxu0 0.0
    %8658 = vmatprep.subr.mxu0 0.0
    %8659 = vmatpush1.msra.mxu0 0.0
    %8660 = vmatprep.subr.mxu0 0.0
    %8661 = vmatpush1.msra.mxu0 0.0
    %8662 = vmatprep.subr.mxu0 0.0
    %8663 = vmatpush1.msra.mxu0 0.0
    %8664 = vmatprep.subr.mxu0 0.0
    %8665 = vmatpush1.msra.mxu0 0.0
    %8666 = vmatprep.subr.mxu0 0.0
    %8667 = vmatpush1.msra.mxu0 0.0
    %8668 = vmatprep.subr.mxu0 0.0
    %8669 = vmatpush1.msra.mxu0 0.0
    %8670 = vmatprep.subr.mxu0 0.0
    %8671 = vmatpush1.msra.mxu0 0.0
    %8672 = vmatprep.subr.mxu0 0.0
    %8673 = vmatpush1.msra.mxu0 0.0
    %8674 = vmatprep.subr.mxu0 0.0
    %8675 = vmatpush1.msra.mxu0 0.0
    %8676 = vmatprep.subr.mxu0 0.0
    %8677 = vmatpush1.msra.mxu0 0.0
    %8678 = vmatprep.mubr.f32.mxu0 0.0
    %v8679 = vand.u32 %v8611, 4294901760
    %v8680 = vsub.f32 %v8611, %v8679
    %v8681 = vand.u32 %v8680, 4294901760
    %v8682 = vsub.f32 %v8680, %v8681
    %v8683 = vand.u32 %v8682, 4294901760
    %8684 = vmatmul.mubr.f32.gmra.mrb[0].mxu0 %v8683
    %v8685 = vpop.f32.mrb[0].mxu0
    %v8686 = vadd.f32 0.0, %v8685
    %v8687 = vpop.f32.mrb[0].mxu0
    %8688 = vdwg.mxu0
    %8689 = vmatprep.subr.mxu0 0.0
    %v8690 = vand.u32 %v8608, 4294901760
    %v8691 = vsub.f32 %v8608, %v8690
    %v8692 = vand.u32 %v8691, 4294901760
    %v8693 = vsub.f32 %v8691, %v8692
    %v8694 = vand.u32 %v8693, 4294901760
    %8695 = vmatpush1.msra.mxu0 %v8694
    %8696 = vmatprep.subr.mxu0 0.0
    %8697 = vmatpush1.msra.mxu0 0.0
    %8698 = vmatprep.subr.mxu0 0.0
    %8699 = vmatpush1.msra.mxu0 0.0
    %8700 = vmatprep.subr.mxu0 0.0
    %8701 = vmatpush1.msra.mxu0 0.0
    %8702 = vmatprep.subr.mxu0 0.0
    %8703 = vmatpush1.msra.mxu0 0.0
    %8704 = vmatprep.subr.mxu0 0.0
    %8705 = vmatpush1.msra.mxu0 0.0
    %8706 = vmatprep.subr.mxu0 0.0
    %8707 = vmatpush1.msra.mxu0 0.0
    %8708 = vmatprep.subr.mxu0 0.0
    %8709 = vmatpush1.msra.mxu0 0.0
    %8710 = vmatprep.subr.mxu0 0.0
    %8711 = vmatpush1.msra.mxu0 0.0
    %8712 = vmatprep.subr.mxu0 0.0
    %8713 = vmatpush1.msra.mxu0 0.0
    %8714 = vmatprep.subr.mxu0 0.0
    %8715 = vmatpush1.msra.mxu0 0.0
    %8716 = vmatprep.subr.mxu0 0.0
    %8717 = vmatpush1.msra.mxu0 0.0
    %8718 = vmatprep.subr.mxu0 0.0
    %8719 = vmatpush1.msra.mxu0 0.0
    %8720 = vmatprep.subr.mxu0 0.0
    %8721 = vmatpush1.msra.mxu0 0.0
    %8722 = vmatprep.subr.mxu0 0.0
    %8723 = vmatpush1.msra.mxu0 0.0
    %8724 = vmatprep.subr.mxu0 0.0
    %8725 = vmatpush1.msra.mxu0 0.0
    %8726 = vmatprep.subr.mxu0 0.0
    %8727 = vmatpush1.msra.mxu0 0.0
    %8728 = vmatprep.subr.mxu0 0.0
    %8729 = vmatpush1.msra.mxu0 0.0
    %8730 = vmatprep.subr.mxu0 0.0
    %8731 = vmatpush1.msra.mxu0 0.0
    %8732 = vmatprep.subr.mxu0 0.0
    %8733 = vmatpush1.msra.mxu0 0.0
    %8734 = vmatprep.subr.mxu0 0.0
    %8735 = vmatpush1.msra.mxu0 0.0
    %8736 = vmatprep.subr.mxu0 0.0
    %8737 = vmatpush1.msra.mxu0 0.0
    %8738 = vmatprep.subr.mxu0 0.0
    %8739 = vmatpush1.msra.mxu0 0.0
    %8740 = vmatprep.subr.mxu0 0.0
    %8741 = vmatpush1.msra.mxu0 0.0
    %8742 = vmatprep.subr.mxu0 0.0
    %8743 = vmatpush1.msra.mxu0 0.0
    %8744 = vmatprep.subr.mxu0 0.0
    %8745 = vmatpush1.msra.mxu0 0.0
    %8746 = vmatprep.subr.mxu0 0.0
    %8747 = vmatpush1.msra.mxu0 0.0
    %8748 = vmatprep.subr.mxu0 0.0
    %8749 = vmatpush1.msra.mxu0 0.0
    %8750 = vmatprep.subr.mxu0 0.0
    %8751 = vmatpush1.msra.mxu0 0.0
    %8752 = vmatprep.subr.mxu0 0.0
    %8753 = vmatpush1.msra.mxu0 0.0
    %8754 = vmatprep.subr.mxu0 0.0
    %8755 = vmatpush1.msra.mxu0 0.0
    %8756 = vmatprep.subr.mxu0 0.0
    %8757 = vmatpush1.msra.mxu0 0.0
    %8758 = vmatprep.mubr.f32.mxu0 0.0
    %v8759 = vand.u32 %v8611, 4294901760
    %8760 = vmatmul.mubr.f32.gmra.mrb[0].mxu0 %v8759
    %v8761 = vpop.f32.mrb[0].mxu0
    %v8762 = vadd.f32 %v8686, %v8761
    %v8763 = vpop.f32.mrb[0].mxu0
    %8764 = vdwg.mxu0
    %8765 = vmatprep.subr.mxu0 0.0
    %v8766 = vand.u32 %v8608, 4294901760
    %v8767 = vsub.f32 %v8608, %v8766
    %8768 = vmatpush1.msra.mxu0 %v8767
    %8769 = vmatprep.subr.mxu0 0.0
    %8770 = vmatpush1.msra.mxu0 0.0
    %8771 = vmatprep.subr.mxu0 0.0
    %8772 = vmatpush1.msra.mxu0 0.0
    %8773 = vmatprep.subr.mxu0 0.0
    %8774 = vmatpush1.msra.mxu0 0.0
    %8775 = vmatprep.subr.mxu0 0.0
    %8776 = vmatpush1.msra.mxu0 0.0
    %8777 = vmatprep.subr.mxu0 0.0
    %8778 = vmatpush1.msra.mxu0 0.0
    %8779 = vmatprep.subr.mxu0 0.0
    %8780 = vmatpush1.msra.mxu0 0.0
    %8781 = vmatprep.subr.mxu0 0.0
    %8782 = vmatpush1.msra.mxu0 0.0
    %8783 = vmatprep.subr.mxu0 0.0
    %8784 = vmatpush1.msra.mxu0 0.0
    %8785 = vmatprep.subr.mxu0 0.0
    %8786 = vmatpush1.msra.mxu0 0.0
    %8787 = vmatprep.subr.mxu0 0.0
    %8788 = vmatpush1.msra.mxu0 0.0
    %8789 = vmatprep.subr.mxu0 0.0
    %8790 = vmatpush1.msra.mxu0 0.0
    %8791 = vmatprep.subr.mxu0 0.0
    %8792 = vmatpush1.msra.mxu0 0.0
    %8793 = vmatprep.subr.mxu0 0.0
    %8794 = vmatpush1.msra.mxu0 0.0
    %8795 = vmatprep.subr.mxu0 0.0
    %8796 = vmatpush1.msra.mxu0 0.0
    %8797 = vmatprep.subr.mxu0 0.0
    %8798 = vmatpush1.msra.mxu0 0.0
    %8799 = vmatprep.subr.mxu0 0.0
    %8800 = vmatpush1.msra.mxu0 0.0
    %8801 = vmatprep.subr.mxu0 0.0
    %8802 = vmatpush1.msra.mxu0 0.0
    %8803 = vmatprep.subr.mxu0 0.0
    %8804 = vmatpush1.msra.mxu0 0.0
    %8805 = vmatprep.subr.mxu0 0.0
    %8806 = vmatpush1.msra.mxu0 0.0
    %8807 = vmatprep.subr.mxu0 0.0
    %8808 = vmatpush1.msra.mxu0 0.0
    %8809 = vmatprep.subr.mxu0 0.0
    %8810 = vmatpush1.msra.mxu0 0.0
    %8811 = vmatprep.subr.mxu0 0.0
    %8812 = vmatpush1.msra.mxu0 0.0
    %8813 = vmatprep.subr.mxu0 0.0
    %8814 = vmatpush1.msra.mxu0 0.0
    %8815 = vmatprep.subr.mxu0 0.0
    %8816 = vmatpush1.msra.mxu0 0.0
    %8817 = vmatprep.subr.mxu0 0.0
    %8818 = vmatpush1.msra.mxu0 0.0
    %8819 = vmatprep.subr.mxu0 0.0
    %8820 = vmatpush1.msra.mxu0 0.0
    %8821 = vmatprep.subr.mxu0 0.0
    %8822 = vmatpush1.msra.mxu0 0.0
    %8823 = vmatprep.subr.mxu0 0.0
    %8824 = vmatpush1.msra.mxu0 0.0
    %8825 = vmatprep.subr.mxu0 0.0
    %8826 = vmatpush1.msra.mxu0 0.0
    %8827 = vmatprep.subr.mxu0 0.0
    %8828 = vmatpush1.msra.mxu0 0.0
    %8829 = vmatprep.subr.mxu0 0.0
    %8830 = vmatpush1.msra.mxu0 0.0
    %8831 = vmatprep.mubr.f32.mxu0 0.0
    %v8832 = vand.u32 %v8611, 4294901760
    %v8833 = vsub.f32 %v8611, %v8832
    %8834 = vmatmul.mubr.f32.gmra.mrb[0].mxu0 %v8833
    %v8835 = vpop.f32.mrb[0].mxu0
    %v8836 = vadd.f32 %v8762, %v8835
    %v8837 = vpop.f32.mrb[0].mxu0
    %8838 = vdwg.mxu0
    %8839 = vmatprep.subr.mxu0 0.0
    %v8840 = vand.u32 %v8608, 4294901760
    %8841 = vmatpush1.msra.mxu0 %v8840
    %8842 = vmatprep.subr.mxu0 0.0
    %8843 = vmatpush1.msra.mxu0 0.0
    %8844 = vmatprep.subr.mxu0 0.0
    %8845 = vmatpush1.msra.mxu0 0.0
    %8846 = vmatprep.subr.mxu0 0.0
    %8847 = vmatpush1.msra.mxu0 0.0
    %8848 = vmatprep.subr.mxu0 0.0
    %8849 = vmatpush1.msra.mxu0 0.0
    %8850 = vmatprep.subr.mxu0 0.0
    %8851 = vmatpush1.msra.mxu0 0.0
    %8852 = vmatprep.subr.mxu0 0.0
    %8853 = vmatpush1.msra.mxu0 0.0
    %8854 = vmatprep.subr.mxu0 0.0
    %8855 = vmatpush1.msra.mxu0 0.0
    %8856 = vmatprep.subr.mxu0 0.0
    %8857 = vmatpush1.msra.mxu0 0.0
    %8858 = vmatprep.subr.mxu0 0.0
    %8859 = vmatpush1.msra.mxu0 0.0
    %8860 = vmatprep.subr.mxu0 0.0
    %8861 = vmatpush1.msra.mxu0 0.0
    %8862 = vmatprep.subr.mxu0 0.0
    %8863 = vmatpush1.msra.mxu0 0.0
    %8864 = vmatprep.subr.mxu0 0.0
    %8865 = vmatpush1.msra.mxu0 0.0
    %8866 = vmatprep.subr.mxu0 0.0
    %8867 = vmatpush1.msra.mxu0 0.0
    %8868 = vmatprep.subr.mxu0 0.0
    %8869 = vmatpush1.msra.mxu0 0.0
    %8870 = vmatprep.subr.mxu0 0.0
    %8871 = vmatpush1.msra.mxu0 0.0
    %8872 = vmatprep.subr.mxu0 0.0
    %8873 = vmatpush1.msra.mxu0 0.0
    %8874 = vmatprep.subr.mxu0 0.0
    %8875 = vmatpush1.msra.mxu0 0.0
    %8876 = vmatprep.subr.mxu0 0.0
    %8877 = vmatpush1.msra.mxu0 0.0
    %8878 = vmatprep.subr.mxu0 0.0
    %8879 = vmatpush1.msra.mxu0 0.0
    %8880 = vmatprep.subr.mxu0 0.0
    %8881 = vmatpush1.msra.mxu0 0.0
    %8882 = vmatprep.subr.mxu0 0.0
    %8883 = vmatpush1.msra.mxu0 0.0
    %8884 = vmatprep.subr.mxu0 0.0
    %8885 = vmatpush1.msra.mxu0 0.0
    %8886 = vmatprep.subr.mxu0 0.0
    %8887 = vmatpush1.msra.mxu0 0.0
    %8888 = vmatprep.subr.mxu0 0.0
    %8889 = vmatpush1.msra.mxu0 0.0
    %8890 = vmatprep.subr.mxu0 0.0
    %8891 = vmatpush1.msra.mxu0 0.0
    %8892 = vmatprep.subr.mxu0 0.0
    %8893 = vmatpush1.msra.mxu0 0.0
    %8894 = vmatprep.subr.mxu0 0.0
    %8895 = vmatpush1.msra.mxu0 0.0
    %8896 = vmatprep.subr.mxu0 0.0
    %8897 = vmatpush1.msra.mxu0 0.0
    %8898 = vmatprep.subr.mxu0 0.0
    %8899 = vmatpush1.msra.mxu0 0.0
    %8900 = vmatprep.subr.mxu0 0.0
    %8901 = vmatpush1.msra.mxu0 0.0
    %8902 = vmatprep.subr.mxu0 0.0
    %8903 = vmatpush1.msra.mxu0 0.0
    %8904 = vmatprep.mubr.f32.mxu0 0.0
    %v8905 = vand.u32 %v8611, 4294901760
    %v8906 = vsub.f32 %v8611, %v8905
    %v8907 = vand.u32 %v8906, 4294901760
    %8908 = vmatmul.mubr.f32.gmra.mrb[0].mxu0 %v8907
    %v8909 = vpop.f32.mrb[0].mxu0
    %v8910 = vadd.f32 %v8836, %v8909
    %v8911 = vpop.f32.mrb[0].mxu0
    %8912 = vdwg.mxu0
    %8913 = vmatprep.subr.mxu0 0.0
    %v8914 = vand.u32 %v8608, 4294901760
    %v8915 = vsub.f32 %v8608, %v8914
    %v8916 = vand.u32 %v8915, 4294901760
    %8917 = vmatpush1.msra.mxu0 %v8916
    %8918 = vmatprep.subr.mxu0 0.0
    %8919 = vmatpush1.msra.mxu0 0.0
    %8920 = vmatprep.subr.mxu0 0.0
    %8921 = vmatpush1.msra.mxu0 0.0
    %8922 = vmatprep.subr.mxu0 0.0
    %8923 = vmatpush1.msra.mxu0 0.0
    %8924 = vmatprep.subr.mxu0 0.0
    %8925 = vmatpush1.msra.mxu0 0.0
    %8926 = vmatprep.subr.mxu0 0.0
    %8927 = vmatpush1.msra.mxu0 0.0
    %8928 = vmatprep.subr.mxu0 0.0
    %8929 = vmatpush1.msra.mxu0 0.0
    %8930 = vmatprep.subr.mxu0 0.0
    %8931 = vmatpush1.msra.mxu0 0.0
    %8932 = vmatprep.subr.mxu0 0.0
    %8933 = vmatpush1.msra.mxu0 0.0
    %8934 = vmatprep.subr.mxu0 0.0
    %8935 = vmatpush1.msra.mxu0 0.0
    %8936 = vmatprep.subr.mxu0 0.0
    %8937 = vmatpush1.msra.mxu0 0.0
    %8938 = vmatprep.subr.mxu0 0.0
    %8939 = vmatpush1.msra.mxu0 0.0
    %8940 = vmatprep.subr.mxu0 0.0
    %8941 = vmatpush1.msra.mxu0 0.0
    %8942 = vmatprep.subr.mxu0 0.0
    %8943 = vmatpush1.msra.mxu0 0.0
    %8944 = vmatprep.subr.mxu0 0.0
    %8945 = vmatpush1.msra.mxu0 0.0
    %8946 = vmatprep.subr.mxu0 0.0
    %8947 = vmatpush1.msra.mxu0 0.0
    %8948 = vmatprep.subr.mxu0 0.0
    %8949 = vmatpush1.msra.mxu0 0.0
    %8950 = vmatprep.subr.mxu0 0.0
    %8951 = vmatpush1.msra.mxu0 0.0
    %8952 = vmatprep.subr.mxu0 0.0
    %8953 = vmatpush1.msra.mxu0 0.0
    %8954 = vmatprep.subr.mxu0 0.0
    %8955 = vmatpush1.msra.mxu0 0.0
    %8956 = vmatprep.subr.mxu0 0.0
    %8957 = vmatpush1.msra.mxu0 0.0
    %8958 = vmatprep.subr.mxu0 0.0
    %8959 = vmatpush1.msra.mxu0 0.0
    %8960 = vmatprep.subr.mxu0 0.0
    %8961 = vmatpush1.msra.mxu0 0.0
    %8962 = vmatprep.subr.mxu0 0.0
    %8963 = vmatpush1.msra.mxu0 0.0
    %8964 = vmatprep.subr.mxu0 0.0
    %8965 = vmatpush1.msra.mxu0 0.0
    %8966 = vmatprep.subr.mxu0 0.0
    %8967 = vmatpush1.msra.mxu0 0.0
    %8968 = vmatprep.subr.mxu0 0.0
    %8969 = vmatpush1.msra.mxu0 0.0
    %8970 = vmatprep.subr.mxu0 0.0
    %8971 = vmatpush1.msra.mxu0 0.0
    %8972 = vmatprep.subr.mxu0 0.0
    %8973 = vmatpush1.msra.mxu0 0.0
    %8974 = vmatprep.subr.mxu0 0.0
    %8975 = vmatpush1.msra.mxu0 0.0
    %8976 = vmatprep.subr.mxu0 0.0
    %8977 = vmatpush1.msra.mxu0 0.0
    %8978 = vmatprep.subr.mxu0 0.0
    %8979 = vmatpush1.msra.mxu0 0.0
    %8980 = vmatprep.mubr.f32.mxu0 0.0
    %v8981 = vand.u32 %v8611, 4294901760
    %8982 = vmatmul.mubr.f32.gmra.mrb[0].mxu0 %v8981
    %v8983 = vpop.f32.mrb[0].mxu0
    %v8984 = vadd.f32 %v8910, %v8983
    %v8985 = vpop.f32.mrb[0].mxu0
    %8986 = vdwg.mxu0
    %8987 = vmatprep.subr.mxu0 0.0
    %v8988 = vand.u32 %v8608, 4294901760
    %8989 = vmatpush1.msra.mxu0 %v8988
    %8990 = vmatprep.subr.mxu0 0.0
    %8991 = vmatpush1.msra.mxu0 0.0
    %8992 = vmatprep.subr.mxu0 0.0
    %8993 = vmatpush1.msra.mxu0 0.0
    %8994 = vmatprep.subr.mxu0 0.0
    %8995 = vmatpush1.msra.mxu0 0.0
    %8996 = vmatprep.subr.mxu0 0.0
    %8997 = vmatpush1.msra.mxu0 0.0
    %8998 = vmatprep.subr.mxu0 0.0
    %8999 = vmatpush1.msra.mxu0 0.0
    %9000 = vmatprep.subr.mxu0 0.0
    %9001 = vmatpush1.msra.mxu0 0.0
    %9002 = vmatprep.subr.mxu0 0.0
    %9003 = vmatpush1.msra.mxu0 0.0
    %9004 = vmatprep.subr.mxu0 0.0
    %9005 = vmatpush1.msra.mxu0 0.0
    %9006 = vmatprep.subr.mxu0 0.0
    %9007 = vmatpush1.msra.mxu0 0.0
    %9008 = vmatprep.subr.mxu0 0.0
    %9009 = vmatpush1.msra.mxu0 0.0
    %9010 = vmatprep.subr.mxu0 0.0
    %9011 = vmatpush1.msra.mxu0 0.0
    %9012 = vmatprep.subr.mxu0 0.0
    %9013 = vmatpush1.msra.mxu0 0.0
    %9014 = vmatprep.subr.mxu0 0.0
    %9015 = vmatpush1.msra.mxu0 0.0
    %9016 = vmatprep.subr.mxu0 0.0
    %9017 = vmatpush1.msra.mxu0 0.0
    %9018 = vmatprep.subr.mxu0 0.0
    %9019 = vmatpush1.msra.mxu0 0.0
    %9020 = vmatprep.subr.mxu0 0.0
    %9021 = vmatpush1.msra.mxu0 0.0
    %9022 = vmatprep.subr.mxu0 0.0
    %9023 = vmatpush1.msra.mxu0 0.0
    %9024 = vmatprep.subr.mxu0 0.0
    %9025 = vmatpush1.msra.mxu0 0.0
    %9026 = vmatprep.subr.mxu0 0.0
    %9027 = vmatpush1.msra.mxu0 0.0
    %9028 = vmatprep.subr.mxu0 0.0
    %9029 = vmatpush1.msra.mxu0 0.0
    %9030 = vmatprep.subr.mxu0 0.0
    %9031 = vmatpush1.msra.mxu0 0.0
    %9032 = vmatprep.subr.mxu0 0.0
    %9033 = vmatpush1.msra.mxu0 0.0
    %9034 = vmatprep.subr.mxu0 0.0
    %9035 = vmatpush1.msra.mxu0 0.0
    %9036 = vmatprep.subr.mxu0 0.0
    %9037 = vmatpush1.msra.mxu0 0.0
    %9038 = vmatprep.subr.mxu0 0.0
    %9039 = vmatpush1.msra.mxu0 0.0
    %9040 = vmatprep.subr.mxu0 0.0
    %9041 = vmatpush1.msra.mxu0 0.0
    %9042 = vmatprep.subr.mxu0 0.0
    %9043 = vmatpush1.msra.mxu0 0.0
    %9044 = vmatprep.subr.mxu0 0.0
    %9045 = vmatpush1.msra.mxu0 0.0
    %9046 = vmatprep.subr.mxu0 0.0
    %9047 = vmatpush1.msra.mxu0 0.0
    %9048 = vmatprep.subr.mxu0 0.0
    %9049 = vmatpush1.msra.mxu0 0.0
    %9050 = vmatprep.subr.mxu0 0.0
    %9051 = vmatpush1.msra.mxu0 0.0
    %9052 = vmatprep.mubr.f32.mxu0 0.0
    %v9053 = vand.u32 %v8611, 4294901760
    %9054 = vmatmul.mubr.f32.gmra.mrb[0].mxu0 %v9053
    %v9055 = vpop.f32.mrb[0].mxu0
    %v9056 = vadd.f32 %v8984, %v9055
    %v9057 = vpop.f32.mrb[0].mxu0
    %9058 = vdwg.mxu0
    %9060 = vrot.lane.b32.xlu0 %v9056, 24
    %v9061 = vpop.permute.xlu0 %9060
    %9063 = vst.msk [vmem:[#allocation2 + $0x8] sm:$0xff] %vm5382, %v9061
    %v9064 = vld [vmem:[#allocation2] sm:$0xff]
    %v9065 = vld [vmem:[#allocation2 + $0x8] sm:$0xff]
    %v9067 = vsel %vm107, %v9064, 0
    %v9070 = vsel %vm107, %v9065, 0
    %9072 = vmatprep.subr.mxu0 0.0
    %v9073 = vand.u32 %v103, 4294901760
    %9074 = vmatpush1.msra.mxu0 %v9073
    %9075 = vmatprep.subr.mxu0 0.0
    %v9076 = vand.u32 %v104, 4294901760
    %9077 = vmatpush1.msra.mxu0 %v9076
    %9078 = vmatprep.subr.mxu0 0.0
    %v9079 = vand.u32 %v105, 4294901760
    %9080 = vmatpush1.msra.mxu0 %v9079
    %9081 = vmatprep.subr.mxu0 0.0
    %v9082 = vand.u32 %v106, 4294901760
    %9083 = vmatpush1.msra.mxu0 %v9082
    %9084 = vmatprep.subr.mxu0 0.0
    %9085 = vmatpush1.msra.mxu0 0.0
    %9086 = vmatprep.subr.mxu0 0.0
    %9087 = vmatpush1.msra.mxu0 0.0
    %9088 = vmatprep.subr.mxu0 0.0
    %9089 = vmatpush1.msra.mxu0 0.0
    %9090 = vmatprep.subr.mxu0 0.0
    %9091 = vmatpush1.msra.mxu0 0.0
    %9092 = vmatprep.subr.mxu0 0.0
    %9093 = vmatpush1.msra.mxu0 0.0
    %9094 = vmatprep.subr.mxu0 0.0
    %9095 = vmatpush1.msra.mxu0 0.0
    %9096 = vmatprep.subr.mxu0 0.0
    %9097 = vmatpush1.msra.mxu0 0.0
    %9098 = vmatprep.subr.mxu0 0.0
    %9099 = vmatpush1.msra.mxu0 0.0
    %9100 = vmatprep.subr.mxu0 0.0
    %9101 = vmatpush1.msra.mxu0 0.0
    %9102 = vmatprep.subr.mxu0 0.0
    %9103 = vmatpush1.msra.mxu0 0.0
    %9104 = vmatprep.subr.mxu0 0.0
    %9105 = vmatpush1.msra.mxu0 0.0
    %9106 = vmatprep.subr.mxu0 0.0
    %9107 = vmatpush1.msra.mxu0 0.0
    %9108 = vmatprep.subr.mxu0 0.0
    %9109 = vmatpush1.msra.mxu0 0.0
    %9110 = vmatprep.subr.mxu0 0.0
    %9111 = vmatpush1.msra.mxu0 0.0
    %9112 = vmatprep.subr.mxu0 0.0
    %9113 = vmatpush1.msra.mxu0 0.0
    %9114 = vmatprep.subr.mxu0 0.0
    %9115 = vmatpush1.msra.mxu0 0.0
    %9116 = vmatprep.subr.mxu0 0.0
    %9117 = vmatpush1.msra.mxu0 0.0
    %9118 = vmatprep.subr.mxu0 0.0
    %9119 = vmatpush1.msra.mxu0 0.0
    %9120 = vmatprep.subr.mxu0 0.0
    %9121 = vmatpush1.msra.mxu0 0.0
    %9122 = vmatprep.subr.mxu0 0.0
    %9123 = vmatpush1.msra.mxu0 0.0
    %9124 = vmatprep.subr.mxu0 0.0
    %9125 = vmatpush1.msra.mxu0 0.0
    %9126 = vmatprep.subr.mxu0 0.0
    %9127 = vmatpush1.msra.mxu0 0.0
    %9128 = vmatprep.subr.mxu0 0.0
    %9129 = vmatpush1.msra.mxu0 0.0
    %9130 = vmatprep.subr.mxu0 0.0
    %9131 = vmatpush1.msra.mxu0 0.0
    %9132 = vmatprep.subr.mxu0 0.0
    %9133 = vmatpush1.msra.mxu0 0.0
    %9134 = vmatprep.subr.mxu0 0.0
    %9135 = vmatpush1.msra.mxu0 0.0
    %9136 = vmatprep.subr.mxu0 0.0
    %9137 = vmatpush1.msra.mxu0 0.0
    %9138 = vmatprep.subr.mxu0 0.0
    %9139 = vmatpush1.msra.mxu0 0.0
    %9140 = vmatprep.mubr.f32.mxu0 0.0
    %v9141 = vand.u32 %v9067, 4294901760
    %v9142 = vsub.f32 %v9067, %v9141
    %v9143 = vand.u32 %v9142, 4294901760
    %v9144 = vsub.f32 %v9142, %v9143
    %v9145 = vand.u32 %v9144, 4294901760
    %9146 = vmatmul.mubr.f32.gmra.mrb[0].mxu0 %v9145
    %v9147 = vpop.f32.mrb[0].mxu0
    %v9148 = vadd.f32 0.0, %v9147
    %v9149 = vpop.f32.mrb[0].mxu0
    %9150 = vmatprep.mubr.f32.mxu0 0.0
    %v9151 = vand.u32 %v9070, 4294901760
    %v9152 = vsub.f32 %v9070, %v9151
    %v9153 = vand.u32 %v9152, 4294901760
    %v9154 = vsub.f32 %v9152, %v9153
    %v9155 = vand.u32 %v9154, 4294901760
    %9156 = vmatmul.mubr.f32.gmra.mrb[0].mxu0 %v9155
    %v9157 = vpop.f32.mrb[0].mxu0
    %v9158 = vadd.f32 0.0, %v9157
    %v9159 = vpop.f32.mrb[0].mxu0
    %9160 = vdwg.mxu0
    %9161 = vmatprep.subr.mxu0 0.0
    %v9162 = vand.u32 %v103, 4294901760
    %v9163 = vsub.f32 %v103, %v9162
    %v9164 = vand.u32 %v9163, 4294901760
    %v9165 = vsub.f32 %v9163, %v9164
    %v9166 = vand.u32 %v9165, 4294901760
    %9167 = vmatpush1.msra.mxu0 %v9166
    %9168 = vmatprep.subr.mxu0 0.0
    %v9169 = vand.u32 %v104, 4294901760
    %v9170 = vsub.f32 %v104, %v9169
    %v9171 = vand.u32 %v9170, 4294901760
    %v9172 = vsub.f32 %v9170, %v9171
    %v9173 = vand.u32 %v9172, 4294901760
    %9174 = vmatpush1.msra.mxu0 %v9173
    %9175 = vmatprep.subr.mxu0 0.0
    %v9176 = vand.u32 %v105, 4294901760
    %v9177 = vsub.f32 %v105, %v9176
    %v9178 = vand.u32 %v9177, 4294901760
    %v9179 = vsub.f32 %v9177, %v9178
    %v9180 = vand.u32 %v9179, 4294901760
    %9181 = vmatpush1.msra.mxu0 %v9180
    %9182 = vmatprep.subr.mxu0 0.0
    %v9183 = vand.u32 %v106, 4294901760
    %v9184 = vsub.f32 %v106, %v9183
    %v9185 = vand.u32 %v9184, 4294901760
    %v9186 = vsub.f32 %v9184, %v9185
    %v9187 = vand.u32 %v9186, 4294901760
    %9188 = vmatpush1.msra.mxu0 %v9187
    %9189 = vmatprep.subr.mxu0 0.0
    %9190 = vmatpush1.msra.mxu0 0.0
    %9191 = vmatprep.subr.mxu0 0.0
    %9192 = vmatpush1.msra.mxu0 0.0
    %9193 = vmatprep.subr.mxu0 0.0
    %9194 = vmatpush1.msra.mxu0 0.0
    %9195 = vmatprep.subr.mxu0 0.0
    %9196 = vmatpush1.msra.mxu0 0.0
    %9197 = vmatprep.subr.mxu0 0.0
    %9198 = vmatpush1.msra.mxu0 0.0
    %9199 = vmatprep.subr.mxu0 0.0
    %9200 = vmatpush1.msra.mxu0 0.0
    %9201 = vmatprep.subr.mxu0 0.0
    %9202 = vmatpush1.msra.mxu0 0.0
    %9203 = vmatprep.subr.mxu0 0.0
    %9204 = vmatpush1.msra.mxu0 0.0
    %9205 = vmatprep.subr.mxu0 0.0
    %9206 = vmatpush1.msra.mxu0 0.0
    %9207 = vmatprep.subr.mxu0 0.0
    %9208 = vmatpush1.msra.mxu0 0.0
    %9209 = vmatprep.subr.mxu0 0.0
    %9210 = vmatpush1.msra.mxu0 0.0
    %9211 = vmatprep.subr.mxu0 0.0
    %9212 = vmatpush1.msra.mxu0 0.0
    %9213 = vmatprep.subr.mxu0 0.0
    %9214 = vmatpush1.msra.mxu0 0.0
    %9215 = vmatprep.subr.mxu0 0.0
    %9216 = vmatpush1.msra.mxu0 0.0
    %9217 = vmatprep.subr.mxu0 0.0
    %9218 = vmatpush1.msra.mxu0 0.0
    %9219 = vmatprep.subr.mxu0 0.0
    %9220 = vmatpush1.msra.mxu0 0.0
    %9221 = vmatprep.subr.mxu0 0.0
    %9222 = vmatpush1.msra.mxu0 0.0
    %9223 = vmatprep.subr.mxu0 0.0
    %9224 = vmatpush1.msra.mxu0 0.0
    %9225 = vmatprep.subr.mxu0 0.0
    %9226 = vmatpush1.msra.mxu0 0.0
    %9227 = vmatprep.subr.mxu0 0.0
    %9228 = vmatpush1.msra.mxu0 0.0
    %9229 = vmatprep.subr.mxu0 0.0
    %9230 = vmatpush1.msra.mxu0 0.0
    %9231 = vmatprep.subr.mxu0 0.0
    %9232 = vmatpush1.msra.mxu0 0.0
    %9233 = vmatprep.subr.mxu0 0.0
    %9234 = vmatpush1.msra.mxu0 0.0
    %9235 = vmatprep.subr.mxu0 0.0
    %9236 = vmatpush1.msra.mxu0 0.0
    %9237 = vmatprep.subr.mxu0 0.0
    %9238 = vmatpush1.msra.mxu0 0.0
    %9239 = vmatprep.subr.mxu0 0.0
    %9240 = vmatpush1.msra.mxu0 0.0
    %9241 = vmatprep.subr.mxu0 0.0
    %9242 = vmatpush1.msra.mxu0 0.0
    %9243 = vmatprep.subr.mxu0 0.0
    %9244 = vmatpush1.msra.mxu0 0.0
    %9245 = vmatprep.mubr.f32.mxu0 0.0
    %v9246 = vand.u32 %v9067, 4294901760
    %9247 = vmatmul.mubr.f32.gmra.mrb[0].mxu0 %v9246
    %v9248 = vpop.f32.mrb[0].mxu0
    %v9249 = vadd.f32 %v9148, %v9248
    %v9250 = vpop.f32.mrb[0].mxu0
    %9251 = vmatprep.mubr.f32.mxu0 0.0
    %v9252 = vand.u32 %v9070, 4294901760
    %9253 = vmatmul.mubr.f32.gmra.mrb[0].mxu0 %v9252
    %v9254 = vpop.f32.mrb[0].mxu0
    %v9255 = vadd.f32 %v9158, %v9254
    %v9256 = vpop.f32.mrb[0].mxu0
    %9257 = vdwg.mxu0
    %9258 = vmatprep.subr.mxu0 0.0
    %v9259 = vand.u32 %v103, 4294901760
    %v9260 = vsub.f32 %v103, %v9259
    %9261 = vmatpush1.msra.mxu0 %v9260
    %9262 = vmatprep.subr.mxu0 0.0
    %v9263 = vand.u32 %v104, 4294901760
    %v9264 = vsub.f32 %v104, %v9263
    %9265 = vmatpush1.msra.mxu0 %v9264
    %9266 = vmatprep.subr.mxu0 0.0
    %v9267 = vand.u32 %v105, 4294901760
    %v9268 = vsub.f32 %v105, %v9267
    %9269 = vmatpush1.msra.mxu0 %v9268
    %9270 = vmatprep.subr.mxu0 0.0
    %v9271 = vand.u32 %v106, 4294901760
    %v9272 = vsub.f32 %v106, %v9271
    %9273 = vmatpush1.msra.mxu0 %v9272
    %9274 = vmatprep.subr.mxu0 0.0
    %9275 = vmatpush1.msra.mxu0 0.0
    %9276 = vmatprep.subr.mxu0 0.0
    %9277 = vmatpush1.msra.mxu0 0.0
    %9278 = vmatprep.subr.mxu0 0.0
    %9279 = vmatpush1.msra.mxu0 0.0
    %9280 = vmatprep.subr.mxu0 0.0
    %9281 = vmatpush1.msra.mxu0 0.0
    %9282 = vmatprep.subr.mxu0 0.0
    %9283 = vmatpush1.msra.mxu0 0.0
    %9284 = vmatprep.subr.mxu0 0.0
    %9285 = vmatpush1.msra.mxu0 0.0
    %9286 = vmatprep.subr.mxu0 0.0
    %9287 = vmatpush1.msra.mxu0 0.0
    %9288 = vmatprep.subr.mxu0 0.0
    %9289 = vmatpush1.msra.mxu0 0.0
    %9290 = vmatprep.subr.mxu0 0.0
    %9291 = vmatpush1.msra.mxu0 0.0
    %9292 = vmatprep.subr.mxu0 0.0
    %9293 = vmatpush1.msra.mxu0 0.0
    %9294 = vmatprep.subr.mxu0 0.0
    %9295 = vmatpush1.msra.mxu0 0.0
    %9296 = vmatprep.subr.mxu0 0.0
    %9297 = vmatpush1.msra.mxu0 0.0
    %9298 = vmatprep.subr.mxu0 0.0
    %9299 = vmatpush1.msra.mxu0 0.0
    %9300 = vmatprep.subr.mxu0 0.0
    %9301 = vmatpush1.msra.mxu0 0.0
    %9302 = vmatprep.subr.mxu0 0.0
    %9303 = vmatpush1.msra.mxu0 0.0
    %9304 = vmatprep.subr.mxu0 0.0
    %9305 = vmatpush1.msra.mxu0 0.0
    %9306 = vmatprep.subr.mxu0 0.0
    %9307 = vmatpush1.msra.mxu0 0.0
    %9308 = vmatprep.subr.mxu0 0.0
    %9309 = vmatpush1.msra.mxu0 0.0
    %9310 = vmatprep.subr.mxu0 0.0
    %9311 = vmatpush1.msra.mxu0 0.0
    %9312 = vmatprep.subr.mxu0 0.0
    %9313 = vmatpush1.msra.mxu0 0.0
    %9314 = vmatprep.subr.mxu0 0.0
    %9315 = vmatpush1.msra.mxu0 0.0
    %9316 = vmatprep.subr.mxu0 0.0
    %9317 = vmatpush1.msra.mxu0 0.0
    %9318 = vmatprep.subr.mxu0 0.0
    %9319 = vmatpush1.msra.mxu0 0.0
    %9320 = vmatprep.subr.mxu0 0.0
    %9321 = vmatpush1.msra.mxu0 0.0
    %9322 = vmatprep.subr.mxu0 0.0
    %9323 = vmatpush1.msra.mxu0 0.0
    %9324 = vmatprep.subr.mxu0 0.0
    %9325 = vmatpush1.msra.mxu0 0.0
    %9326 = vmatprep.subr.mxu0 0.0
    %9327 = vmatpush1.msra.mxu0 0.0
    %9328 = vmatprep.subr.mxu0 0.0
    %9329 = vmatpush1.msra.mxu0 0.0
    %9330 = vmatprep.mubr.f32.mxu0 0.0
    %v9331 = vand.u32 %v9067, 4294901760
    %v9332 = vsub.f32 %v9067, %v9331
    %9333 = vmatmul.mubr.f32.gmra.mrb[0].mxu0 %v9332
    %v9334 = vpop.f32.mrb[0].mxu0
    %v9335 = vadd.f32 %v9249, %v9334
    %v9336 = vpop.f32.mrb[0].mxu0
    %9337 = vmatprep.mubr.f32.mxu0 0.0
    %v9338 = vand.u32 %v9070, 4294901760
    %v9339 = vsub.f32 %v9070, %v9338
    %9340 = vmatmul.mubr.f32.gmra.mrb[0].mxu0 %v9339
    %v9341 = vpop.f32.mrb[0].mxu0
    %v9342 = vadd.f32 %v9255, %v9341
    %v9343 = vpop.f32.mrb[0].mxu0
    %9344 = vdwg.mxu0
    %9345 = vmatprep.subr.mxu0 0.0
    %v9346 = vand.u32 %v103, 4294901760
    %9347 = vmatpush1.msra.mxu0 %v9346
    %9348 = vmatprep.subr.mxu0 0.0
    %v9349 = vand.u32 %v104, 4294901760
    %9350 = vmatpush1.msra.mxu0 %v9349
    %9351 = vmatprep.subr.mxu0 0.0
    %v9352 = vand.u32 %v105, 4294901760
    %9353 = vmatpush1.msra.mxu0 %v9352
    %9354 = vmatprep.subr.mxu0 0.0
    %v9355 = vand.u32 %v106, 4294901760
    %9356 = vmatpush1.msra.mxu0 %v9355
    %9357 = vmatprep.subr.mxu0 0.0
    %9358 = vmatpush1.msra.mxu0 0.0
    %9359 = vmatprep.subr.mxu0 0.0
    %9360 = vmatpush1.msra.mxu0 0.0
    %9361 = vmatprep.subr.mxu0 0.0
    %9362 = vmatpush1.msra.mxu0 0.0
    %9363 = vmatprep.subr.mxu0 0.0
    %9364 = vmatpush1.msra.mxu0 0.0
    %9365 = vmatprep.subr.mxu0 0.0
    %9366 = vmatpush1.msra.mxu0 0.0
    %9367 = vmatprep.subr.mxu0 0.0
    %9368 = vmatpush1.msra.mxu0 0.0
    %9369 = vmatprep.subr.mxu0 0.0
    %9370 = vmatpush1.msra.mxu0 0.0
    %9371 = vmatprep.subr.mxu0 0.0
    %9372 = vmatpush1.msra.mxu0 0.0
    %9373 = vmatprep.subr.mxu0 0.0
    %9374 = vmatpush1.msra.mxu0 0.0
    %9375 = vmatprep.subr.mxu0 0.0
    %9376 = vmatpush1.msra.mxu0 0.0
    %9377 = vmatprep.subr.mxu0 0.0
    %9378 = vmatpush1.msra.mxu0 0.0
    %9379 = vmatprep.subr.mxu0 0.0
    %9380 = vmatpush1.msra.mxu0 0.0
    %9381 = vmatprep.subr.mxu0 0.0
    %9382 = vmatpush1.msra.mxu0 0.0
    %9383 = vmatprep.subr.mxu0 0.0
    %9384 = vmatpush1.msra.mxu0 0.0
    %9385 = vmatprep.subr.mxu0 0.0
    %9386 = vmatpush1.msra.mxu0 0.0
    %9387 = vmatprep.subr.mxu0 0.0
    %9388 = vmatpush1.msra.mxu0 0.0
    %9389 = vmatprep.subr.mxu0 0.0
    %9390 = vmatpush1.msra.mxu0 0.0
    %9391 = vmatprep.subr.mxu0 0.0
    %9392 = vmatpush1.msra.mxu0 0.0
    %9393 = vmatprep.subr.mxu0 0.0
    %9394 = vmatpush1.msra.mxu0 0.0
    %9395 = vmatprep.subr.mxu0 0.0
    %9396 = vmatpush1.msra.mxu0 0.0
    %9397 = vmatprep.subr.mxu0 0.0
    %9398 = vmatpush1.msra.mxu0 0.0
    %9399 = vmatprep.subr.mxu0 0.0
    %9400 = vmatpush1.msra.mxu0 0.0
    %9401 = vmatprep.subr.mxu0 0.0
    %9402 = vmatpush1.msra.mxu0 0.0
    %9403 = vmatprep.subr.mxu0 0.0
    %9404 = vmatpush1.msra.mxu0 0.0
    %9405 = vmatprep.subr.mxu0 0.0
    %9406 = vmatpush1.msra.mxu0 0.0
    %9407 = vmatprep.subr.mxu0 0.0
    %9408 = vmatpush1.msra.mxu0 0.0
    %9409 = vmatprep.subr.mxu0 0.0
    %9410 = vmatpush1.msra.mxu0 0.0
    %9411 = vmatprep.subr.mxu0 0.0
    %9412 = vmatpush1.msra.mxu0 0.0
    %9413 = vmatprep.mubr.f32.mxu0 0.0
    %v9414 = vand.u32 %v9067, 4294901760
    %v9415 = vsub.f32 %v9067, %v9414
    %v9416 = vand.u32 %v9415, 4294901760
    %9417 = vmatmul.mubr.f32.gmra.mrb[0].mxu0 %v9416
    %v9418 = vpop.f32.mrb[0].mxu0
    %v9419 = vadd.f32 %v9335, %v9418
    %v9420 = vpop.f32.mrb[0].mxu0
    %9421 = vmatprep.mubr.f32.mxu0 0.0
    %v9422 = vand.u32 %v9070, 4294901760
    %v9423 = vsub.f32 %v9070, %v9422
    %v9424 = vand.u32 %v9423, 4294901760
    %9425 = vmatmul.mubr.f32.gmra.mrb[0].mxu0 %v9424
    %v9426 = vpop.f32.mrb[0].mxu0
    %v9427 = vadd.f32 %v9342, %v9426
    %v9428 = vpop.f32.mrb[0].mxu0
    %9429 = vdwg.mxu0
    %9430 = vmatprep.subr.mxu0 0.0
    %v9431 = vand.u32 %v103, 4294901760
    %v9432 = vsub.f32 %v103, %v9431
    %v9433 = vand.u32 %v9432, 4294901760
    %9434 = vmatpush1.msra.mxu0 %v9433
    %9435 = vmatprep.subr.mxu0 0.0
    %v9436 = vand.u32 %v104, 4294901760
    %v9437 = vsub.f32 %v104, %v9436
    %v9438 = vand.u32 %v9437, 4294901760
    %9439 = vmatpush1.msra.mxu0 %v9438
    %9440 = vmatprep.subr.mxu0 0.0
    %v9441 = vand.u32 %v105, 4294901760
    %v9442 = vsub.f32 %v105, %v9441
    %v9443 = vand.u32 %v9442, 4294901760
    %9444 = vmatpush1.msra.mxu0 %v9443
    %9445 = vmatprep.subr.mxu0 0.0
    %v9446 = vand.u32 %v106, 4294901760
    %v9447 = vsub.f32 %v106, %v9446
    %v9448 = vand.u32 %v9447, 4294901760
    %9449 = vmatpush1.msra.mxu0 %v9448
    %9450 = vmatprep.subr.mxu0 0.0
    %9451 = vmatpush1.msra.mxu0 0.0
    %9452 = vmatprep.subr.mxu0 0.0
    %9453 = vmatpush1.msra.mxu0 0.0
    %9454 = vmatprep.subr.mxu0 0.0
    %9455 = vmatpush1.msra.mxu0 0.0
    %9456 = vmatprep.subr.mxu0 0.0
    %9457 = vmatpush1.msra.mxu0 0.0
    %9458 = vmatprep.subr.mxu0 0.0
    %9459 = vmatpush1.msra.mxu0 0.0
    %9460 = vmatprep.subr.mxu0 0.0
    %9461 = vmatpush1.msra.mxu0 0.0
    %9462 = vmatprep.subr.mxu0 0.0
    %9463 = vmatpush1.msra.mxu0 0.0
    %9464 = vmatprep.subr.mxu0 0.0
    %9465 = vmatpush1.msra.mxu0 0.0
    %9466 = vmatprep.subr.mxu0 0.0
    %9467 = vmatpush1.msra.mxu0 0.0
    %9468 = vmatprep.subr.mxu0 0.0
    %9469 = vmatpush1.msra.mxu0 0.0
    %9470 = vmatprep.subr.mxu0 0.0
    %9471 = vmatpush1.msra.mxu0 0.0
    %9472 = vmatprep.subr.mxu0 0.0
    %9473 = vmatpush1.msra.mxu0 0.0
    %9474 = vmatprep.subr.mxu0 0.0
    %9475 = vmatpush1.msra.mxu0 0.0
    %9476 = vmatprep.subr.mxu0 0.0
    %9477 = vmatpush1.msra.mxu0 0.0
    %9478 = vmatprep.subr.mxu0 0.0
    %9479 = vmatpush1.msra.mxu0 0.0
    %9480 = vmatprep.subr.mxu0 0.0
    %9481 = vmatpush1.msra.mxu0 0.0
    %9482 = vmatprep.subr.mxu0 0.0
    %9483 = vmatpush1.msra.mxu0 0.0
    %9484 = vmatprep.subr.mxu0 0.0
    %9485 = vmatpush1.msra.mxu0 0.0
    %9486 = vmatprep.subr.mxu0 0.0
    %9487 = vmatpush1.msra.mxu0 0.0
    %9488 = vmatprep.subr.mxu0 0.0
    %9489 = vmatpush1.msra.mxu0 0.0
    %9490 = vmatprep.subr.mxu0 0.0
    %9491 = vmatpush1.msra.mxu0 0.0
    %9492 = vmatprep.subr.mxu0 0.0
    %9493 = vmatpush1.msra.mxu0 0.0
    %9494 = vmatprep.subr.mxu0 0.0
    %9495 = vmatpush1.msra.mxu0 0.0
    %9496 = vmatprep.subr.mxu0 0.0
    %9497 = vmatpush1.msra.mxu0 0.0
    %9498 = vmatprep.subr.mxu0 0.0
    %9499 = vmatpush1.msra.mxu0 0.0
    %9500 = vmatprep.subr.mxu0 0.0
    %9501 = vmatpush1.msra.mxu0 0.0
    %9502 = vmatprep.subr.mxu0 0.0
    %9503 = vmatpush1.msra.mxu0 0.0
    %9504 = vmatprep.subr.mxu0 0.0
    %9505 = vmatpush1.msra.mxu0 0.0
    %9506 = vmatprep.mubr.f32.mxu0 0.0
    %v9507 = vand.u32 %v9067, 4294901760
    %9508 = vmatmul.mubr.f32.gmra.mrb[0].mxu0 %v9507
    %v9509 = vpop.f32.mrb[0].mxu0
    %v9510 = vadd.f32 %v9419, %v9509
    %v9511 = vpop.f32.mrb[0].mxu0
    %9512 = vmatprep.mubr.f32.mxu0 0.0
    %v9513 = vand.u32 %v9070, 4294901760
    %9514 = vmatmul.mubr.f32.gmra.mrb[0].mxu0 %v9513
    %v9515 = vpop.f32.mrb[0].mxu0
    %v9516 = vadd.f32 %v9427, %v9515
    %v9517 = vpop.f32.mrb[0].mxu0
    %9518 = vdwg.mxu0
    %9519 = vmatprep.subr.mxu0 0.0
    %v9520 = vand.u32 %v103, 4294901760
    %9521 = vmatpush1.msra.mxu0 %v9520
    %9522 = vmatprep.subr.mxu0 0.0
    %v9523 = vand.u32 %v104, 4294901760
    %9524 = vmatpush1.msra.mxu0 %v9523
    %9525 = vmatprep.subr.mxu0 0.0
    %v9526 = vand.u32 %v105, 4294901760
    %9527 = vmatpush1.msra.mxu0 %v9526
    %9528 = vmatprep.subr.mxu0 0.0
    %v9529 = vand.u32 %v106, 4294901760
    %9530 = vmatpush1.msra.mxu0 %v9529
    %9531 = vmatprep.subr.mxu0 0.0
    %9532 = vmatpush1.msra.mxu0 0.0
    %9533 = vmatprep.subr.mxu0 0.0
    %9534 = vmatpush1.msra.mxu0 0.0
    %9535 = vmatprep.subr.mxu0 0.0
    %9536 = vmatpush1.msra.mxu0 0.0
    %9537 = vmatprep.subr.mxu0 0.0
    %9538 = vmatpush1.msra.mxu0 0.0
    %9539 = vmatprep.subr.mxu0 0.0
    %9540 = vmatpush1.msra.mxu0 0.0
    %9541 = vmatprep.subr.mxu0 0.0
    %9542 = vmatpush1.msra.mxu0 0.0
    %9543 = vmatprep.subr.mxu0 0.0
    %9544 = vmatpush1.msra.mxu0 0.0
    %9545 = vmatprep.subr.mxu0 0.0
    %9546 = vmatpush1.msra.mxu0 0.0
    %9547 = vmatprep.subr.mxu0 0.0
    %9548 = vmatpush1.msra.mxu0 0.0
    %9549 = vmatprep.subr.mxu0 0.0
    %9550 = vmatpush1.msra.mxu0 0.0
    %9551 = vmatprep.subr.mxu0 0.0
    %9552 = vmatpush1.msra.mxu0 0.0
    %9553 = vmatprep.subr.mxu0 0.0
    %9554 = vmatpush1.msra.mxu0 0.0
    %9555 = vmatprep.subr.mxu0 0.0
    %9556 = vmatpush1.msra.mxu0 0.0
    %9557 = vmatprep.subr.mxu0 0.0
    %9558 = vmatpush1.msra.mxu0 0.0
    %9559 = vmatprep.subr.mxu0 0.0
    %9560 = vmatpush1.msra.mxu0 0.0
    %9561 = vmatprep.subr.mxu0 0.0
    %9562 = vmatpush1.msra.mxu0 0.0
    %9563 = vmatprep.subr.mxu0 0.0
    %9564 = vmatpush1.msra.mxu0 0.0
    %9565 = vmatprep.subr.mxu0 0.0
    %9566 = vmatpush1.msra.mxu0 0.0
    %9567 = vmatprep.subr.mxu0 0.0
    %9568 = vmatpush1.msra.mxu0 0.0
    %9569 = vmatprep.subr.mxu0 0.0
    %9570 = vmatpush1.msra.mxu0 0.0
    %9571 = vmatprep.subr.mxu0 0.0
    %9572 = vmatpush1.msra.mxu0 0.0
    %9573 = vmatprep.subr.mxu0 0.0
    %9574 = vmatpush1.msra.mxu0 0.0
    %9575 = vmatprep.subr.mxu0 0.0
    %9576 = vmatpush1.msra.mxu0 0.0
    %9577 = vmatprep.subr.mxu0 0.0
    %9578 = vmatpush1.msra.mxu0 0.0
    %9579 = vmatprep.subr.mxu0 0.0
    %9580 = vmatpush1.msra.mxu0 0.0
    %9581 = vmatprep.subr.mxu0 0.0
    %9582 = vmatpush1.msra.mxu0 0.0
    %9583 = vmatprep.subr.mxu0 0.0
    %9584 = vmatpush1.msra.mxu0 0.0
    %9585 = vmatprep.subr.mxu0 0.0
    %9586 = vmatpush1.msra.mxu0 0.0
    %9587 = vmatprep.mubr.f32.mxu0 0.0
    %v9588 = vand.u32 %v9067, 4294901760
    %9589 = vmatmul.mubr.f32.gmra.mrb[0].mxu0 %v9588
    %v9590 = vpop.f32.mrb[0].mxu0
    %v9591 = vadd.f32 %v9510, %v9590
    %v9592 = vpop.f32.mrb[0].mxu0
    %9593 = vmatprep.mubr.f32.mxu0 0.0
    %v9594 = vand.u32 %v9070, 4294901760
    %9595 = vmatmul.mubr.f32.gmra.mrb[0].mxu0 %v9594
    %v9596 = vpop.f32.mrb[0].mxu0
    %v9597 = vadd.f32 %v9516, %v9596
    %v9598 = vpop.f32.mrb[0].mxu0
    %9599 = vdwg.mxu0
    %9600 = vst.msk [vmem:[#allocation12] sm:$0xff] %vm107, %v9591
    %9601 = vst.msk [vmem:[#allocation12 + $0x8] sm:$0xff] %vm107, %v9597
    // Predicated region
    $region42: #{simple_transformer_forward.1} parent=1 // pred_check
      _
    $region43: #{simple_transformer_forward.1} parent=1 // pred_check_branch
      %9603 = sbr.rel (0) target = $region45
    $region44: #{simple_transformer_forward.1} parent=1 // pred_region
      %s9605 = ssub.s32 256, 256
      %9606 = vsyncadd [#allocation5], %s9605
      %s9607 = sshll.u32 [#allocation12], 4
      %s9608 = int_to_ptr.vmem [resolvable:$true] %s9607
      %9613 = dma.vmem_to_hbm [thread:$0]  %s9608, 256, %s5, [#allocation5], 128, 128, 8
    $region45: #{simple_transformer_forward.1} parent=1 // pred_fallthru
      _
    // Predicated region
    $region46: #{simple_transformer_forward.1} parent=1 // pred_check
      _
    $region47: #{simple_transformer_forward.1} parent=1 // pred_check_branch
      %9615 = sbr.rel (0) target = $region49
    $region48: #{simple_transformer_forward.1} parent=1 // pred_region
      %9616 = dma.done [#allocation5], 256
    $region49: #{simple_transformer_forward.1} parent=1 // pred_fallthru
      _
    %9617 = vsyncpa [#allocation4], 1
    %9618 = vsyncpa [#allocation7], 1
    %9619 = vsyncpa [#allocation10], 1
    %9620 = vsyncpa [#allocation5], 1

</llo_original>
